<compile_context>
chip_gen: v7x
topology: tpu7x:2x2x1
jax: 0.10.0
libtpu: 0.0.40
codegen_flags: <defaults>
</compile_context>

<pallas_src>
import functools

import jax
import jax.numpy as jnp
from jax.experimental import pallas as pl
from jax.experimental.pallas import tpu as pltpu

LATENT_DIM = 128
FLAT = 64 * (224 // 8) * (224 // 8)   # 50176


# ----------------------------------------------------------------------------
# Pallas kernel: tiled matmul with bias + activation (relu / sigmoid / none)
# bf16 x bf16 -> f32 accumulate, f32 epilogue, cast to out dtype.
# ----------------------------------------------------------------------------
def _mm_bias_act_kernel(x_ref, w_ref, b_ref, o_ref, *, activation, nk):
    def epilogue(acc):
        y = acc + b_ref[...]                     # bias (1, tn) broadcasts to (tm, tn)
        if activation == "relu":
            y = jnp.maximum(y, 0.0)
        elif activation == "sigmoid":
            y = jax.nn.sigmoid(y)
        o_ref[...] = y.astype(o_ref.dtype)

    part = jnp.dot(x_ref[...], w_ref[...], preferred_element_type=jnp.float32)

    if nk == 1:
        epilogue(part)
    else:
        # Output block index is independent of k -> o_ref is VMEM-resident across
        # the K axis and doubles as the f32 accumulator (no scratch needed).
        k = pl.program_id(2)

        @pl.when(k == 0)
        def _():
            o_ref[...] = jnp.zeros_like(o_ref)

        o_ref[...] += part

        @pl.when(k == nk - 1)
        def _():
            epilogue(o_ref[...])


def _pick_tile(dim, pref, align):
    """Largest divisor of `dim` that is a multiple of `align` and <= `pref`.
    Falls back to the full dim (full-extent blocks need no (8,128) alignment)."""
    best = dim
    d = align
    while d <= min(dim, pref):
        if dim % d == 0:
            best = d
        d += align
    return best


def matmul_bias_act(x, w, b, activation, out_dtype=jnp.float32):
    """y = act(x @ w + b).  x:[M,K], w:[K,N], b:[N]  ->  [M,N] (out_dtype)."""
    M, K = x.shape
    Kw, N = w.shape
    assert K == Kw
    x = x.astype(jnp.bfloat16)
    w = w.astype(jnp.bfloat16)
    b2 = b.reshape(1, N).astype(jnp.float32)

    tm = _pick_tile(M, 512, 8)      # M is always a nice multiple here (or tiny -> full)
    tk = _pick_tile(K, 512, 128)    # small K -> single full-extent block (no padding)
    tn = _pick_tile(N, 512, 128)    # small N -> single full-extent block (no padding)
    nk = K // tk
    # accumulation across k happens directly in the f32 output tile
    assert nk == 1 or out_dtype == jnp.float32

    kernel = functools.partial(_mm_bias_act_kernel, activation=activation, nk=nk)

    return pl.pallas_call(
        kernel,
        out_shape=jax.ShapeDtypeStruct((M, N), out_dtype),
        grid_spec=pltpu.PrefetchScalarGridSpec(
            num_scalar_prefetch=0,
            grid=(M // tm, N // tn, nk),
            in_specs=[
                pl.BlockSpec((tm, tk), lambda i, j, k: (i, k)),
                pl.BlockSpec((tk, tn), lambda i, j, k: (k, j)),
                pl.BlockSpec((1, tn), lambda i, j, k: (0, j)),
            ],
            out_specs=pl.BlockSpec((tm, tn), lambda i, j, k: (i, j)),
        ),
        compiler_params=pltpu.CompilerParams(
            dimension_semantics=("parallel", "parallel", "arbitrary")),
    )(x, w, b2)


# ----------------------------------------------------------------------------
# Conv (stride 2) and ConvTranspose (stride 2) in NHWC, lowered to one matmul
# ----------------------------------------------------------------------------
def conv2d_s2(x, w_mat, b, act, out_dtype=jnp.bfloat16):
    """3x3 / stride-2 / padding-1 conv.  x: NHWC, w_mat: [9*Cin, Cout] (kh,kw,ci)."""
    B, H, W, C = x.shape
    x = x.astype(jnp.bfloat16)
    Ho, Wo = H // 2, W // 2
    xp = jnp.pad(x, ((0, 0), (1, 1), (1, 1), (0, 0)))
    taps = [xp[:, kh:kh + 2 * Ho - 1:2, kw:kw + 2 * Wo - 1:2, :]
            for kh in range(3) for kw in range(3)]
    # TODO(synk): fuse this im2col into the Pallas kernel (halo'd feature-map tiles
    # + 9 in-kernel taps); the stride-2 encoder patch slabs are small (<2 MB) so it
    # is left as plain-JAX glue.
    patches = jnp.stack(taps, axis=3).reshape(B * Ho * Wo, 9 * C)
    y = matmul_bias_act(patches, w_mat, b, act, out_dtype)
    return y.reshape(B, Ho, Wo, -1)


def deconv2x(x, w_phase, b_phase, act, out_dtype=jnp.bfloat16):
    """ConvTranspose2d(k=3, s=2, p=1, output_padding=1) via sub-pixel phases.
    x: NHWC [B,H,W,Cin]; w_phase: [4*Cin, 4*Cout]; b_phase: [4*Cout].
    Output: NHWC [B, 2H, 2W, Cout]."""
    B, H, W, C = x.shape
    Cout = w_phase.shape[1] // 4
    x = x.astype(jnp.bfloat16)
    xp = jnp.pad(x, ((0, 0), (0, 1), (0, 1), (0, 0)))
    taps = jnp.concatenate(
        [x,                               # x[y,   x  ]
         xp[:, :H, 1:W + 1, :],           # x[y,   x+1]
         xp[:, 1:H + 1, :W, :],           # x[y+1, x  ]
         xp[:, 1:H + 1, 1:W + 1, :]],     # x[y+1, x+1]
        axis=-1).reshape(B * H * W, 4 * C)
    y = matmul_bias_act(taps, w_phase, b_phase, act, out_dtype)   # [B*H*W, 4*Cout]
    # interleave the 4 phases (dy, dx) into the 2x-upsampled map
    y = y.reshape(B, H, W, 2, 2, Cout).transpose(0, 1, 3, 2, 4, 5)
    return y.reshape(B, 2 * H, 2 * W, Cout)


# ----------------------------------------------------------------------------
# Parameter preparation (one-time, outside the jitted forward)
# ----------------------------------------------------------------------------
def _conv_weight_matrix(w):
    """PyTorch Conv2d weight [Cout, Cin, 3, 3] -> [9*Cin, Cout] in (kh,kw,ci) order."""
    cout = w.shape[0]
    return w.transpose(2, 3, 1, 0).reshape(-1, cout)


def _deconv_phase_weight(wt):
    """PyTorch ConvTranspose2d weight [Cin, Cout, 3, 3] -> combined sub-pixel phase
    weight [4*Cin, 4*Cout].  Tap order: x[y,x], x[y,x+1], x[y+1,x], x[y+1,x+1];
    phase (column-block) order: (dy,dx) = (0,0),(0,1),(1,0),(1,1)."""
    cin, cout = wt.shape[0], wt.shape[1]
    z = jnp.zeros((cin, cout), wt.dtype)
    w = lambda kh, kw: wt[:, :, kh, kw]
    cols = [
        jnp.concatenate([w(1, 1), z,       z,       z      ], axis=0),   # (0,0)
        jnp.concatenate([w(1, 2), w(1, 0), z,       z      ], axis=0),   # (0,1)
        jnp.concatenate([w(2, 1), z,       w(0, 1), z      ], axis=0),   # (1,0)
        jnp.concatenate([w(2, 2), w(2, 0), w(0, 2), w(0, 0)], axis=0),   # (1,1)
    ]
    return jnp.concatenate(cols, axis=1)


def prepare_params(p):
    """Re-layout PyTorch-style params into kernel-friendly form (done once):
    bf16 weights, NHWC flatten order for FC, pre-transposed FC matrices,
    phase-combined deconv weights."""
    kp = {}
    for name in ("enc_conv1", "enc_conv2", "enc_conv3"):
        kp[name + "_w"] = _conv_weight_matrix(p[name + "_w"]).astype(jnp.bfloat16)
        kp[name + "_b"] = p[name + "_b"].astype(jnp.float32)

    # fc_enc: torch weight [latent, FLAT] over NCHW flatten -> [FLAT_nhwc, latent]
    we = p["fc_enc_w"].reshape(LATENT_DIM, 64, 28, 28)
    kp["fc_enc_w"] = we.transpose(2, 3, 1, 0).reshape(FLAT, LATENT_DIM).astype(jnp.bfloat16)
    kp["fc_enc_b"] = p["fc_enc_b"].astype(jnp.float32)

    # fc_dec: torch weight [FLAT, latent] over NCHW flatten -> [latent, FLAT_nhwc]
    wd = p["fc_dec_w"].reshape(64, 28, 28, LATENT_DIM)
    kp["fc_dec_w"] = wd.transpose(3, 1, 2, 0).reshape(LATENT_DIM, FLAT).astype(jnp.bfloat16)
    kp["fc_dec_b"] = (p["fc_dec_b"].reshape(64, 28, 28)
                      .transpose(1, 2, 0).reshape(FLAT).astype(jnp.float32))

    for name in ("dec_deconv1", "dec_deconv2", "dec_deconv3"):
        kp[name + "_w"] = _deconv_phase_weight(p[name + "_w"]).astype(jnp.bfloat16)
        kp[name + "_b"] = jnp.tile(p[name + "_b"], 4).astype(jnp.float32)
    return kp


# ----------------------------------------------------------------------------
# AutoEncoder forward
# ----------------------------------------------------------------------------
def init_params(key):
    """PyTorch-layout parameters (Conv2d [Cout,Cin,kh,kw], ConvTranspose2d
    [Cin,Cout,kh,kw], Linear [out,in])."""
    ks = jax.random.split(key, 16)
    s = 0.02

    def n(k, shape):
        return s * jax.random.normal(k, shape, jnp.float32)

    return {
        "enc_conv1_w": n(ks[0], (16, 1, 3, 3)),  "enc_conv1_b": n(ks[1], (16,)),
        "enc_conv2_w": n(ks[2], (32, 16, 3, 3)), "enc_conv2_b": n(ks[3], (32,)),
        "enc_conv3_w": n(ks[4], (64, 32, 3, 3)), "enc_conv3_b": n(ks[5], (64,)),
        "fc_enc_w": n(ks[6], (LATENT_DIM, FLAT)), "fc_enc_b": n(ks[7], (LATENT_DIM,)),
        "fc_dec_w": n(ks[8], (FLAT, LATENT_DIM)), "fc_dec_b": n(ks[9], (FLAT,)),
        "dec_deconv1_w": n(ks[10], (64, 32, 3, 3)), "dec_deconv1_b": n(ks[11], (32,)),
        "dec_deconv2_w": n(ks[12], (32, 16, 3, 3)), "dec_deconv2_b": n(ks[13], (16,)),
        "dec_deconv3_w": n(ks[14], (16, 1, 3, 3)),  "dec_deconv3_b": n(ks[15], (1,)),
    }


def autoencoder_forward(kp, x):
    """x: NCHW [B, 1, 224, 224] float32 -> NCHW [B, 1, 224, 224] float32."""
    B = x.shape[0]
    h = x.reshape(B, 224, 224, 1)                 # C == 1: NCHW -> NHWC is a reshape
    # ---- encoder ----
    h = conv2d_s2(h, kp["enc_conv1_w"], kp["enc_conv1_b"], "relu")   # [B,112,112,16]
    h = conv2d_s2(h, kp["enc_conv2_w"], kp["enc_conv2_b"], "relu")   # [B, 56, 56,32]
    h = conv2d_s2(h, kp["enc_conv3_w"], kp["enc_conv3_b"], "relu")   # [B, 28, 28,64]
    h = h.reshape(B, FLAT)
    z = matmul_bias_act(h, kp["fc_enc_w"], kp["fc_enc_b"], "none",
                        out_dtype=jnp.float32)                       # [B, 128]
    # ---- decoder ----
    d = matmul_bias_act(z, kp["fc_dec_w"], kp["fc_dec_b"], "none",
                        out_dtype=jnp.float32)                       # [B, 50176]
    d = d.reshape(B, 28, 28, 64)
    d = deconv2x(d, kp["dec_deconv1_w"], kp["dec_deconv1_b"], "relu")       # [B, 56, 56,32]
    d = deconv2x(d, kp["dec_deconv2_w"], kp["dec_deconv2_b"], "relu")       # [B,112,112,16]
    d = deconv2x(d, kp["dec_deconv3_w"], kp["dec_deconv3_b"], "sigmoid",
                 out_dtype=jnp.float32)                                      # [B,224,224, 1]
    return d.reshape(B, 1, 224, 224)              # C == 1: NHWC -> NCHW is a reshape


if __name__ == "__main__":
    key = jax.random.PRNGKey(0)
    k_param, k_input = jax.random.split(key)
    params = init_params(k_param)
    kparams = prepare_params(params)   # one-time re-layout (outside the jitted fwd)

    # forward is hard-wired to 224x224 single-channel input (fc expects 64*28*28)
    x = jax.random.normal(k_input, (2, 1, 224, 224), jnp.float32)

    fwd = jax.jit(autoencoder_forward)
    out = jax.block_until_ready(fwd(kparams, x))

    assert out.shape == (2, 1, 224, 224), out.shape
    assert out.dtype == jnp.float32
    assert bool(jnp.all(jnp.isfinite(out)))
    assert bool(jnp.all((out >= 0.0) & (out <= 1.0)))   # sigmoid output range
    print("KERNEL_OK")
</pallas_src>

<mosaic_0001>
module attributes {stable_mosaic.version = 11 : i64} {
  func.func @_mm_bias_act_kernel(%arg0: i32, %arg1: i32, %arg2: i32, %arg3: memref<512x9xbf16, #tpu.memory_space<vmem>>, %arg4: memref<9x16xbf16, #tpu.memory_space<vmem>>, %arg5: memref<1x16xf32, #tpu.memory_space<vmem>>, %arg6: memref<512x16xbf16, #tpu.memory_space<vmem>>) attributes {dimension_semantics = [#tpu.dimension_semantics<parallel>, #tpu.dimension_semantics<parallel>, #tpu.dimension_semantics<arbitrary>], iteration_bounds = array<i64: 49, 1, 1>, scalar_prefetch = 0 : i64, scratch_operands = 0 : i64, tpu.core_type = #tpu.core_type<tc>, window_params = [{transform_indices = @transform_0, window_bounds = array<i64: 512, 9>}, {transform_indices = @transform_1, window_bounds = array<i64: 9, 16>}, {transform_indices = @transform_2, window_bounds = array<i64: 1, 16>}, {transform_indices = @transform_3, window_bounds = array<i64: 512, 16>}]} {
    %c0 = arith.constant 0 : index
    %c0_0 = arith.constant 0 : index
    %0 = vector.load %arg3[%c0, %c0_0] : memref<512x9xbf16, #tpu.memory_space<vmem>>, vector<512x9xbf16>
    %c0_1 = arith.constant 0 : index
    %c0_2 = arith.constant 0 : index
    %1 = vector.load %arg4[%c0_1, %c0_2] : memref<9x16xbf16, #tpu.memory_space<vmem>>, vector<9x16xbf16>
    %cst = arith.constant dense<0.000000e+00> : vector<512x16xf32>
    %2 = tpu.matmul %0, %1, %cst {dimension_numbers = #tpu.dot_dimension_numbers<[1], [0], [0], [1], [0, 0, 1, 1], [], []>} : vector<512x9xbf16>, vector<9x16xbf16>, vector<512x16xf32> -> vector<512x16xf32>
    %c0_3 = arith.constant 0 : index
    %c0_4 = arith.constant 0 : index
    %3 = vector.load %arg5[%c0_3, %c0_4] : memref<1x16xf32, #tpu.memory_space<vmem>>, vector<1x16xf32>
    %4 = vector.broadcast %3 : vector<1x16xf32> to vector<512x16xf32>
    %5 = arith.addf %2, %4 : vector<512x16xf32>
    %cst_5 = arith.constant 0.000000e+00 : f32
    %6 = vector.broadcast %cst_5 : f32 to vector<512x16xf32>
    %7 = arith.maximumf %5, %6 : vector<512x16xf32>
    %8 = arith.truncf %7 : vector<512x16xf32> to vector<512x16xbf16>
    %c0_6 = arith.constant 0 : index
    %c0_7 = arith.constant 0 : index
    %9 = vector.load %arg6[%c0_6, %c0_7] : memref<512x16xbf16, #tpu.memory_space<vmem>>, vector<512x16xbf16>
    tpu.vector_store %arg6[%c0_6, %c0_7], %8 {strides = array<i32>} : memref<512x16xbf16, #tpu.memory_space<vmem>>, vector<512x16xbf16>,
    return
  }
  func.func @transform_0(%arg0: i32, %arg1: i32, %arg2: i32) -> (i32, i32) {
    %c0_i32 = arith.constant 0 : i32
    return %arg0, %arg2 : i32, i32
  }
  func.func @transform_1(%arg0: i32, %arg1: i32, %arg2: i32) -> (i32, i32) {
    %c0_i32 = arith.constant 0 : i32
    return %arg2, %arg1 : i32, i32
  }
  func.func @transform_2(%arg0: i32, %arg1: i32, %arg2: i32) -> (i32, i32) {
    %c0_i32 = arith.constant 0 : i32
    %c0_i32_0 = arith.constant 0 : i32
    return %c0_i32, %arg1 : i32, i32
  }
  func.func @transform_3(%arg0: i32, %arg1: i32, %arg2: i32) -> (i32, i32) {
    %c0_i32 = arith.constant 0 : i32
    return %arg0, %arg1 : i32, i32
  }
}

module attributes {stable_mosaic.version = 11 : i64} {
  func.func @_mm_bias_act_kernel(%arg0: i32, %arg1: i32, %arg2: i32, %arg3: memref<448x144xbf16, #tpu.memory_space<vmem>>, %arg4: memref<144x32xbf16, #tpu.memory_space<vmem>>, %arg5: memref<1x32xf32, #tpu.memory_space<vmem>>, %arg6: memref<448x32xbf16, #tpu.memory_space<vmem>>) attributes {dimension_semantics = [#tpu.dimension_semantics<parallel>, #tpu.dimension_semantics<parallel>, #tpu.dimension_semantics<arbitrary>], iteration_bounds = array<i64: 14, 1, 1>, scalar_prefetch = 0 : i64, scratch_operands = 0 : i64, tpu.core_type = #tpu.core_type<tc>, window_params = [{transform_indices = @transform_0, window_bounds = array<i64: 448, 144>}, {transform_indices = @transform_1, window_bounds = array<i64: 144, 32>}, {transform_indices = @transform_2, window_bounds = array<i64: 1, 32>}, {transform_indices = @transform_3, window_bounds = array<i64: 448, 32>}]} {
    %c0 = arith.constant 0 : index
    %c0_0 = arith.constant 0 : index
    %0 = vector.load %arg3[%c0, %c0_0] : memref<448x144xbf16, #tpu.memory_space<vmem>>, vector<448x144xbf16>
    %c0_1 = arith.constant 0 : index
    %c0_2 = arith.constant 0 : index
    %1 = vector.load %arg4[%c0_1, %c0_2] : memref<144x32xbf16, #tpu.memory_space<vmem>>, vector<144x32xbf16>
    %cst = arith.constant dense<0.000000e+00> : vector<448x32xf32>
    %2 = tpu.matmul %0, %1, %cst {dimension_numbers = #tpu.dot_dimension_numbers<[1], [0], [0], [1], [0, 0, 1, 1], [], []>} : vector<448x144xbf16>, vector<144x32xbf16>, vector<448x32xf32> -> vector<448x32xf32>
    %c0_3 = arith.constant 0 : index
    %c0_4 = arith.constant 0 : index
    %3 = vector.load %arg5[%c0_3, %c0_4] : memref<1x32xf32, #tpu.memory_space<vmem>>, vector<1x32xf32>
    %4 = vector.broadcast %3 : vector<1x32xf32> to vector<448x32xf32>
    %5 = arith.addf %2, %4 : vector<448x32xf32>
    %cst_5 = arith.constant 0.000000e+00 : f32
    %6 = vector.broadcast %cst_5 : f32 to vector<448x32xf32>
    %7 = arith.maximumf %5, %6 : vector<448x32xf32>
    %8 = arith.truncf %7 : vector<448x32xf32> to vector<448x32xbf16>
    %c0_6 = arith.constant 0 : index
    %c0_7 = arith.constant 0 : index
    %9 = vector.load %arg6[%c0_6, %c0_7] : memref<448x32xbf16, #tpu.memory_space<vmem>>, vector<448x32xbf16>
    tpu.vector_store %arg6[%c0_6, %c0_7], %8 {strides = array<i32>} : memref<448x32xbf16, #tpu.memory_space<vmem>>, vector<448x32xbf16>,
    return
  }
  func.func @transform_0(%arg0: i32, %arg1: i32, %arg2: i32) -> (i32, i32) {
    %c0_i32 = arith.constant 0 : i32
    return %arg0, %arg2 : i32, i32
  }
  func.func @transform_1(%arg0: i32, %arg1: i32, %arg2: i32) -> (i32, i32) {
    %c0_i32 = arith.constant 0 : i32
    return %arg2, %arg1 : i32, i32
  }
  func.func @transform_2(%arg0: i32, %arg1: i32, %arg2: i32) -> (i32, i32) {
    %c0_i32 = arith.constant 0 : i32
    %c0_i32_0 = arith.constant 0 : i32
    return %c0_i32, %arg1 : i32, i32
  }
  func.func @transform_3(%arg0: i32, %arg1: i32, %arg2: i32) -> (i32, i32) {
    %c0_i32 = arith.constant 0 : i32
    return %arg0, %arg1 : i32, i32
  }
}

module attributes {stable_mosaic.version = 11 : i64} {
  func.func @_mm_bias_act_kernel(%arg0: i32, %arg1: i32, %arg2: i32, %arg3: memref<392x288xbf16, #tpu.memory_space<vmem>>, %arg4: memref<288x64xbf16, #tpu.memory_space<vmem>>, %arg5: memref<1x64xf32, #tpu.memory_space<vmem>>, %arg6: memref<392x64xbf16, #tpu.memory_space<vmem>>) attributes {dimension_semantics = [#tpu.dimension_semantics<parallel>, #tpu.dimension_semantics<parallel>, #tpu.dimension_semantics<arbitrary>], iteration_bounds = array<i64: 4, 1, 1>, scalar_prefetch = 0 : i64, scratch_operands = 0 : i64, tpu.core_type = #tpu.core_type<tc>, window_params = [{transform_indices = @transform_0, window_bounds = array<i64: 392, 288>}, {transform_indices = @transform_1, window_bounds = array<i64: 288, 64>}, {transform_indices = @transform_2, window_bounds = array<i64: 1, 64>}, {transform_indices = @transform_3, window_bounds = array<i64: 392, 64>}]} {
    %c0 = arith.constant 0 : index
    %c0_0 = arith.constant 0 : index
    %0 = vector.load %arg3[%c0, %c0_0] : memref<392x288xbf16, #tpu.memory_space<vmem>>, vector<392x288xbf16>
    %c0_1 = arith.constant 0 : index
    %c0_2 = arith.constant 0 : index
    %1 = vector.load %arg4[%c0_1, %c0_2] : memref<288x64xbf16, #tpu.memory_space<vmem>>, vector<288x64xbf16>
    %cst = arith.constant dense<0.000000e+00> : vector<392x64xf32>
    %2 = tpu.matmul %0, %1, %cst {dimension_numbers = #tpu.dot_dimension_numbers<[1], [0], [0], [1], [0, 0, 1, 1], [], []>} : vector<392x288xbf16>, vector<288x64xbf16>, vector<392x64xf32> -> vector<392x64xf32>
    %c0_3 = arith.constant 0 : index
    %c0_4 = arith.constant 0 : index
    %3 = vector.load %arg5[%c0_3, %c0_4] : memref<1x64xf32, #tpu.memory_space<vmem>>, vector<1x64xf32>
    %4 = vector.broadcast %3 : vector<1x64xf32> to vector<392x64xf32>
    %5 = arith.addf %2, %4 : vector<392x64xf32>
    %cst_5 = arith.constant 0.000000e+00 : f32
    %6 = vector.broadcast %cst_5 : f32 to vector<392x64xf32>
    %7 = arith.maximumf %5, %6 : vector<392x64xf32>
    %8 = arith.truncf %7 : vector<392x64xf32> to vector<392x64xbf16>
    %c0_6 = arith.constant 0 : index
    %c0_7 = arith.constant 0 : index
    %9 = vector.load %arg6[%c0_6, %c0_7] : memref<392x64xbf16, #tpu.memory_space<vmem>>, vector<392x64xbf16>
    tpu.vector_store %arg6[%c0_6, %c0_7], %8 {strides = array<i32>} : memref<392x64xbf16, #tpu.memory_space<vmem>>, vector<392x64xbf16>,
    return
  }
  func.func @transform_0(%arg0: i32, %arg1: i32, %arg2: i32) -> (i32, i32) {
    %c0_i32 = arith.constant 0 : i32
    return %arg0, %arg2 : i32, i32
  }
  func.func @transform_1(%arg0: i32, %arg1: i32, %arg2: i32) -> (i32, i32) {
    %c0_i32 = arith.constant 0 : i32
    return %arg2, %arg1 : i32, i32
  }
  func.func @transform_2(%arg0: i32, %arg1: i32, %arg2: i32) -> (i32, i32) {
    %c0_i32 = arith.constant 0 : i32
    %c0_i32_0 = arith.constant 0 : i32
    return %c0_i32, %arg1 : i32, i32
  }
  func.func @transform_3(%arg0: i32, %arg1: i32, %arg2: i32) -> (i32, i32) {
    %c0_i32 = arith.constant 0 : i32
    return %arg0, %arg1 : i32, i32
  }
}

module attributes {stable_mosaic.version = 11 : i64} {
  func.func @_mm_bias_act_kernel(%arg0: i32, %arg1: i32, %arg2: i32, %arg3: memref<2x512xbf16, #tpu.memory_space<vmem>>, %arg4: memref<512x128xbf16, #tpu.memory_space<vmem>>, %arg5: memref<1x128xf32, #tpu.memory_space<vmem>>, %arg6: memref<2x128xf32, #tpu.memory_space<vmem>>) attributes {dimension_semantics = [#tpu.dimension_semantics<parallel>, #tpu.dimension_semantics<parallel>, #tpu.dimension_semantics<arbitrary>], iteration_bounds = array<i64: 1, 1, 98>, scalar_prefetch = 0 : i64, scratch_operands = 0 : i64, tpu.core_type = #tpu.core_type<tc>, window_params = [{transform_indices = @transform_0, window_bounds = array<i64: 2, 512>}, {transform_indices = @transform_1, window_bounds = array<i64: 512, 128>}, {transform_indices = @transform_2, window_bounds = array<i64: 1, 128>}, {transform_indices = @transform_3, window_bounds = array<i64: 2, 128>}]} {
    %c0 = arith.constant 0 : index
    %c0_0 = arith.constant 0 : index
    %0 = vector.load %arg3[%c0, %c0_0] : memref<2x512xbf16, #tpu.memory_space<vmem>>, vector<2x512xbf16>
    %c0_1 = arith.constant 0 : index
    %c0_2 = arith.constant 0 : index
    %1 = vector.load %arg4[%c0_1, %c0_2] : memref<512x128xbf16, #tpu.memory_space<vmem>>, vector<512x128xbf16>
    %cst = arith.constant dense<0.000000e+00> : vector<2x128xf32>
    %2 = tpu.matmul %0, %1, %cst {dimension_numbers = #tpu.dot_dimension_numbers<[1], [0], [0], [1], [0, 0, 1, 1], [], []>} : vector<2x512xbf16>, vector<512x128xbf16>, vector<2x128xf32> -> vector<2x128xf32>
    %c0_i32 = arith.constant 0 : i32
    %3 = arith.cmpi eq, %arg2, %c0_i32 : i32
    %4 = arith.extui %3 : i1 to i32
    %c0_i32_3 = arith.constant 0 : i32
    %5 = arith.cmpi ne, %4, %c0_i32_3 : i32
    scf.if %5 {
      %cst_9 = arith.constant 0.000000e+00 : f32
      %12 = vector.broadcast %cst_9 : f32 to vector<2x128xf32>
      %c0_10 = arith.constant 0 : index
      %c0_11 = arith.constant 0 : index
      %13 = vector.load %arg6[%c0_10, %c0_11] : memref<2x128xf32, #tpu.memory_space<vmem>>, vector<2x128xf32>
      tpu.vector_store %arg6[%c0_10, %c0_11], %12 {strides = array<i32>} : memref<2x128xf32, #tpu.memory_space<vmem>>, vector<2x128xf32>,
    } else {
    }
    %c0_4 = arith.constant 0 : index
    %c0_5 = arith.constant 0 : index
    %6 = vector.load %arg6[%c0_4, %c0_5] : memref<2x128xf32, #tpu.memory_space<vmem>>, vector<2x128xf32>
    %7 = arith.addf %6, %2 : vector<2x128xf32>
    %c0_6 = arith.constant 0 : index
    %c0_7 = arith.constant 0 : index
    %8 = vector.load %arg6[%c0_6, %c0_7] : memref<2x128xf32, #tpu.memory_space<vmem>>, vector<2x128xf32>
    tpu.vector_store %arg6[%c0_6, %c0_7], %7 {strides = array<i32>} : memref<2x128xf32, #tpu.memory_space<vmem>>, vector<2x128xf32>,
    %c97_i32 = arith.constant 97 : i32
    %9 = arith.cmpi eq, %arg2, %c97_i32 : i32
    %10 = arith.extui %9 : i1 to i32
    %c0_i32_8 = arith.constant 0 : i32
    %11 = arith.cmpi ne, %10, %c0_i32_8 : i32
    scf.if %11 {
      %c0_9 = arith.constant 0 : index
      %c0_10 = arith.constant 0 : index
      %12 = vector.load %arg6[%c0_9, %c0_10] : memref<2x128xf32, #tpu.memory_space<vmem>>, vector<2x128xf32>
      %c0_11 = arith.constant 0 : index
      %c0_12 = arith.constant 0 : index
      %13 = vector.load %arg5[%c0_11, %c0_12] : memref<1x128xf32, #tpu.memory_space<vmem>>, vector<1x128xf32>
      %14 = vector.broadcast %13 : vector<1x128xf32> to vector<2x128xf32>
      %15 = arith.addf %12, %14 : vector<2x128xf32>
      %c0_13 = arith.constant 0 : index
      %c0_14 = arith.constant 0 : index
      %16 = vector.load %arg6[%c0_13, %c0_14] : memref<2x128xf32, #tpu.memory_space<vmem>>, vector<2x128xf32>
      tpu.vector_store %arg6[%c0_13, %c0_14], %15 {strides = array<i32>} : memref<2x128xf32, #tpu.memory_space<vmem>>, vector<2x128xf32>,
    } else {
    }
    return
  }
  func.func @transform_0(%arg0: i32, %arg1: i32, %arg2: i32) -> (i32, i32) {
    %c0_i32 = arith.constant 0 : i32
    return %arg0, %arg2 : i32, i32
  }
  func.func @transform_1(%arg0: i32, %arg1: i32, %arg2: i32) -> (i32, i32) {
    %c0_i32 = arith.constant 0 : i32
    return %arg2, %arg1 : i32, i32
  }
  func.func @transform_2(%arg0: i32, %arg1: i32, %arg2: i32) -> (i32, i32) {
    %c0_i32 = arith.constant 0 : i32
    %c0_i32_0 = arith.constant 0 : i32
    return %c0_i32, %arg1 : i32, i32
  }
  func.func @transform_3(%arg0: i32, %arg1: i32, %arg2: i32) -> (i32, i32) {
    %c0_i32 = arith.constant 0 : i32
    return %arg0, %arg1 : i32, i32
  }
}

module attributes {stable_mosaic.version = 11 : i64} {
  func.func @_mm_bias_act_kernel(%arg0: i32, %arg1: i32, %arg2: i32, %arg3: memref<2x128xbf16, #tpu.memory_space<vmem>>, %arg4: memref<128x512xbf16, #tpu.memory_space<vmem>>, %arg5: memref<1x512xf32, #tpu.memory_space<vmem>>, %arg6: memref<2x512xf32, #tpu.memory_space<vmem>>) attributes {dimension_semantics = [#tpu.dimension_semantics<parallel>, #tpu.dimension_semantics<parallel>, #tpu.dimension_semantics<arbitrary>], iteration_bounds = array<i64: 1, 98, 1>, scalar_prefetch = 0 : i64, scratch_operands = 0 : i64, tpu.core_type = #tpu.core_type<tc>, window_params = [{transform_indices = @transform_0, window_bounds = array<i64: 2, 128>}, {transform_indices = @transform_1, window_bounds = array<i64: 128, 512>}, {transform_indices = @transform_2, window_bounds = array<i64: 1, 512>}, {transform_indices = @transform_3, window_bounds = array<i64: 2, 512>}]} {
    %c0 = arith.constant 0 : index
    %c0_0 = arith.constant 0 : index
    %0 = vector.load %arg3[%c0, %c0_0] : memref<2x128xbf16, #tpu.memory_space<vmem>>, vector<2x128xbf16>
    %c0_1 = arith.constant 0 : index
    %c0_2 = arith.constant 0 : index
    %1 = vector.load %arg4[%c0_1, %c0_2] : memref<128x512xbf16, #tpu.memory_space<vmem>>, vector<128x512xbf16>
    %cst = arith.constant dense<0.000000e+00> : vector<2x512xf32>
    %2 = tpu.matmul %0, %1, %cst {dimension_numbers = #tpu.dot_dimension_numbers<[1], [0], [0], [1], [0, 0, 1, 1], [], []>} : vector<2x128xbf16>, vector<128x512xbf16>, vector<2x512xf32> -> vector<2x512xf32>
    %c0_3 = arith.constant 0 : index
    %c0_4 = arith.constant 0 : index
    %3 = vector.load %arg5[%c0_3, %c0_4] : memref<1x512xf32, #tpu.memory_space<vmem>>, vector<1x512xf32>
    %4 = vector.broadcast %3 : vector<1x512xf32> to vector<2x512xf32>
    %5 = arith.addf %2, %4 : vector<2x512xf32>
    %c0_5 = arith.constant 0 : index
    %c0_6 = arith.constant 0 : index
    %6 = vector.load %arg6[%c0_5, %c0_6] : memref<2x512xf32, #tpu.memory_space<vmem>>, vector<2x512xf32>
    tpu.vector_store %arg6[%c0_5, %c0_6], %5 {strides = array<i32>} : memref<2x512xf32, #tpu.memory_space<vmem>>, vector<2x512xf32>,
    return
  }
  func.func @transform_0(%arg0: i32, %arg1: i32, %arg2: i32) -> (i32, i32) {
    %c0_i32 = arith.constant 0 : i32
    return %arg0, %arg2 : i32, i32
  }
  func.func @transform_1(%arg0: i32, %arg1: i32, %arg2: i32) -> (i32, i32) {
    %c0_i32 = arith.constant 0 : i32
    return %arg2, %arg1 : i32, i32
  }
  func.func @transform_2(%arg0: i32, %arg1: i32, %arg2: i32) -> (i32, i32) {
    %c0_i32 = arith.constant 0 : i32
    %c0_i32_0 = arith.constant 0 : i32
    return %c0_i32, %arg1 : i32, i32
  }
  func.func @transform_3(%arg0: i32, %arg1: i32, %arg2: i32) -> (i32, i32) {
    %c0_i32 = arith.constant 0 : i32
    return %arg0, %arg1 : i32, i32
  }
}

module attributes {stable_mosaic.version = 11 : i64} {
  func.func @_mm_bias_act_kernel(%arg0: i32, %arg1: i32, %arg2: i32, %arg3: memref<392x256xbf16, #tpu.memory_space<vmem>>, %arg4: memref<256x128xbf16, #tpu.memory_space<vmem>>, %arg5: memref<1x128xf32, #tpu.memory_space<vmem>>, %arg6: memref<392x128xbf16, #tpu.memory_space<vmem>>) attributes {dimension_semantics = [#tpu.dimension_semantics<parallel>, #tpu.dimension_semantics<parallel>, #tpu.dimension_semantics<arbitrary>], iteration_bounds = array<i64: 4, 1, 1>, scalar_prefetch = 0 : i64, scratch_operands = 0 : i64, tpu.core_type = #tpu.core_type<tc>, window_params = [{transform_indices = @transform_0, window_bounds = array<i64: 392, 256>}, {transform_indices = @transform_1, window_bounds = array<i64: 256, 128>}, {transform_indices = @transform_2, window_bounds = array<i64: 1, 128>}, {transform_indices = @transform_3, window_bounds = array<i64: 392, 128>}]} {
    %c0 = arith.constant 0 : index
    %c0_0 = arith.constant 0 : index
    %0 = vector.load %arg3[%c0, %c0_0] : memref<392x256xbf16, #tpu.memory_space<vmem>>, vector<392x256xbf16>
    %c0_1 = arith.constant 0 : index
    %c0_2 = arith.constant 0 : index
    %1 = vector.load %arg4[%c0_1, %c0_2] : memref<256x128xbf16, #tpu.memory_space<vmem>>, vector<256x128xbf16>
    %cst = arith.constant dense<0.000000e+00> : vector<392x128xf32>
    %2 = tpu.matmul %0, %1, %cst {dimension_numbers = #tpu.dot_dimension_numbers<[1], [0], [0], [1], [0, 0, 1, 1], [], []>} : vector<392x256xbf16>, vector<256x128xbf16>, vector<392x128xf32> -> vector<392x128xf32>
    %c0_3 = arith.constant 0 : index
    %c0_4 = arith.constant 0 : index
    %3 = vector.load %arg5[%c0_3, %c0_4] : memref<1x128xf32, #tpu.memory_space<vmem>>, vector<1x128xf32>
    %4 = vector.broadcast %3 : vector<1x128xf32> to vector<392x128xf32>
    %5 = arith.addf %2, %4 : vector<392x128xf32>
    %cst_5 = arith.constant 0.000000e+00 : f32
    %6 = vector.broadcast %cst_5 : f32 to vector<392x128xf32>
    %7 = arith.maximumf %5, %6 : vector<392x128xf32>
    %8 = arith.truncf %7 : vector<392x128xf32> to vector<392x128xbf16>
    %c0_6 = arith.constant 0 : index
    %c0_7 = arith.constant 0 : index
    %9 = vector.load %arg6[%c0_6, %c0_7] : memref<392x128xbf16, #tpu.memory_space<vmem>>, vector<392x128xbf16>
    tpu.vector_store %arg6[%c0_6, %c0_7], %8 {strides = array<i32>} : memref<392x128xbf16, #tpu.memory_space<vmem>>, vector<392x128xbf16>,
    return
  }
  func.func @transform_0(%arg0: i32, %arg1: i32, %arg2: i32) -> (i32, i32) {
    %c0_i32 = arith.constant 0 : i32
    return %arg0, %arg2 : i32, i32
  }
  func.func @transform_1(%arg0: i32, %arg1: i32, %arg2: i32) -> (i32, i32) {
    %c0_i32 = arith.constant 0 : i32
    return %arg2, %arg1 : i32, i32
  }
  func.func @transform_2(%arg0: i32, %arg1: i32, %arg2: i32) -> (i32, i32) {
    %c0_i32 = arith.constant 0 : i32
    %c0_i32_0 = arith.constant 0 : i32
    return %c0_i32, %arg1 : i32, i32
  }
  func.func @transform_3(%arg0: i32, %arg1: i32, %arg2: i32) -> (i32, i32) {
    %c0_i32 = arith.constant 0 : i32
    return %arg0, %arg1 : i32, i32
  }
}

module attributes {stable_mosaic.version = 11 : i64} {
  func.func @_mm_bias_act_kernel(%arg0: i32, %arg1: i32, %arg2: i32, %arg3: memref<448x128xbf16, #tpu.memory_space<vmem>>, %arg4: memref<128x64xbf16, #tpu.memory_space<vmem>>, %arg5: memref<1x64xf32, #tpu.memory_space<vmem>>, %arg6: memref<448x64xbf16, #tpu.memory_space<vmem>>) attributes {dimension_semantics = [#tpu.dimension_semantics<parallel>, #tpu.dimension_semantics<parallel>, #tpu.dimension_semantics<arbitrary>], iteration_bounds = array<i64: 14, 1, 1>, scalar_prefetch = 0 : i64, scratch_operands = 0 : i64, tpu.core_type = #tpu.core_type<tc>, window_params = [{transform_indices = @transform_0, window_bounds = array<i64: 448, 128>}, {transform_indices = @transform_1, window_bounds = array<i64: 128, 64>}, {transform_indices = @transform_2, window_bounds = array<i64: 1, 64>}, {transform_indices = @transform_3, window_bounds = array<i64: 448, 64>}]} {
    %c0 = arith.constant 0 : index
    %c0_0 = arith.constant 0 : index
    %0 = vector.load %arg3[%c0, %c0_0] : memref<448x128xbf16, #tpu.memory_space<vmem>>, vector<448x128xbf16>
    %c0_1 = arith.constant 0 : index
    %c0_2 = arith.constant 0 : index
    %1 = vector.load %arg4[%c0_1, %c0_2] : memref<128x64xbf16, #tpu.memory_space<vmem>>, vector<128x64xbf16>
    %cst = arith.constant dense<0.000000e+00> : vector<448x64xf32>
    %2 = tpu.matmul %0, %1, %cst {dimension_numbers = #tpu.dot_dimension_numbers<[1], [0], [0], [1], [0, 0, 1, 1], [], []>} : vector<448x128xbf16>, vector<128x64xbf16>, vector<448x64xf32> -> vector<448x64xf32>
    %c0_3 = arith.constant 0 : index
    %c0_4 = arith.constant 0 : index
    %3 = vector.load %arg5[%c0_3, %c0_4] : memref<1x64xf32, #tpu.memory_space<vmem>>, vector<1x64xf32>
    %4 = vector.broadcast %3 : vector<1x64xf32> to vector<448x64xf32>
    %5 = arith.addf %2, %4 : vector<448x64xf32>
    %cst_5 = arith.constant 0.000000e+00 : f32
    %6 = vector.broadcast %cst_5 : f32 to vector<448x64xf32>
    %7 = arith.maximumf %5, %6 : vector<448x64xf32>
    %8 = arith.truncf %7 : vector<448x64xf32> to vector<448x64xbf16>
    %c0_6 = arith.constant 0 : index
    %c0_7 = arith.constant 0 : index
    %9 = vector.load %arg6[%c0_6, %c0_7] : memref<448x64xbf16, #tpu.memory_space<vmem>>, vector<448x64xbf16>
    tpu.vector_store %arg6[%c0_6, %c0_7], %8 {strides = array<i32>} : memref<448x64xbf16, #tpu.memory_space<vmem>>, vector<448x64xbf16>,
    return
  }
  func.func @transform_0(%arg0: i32, %arg1: i32, %arg2: i32) -> (i32, i32) {
    %c0_i32 = arith.constant 0 : i32
    return %arg0, %arg2 : i32, i32
  }
  func.func @transform_1(%arg0: i32, %arg1: i32, %arg2: i32) -> (i32, i32) {
    %c0_i32 = arith.constant 0 : i32
    return %arg2, %arg1 : i32, i32
  }
  func.func @transform_2(%arg0: i32, %arg1: i32, %arg2: i32) -> (i32, i32) {
    %c0_i32 = arith.constant 0 : i32
    %c0_i32_0 = arith.constant 0 : i32
    return %c0_i32, %arg1 : i32, i32
  }
  func.func @transform_3(%arg0: i32, %arg1: i32, %arg2: i32) -> (i32, i32) {
    %c0_i32 = arith.constant 0 : i32
    return %arg0, %arg1 : i32, i32
  }
}

module attributes {stable_mosaic.version = 11 : i64} {
  func.func @_mm_bias_act_kernel(%arg0: i32, %arg1: i32, %arg2: i32, %arg3: memref<512x64xbf16, #tpu.memory_space<vmem>>, %arg4: memref<64x4xbf16, #tpu.memory_space<vmem>>, %arg5: memref<1x4xf32, #tpu.memory_space<vmem>>, %arg6: memref<512x4xf32, #tpu.memory_space<vmem>>) attributes {dimension_semantics = [#tpu.dimension_semantics<parallel>, #tpu.dimension_semantics<parallel>, #tpu.dimension_semantics<arbitrary>], iteration_bounds = array<i64: 49, 1, 1>, scalar_prefetch = 0 : i64, scratch_operands = 0 : i64, tpu.core_type = #tpu.core_type<tc>, window_params = [{transform_indices = @transform_0, window_bounds = array<i64: 512, 64>}, {transform_indices = @transform_1, window_bounds = array<i64: 64, 4>}, {transform_indices = @transform_2, window_bounds = array<i64: 1, 4>}, {transform_indices = @transform_3, window_bounds = array<i64: 512, 4>}]} {
    %c0 = arith.constant 0 : index
    %c0_0 = arith.constant 0 : index
    %0 = vector.load %arg3[%c0, %c0_0] : memref<512x64xbf16, #tpu.memory_space<vmem>>, vector<512x64xbf16>
    %c0_1 = arith.constant 0 : index
    %c0_2 = arith.constant 0 : index
    %1 = vector.load %arg4[%c0_1, %c0_2] : memref<64x4xbf16, #tpu.memory_space<vmem>>, vector<64x4xbf16>
    %cst = arith.constant dense<0.000000e+00> : vector<512x4xf32>
    %2 = tpu.matmul %0, %1, %cst {dimension_numbers = #tpu.dot_dimension_numbers<[1], [0], [0], [1], [0, 0, 1, 1], [], []>} : vector<512x64xbf16>, vector<64x4xbf16>, vector<512x4xf32> -> vector<512x4xf32>
    %c0_3 = arith.constant 0 : index
    %c0_4 = arith.constant 0 : index
    %3 = vector.load %arg5[%c0_3, %c0_4] : memref<1x4xf32, #tpu.memory_space<vmem>>, vector<1x4xf32>
    %4 = vector.broadcast %3 : vector<1x4xf32> to vector<512x4xf32>
    %5 = arith.addf %2, %4 : vector<512x4xf32>
    %6 = arith.negf %5 : vector<512x4xf32>
    %7 = math.exp %6 : vector<512x4xf32>
    %cst_5 = arith.constant 1.000000e+00 : f32
    %8 = vector.broadcast %cst_5 : f32 to vector<512x4xf32>
    %9 = arith.addf %8, %7 : vector<512x4xf32>
    %10 = arith.divf %8, %9 : vector<512x4xf32>
    %c0_6 = arith.constant 0 : index
    %c0_7 = arith.constant 0 : index
    %11 = vector.load %arg6[%c0_6, %c0_7] : memref<512x4xf32, #tpu.memory_space<vmem>>, vector<512x4xf32>
    tpu.vector_store %arg6[%c0_6, %c0_7], %10 {strides = array<i32>} : memref<512x4xf32, #tpu.memory_space<vmem>>, vector<512x4xf32>,
    return
  }
  func.func @transform_0(%arg0: i32, %arg1: i32, %arg2: i32) -> (i32, i32) {
    %c0_i32 = arith.constant 0 : i32
    return %arg0, %arg2 : i32, i32
  }
  func.func @transform_1(%arg0: i32, %arg1: i32, %arg2: i32) -> (i32, i32) {
    %c0_i32 = arith.constant 0 : i32
    return %arg2, %arg1 : i32, i32
  }
  func.func @transform_2(%arg0: i32, %arg1: i32, %arg2: i32) -> (i32, i32) {
    %c0_i32 = arith.constant 0 : i32
    %c0_i32_0 = arith.constant 0 : i32
    return %c0_i32, %arg1 : i32, i32
  }
  func.func @transform_3(%arg0: i32, %arg1: i32, %arg2: i32) -> (i32, i32) {
    %c0_i32 = arith.constant 0 : i32
    return %arg0, %arg1 : i32, i32
  }
}

</mosaic_0001>

<llo_original>
// kernel: autoencoder_forward.8
$region0: #{autoencoder_forward.8}
  #allocation0 [shape = 'u32[]', space=smem, size = 0x4, offset = 0x4, fixed_abs, tag = 'smem constant byte address 0x4 - core index']
  #allocation1 [shape = 'u32[144,128]{1,0:T(1,128)}', space=vmem, size = 0x12000, scoped, tag = 'internal scratch']
  %s0 = inlined_call_operand.vmem [shape: bf16[25088,9], index: 0, kind: input, shape index: {}]
  %s1 = inlined_call_operand.vmem [shape: bf16[9,16], index: 1, kind: input, shape index: {}]
  %s2 = inlined_call_operand.vmem [shape: f32[1,16], index: 2, kind: input, shape index: {}]
  %s3 = inlined_call_operand.vmem [shape: bf16[25088,16], index: 3, kind: output, shape index: {}]
  %s4 = sld [smem:[#allocation0]]
  $region45: #{autoencoder_forward.8} parent=0
    _
  %s6 = ssub.s32 1, %s4
  %s7 = scalar_select 0, %s6, %s4
  loop: start=0, step=1, limit=51
  $region2: #{autoencoder_forward.8} parent=0 // loop_pre_header
    _
  $region3: #{autoencoder_forward.8} parent=0 // loop_header
    %s9 = sphi 0, %s13
    %p10 = scmp.ge.s32.totalorder %s9, 51
    %s16 = sphi 0, %s35
    %s17 = sphi 0, %s31
    %s18 = sphi 0, %s27
    %s19 = sphi 0, %s16
    %s20 = sphi 0, %s17
    %s21 = sphi 0, %s18
    %s22 = sphi 0, %s19
    %s23 = sphi 0, %s20
    %s24 = sphi 0, %s21
    %s40 = sphi 0, %s42
    %s43 = sphi 0, %s40
    %s44 = sphi 0, %s43
    %s60 = sphi 0, %s44
    %s68 = sphi 0, %s70
    %s71 = sphi 0, %s68
    %s72 = sphi 0, %s71
    %s88 = sphi 0, %s72
    %s94 = sphi 0, %s96
    %s97 = sphi 0, %s94
    %s98 = sphi 0, %s97
    %s114 = sphi 0, %s98
    %s122 = sphi 0, %s124
    %s125 = sphi 0, %s122
    %s126 = sphi 0, %s125
    %s142 = sphi 0, %s126
  $region4: #{autoencoder_forward.8} parent=0 // loop_header_branch
    %12 = sbr.rel (%p10) target = $region8
  $region5: #{autoencoder_forward.8} parent=0 // loop_body
    %s14 = ssub.s32 %s9, 1
    %s15 = ssub.s32 %s9, 2
    %s25 = sadd.s32 1, %s18
    %p26 = scmp.ge.s32.totalorder %s25, 1
    %s27 = scalar_select %p26, 0, %s25
    %s28 = sadd.s32 1, %s17
    %s29 = scalar_select %p26, %s28, %s17
    %p30 = scmp.ge.s32.totalorder %s29, 1
    %s31 = scalar_select %p30, 0, %s29
    %s32 = sadd.s32 1, %s16
    %s33 = scalar_select %p30, %s32, %s16
    %p34 = scmp.ge.s32.totalorder %s33, 49
    %s35 = scalar_select %p34, 0, %s33
    %s36 = ssub.s32 %s16, %s35
    %s37 = ssub.s32 %s18, %s27
    %s38 = sor.u32 %s36, %s37
    %p39 = scmp.eq.s32.totalorder %s38, 0
    %s41 = sadd.s32 %s40, 1
    %s42 = scalar_select %p39, %s40, %s41
    %p45 = pneg %p39
    %p46 = scmp.eq.s32.totalorder %s9, 48
    %p47 = por %p45, %p46
    %p48 = scmp.ne.s32.totalorder %s40, %s43
    %p49 = scmp.eq.s32.totalorder %s9, 0
    %p50 = por %p48, %p49
    %p51 = scmp.ne.s32.totalorder %s40, %s43
    %p52 = scmp.eq.s32.totalorder %s14, 48
    %p53 = por %p51, %p52
    %p54 = scmp.ne.s32.totalorder %s43, %s44
    %p55 = scmp.eq.s32.totalorder %s14, 0
    %p56 = por %p54, %p55
    %p57 = scmp.ne.s32.totalorder %s43, %s44
    %p58 = scmp.eq.s32.totalorder %s15, 48
    %p59 = por %p57, %p58
    %p61 = scmp.ne.s32.totalorder %s44, %s60
    %p62 = scmp.eq.s32.totalorder %s15, 0
    %p63 = por %p61, %p62
    %s64 = ssub.s32 %s18, %s27
    %s65 = ssub.s32 %s17, %s31
    %s66 = sor.u32 %s64, %s65
    %p67 = scmp.eq.s32.totalorder %s66, 0
    %s69 = sadd.s32 %s68, 1
    %s70 = scalar_select %p67, %s68, %s69
    %p73 = pneg %p67
    %p74 = scmp.eq.s32.totalorder %s9, 48
    %p75 = por %p73, %p74
    %p76 = scmp.ne.s32.totalorder %s68, %s71
    %p77 = scmp.eq.s32.totalorder %s9, 0
    %p78 = por %p76, %p77
    %p79 = scmp.ne.s32.totalorder %s68, %s71
    %p80 = scmp.eq.s32.totalorder %s14, 48
    %p81 = por %p79, %p80
    %p82 = scmp.ne.s32.totalorder %s71, %s72
    %p83 = scmp.eq.s32.totalorder %s14, 0
    %p84 = por %p82, %p83
    %p85 = scmp.ne.s32.totalorder %s71, %s72
    %p86 = scmp.eq.s32.totalorder %s15, 48
    %p87 = por %p85, %p86
    %p89 = scmp.ne.s32.totalorder %s72, %s88
    %p90 = scmp.eq.s32.totalorder %s15, 0
    %p91 = por %p89, %p90
    %s92 = ssub.s32 %s17, %s31
    %p93 = scmp.eq.s32.totalorder %s92, 0
    %s95 = sadd.s32 %s94, 1
    %s96 = scalar_select %p93, %s94, %s95
    %p99 = pneg %p93
    %p100 = scmp.eq.s32.totalorder %s9, 48
    %p101 = por %p99, %p100
    %p102 = scmp.ne.s32.totalorder %s94, %s97
    %p103 = scmp.eq.s32.totalorder %s9, 0
    %p104 = por %p102, %p103
    %p105 = scmp.ne.s32.totalorder %s94, %s97
    %p106 = scmp.eq.s32.totalorder %s14, 48
    %p107 = por %p105, %p106
    %p108 = scmp.ne.s32.totalorder %s97, %s98
    %p109 = scmp.eq.s32.totalorder %s14, 0
    %p110 = por %p108, %p109
    %p111 = scmp.ne.s32.totalorder %s97, %s98
    %p112 = scmp.eq.s32.totalorder %s15, 48
    %p113 = por %p111, %p112
    %p115 = scmp.ne.s32.totalorder %s98, %s114
    %p116 = scmp.eq.s32.totalorder %s15, 0
    %p117 = por %p115, %p116
    %s118 = ssub.s32 %s16, %s35
    %s119 = ssub.s32 %s17, %s31
    %s120 = sor.u32 %s118, %s119
    %p121 = scmp.eq.s32.totalorder %s120, 0
    %s123 = sadd.s32 %s122, 1
    %s124 = scalar_select %p121, %s122, %s123
    %p127 = pneg %p121
    %p128 = scmp.eq.s32.totalorder %s9, 48
    %p129 = por %p127, %p128
    %p130 = scmp.ne.s32.totalorder %s122, %s125
    %p131 = scmp.eq.s32.totalorder %s9, 0
    %p132 = por %p130, %p131
    %p133 = scmp.ne.s32.totalorder %s122, %s125
    %p134 = scmp.eq.s32.totalorder %s14, 48
    %p135 = por %p133, %p134
    %p136 = scmp.ne.s32.totalorder %s125, %s126
    %p137 = scmp.eq.s32.totalorder %s14, 0
    %p138 = por %p136, %p137
    %p139 = scmp.ne.s32.totalorder %s125, %s126
    %p140 = scmp.eq.s32.totalorder %s15, 48
    %p141 = por %p139, %p140
    %p143 = scmp.ne.s32.totalorder %s126, %s142
    %p144 = scmp.eq.s32.totalorder %s15, 0
    %p145 = por %p143, %p144
    %p146 = scmp.le.s32.totalorder 1, %s9
    %p147 = scmp.lt.s32.totalorder %s9, 50
    %p148 = pnand %p146, %p147
    %p149 = pneg %p148
    // Predicated region
    $region9: #{autoencoder_forward.8} parent=5 // pred_check
      _
    $region10: #{autoencoder_forward.8} parent=5 // pred_check_branch
      %151 = sbr.rel (%p148) target = $region12
    $region11: #{autoencoder_forward.8} parent=5 // pred_region
      %s152 = ssub.s32 %s9, 1
      // Predicated region
      $region13: #{autoencoder_forward.8} parent=11 // pred_check
        %p153 = pneg %p84
      $region14: #{autoencoder_forward.8} parent=11 // pred_check_branch
        %155 = sbr.rel (%p153) target = $region16
      $region15: #{autoencoder_forward.8} parent=11 // pred_region
        %s156 = smul.u32 2, %s21
        %p157 = scmp.lt.s32.totalorder %s156, 1
        %s158 = scalar_select %p157, %s156, 1
        %p159 = scmp.lt.s32.totalorder %s20, 0
        %s160 = scalar_select %p159, %s20, 0
        %s161 = sadd.s32 %s160, %s158
        %s162 = smul.addr %s161, 4
        %s163 = scalar_lea.vmem %s1, %s162
        %s164 = smul.u32 2, %s21
      $region16: #{autoencoder_forward.8} parent=11 // pred_fallthru
        _
      // Predicated region
      $region17: #{autoencoder_forward.8} parent=11 // pred_check
        %p165 = pneg %p110
      $region18: #{autoencoder_forward.8} parent=11 // pred_check_branch
        %167 = sbr.rel (%p165) target = $region20
      $region19: #{autoencoder_forward.8} parent=11 // pred_region
        %p168 = scmp.lt.s32.totalorder %s20, 0
        %s169 = scalar_select %p168, %s20, 0
        %s170 = scalar_lea.vmem %s2, %s169
      $region20: #{autoencoder_forward.8} parent=11 // pred_fallthru
        _
    $region12: #{autoencoder_forward.8} parent=5 // pred_fallthru
      _
    %p171 = scmp.lt.s32.totalorder %s9, 49
    // Predicated region
    $region21: #{autoencoder_forward.8} parent=5 // pred_check
      %p172 = pneg %p171
    $region22: #{autoencoder_forward.8} parent=5 // pred_check_branch
      %174 = sbr.rel (%p172) target = $region24
    $region23: #{autoencoder_forward.8} parent=5 // pred_region
      // Predicated region
      $region25: #{autoencoder_forward.8} parent=23 // pred_check
        %p175 = pneg %p50
      $region26: #{autoencoder_forward.8} parent=23 // pred_check_branch
        %177 = sbr.rel (%p175) target = $region28
      $region27: #{autoencoder_forward.8} parent=23 // pred_region
        %s178 = smul.u32 64, %s16
        %p179 = scmp.lt.s32.totalorder %s178, 3135
        %s180 = scalar_select %p179, %s178, 3135
        %p181 = scmp.lt.s32.totalorder %s18, 0
        %s182 = scalar_select %p181, %s18, 0
        %s183 = sadd.s32 %s182, %s180
        %s184 = smul.addr %s183, 4
        %s185 = scalar_lea.vmem %s0, %s184
        %s186 = smul.u32 64, %s16
      $region28: #{autoencoder_forward.8} parent=23 // pred_fallthru
        _
    $region24: #{autoencoder_forward.8} parent=5 // pred_fallthru
      _
    %p187 = scmp.le.s32.totalorder 1, %s9
    %p188 = scmp.lt.s32.totalorder %s9, 50
    %p189 = pnand %p187, %p188
    %p190 = pneg %p189
    // Predicated region
    $region29: #{autoencoder_forward.8} parent=5 // pred_check
      _
    $region30: #{autoencoder_forward.8} parent=5 // pred_check_branch
      %192 = sbr.rel (%p189) target = $region32
    $region31: #{autoencoder_forward.8} parent=5 // pred_region
      %s193 = ssub.s32 %s9, 1
      %s194 = smul.u32 64, %s19
      %p195 = scmp.lt.s32.totalorder %s194, 3135
      %s196 = scalar_select %p195, %s194, 3135
      %p197 = scmp.lt.s32.totalorder %s21, 0
      %s198 = scalar_select %p197, %s21, 0
      %s199 = sadd.s32 %s198, %s196
      %s200 = smul.addr %s199, 4
      %s201 = scalar_lea.vmem %s0, %s200
      %p202 = pneg %p56
      %p203 = pneg %p53
      %s204 = smul.u32 2, %s21
      %p205 = scmp.lt.s32.totalorder %s204, 1
      %s206 = scalar_select %p205, %s204, 1
      %p207 = scmp.lt.s32.totalorder %s20, 0
      %s208 = scalar_select %p207, %s20, 0
      %s209 = sadd.s32 %s208, %s206
      %s210 = smul.addr %s209, 4
      %s211 = scalar_lea.vmem %s1, %s210
      %p212 = pneg %p84
      %p213 = pneg %p81
      %p214 = scmp.lt.s32.totalorder %s20, 0
      %s215 = scalar_select %p214, %s20, 0
      %s216 = scalar_lea.vmem %s2, %s215
      %p217 = pneg %p110
      %p218 = pneg %p107
      %p219 = pneg %p138
      %p220 = pneg %p135
      %s221 = smul.u32 64, %s19
      %p222 = scmp.lt.s32.totalorder %s221, 3135
      %s223 = scalar_select %p222, %s221, 3135
      %p224 = scmp.lt.s32.totalorder %s20, 0
      %s225 = scalar_select %p224, %s20, 0
      %s226 = sadd.s32 %s225, %s223
      %s227 = smul.addr %s226, 4
      %s228 = scalar_lea.vmem %s3, %s227
      %s229 = smul.u32 64, %s19
      %p230 = scmp.lt.s32.totalorder %s229, 3135
      %s231 = scalar_select %p230, %s229, 3135
      %p232 = scmp.lt.s32.totalorder %s21, 0
      %s233 = scalar_select %p232, %s21, 0
      %s234 = sadd.s32 %s233, %s231
      %s235 = smul.addr %s234, 4
      %s236 = scalar_lea.vmem %s0, %s235
      %s237 = smul.u32 64, %s19
      %s238 = smul.u32 2, %s21
      %p239 = scmp.lt.s32.totalorder %s238, 1
      %s240 = scalar_select %p239, %s238, 1
      %p241 = scmp.lt.s32.totalorder %s20, 0
      %s242 = scalar_select %p241, %s20, 0
      %s243 = sadd.s32 %s242, %s240
      %s244 = smul.addr %s243, 4
      %s245 = scalar_lea.vmem %s1, %s244
      %s246 = smul.u32 2, %s21
      %p247 = scmp.lt.s32.totalorder %s20, 0
      %s248 = scalar_select %p247, %s20, 0
      %s249 = scalar_lea.vmem %s2, %s248
      %s250 = smul.u32 64, %s19
      %p251 = scmp.lt.s32.totalorder %s250, 3135
      %s252 = scalar_select %p251, %s250, 3135
      %p253 = scmp.lt.s32.totalorder %s20, 0
      %s254 = scalar_select %p253, %s20, 0
      %s255 = sadd.s32 %s254, %s252
      %s256 = smul.addr %s255, 4
      %s257 = scalar_lea.vmem %s3, %s256
      %s258 = smul.u32 64, %s19
      %v260 = vld [vmem:[%s236] sm:$0xf]
      %v261 = vld [vmem:[%s236 + $0x4] sm:$0xf]
      %v262 = vld [vmem:[%s236 + $0x8] sm:$0xf]
      %v263 = vld [vmem:[%s236 + $0xc] sm:$0xf]
      %v264 = vld [vmem:[%s236 + $0x10] sm:$0xf]
      %v265 = vld [vmem:[%s236 + $0x14] sm:$0xf]
      %v266 = vld [vmem:[%s236 + $0x18] sm:$0xf]
      %v267 = vld [vmem:[%s236 + $0x1c] sm:$0xf]
      %v268 = vld [vmem:[%s236 + $0x20] sm:$0xf]
      %v269 = vld [vmem:[%s236 + $0x24] sm:$0xf]
      %v270 = vld [vmem:[%s236 + $0x28] sm:$0xf]
      %v271 = vld [vmem:[%s236 + $0x2c] sm:$0xf]
      %v272 = vld [vmem:[%s236 + $0x30] sm:$0xf]
      %v273 = vld [vmem:[%s236 + $0x34] sm:$0xf]
      %v274 = vld [vmem:[%s236 + $0x38] sm:$0xf]
      %v275 = vld [vmem:[%s236 + $0x3c] sm:$0xf]
      %v276 = vld [vmem:[%s236 + $0x40] sm:$0xf]
      %v277 = vld [vmem:[%s236 + $0x44] sm:$0xf]
      %v278 = vld [vmem:[%s236 + $0x48] sm:$0xf]
      %v279 = vld [vmem:[%s236 + $0x4c] sm:$0xf]
      %v280 = vld [vmem:[%s236 + $0x50] sm:$0xf]
      %v281 = vld [vmem:[%s236 + $0x54] sm:$0xf]
      %v282 = vld [vmem:[%s236 + $0x58] sm:$0xf]
      %v283 = vld [vmem:[%s236 + $0x5c] sm:$0xf]
      %v284 = vld [vmem:[%s236 + $0x60] sm:$0xf]
      %v285 = vld [vmem:[%s236 + $0x64] sm:$0xf]
      %v286 = vld [vmem:[%s236 + $0x68] sm:$0xf]
      %v287 = vld [vmem:[%s236 + $0x6c] sm:$0xf]
      %v288 = vld [vmem:[%s236 + $0x70] sm:$0xf]
      %v289 = vld [vmem:[%s236 + $0x74] sm:$0xf]
      %v290 = vld [vmem:[%s236 + $0x78] sm:$0xf]
      %v291 = vld [vmem:[%s236 + $0x7c] sm:$0xf]
      %v292 = vld [vmem:[%s236 + $0x80] sm:$0xf]
      %v293 = vld [vmem:[%s236 + $0x84] sm:$0xf]
      %v294 = vld [vmem:[%s236 + $0x88] sm:$0xf]
      %v295 = vld [vmem:[%s236 + $0x8c] sm:$0xf]
      %v296 = vld [vmem:[%s236 + $0x90] sm:$0xf]
      %v297 = vld [vmem:[%s236 + $0x94] sm:$0xf]
      %v298 = vld [vmem:[%s236 + $0x98] sm:$0xf]
      %v299 = vld [vmem:[%s236 + $0x9c] sm:$0xf]
      %v300 = vld [vmem:[%s236 + $0xa0] sm:$0xf]
      %v301 = vld [vmem:[%s236 + $0xa4] sm:$0xf]
      %v302 = vld [vmem:[%s236 + $0xa8] sm:$0xf]
      %v303 = vld [vmem:[%s236 + $0xac] sm:$0xf]
      %v304 = vld [vmem:[%s236 + $0xb0] sm:$0xf]
      %v305 = vld [vmem:[%s236 + $0xb4] sm:$0xf]
      %v306 = vld [vmem:[%s236 + $0xb8] sm:$0xf]
      %v307 = vld [vmem:[%s236 + $0xbc] sm:$0xf]
      %v308 = vld [vmem:[%s236 + $0xc0] sm:$0xf]
      %v309 = vld [vmem:[%s236 + $0xc4] sm:$0xf]
      %v310 = vld [vmem:[%s236 + $0xc8] sm:$0xf]
      %v311 = vld [vmem:[%s236 + $0xcc] sm:$0xf]
      %v312 = vld [vmem:[%s236 + $0xd0] sm:$0xf]
      %v313 = vld [vmem:[%s236 + $0xd4] sm:$0xf]
      %v314 = vld [vmem:[%s236 + $0xd8] sm:$0xf]
      %v315 = vld [vmem:[%s236 + $0xdc] sm:$0xf]
      %v316 = vld [vmem:[%s236 + $0xe0] sm:$0xf]
      %v317 = vld [vmem:[%s236 + $0xe4] sm:$0xf]
      %v318 = vld [vmem:[%s236 + $0xe8] sm:$0xf]
      %v319 = vld [vmem:[%s236 + $0xec] sm:$0xf]
      %v320 = vld [vmem:[%s236 + $0xf0] sm:$0xf]
      %v321 = vld [vmem:[%s236 + $0xf4] sm:$0xf]
      %v322 = vld [vmem:[%s236 + $0xf8] sm:$0xf]
      %v323 = vld [vmem:[%s236 + $0xfc] sm:$0xf]
      %v324 = vld [vmem:[%s245] sm:$0xf]
      %v325 = vld [vmem:[%s245 + $0x4] sm:$0x1]
      %v326 = vld [vmem:[%s249] sm:$0x1]
      %v328 = vlaneseq
      %v329 = vshrl.u32 %v328, 7
      %v330 = vsub.s32 0, %v329
      %v331 = vrot.slane %v326, %v330
      %v397 = vunpack.c.l.b16 %v260
      %v398 = vunpack.c.l.b16 %v261
      %v399 = vunpack.c.l.b16 %v262
      %v400 = vunpack.c.l.b16 %v263
      %v401 = vunpack.c.l.b16 %v264
      %v402 = vunpack.c.l.b16 %v265
      %v403 = vunpack.c.l.b16 %v266
      %v404 = vunpack.c.l.b16 %v267
      %v405 = vunpack.c.l.b16 %v268
      %v406 = vunpack.c.l.b16 %v269
      %v407 = vunpack.c.l.b16 %v270
      %v408 = vunpack.c.l.b16 %v271
      %v409 = vunpack.c.l.b16 %v272
      %v410 = vunpack.c.l.b16 %v273
      %v411 = vunpack.c.l.b16 %v274
      %v412 = vunpack.c.l.b16 %v275
      %v413 = vunpack.c.l.b16 %v276
      %v414 = vunpack.c.l.b16 %v277
      %v415 = vunpack.c.l.b16 %v278
      %v416 = vunpack.c.l.b16 %v279
      %v417 = vunpack.c.l.b16 %v280
      %v418 = vunpack.c.l.b16 %v281
      %v419 = vunpack.c.l.b16 %v282
      %v420 = vunpack.c.l.b16 %v283
      %v421 = vunpack.c.l.b16 %v284
      %v422 = vunpack.c.l.b16 %v285
      %v423 = vunpack.c.l.b16 %v286
      %v424 = vunpack.c.l.b16 %v287
      %v425 = vunpack.c.l.b16 %v288
      %v426 = vunpack.c.l.b16 %v289
      %v427 = vunpack.c.l.b16 %v290
      %v428 = vunpack.c.l.b16 %v291
      %v429 = vunpack.c.l.b16 %v292
      %v430 = vunpack.c.l.b16 %v293
      %v431 = vunpack.c.l.b16 %v294
      %v432 = vunpack.c.l.b16 %v295
      %v433 = vunpack.c.l.b16 %v296
      %v434 = vunpack.c.l.b16 %v297
      %v435 = vunpack.c.l.b16 %v298
      %v436 = vunpack.c.l.b16 %v299
      %v437 = vunpack.c.l.b16 %v300
      %v438 = vunpack.c.l.b16 %v301
      %v439 = vunpack.c.l.b16 %v302
      %v440 = vunpack.c.l.b16 %v303
      %v441 = vunpack.c.l.b16 %v304
      %v442 = vunpack.c.l.b16 %v305
      %v443 = vunpack.c.l.b16 %v306
      %v444 = vunpack.c.l.b16 %v307
      %v445 = vunpack.c.l.b16 %v308
      %v446 = vunpack.c.l.b16 %v309
      %v447 = vunpack.c.l.b16 %v310
      %v448 = vunpack.c.l.b16 %v311
      %v449 = vunpack.c.l.b16 %v312
      %v450 = vunpack.c.l.b16 %v313
      %v451 = vunpack.c.l.b16 %v314
      %v452 = vunpack.c.l.b16 %v315
      %v453 = vunpack.c.l.b16 %v316
      %v454 = vunpack.c.l.b16 %v317
      %v455 = vunpack.c.l.b16 %v318
      %v456 = vunpack.c.l.b16 %v319
      %v457 = vunpack.c.l.b16 %v320
      %v458 = vunpack.c.l.b16 %v321
      %v459 = vunpack.c.l.b16 %v322
      %v460 = vunpack.c.l.b16 %v323
      %v461 = vpack.c.b16 %v398, %v397
      %v462 = vpack.c.b16 %v400, %v399
      %v463 = vpack.c.b16 %v402, %v401
      %v464 = vpack.c.b16 %v404, %v403
      %v465 = vpack.c.b16 %v406, %v405
      %v466 = vpack.c.b16 %v408, %v407
      %v467 = vpack.c.b16 %v410, %v409
      %v468 = vpack.c.b16 %v412, %v411
      %v469 = vpack.c.b16 %v414, %v413
      %v470 = vpack.c.b16 %v416, %v415
      %v471 = vpack.c.b16 %v418, %v417
      %v472 = vpack.c.b16 %v420, %v419
      %v473 = vpack.c.b16 %v422, %v421
      %v474 = vpack.c.b16 %v424, %v423
      %v475 = vpack.c.b16 %v426, %v425
      %v476 = vpack.c.b16 %v428, %v427
      %v477 = vpack.c.b16 %v430, %v429
      %v478 = vpack.c.b16 %v432, %v431
      %v479 = vpack.c.b16 %v434, %v433
      %v480 = vpack.c.b16 %v436, %v435
      %v481 = vpack.c.b16 %v438, %v437
      %v482 = vpack.c.b16 %v440, %v439
      %v483 = vpack.c.b16 %v442, %v441
      %v484 = vpack.c.b16 %v444, %v443
      %v485 = vpack.c.b16 %v446, %v445
      %v486 = vpack.c.b16 %v448, %v447
      %v487 = vpack.c.b16 %v450, %v449
      %v488 = vpack.c.b16 %v452, %v451
      %v489 = vpack.c.b16 %v454, %v453
      %v490 = vpack.c.b16 %v456, %v455
      %v491 = vpack.c.b16 %v458, %v457
      %v492 = vpack.c.b16 %v460, %v459
      %v495 = vunpack.c.l.b16 %v324
      %v496 = vunpack.c.l.b16 %v325
      %v497 = vpack.c.b16 %v496, %v495
      %vm498 = vcmask 72704
      %v500 = vsel %vm498, %v461, 0
      %v503 = vsel %vm498, %v462, 0
      %v506 = vsel %vm498, %v463, 0
      %v509 = vsel %vm498, %v464, 0
      %v512 = vsel %vm498, %v465, 0
      %v515 = vsel %vm498, %v466, 0
      %v518 = vsel %vm498, %v467, 0
      %v521 = vsel %vm498, %v468, 0
      %v524 = vsel %vm498, %v469, 0
      %v527 = vsel %vm498, %v470, 0
      %v530 = vsel %vm498, %v471, 0
      %v533 = vsel %vm498, %v472, 0
      %v536 = vsel %vm498, %v473, 0
      %v539 = vsel %vm498, %v474, 0
      %v542 = vsel %vm498, %v475, 0
      %v545 = vsel %vm498, %v476, 0
      %v548 = vsel %vm498, %v477, 0
      %v551 = vsel %vm498, %v478, 0
      %v554 = vsel %vm498, %v479, 0
      %v557 = vsel %vm498, %v480, 0
      %v560 = vsel %vm498, %v481, 0
      %v563 = vsel %vm498, %v482, 0
      %v566 = vsel %vm498, %v483, 0
      %v569 = vsel %vm498, %v484, 0
      %v572 = vsel %vm498, %v485, 0
      %v575 = vsel %vm498, %v486, 0
      %v578 = vsel %vm498, %v487, 0
      %v581 = vsel %vm498, %v488, 0
      %v584 = vsel %vm498, %v489, 0
      %v587 = vsel %vm498, %v490, 0
      %v590 = vsel %vm498, %v491, 0
      %v593 = vsel %vm498, %v492, 0
      %vm595 = vcmask 1043456
      %vm596 = vcmask 1044480
      %v597 = vsel %vm595, 4294967295, 65535
      %v598 = vsel %vm596, %v597, 0
      %v600 = vand.u32 %v497, %v598
      %602 = vmatprep.subr.bf16.mxu0 0
      %603 = vmatpush1.bf16.msra.mxu0 %v600
      %604 = vmatprep.subr.bf16.mxu0 0
      %605 = vmatpush1.bf16.msra.mxu0 0
      %606 = vmatprep.subr.bf16.mxu0 0
      %607 = vmatpush1.bf16.msra.mxu0 0
      %608 = vmatprep.subr.bf16.mxu0 0
      %609 = vmatpush1.bf16.msra.mxu0 0
      %610 = vmatprep.subr.bf16.mxu0 0
      %611 = vmatpush1.bf16.msra.mxu0 0
      %612 = vmatprep.subr.bf16.mxu0 0
      %613 = vmatpush1.bf16.msra.mxu0 0
      %614 = vmatprep.subr.bf16.mxu0 0
      %615 = vmatpush1.bf16.msra.mxu0 0
      %616 = vmatprep.subr.bf16.mxu0 0
      %617 = vmatpush1.bf16.msra.mxu0 0
      %618 = vmatprep.subr.bf16.mxu0 0
      %619 = vmatpush1.bf16.msra.mxu0 0
      %620 = vmatprep.subr.bf16.mxu0 0
      %621 = vmatpush1.bf16.msra.mxu0 0
      %622 = vmatprep.subr.bf16.mxu0 0
      %623 = vmatpush1.bf16.msra.mxu0 0
      %624 = vmatprep.subr.bf16.mxu0 0
      %625 = vmatpush1.bf16.msra.mxu0 0
      %626 = vmatprep.subr.bf16.mxu0 0
      %627 = vmatpush1.bf16.msra.mxu0 0
      %628 = vmatprep.subr.bf16.mxu0 0
      %629 = vmatpush1.bf16.msra.mxu0 0
      %630 = vmatprep.subr.bf16.mxu0 0
      %631 = vmatpush1.bf16.msra.mxu0 0
      %632 = vmatprep.subr.bf16.mxu0 0
      %633 = vmatpush1.bf16.msra.mxu0 0
      %634 = vmatprep.mubr.bf16.mxu0 0
      %635 = vmatmul.mubr.bf16.gmra.mrb[0].mxu0 %v500
      %v636 = vpop.f32.mrb[0].mxu0
      %v637 = vadd.f32 %v331, %v636
      %v638 = vpop.f32.mrb[0].mxu0
      %v639 = vpop.f32.mrb[0].mxu0
      %v640 = vadd.f32 %v331, %v639
      %v641 = vpop.f32.mrb[0].mxu0
      %642 = vmatprep.mubr.bf16.mxu0 0
      %643 = vmatmul.mubr.bf16.gmra.mrb[0].mxu0 %v503
      %v644 = vpop.f32.mrb[0].mxu0
      %v645 = vadd.f32 %v331, %v644
      %v646 = vpop.f32.mrb[0].mxu0
      %v647 = vpop.f32.mrb[0].mxu0
      %v648 = vadd.f32 %v331, %v647
      %v649 = vpop.f32.mrb[0].mxu0
      %650 = vmatprep.mubr.bf16.mxu0 0
      %651 = vmatmul.mubr.bf16.gmra.mrb[0].mxu0 %v506
      %v652 = vpop.f32.mrb[0].mxu0
      %v653 = vadd.f32 %v331, %v652
      %v654 = vpop.f32.mrb[0].mxu0
      %v655 = vpop.f32.mrb[0].mxu0
      %v656 = vadd.f32 %v331, %v655
      %v657 = vpop.f32.mrb[0].mxu0
      %658 = vmatprep.mubr.bf16.mxu0 0
      %659 = vmatmul.mubr.bf16.gmra.mrb[0].mxu0 %v509
      %v660 = vpop.f32.mrb[0].mxu0
      %v661 = vadd.f32 %v331, %v660
      %v662 = vpop.f32.mrb[0].mxu0
      %v663 = vpop.f32.mrb[0].mxu0
      %v664 = vadd.f32 %v331, %v663
      %v665 = vpop.f32.mrb[0].mxu0
      %666 = vmatprep.mubr.bf16.mxu0 0
      %667 = vmatmul.mubr.bf16.gmra.mrb[0].mxu0 %v512
      %v668 = vpop.f32.mrb[0].mxu0
      %v669 = vadd.f32 %v331, %v668
      %v670 = vpop.f32.mrb[0].mxu0
      %v671 = vpop.f32.mrb[0].mxu0
      %v672 = vadd.f32 %v331, %v671
      %v673 = vpop.f32.mrb[0].mxu0
      %674 = vmatprep.mubr.bf16.mxu0 0
      %675 = vmatmul.mubr.bf16.gmra.mrb[0].mxu0 %v515
      %v676 = vpop.f32.mrb[0].mxu0
      %v677 = vadd.f32 %v331, %v676
      %v678 = vpop.f32.mrb[0].mxu0
      %v679 = vpop.f32.mrb[0].mxu0
      %v680 = vadd.f32 %v331, %v679
      %v681 = vpop.f32.mrb[0].mxu0
      %682 = vmatprep.mubr.bf16.mxu0 0
      %683 = vmatmul.mubr.bf16.gmra.mrb[0].mxu0 %v518
      %v684 = vpop.f32.mrb[0].mxu0
      %v685 = vadd.f32 %v331, %v684
      %v686 = vpop.f32.mrb[0].mxu0
      %v687 = vpop.f32.mrb[0].mxu0
      %v688 = vadd.f32 %v331, %v687
      %v689 = vpop.f32.mrb[0].mxu0
      %690 = vmatprep.mubr.bf16.mxu0 0
      %691 = vmatmul.mubr.bf16.gmra.mrb[0].mxu0 %v521
      %v692 = vpop.f32.mrb[0].mxu0
      %v693 = vadd.f32 %v331, %v692
      %v694 = vpop.f32.mrb[0].mxu0
      %v695 = vpop.f32.mrb[0].mxu0
      %v696 = vadd.f32 %v331, %v695
      %v697 = vpop.f32.mrb[0].mxu0
      %698 = vmatprep.mubr.bf16.mxu0 0
      %699 = vmatmul.mubr.bf16.gmra.mrb[0].mxu0 %v524
      %v700 = vpop.f32.mrb[0].mxu0
      %v701 = vadd.f32 %v331, %v700
      %v702 = vpop.f32.mrb[0].mxu0
      %v703 = vpop.f32.mrb[0].mxu0
      %v704 = vadd.f32 %v331, %v703
      %v705 = vpop.f32.mrb[0].mxu0
      %706 = vmatprep.mubr.bf16.mxu0 0
      %707 = vmatmul.mubr.bf16.gmra.mrb[0].mxu0 %v527
      %v708 = vpop.f32.mrb[0].mxu0
      %v709 = vadd.f32 %v331, %v708
      %v710 = vpop.f32.mrb[0].mxu0
      %v711 = vpop.f32.mrb[0].mxu0
      %v712 = vadd.f32 %v331, %v711
      %v713 = vpop.f32.mrb[0].mxu0
      %714 = vmatprep.mubr.bf16.mxu0 0
      %715 = vmatmul.mubr.bf16.gmra.mrb[0].mxu0 %v530
      %v716 = vpop.f32.mrb[0].mxu0
      %v717 = vadd.f32 %v331, %v716
      %v718 = vpop.f32.mrb[0].mxu0
      %v719 = vpop.f32.mrb[0].mxu0
      %v720 = vadd.f32 %v331, %v719
      %v721 = vpop.f32.mrb[0].mxu0
      %722 = vmatprep.mubr.bf16.mxu0 0
      %723 = vmatmul.mubr.bf16.gmra.mrb[0].mxu0 %v533
      %v724 = vpop.f32.mrb[0].mxu0
      %v725 = vadd.f32 %v331, %v724
      %v726 = vpop.f32.mrb[0].mxu0
      %v727 = vpop.f32.mrb[0].mxu0
      %v728 = vadd.f32 %v331, %v727
      %v729 = vpop.f32.mrb[0].mxu0
      %730 = vmatprep.mubr.bf16.mxu0 0
      %731 = vmatmul.mubr.bf16.gmra.mrb[0].mxu0 %v536
      %v732 = vpop.f32.mrb[0].mxu0
      %v733 = vadd.f32 %v331, %v732
      %v734 = vpop.f32.mrb[0].mxu0
      %v735 = vpop.f32.mrb[0].mxu0
      %v736 = vadd.f32 %v331, %v735
      %v737 = vpop.f32.mrb[0].mxu0
      %738 = vmatprep.mubr.bf16.mxu0 0
      %739 = vmatmul.mubr.bf16.gmra.mrb[0].mxu0 %v539
      %v740 = vpop.f32.mrb[0].mxu0
      %v741 = vadd.f32 %v331, %v740
      %v742 = vpop.f32.mrb[0].mxu0
      %v743 = vpop.f32.mrb[0].mxu0
      %v744 = vadd.f32 %v331, %v743
      %v745 = vpop.f32.mrb[0].mxu0
      %746 = vmatprep.mubr.bf16.mxu0 0
      %747 = vmatmul.mubr.bf16.gmra.mrb[0].mxu0 %v542
      %v748 = vpop.f32.mrb[0].mxu0
      %v749 = vadd.f32 %v331, %v748
      %v750 = vpop.f32.mrb[0].mxu0
      %v751 = vpop.f32.mrb[0].mxu0
      %v752 = vadd.f32 %v331, %v751
      %v753 = vpop.f32.mrb[0].mxu0
      %754 = vmatprep.mubr.bf16.mxu0 0
      %755 = vmatmul.mubr.bf16.gmra.mrb[0].mxu0 %v545
      %v756 = vpop.f32.mrb[0].mxu0
      %v757 = vadd.f32 %v331, %v756
      %v758 = vpop.f32.mrb[0].mxu0
      %v759 = vpop.f32.mrb[0].mxu0
      %v760 = vadd.f32 %v331, %v759
      %v761 = vpop.f32.mrb[0].mxu0
      %762 = vmatprep.mubr.bf16.mxu0 0
      %763 = vmatmul.mubr.bf16.gmra.mrb[0].mxu0 %v548
      %v764 = vpop.f32.mrb[0].mxu0
      %v765 = vadd.f32 %v331, %v764
      %v766 = vpop.f32.mrb[0].mxu0
      %v767 = vpop.f32.mrb[0].mxu0
      %v768 = vadd.f32 %v331, %v767
      %v769 = vpop.f32.mrb[0].mxu0
      %770 = vmatprep.mubr.bf16.mxu0 0
      %771 = vmatmul.mubr.bf16.gmra.mrb[0].mxu0 %v551
      %v772 = vpop.f32.mrb[0].mxu0
      %v773 = vadd.f32 %v331, %v772
      %v774 = vpop.f32.mrb[0].mxu0
      %v775 = vpop.f32.mrb[0].mxu0
      %v776 = vadd.f32 %v331, %v775
      %v777 = vpop.f32.mrb[0].mxu0
      %778 = vmatprep.mubr.bf16.mxu0 0
      %779 = vmatmul.mubr.bf16.gmra.mrb[0].mxu0 %v554
      %v780 = vpop.f32.mrb[0].mxu0
      %v781 = vadd.f32 %v331, %v780
      %v782 = vpop.f32.mrb[0].mxu0
      %v783 = vpop.f32.mrb[0].mxu0
      %v784 = vadd.f32 %v331, %v783
      %v785 = vpop.f32.mrb[0].mxu0
      %786 = vmatprep.mubr.bf16.mxu0 0
      %787 = vmatmul.mubr.bf16.gmra.mrb[0].mxu0 %v557
      %v788 = vpop.f32.mrb[0].mxu0
      %v789 = vadd.f32 %v331, %v788
      %v790 = vpop.f32.mrb[0].mxu0
      %v791 = vpop.f32.mrb[0].mxu0
      %v792 = vadd.f32 %v331, %v791
      %v793 = vpop.f32.mrb[0].mxu0
      %794 = vmatprep.mubr.bf16.mxu0 0
      %795 = vmatmul.mubr.bf16.gmra.mrb[0].mxu0 %v560
      %v796 = vpop.f32.mrb[0].mxu0
      %v797 = vadd.f32 %v331, %v796
      %v798 = vpop.f32.mrb[0].mxu0
      %v799 = vpop.f32.mrb[0].mxu0
      %v800 = vadd.f32 %v331, %v799
      %v801 = vpop.f32.mrb[0].mxu0
      %802 = vmatprep.mubr.bf16.mxu0 0
      %803 = vmatmul.mubr.bf16.gmra.mrb[0].mxu0 %v563
      %v804 = vpop.f32.mrb[0].mxu0
      %v805 = vadd.f32 %v331, %v804
      %v806 = vpop.f32.mrb[0].mxu0
      %v807 = vpop.f32.mrb[0].mxu0
      %v808 = vadd.f32 %v331, %v807
      %v809 = vpop.f32.mrb[0].mxu0
      %810 = vmatprep.mubr.bf16.mxu0 0
      %811 = vmatmul.mubr.bf16.gmra.mrb[0].mxu0 %v566
      %v812 = vpop.f32.mrb[0].mxu0
      %v813 = vadd.f32 %v331, %v812
      %v814 = vpop.f32.mrb[0].mxu0
      %v815 = vpop.f32.mrb[0].mxu0
      %v816 = vadd.f32 %v331, %v815
      %v817 = vpop.f32.mrb[0].mxu0
      %818 = vmatprep.mubr.bf16.mxu0 0
      %819 = vmatmul.mubr.bf16.gmra.mrb[0].mxu0 %v569
      %v820 = vpop.f32.mrb[0].mxu0
      %v821 = vadd.f32 %v331, %v820
      %v822 = vpop.f32.mrb[0].mxu0
      %v823 = vpop.f32.mrb[0].mxu0
      %v824 = vadd.f32 %v331, %v823
      %v825 = vpop.f32.mrb[0].mxu0
      %826 = vmatprep.mubr.bf16.mxu0 0
      %827 = vmatmul.mubr.bf16.gmra.mrb[0].mxu0 %v572
      %v828 = vpop.f32.mrb[0].mxu0
      %v829 = vadd.f32 %v331, %v828
      %v830 = vpop.f32.mrb[0].mxu0
      %v831 = vpop.f32.mrb[0].mxu0
      %v832 = vadd.f32 %v331, %v831
      %v833 = vpop.f32.mrb[0].mxu0
      %834 = vmatprep.mubr.bf16.mxu0 0
      %835 = vmatmul.mubr.bf16.gmra.mrb[0].mxu0 %v575
      %v836 = vpop.f32.mrb[0].mxu0
      %v837 = vadd.f32 %v331, %v836
      %v838 = vpop.f32.mrb[0].mxu0
      %v839 = vpop.f32.mrb[0].mxu0
      %v840 = vadd.f32 %v331, %v839
      %v841 = vpop.f32.mrb[0].mxu0
      %842 = vmatprep.mubr.bf16.mxu0 0
      %843 = vmatmul.mubr.bf16.gmra.mrb[0].mxu0 %v578
      %v844 = vpop.f32.mrb[0].mxu0
      %v845 = vadd.f32 %v331, %v844
      %v846 = vpop.f32.mrb[0].mxu0
      %v847 = vpop.f32.mrb[0].mxu0
      %v848 = vadd.f32 %v331, %v847
      %v849 = vpop.f32.mrb[0].mxu0
      %850 = vmatprep.mubr.bf16.mxu0 0
      %851 = vmatmul.mubr.bf16.gmra.mrb[0].mxu0 %v581
      %v852 = vpop.f32.mrb[0].mxu0
      %v853 = vadd.f32 %v331, %v852
      %v854 = vpop.f32.mrb[0].mxu0
      %v855 = vpop.f32.mrb[0].mxu0
      %v856 = vadd.f32 %v331, %v855
      %v857 = vpop.f32.mrb[0].mxu0
      %858 = vmatprep.mubr.bf16.mxu0 0
      %859 = vmatmul.mubr.bf16.gmra.mrb[0].mxu0 %v584
      %v860 = vpop.f32.mrb[0].mxu0
      %v861 = vadd.f32 %v331, %v860
      %v862 = vpop.f32.mrb[0].mxu0
      %v863 = vpop.f32.mrb[0].mxu0
      %v864 = vadd.f32 %v331, %v863
      %v865 = vpop.f32.mrb[0].mxu0
      %866 = vmatprep.mubr.bf16.mxu0 0
      %867 = vmatmul.mubr.bf16.gmra.mrb[0].mxu0 %v587
      %v868 = vpop.f32.mrb[0].mxu0
      %v869 = vadd.f32 %v331, %v868
      %v870 = vpop.f32.mrb[0].mxu0
      %v871 = vpop.f32.mrb[0].mxu0
      %v872 = vadd.f32 %v331, %v871
      %v873 = vpop.f32.mrb[0].mxu0
      %874 = vmatprep.mubr.bf16.mxu0 0
      %875 = vmatmul.mubr.bf16.gmra.mrb[0].mxu0 %v590
      %v876 = vpop.f32.mrb[0].mxu0
      %v877 = vadd.f32 %v331, %v876
      %v878 = vpop.f32.mrb[0].mxu0
      %v879 = vpop.f32.mrb[0].mxu0
      %v880 = vadd.f32 %v331, %v879
      %v881 = vpop.f32.mrb[0].mxu0
      %882 = vmatprep.mubr.bf16.mxu0 0
      %883 = vmatmul.mubr.bf16.gmra.mrb[0].mxu0 %v593
      %v884 = vpop.f32.mrb[0].mxu0
      %v885 = vadd.f32 %v331, %v884
      %v886 = vpop.f32.mrb[0].mxu0
      %v887 = vpop.f32.mrb[0].mxu0
      %v888 = vadd.f32 %v331, %v887
      %v889 = vpop.f32.mrb[0].mxu0
      %890 = vdwg.mxu0
      %v891 = vmax.f32 %v637, 0.0
      %v892 = vmax.f32 %v640, 0.0
      %v893 = vmax.f32 %v645, 0.0
      %v894 = vmax.f32 %v648, 0.0
      %v895 = vmax.f32 %v653, 0.0
      %v896 = vmax.f32 %v656, 0.0
      %v897 = vmax.f32 %v661, 0.0
      %v898 = vmax.f32 %v664, 0.0
      %v899 = vmax.f32 %v669, 0.0
      %v900 = vmax.f32 %v672, 0.0
      %v901 = vmax.f32 %v677, 0.0
      %v902 = vmax.f32 %v680, 0.0
      %v903 = vmax.f32 %v685, 0.0
      %v904 = vmax.f32 %v688, 0.0
      %v905 = vmax.f32 %v693, 0.0
      %v906 = vmax.f32 %v696, 0.0
      %v907 = vmax.f32 %v701, 0.0
      %v908 = vmax.f32 %v704, 0.0
      %v909 = vmax.f32 %v709, 0.0
      %v910 = vmax.f32 %v712, 0.0
      %v911 = vmax.f32 %v717, 0.0
      %v912 = vmax.f32 %v720, 0.0
      %v913 = vmax.f32 %v725, 0.0
      %v914 = vmax.f32 %v728, 0.0
      %v915 = vmax.f32 %v733, 0.0
      %v916 = vmax.f32 %v736, 0.0
      %v917 = vmax.f32 %v741, 0.0
      %v918 = vmax.f32 %v744, 0.0
      %v919 = vmax.f32 %v749, 0.0
      %v920 = vmax.f32 %v752, 0.0
      %v921 = vmax.f32 %v757, 0.0
      %v922 = vmax.f32 %v760, 0.0
      %v923 = vmax.f32 %v765, 0.0
      %v924 = vmax.f32 %v768, 0.0
      %v925 = vmax.f32 %v773, 0.0
      %v926 = vmax.f32 %v776, 0.0
      %v927 = vmax.f32 %v781, 0.0
      %v928 = vmax.f32 %v784, 0.0
      %v929 = vmax.f32 %v789, 0.0
      %v930 = vmax.f32 %v792, 0.0
      %v931 = vmax.f32 %v797, 0.0
      %v932 = vmax.f32 %v800, 0.0
      %v933 = vmax.f32 %v805, 0.0
      %v934 = vmax.f32 %v808, 0.0
      %v935 = vmax.f32 %v813, 0.0
      %v936 = vmax.f32 %v816, 0.0
      %v937 = vmax.f32 %v821, 0.0
      %v938 = vmax.f32 %v824, 0.0
      %v939 = vmax.f32 %v829, 0.0
      %v940 = vmax.f32 %v832, 0.0
      %v941 = vmax.f32 %v837, 0.0
      %v942 = vmax.f32 %v840, 0.0
      %v943 = vmax.f32 %v845, 0.0
      %v944 = vmax.f32 %v848, 0.0
      %v945 = vmax.f32 %v853, 0.0
      %v946 = vmax.f32 %v856, 0.0
      %v947 = vmax.f32 %v861, 0.0
      %v948 = vmax.f32 %v864, 0.0
      %v949 = vmax.f32 %v869, 0.0
      %v950 = vmax.f32 %v872, 0.0
      %v951 = vmax.f32 %v877, 0.0
      %v952 = vmax.f32 %v880, 0.0
      %v953 = vmax.f32 %v885, 0.0
      %v954 = vmax.f32 %v888, 0.0
      %v955 = vpack.c.bf16 %v892, %v891
      %v956 = vpack.c.bf16 %v894, %v893
      %v957 = vpack.c.bf16 %v896, %v895
      %v958 = vpack.c.bf16 %v898, %v897
      %v959 = vpack.c.bf16 %v900, %v899
      %v960 = vpack.c.bf16 %v902, %v901
      %v961 = vpack.c.bf16 %v904, %v903
      %v962 = vpack.c.bf16 %v906, %v905
      %v963 = vpack.c.bf16 %v908, %v907
      %v964 = vpack.c.bf16 %v910, %v909
      %v965 = vpack.c.bf16 %v912, %v911
      %v966 = vpack.c.bf16 %v914, %v913
      %v967 = vpack.c.bf16 %v916, %v915
      %v968 = vpack.c.bf16 %v918, %v917
      %v969 = vpack.c.bf16 %v920, %v919
      %v970 = vpack.c.bf16 %v922, %v921
      %v971 = vpack.c.bf16 %v924, %v923
      %v972 = vpack.c.bf16 %v926, %v925
      %v973 = vpack.c.bf16 %v928, %v927
      %v974 = vpack.c.bf16 %v930, %v929
      %v975 = vpack.c.bf16 %v932, %v931
      %v976 = vpack.c.bf16 %v934, %v933
      %v977 = vpack.c.bf16 %v936, %v935
      %v978 = vpack.c.bf16 %v938, %v937
      %v979 = vpack.c.bf16 %v940, %v939
      %v980 = vpack.c.bf16 %v942, %v941
      %v981 = vpack.c.bf16 %v944, %v943
      %v982 = vpack.c.bf16 %v946, %v945
      %v983 = vpack.c.bf16 %v948, %v947
      %v984 = vpack.c.bf16 %v950, %v949
      %v985 = vpack.c.bf16 %v952, %v951
      %v986 = vpack.c.bf16 %v954, %v953
      %v1019 = vunpack.c.l.b16 %v955
      %v1020 = vunpack.c.h.b16 %v955
      %v1021 = vunpack.c.l.b16 %v956
      %v1022 = vunpack.c.h.b16 %v956
      %v1023 = vunpack.c.l.b16 %v957
      %v1024 = vunpack.c.h.b16 %v957
      %v1025 = vunpack.c.l.b16 %v958
      %v1026 = vunpack.c.h.b16 %v958
      %v1027 = vunpack.c.l.b16 %v959
      %v1028 = vunpack.c.h.b16 %v959
      %v1029 = vunpack.c.l.b16 %v960
      %v1030 = vunpack.c.h.b16 %v960
      %v1031 = vunpack.c.l.b16 %v961
      %v1032 = vunpack.c.h.b16 %v961
      %v1033 = vunpack.c.l.b16 %v962
      %v1034 = vunpack.c.h.b16 %v962
      %v1035 = vunpack.c.l.b16 %v963
      %v1036 = vunpack.c.h.b16 %v963
      %v1037 = vunpack.c.l.b16 %v964
      %v1038 = vunpack.c.h.b16 %v964
      %v1039 = vunpack.c.l.b16 %v965
      %v1040 = vunpack.c.h.b16 %v965
      %v1041 = vunpack.c.l.b16 %v966
      %v1042 = vunpack.c.h.b16 %v966
      %v1043 = vunpack.c.l.b16 %v967
      %v1044 = vunpack.c.h.b16 %v967
      %v1045 = vunpack.c.l.b16 %v968
      %v1046 = vunpack.c.h.b16 %v968
      %v1047 = vunpack.c.l.b16 %v969
      %v1048 = vunpack.c.h.b16 %v969
      %v1049 = vunpack.c.l.b16 %v970
      %v1050 = vunpack.c.h.b16 %v970
      %v1051 = vunpack.c.l.b16 %v971
      %v1052 = vunpack.c.h.b16 %v971
      %v1053 = vunpack.c.l.b16 %v972
      %v1054 = vunpack.c.h.b16 %v972
      %v1055 = vunpack.c.l.b16 %v973
      %v1056 = vunpack.c.h.b16 %v973
      %v1057 = vunpack.c.l.b16 %v974
      %v1058 = vunpack.c.h.b16 %v974
      %v1059 = vunpack.c.l.b16 %v975
      %v1060 = vunpack.c.h.b16 %v975
      %v1061 = vunpack.c.l.b16 %v976
      %v1062 = vunpack.c.h.b16 %v976
      %v1063 = vunpack.c.l.b16 %v977
      %v1064 = vunpack.c.h.b16 %v977
      %v1065 = vunpack.c.l.b16 %v978
      %v1066 = vunpack.c.h.b16 %v978
      %v1067 = vunpack.c.l.b16 %v979
      %v1068 = vunpack.c.h.b16 %v979
      %v1069 = vunpack.c.l.b16 %v980
      %v1070 = vunpack.c.h.b16 %v980
      %v1071 = vunpack.c.l.b16 %v981
      %v1072 = vunpack.c.h.b16 %v981
      %v1073 = vunpack.c.l.b16 %v982
      %v1074 = vunpack.c.h.b16 %v982
      %v1075 = vunpack.c.l.b16 %v983
      %v1076 = vunpack.c.h.b16 %v983
      %v1077 = vunpack.c.l.b16 %v984
      %v1078 = vunpack.c.h.b16 %v984
      %v1079 = vunpack.c.l.b16 %v985
      %v1080 = vunpack.c.h.b16 %v985
      %v1081 = vunpack.c.l.b16 %v986
      %v1082 = vunpack.c.h.b16 %v986
      %v1083 = vpack.c.b16 %v1019, %v1019
      %v1084 = vpack.c.b16 %v1020, %v1020
      %v1085 = vpack.c.b16 %v1021, %v1021
      %v1086 = vpack.c.b16 %v1022, %v1022
      %v1087 = vpack.c.b16 %v1023, %v1023
      %v1088 = vpack.c.b16 %v1024, %v1024
      %v1089 = vpack.c.b16 %v1025, %v1025
      %v1090 = vpack.c.b16 %v1026, %v1026
      %v1091 = vpack.c.b16 %v1027, %v1027
      %v1092 = vpack.c.b16 %v1028, %v1028
      %v1093 = vpack.c.b16 %v1029, %v1029
      %v1094 = vpack.c.b16 %v1030, %v1030
      %v1095 = vpack.c.b16 %v1031, %v1031
      %v1096 = vpack.c.b16 %v1032, %v1032
      %v1097 = vpack.c.b16 %v1033, %v1033
      %v1098 = vpack.c.b16 %v1034, %v1034
      %v1099 = vpack.c.b16 %v1035, %v1035
      %v1100 = vpack.c.b16 %v1036, %v1036
      %v1101 = vpack.c.b16 %v1037, %v1037
      %v1102 = vpack.c.b16 %v1038, %v1038
      %v1103 = vpack.c.b16 %v1039, %v1039
      %v1104 = vpack.c.b16 %v1040, %v1040
      %v1105 = vpack.c.b16 %v1041, %v1041
      %v1106 = vpack.c.b16 %v1042, %v1042
      %v1107 = vpack.c.b16 %v1043, %v1043
      %v1108 = vpack.c.b16 %v1044, %v1044
      %v1109 = vpack.c.b16 %v1045, %v1045
      %v1110 = vpack.c.b16 %v1046, %v1046
      %v1111 = vpack.c.b16 %v1047, %v1047
      %v1112 = vpack.c.b16 %v1048, %v1048
      %v1113 = vpack.c.b16 %v1049, %v1049
      %v1114 = vpack.c.b16 %v1050, %v1050
      %v1115 = vpack.c.b16 %v1051, %v1051
      %v1116 = vpack.c.b16 %v1052, %v1052
      %v1117 = vpack.c.b16 %v1053, %v1053
      %v1118 = vpack.c.b16 %v1054, %v1054
      %v1119 = vpack.c.b16 %v1055, %v1055
      %v1120 = vpack.c.b16 %v1056, %v1056
      %v1121 = vpack.c.b16 %v1057, %v1057
      %v1122 = vpack.c.b16 %v1058, %v1058
      %v1123 = vpack.c.b16 %v1059, %v1059
      %v1124 = vpack.c.b16 %v1060, %v1060
      %v1125 = vpack.c.b16 %v1061, %v1061
      %v1126 = vpack.c.b16 %v1062, %v1062
      %v1127 = vpack.c.b16 %v1063, %v1063
      %v1128 = vpack.c.b16 %v1064, %v1064
      %v1129 = vpack.c.b16 %v1065, %v1065
      %v1130 = vpack.c.b16 %v1066, %v1066
      %v1131 = vpack.c.b16 %v1067, %v1067
      %v1132 = vpack.c.b16 %v1068, %v1068
      %v1133 = vpack.c.b16 %v1069, %v1069
      %v1134 = vpack.c.b16 %v1070, %v1070
      %v1135 = vpack.c.b16 %v1071, %v1071
      %v1136 = vpack.c.b16 %v1072, %v1072
      %v1137 = vpack.c.b16 %v1073, %v1073
      %v1138 = vpack.c.b16 %v1074, %v1074
      %v1139 = vpack.c.b16 %v1075, %v1075
      %v1140 = vpack.c.b16 %v1076, %v1076
      %v1141 = vpack.c.b16 %v1077, %v1077
      %v1142 = vpack.c.b16 %v1078, %v1078
      %v1143 = vpack.c.b16 %v1079, %v1079
      %v1144 = vpack.c.b16 %v1080, %v1080
      %v1145 = vpack.c.b16 %v1081, %v1081
      %v1146 = vpack.c.b16 %v1082, %v1082
      %vm1211 = vcmask 125952
      %1212 = vst.msk [vmem:[%s257] sm:$0xf] %vm1211, %v1083
      %1213 = vst.msk [vmem:[%s257 + $0x4] sm:$0xf] %vm1211, %v1084
      %1214 = vst.msk [vmem:[%s257 + $0x8] sm:$0xf] %vm1211, %v1085
      %1215 = vst.msk [vmem:[%s257 + $0xc] sm:$0xf] %vm1211, %v1086
      %1216 = vst.msk [vmem:[%s257 + $0x10] sm:$0xf] %vm1211, %v1087
      %1217 = vst.msk [vmem:[%s257 + $0x14] sm:$0xf] %vm1211, %v1088
      %1218 = vst.msk [vmem:[%s257 + $0x18] sm:$0xf] %vm1211, %v1089
      %1219 = vst.msk [vmem:[%s257 + $0x1c] sm:$0xf] %vm1211, %v1090
      %1220 = vst.msk [vmem:[%s257 + $0x20] sm:$0xf] %vm1211, %v1091
      %1221 = vst.msk [vmem:[%s257 + $0x24] sm:$0xf] %vm1211, %v1092
      %1222 = vst.msk [vmem:[%s257 + $0x28] sm:$0xf] %vm1211, %v1093
      %1223 = vst.msk [vmem:[%s257 + $0x2c] sm:$0xf] %vm1211, %v1094
      %1224 = vst.msk [vmem:[%s257 + $0x30] sm:$0xf] %vm1211, %v1095
      %1225 = vst.msk [vmem:[%s257 + $0x34] sm:$0xf] %vm1211, %v1096
      %1226 = vst.msk [vmem:[%s257 + $0x38] sm:$0xf] %vm1211, %v1097
      %1227 = vst.msk [vmem:[%s257 + $0x3c] sm:$0xf] %vm1211, %v1098
      %1228 = vst.msk [vmem:[%s257 + $0x40] sm:$0xf] %vm1211, %v1099
      %1229 = vst.msk [vmem:[%s257 + $0x44] sm:$0xf] %vm1211, %v1100
      %1230 = vst.msk [vmem:[%s257 + $0x48] sm:$0xf] %vm1211, %v1101
      %1231 = vst.msk [vmem:[%s257 + $0x4c] sm:$0xf] %vm1211, %v1102
      %1232 = vst.msk [vmem:[%s257 + $0x50] sm:$0xf] %vm1211, %v1103
      %1233 = vst.msk [vmem:[%s257 + $0x54] sm:$0xf] %vm1211, %v1104
      %1234 = vst.msk [vmem:[%s257 + $0x58] sm:$0xf] %vm1211, %v1105
      %1235 = vst.msk [vmem:[%s257 + $0x5c] sm:$0xf] %vm1211, %v1106
      %1236 = vst.msk [vmem:[%s257 + $0x60] sm:$0xf] %vm1211, %v1107
      %1237 = vst.msk [vmem:[%s257 + $0x64] sm:$0xf] %vm1211, %v1108
      %1238 = vst.msk [vmem:[%s257 + $0x68] sm:$0xf] %vm1211, %v1109
      %1239 = vst.msk [vmem:[%s257 + $0x6c] sm:$0xf] %vm1211, %v1110
      %1240 = vst.msk [vmem:[%s257 + $0x70] sm:$0xf] %vm1211, %v1111
      %1241 = vst.msk [vmem:[%s257 + $0x74] sm:$0xf] %vm1211, %v1112
      %1242 = vst.msk [vmem:[%s257 + $0x78] sm:$0xf] %vm1211, %v1113
      %1243 = vst.msk [vmem:[%s257 + $0x7c] sm:$0xf] %vm1211, %v1114
      %1244 = vst.msk [vmem:[%s257 + $0x80] sm:$0xf] %vm1211, %v1115
      %1245 = vst.msk [vmem:[%s257 + $0x84] sm:$0xf] %vm1211, %v1116
      %1246 = vst.msk [vmem:[%s257 + $0x88] sm:$0xf] %vm1211, %v1117
      %1247 = vst.msk [vmem:[%s257 + $0x8c] sm:$0xf] %vm1211, %v1118
      %1248 = vst.msk [vmem:[%s257 + $0x90] sm:$0xf] %vm1211, %v1119
      %1249 = vst.msk [vmem:[%s257 + $0x94] sm:$0xf] %vm1211, %v1120
      %1250 = vst.msk [vmem:[%s257 + $0x98] sm:$0xf] %vm1211, %v1121
      %1251 = vst.msk [vmem:[%s257 + $0x9c] sm:$0xf] %vm1211, %v1122
      %1252 = vst.msk [vmem:[%s257 + $0xa0] sm:$0xf] %vm1211, %v1123
      %1253 = vst.msk [vmem:[%s257 + $0xa4] sm:$0xf] %vm1211, %v1124
      %1254 = vst.msk [vmem:[%s257 + $0xa8] sm:$0xf] %vm1211, %v1125
      %1255 = vst.msk [vmem:[%s257 + $0xac] sm:$0xf] %vm1211, %v1126
      %1256 = vst.msk [vmem:[%s257 + $0xb0] sm:$0xf] %vm1211, %v1127
      %1257 = vst.msk [vmem:[%s257 + $0xb4] sm:$0xf] %vm1211, %v1128
      %1258 = vst.msk [vmem:[%s257 + $0xb8] sm:$0xf] %vm1211, %v1129
      %1259 = vst.msk [vmem:[%s257 + $0xbc] sm:$0xf] %vm1211, %v1130
      %1260 = vst.msk [vmem:[%s257 + $0xc0] sm:$0xf] %vm1211, %v1131
      %1261 = vst.msk [vmem:[%s257 + $0xc4] sm:$0xf] %vm1211, %v1132
      %1262 = vst.msk [vmem:[%s257 + $0xc8] sm:$0xf] %vm1211, %v1133
      %1263 = vst.msk [vmem:[%s257 + $0xcc] sm:$0xf] %vm1211, %v1134
      %1264 = vst.msk [vmem:[%s257 + $0xd0] sm:$0xf] %vm1211, %v1135
      %1265 = vst.msk [vmem:[%s257 + $0xd4] sm:$0xf] %vm1211, %v1136
      %1266 = vst.msk [vmem:[%s257 + $0xd8] sm:$0xf] %vm1211, %v1137
      %1267 = vst.msk [vmem:[%s257 + $0xdc] sm:$0xf] %vm1211, %v1138
      %1268 = vst.msk [vmem:[%s257 + $0xe0] sm:$0xf] %vm1211, %v1139
      %1269 = vst.msk [vmem:[%s257 + $0xe4] sm:$0xf] %vm1211, %v1140
      %1270 = vst.msk [vmem:[%s257 + $0xe8] sm:$0xf] %vm1211, %v1141
      %1271 = vst.msk [vmem:[%s257 + $0xec] sm:$0xf] %vm1211, %v1142
      %1272 = vst.msk [vmem:[%s257 + $0xf0] sm:$0xf] %vm1211, %v1143
      %1273 = vst.msk [vmem:[%s257 + $0xf4] sm:$0xf] %vm1211, %v1144
      %1274 = vst.msk [vmem:[%s257 + $0xf8] sm:$0xf] %vm1211, %v1145
      %1275 = vst.msk [vmem:[%s257 + $0xfc] sm:$0xf] %vm1211, %v1146
      %s1276 = smul.u32 64, %s19
      %p1277 = scmp.lt.s32.totalorder %s1276, 3135
      %s1278 = scalar_select %p1277, %s1276, 3135
      %p1279 = scmp.lt.s32.totalorder %s20, 0
      %s1280 = scalar_select %p1279, %s20, 0
      %s1281 = sadd.s32 %s1280, %s1278
      %s1282 = smul.addr %s1281, 4
      %s1283 = scalar_lea.vmem %s3, %s1282
      // Predicated region
      $region33: #{autoencoder_forward.8} parent=31 // pred_check
        %p1284 = pneg %p135
      $region34: #{autoencoder_forward.8} parent=31 // pred_check_branch
        %1286 = sbr.rel (%p1284) target = $region36
      $region35: #{autoencoder_forward.8} parent=31 // pred_region
        %s1287 = smul.u32 64, %s19
      $region36: #{autoencoder_forward.8} parent=31 // pred_fallthru
        _
    $region32: #{autoencoder_forward.8} parent=5 // pred_fallthru
      _
    %p1288 = scmp.le.s32.totalorder 2, %s9
    // Predicated region
    $region37: #{autoencoder_forward.8} parent=5 // pred_check
      %p1289 = pneg %p1288
    $region38: #{autoencoder_forward.8} parent=5 // pred_check_branch
      %1291 = sbr.rel (%p1289) target = $region40
    $region39: #{autoencoder_forward.8} parent=5 // pred_region
      %s1292 = ssub.s32 %s9, 2
      // Predicated region
      $region41: #{autoencoder_forward.8} parent=39 // pred_check
        %p1293 = pneg %p141
      $region42: #{autoencoder_forward.8} parent=39 // pred_check_branch
        %1295 = sbr.rel (%p1293) target = $region44
      $region43: #{autoencoder_forward.8} parent=39 // pred_region
        %s1296 = smul.u32 64, %s22
        %p1297 = scmp.lt.s32.totalorder %s1296, 3135
        %s1298 = scalar_select %p1297, %s1296, 3135
        %p1299 = scmp.lt.s32.totalorder %s23, 0
        %s1300 = scalar_select %p1299, %s23, 0
        %s1301 = sadd.s32 %s1300, %s1298
        %s1302 = smul.addr %s1301, 4
        %s1303 = scalar_lea.vmem %s3, %s1302
      $region44: #{autoencoder_forward.8} parent=39 // pred_fallthru
        _
    $region40: #{autoencoder_forward.8} parent=5 // pred_fallthru
      _
  $region6: #{autoencoder_forward.8} parent=0 // loop_footer
    %s13 = sadd.s32 1, %s9
  $region7: #{autoencoder_forward.8} parent=0 // loop_footer_branch
    %8 = sbr.rel target = $region3
  $region8: #{autoencoder_forward.8} parent=0 // loop_exit
    _

// kernel: autoencoder_forward.9
$region0: #{autoencoder_forward.9}
  #allocation0 [shape = 'u32[]', space=smem, size = 0x4, offset = 0x4, fixed_abs, tag = 'smem constant byte address 0x4 - core index']
  #allocation1 [shape = 'u32[144,128]{1,0:T(1,128)}', space=vmem, size = 0x12000, scoped, tag = 'internal scratch']
  %s0 = inlined_call_operand.vmem [shape: bf16[6272,144], index: 0, kind: input, shape index: {}]
  %s1 = inlined_call_operand.vmem [shape: bf16[144,32], index: 1, kind: input, shape index: {}]
  %s2 = inlined_call_operand.vmem [shape: f32[1,32], index: 2, kind: input, shape index: {}]
  %s3 = inlined_call_operand.vmem [shape: bf16[6272,32], index: 3, kind: output, shape index: {}]
  %s4 = sld [smem:[#allocation0]]
  $region45: #{autoencoder_forward.9} parent=0
    _
  %s6 = ssub.s32 1, %s4
  %s7 = scalar_select 0, %s6, %s4
  loop: start=0, step=1, limit=16
  $region2: #{autoencoder_forward.9} parent=0 // loop_pre_header
    _
  $region3: #{autoencoder_forward.9} parent=0 // loop_header
    %s9 = sphi 0, %s13
    %p10 = scmp.ge.s32.totalorder %s9, 16
    %s16 = sphi 0, %s35
    %s17 = sphi 0, %s31
    %s18 = sphi 0, %s27
    %s19 = sphi 0, %s16
    %s20 = sphi 0, %s17
    %s21 = sphi 0, %s18
    %s22 = sphi 0, %s19
    %s23 = sphi 0, %s20
    %s24 = sphi 0, %s21
    %s40 = sphi 0, %s42
    %s43 = sphi 0, %s40
    %s44 = sphi 0, %s43
    %s60 = sphi 0, %s44
    %s68 = sphi 0, %s70
    %s71 = sphi 0, %s68
    %s72 = sphi 0, %s71
    %s88 = sphi 0, %s72
    %s94 = sphi 0, %s96
    %s97 = sphi 0, %s94
    %s98 = sphi 0, %s97
    %s114 = sphi 0, %s98
    %s122 = sphi 0, %s124
    %s125 = sphi 0, %s122
    %s126 = sphi 0, %s125
    %s142 = sphi 0, %s126
  $region4: #{autoencoder_forward.9} parent=0 // loop_header_branch
    %12 = sbr.rel (%p10) target = $region8
  $region5: #{autoencoder_forward.9} parent=0 // loop_body
    %s14 = ssub.s32 %s9, 1
    %s15 = ssub.s32 %s9, 2
    %s25 = sadd.s32 1, %s18
    %p26 = scmp.ge.s32.totalorder %s25, 1
    %s27 = scalar_select %p26, 0, %s25
    %s28 = sadd.s32 1, %s17
    %s29 = scalar_select %p26, %s28, %s17
    %p30 = scmp.ge.s32.totalorder %s29, 1
    %s31 = scalar_select %p30, 0, %s29
    %s32 = sadd.s32 1, %s16
    %s33 = scalar_select %p30, %s32, %s16
    %p34 = scmp.ge.s32.totalorder %s33, 14
    %s35 = scalar_select %p34, 0, %s33
    %s36 = ssub.s32 %s16, %s35
    %s37 = ssub.s32 %s18, %s27
    %s38 = sor.u32 %s36, %s37
    %p39 = scmp.eq.s32.totalorder %s38, 0
    %s41 = sadd.s32 %s40, 1
    %s42 = scalar_select %p39, %s40, %s41
    %p45 = pneg %p39
    %p46 = scmp.eq.s32.totalorder %s9, 13
    %p47 = por %p45, %p46
    %p48 = scmp.ne.s32.totalorder %s40, %s43
    %p49 = scmp.eq.s32.totalorder %s9, 0
    %p50 = por %p48, %p49
    %p51 = scmp.ne.s32.totalorder %s40, %s43
    %p52 = scmp.eq.s32.totalorder %s14, 13
    %p53 = por %p51, %p52
    %p54 = scmp.ne.s32.totalorder %s43, %s44
    %p55 = scmp.eq.s32.totalorder %s14, 0
    %p56 = por %p54, %p55
    %p57 = scmp.ne.s32.totalorder %s43, %s44
    %p58 = scmp.eq.s32.totalorder %s15, 13
    %p59 = por %p57, %p58
    %p61 = scmp.ne.s32.totalorder %s44, %s60
    %p62 = scmp.eq.s32.totalorder %s15, 0
    %p63 = por %p61, %p62
    %s64 = ssub.s32 %s18, %s27
    %s65 = ssub.s32 %s17, %s31
    %s66 = sor.u32 %s64, %s65
    %p67 = scmp.eq.s32.totalorder %s66, 0
    %s69 = sadd.s32 %s68, 1
    %s70 = scalar_select %p67, %s68, %s69
    %p73 = pneg %p67
    %p74 = scmp.eq.s32.totalorder %s9, 13
    %p75 = por %p73, %p74
    %p76 = scmp.ne.s32.totalorder %s68, %s71
    %p77 = scmp.eq.s32.totalorder %s9, 0
    %p78 = por %p76, %p77
    %p79 = scmp.ne.s32.totalorder %s68, %s71
    %p80 = scmp.eq.s32.totalorder %s14, 13
    %p81 = por %p79, %p80
    %p82 = scmp.ne.s32.totalorder %s71, %s72
    %p83 = scmp.eq.s32.totalorder %s14, 0
    %p84 = por %p82, %p83
    %p85 = scmp.ne.s32.totalorder %s71, %s72
    %p86 = scmp.eq.s32.totalorder %s15, 13
    %p87 = por %p85, %p86
    %p89 = scmp.ne.s32.totalorder %s72, %s88
    %p90 = scmp.eq.s32.totalorder %s15, 0
    %p91 = por %p89, %p90
    %s92 = ssub.s32 %s17, %s31
    %p93 = scmp.eq.s32.totalorder %s92, 0
    %s95 = sadd.s32 %s94, 1
    %s96 = scalar_select %p93, %s94, %s95
    %p99 = pneg %p93
    %p100 = scmp.eq.s32.totalorder %s9, 13
    %p101 = por %p99, %p100
    %p102 = scmp.ne.s32.totalorder %s94, %s97
    %p103 = scmp.eq.s32.totalorder %s9, 0
    %p104 = por %p102, %p103
    %p105 = scmp.ne.s32.totalorder %s94, %s97
    %p106 = scmp.eq.s32.totalorder %s14, 13
    %p107 = por %p105, %p106
    %p108 = scmp.ne.s32.totalorder %s97, %s98
    %p109 = scmp.eq.s32.totalorder %s14, 0
    %p110 = por %p108, %p109
    %p111 = scmp.ne.s32.totalorder %s97, %s98
    %p112 = scmp.eq.s32.totalorder %s15, 13
    %p113 = por %p111, %p112
    %p115 = scmp.ne.s32.totalorder %s98, %s114
    %p116 = scmp.eq.s32.totalorder %s15, 0
    %p117 = por %p115, %p116
    %s118 = ssub.s32 %s16, %s35
    %s119 = ssub.s32 %s17, %s31
    %s120 = sor.u32 %s118, %s119
    %p121 = scmp.eq.s32.totalorder %s120, 0
    %s123 = sadd.s32 %s122, 1
    %s124 = scalar_select %p121, %s122, %s123
    %p127 = pneg %p121
    %p128 = scmp.eq.s32.totalorder %s9, 13
    %p129 = por %p127, %p128
    %p130 = scmp.ne.s32.totalorder %s122, %s125
    %p131 = scmp.eq.s32.totalorder %s9, 0
    %p132 = por %p130, %p131
    %p133 = scmp.ne.s32.totalorder %s122, %s125
    %p134 = scmp.eq.s32.totalorder %s14, 13
    %p135 = por %p133, %p134
    %p136 = scmp.ne.s32.totalorder %s125, %s126
    %p137 = scmp.eq.s32.totalorder %s14, 0
    %p138 = por %p136, %p137
    %p139 = scmp.ne.s32.totalorder %s125, %s126
    %p140 = scmp.eq.s32.totalorder %s15, 13
    %p141 = por %p139, %p140
    %p143 = scmp.ne.s32.totalorder %s126, %s142
    %p144 = scmp.eq.s32.totalorder %s15, 0
    %p145 = por %p143, %p144
    %p146 = scmp.le.s32.totalorder 1, %s9
    %p147 = scmp.lt.s32.totalorder %s9, 15
    %p148 = pnand %p146, %p147
    %p149 = pneg %p148
    // Predicated region
    $region9: #{autoencoder_forward.9} parent=5 // pred_check
      _
    $region10: #{autoencoder_forward.9} parent=5 // pred_check_branch
      %151 = sbr.rel (%p148) target = $region12
    $region11: #{autoencoder_forward.9} parent=5 // pred_region
      %s152 = ssub.s32 %s9, 1
      // Predicated region
      $region13: #{autoencoder_forward.9} parent=11 // pred_check
        %p153 = pneg %p84
      $region14: #{autoencoder_forward.9} parent=11 // pred_check_branch
        %155 = sbr.rel (%p153) target = $region16
      $region15: #{autoencoder_forward.9} parent=11 // pred_region
        %s156 = smul.u32 18, %s21
        %p157 = scmp.lt.s32.totalorder %s156, 17
        %s158 = scalar_select %p157, %s156, 17
        %p159 = scmp.lt.s32.totalorder %s20, 0
        %s160 = scalar_select %p159, %s20, 0
        %s161 = sadd.s32 %s160, %s158
        %s162 = smul.addr %s161, 4
        %s163 = scalar_lea.vmem %s1, %s162
        %s164 = smul.u32 18, %s21
      $region16: #{autoencoder_forward.9} parent=11 // pred_fallthru
        _
      // Predicated region
      $region17: #{autoencoder_forward.9} parent=11 // pred_check
        %p165 = pneg %p110
      $region18: #{autoencoder_forward.9} parent=11 // pred_check_branch
        %167 = sbr.rel (%p165) target = $region20
      $region19: #{autoencoder_forward.9} parent=11 // pred_region
        %p168 = scmp.lt.s32.totalorder %s20, 0
        %s169 = scalar_select %p168, %s20, 0
        %s170 = scalar_lea.vmem %s2, %s169
      $region20: #{autoencoder_forward.9} parent=11 // pred_fallthru
        _
    $region12: #{autoencoder_forward.9} parent=5 // pred_fallthru
      _
    %p171 = scmp.lt.s32.totalorder %s9, 14
    // Predicated region
    $region21: #{autoencoder_forward.9} parent=5 // pred_check
      %p172 = pneg %p171
    $region22: #{autoencoder_forward.9} parent=5 // pred_check_branch
      %174 = sbr.rel (%p172) target = $region24
    $region23: #{autoencoder_forward.9} parent=5 // pred_region
      // Predicated region
      $region25: #{autoencoder_forward.9} parent=23 // pred_check
        %p175 = pneg %p50
      $region26: #{autoencoder_forward.9} parent=23 // pred_check_branch
        %177 = sbr.rel (%p175) target = $region28
      $region27: #{autoencoder_forward.9} parent=23 // pred_region
        %s178 = smul.u32 56, %s16
        %s179 = smul.u32 2, %s18
        %p180 = scmp.lt.s32.totalorder %s178, 783
        %s181 = scalar_select %p180, %s178, 783
        %p182 = scmp.lt.s32.totalorder %s179, 1
        %s183 = scalar_select %p182, %s179, 1
        %s184 = smul.addr %s181, 2
        %s185 = sadd.s32 %s183, %s184
        %s186 = smul.addr %s185, 4
        %s187 = scalar_lea.vmem %s0, %s186
        %s188 = smul.u32 56, %s16
        %s189 = smul.u32 2, %s18
      $region28: #{autoencoder_forward.9} parent=23 // pred_fallthru
        _
    $region24: #{autoencoder_forward.9} parent=5 // pred_fallthru
      _
    %p190 = scmp.le.s32.totalorder 1, %s9
    %p191 = scmp.lt.s32.totalorder %s9, 15
    %p192 = pnand %p190, %p191
    %p193 = pneg %p192
    // Predicated region
    $region29: #{autoencoder_forward.9} parent=5 // pred_check
      _
    $region30: #{autoencoder_forward.9} parent=5 // pred_check_branch
      %195 = sbr.rel (%p192) target = $region32
    $region31: #{autoencoder_forward.9} parent=5 // pred_region
      %s196 = ssub.s32 %s9, 1
      %s197 = smul.u32 56, %s19
      %s198 = smul.u32 2, %s21
      %p199 = scmp.lt.s32.totalorder %s197, 783
      %s200 = scalar_select %p199, %s197, 783
      %p201 = scmp.lt.s32.totalorder %s198, 1
      %s202 = scalar_select %p201, %s198, 1
      %s203 = smul.addr %s200, 2
      %s204 = sadd.s32 %s202, %s203
      %s205 = smul.addr %s204, 4
      %s206 = scalar_lea.vmem %s0, %s205
      %p207 = pneg %p56
      %p208 = pneg %p53
      %s209 = smul.u32 18, %s21
      %p210 = scmp.lt.s32.totalorder %s209, 17
      %s211 = scalar_select %p210, %s209, 17
      %p212 = scmp.lt.s32.totalorder %s20, 0
      %s213 = scalar_select %p212, %s20, 0
      %s214 = sadd.s32 %s213, %s211
      %s215 = smul.addr %s214, 4
      %s216 = scalar_lea.vmem %s1, %s215
      %p217 = pneg %p84
      %p218 = pneg %p81
      %p219 = scmp.lt.s32.totalorder %s20, 0
      %s220 = scalar_select %p219, %s20, 0
      %s221 = scalar_lea.vmem %s2, %s220
      %p222 = pneg %p110
      %p223 = pneg %p107
      %p224 = pneg %p138
      %p225 = pneg %p135
      %s226 = smul.u32 56, %s19
      %p227 = scmp.lt.s32.totalorder %s226, 783
      %s228 = scalar_select %p227, %s226, 783
      %p229 = scmp.lt.s32.totalorder %s20, 0
      %s230 = scalar_select %p229, %s20, 0
      %s231 = sadd.s32 %s230, %s228
      %s232 = smul.addr %s231, 4
      %s233 = scalar_lea.vmem %s3, %s232
      %s234 = smul.u32 56, %s19
      %s235 = smul.u32 2, %s21
      %p236 = scmp.lt.s32.totalorder %s234, 783
      %s237 = scalar_select %p236, %s234, 783
      %p238 = scmp.lt.s32.totalorder %s235, 1
      %s239 = scalar_select %p238, %s235, 1
      %s240 = smul.addr %s237, 2
      %s241 = sadd.s32 %s239, %s240
      %s242 = smul.addr %s241, 4
      %s243 = scalar_lea.vmem %s0, %s242
      %s244 = smul.u32 56, %s19
      %s245 = smul.u32 2, %s21
      %s246 = smul.u32 18, %s21
      %p247 = scmp.lt.s32.totalorder %s246, 17
      %s248 = scalar_select %p247, %s246, 17
      %p249 = scmp.lt.s32.totalorder %s20, 0
      %s250 = scalar_select %p249, %s20, 0
      %s251 = sadd.s32 %s250, %s248
      %s252 = smul.addr %s251, 4
      %s253 = scalar_lea.vmem %s1, %s252
      %s254 = smul.u32 18, %s21
      %p255 = scmp.lt.s32.totalorder %s20, 0
      %s256 = scalar_select %p255, %s20, 0
      %s257 = scalar_lea.vmem %s2, %s256
      %s258 = smul.u32 56, %s19
      %p259 = scmp.lt.s32.totalorder %s258, 783
      %s260 = scalar_select %p259, %s258, 783
      %p261 = scmp.lt.s32.totalorder %s20, 0
      %s262 = scalar_select %p261, %s20, 0
      %s263 = sadd.s32 %s262, %s260
      %s264 = smul.addr %s263, 4
      %s265 = scalar_lea.vmem %s3, %s264
      %s266 = smul.u32 56, %s19
      %v268 = vld [vmem:[%s243] sm:$0xff]
      %v269 = vld [vmem:[%s243 + $0x8] sm:$0xff]
      %v270 = vld [vmem:[%s243 + $0x10] sm:$0xff]
      %v271 = vld [vmem:[%s243 + $0x18] sm:$0xff]
      %v272 = vld [vmem:[%s243 + $0x20] sm:$0xff]
      %v273 = vld [vmem:[%s243 + $0x28] sm:$0xff]
      %v274 = vld [vmem:[%s243 + $0x30] sm:$0xff]
      %v275 = vld [vmem:[%s243 + $0x38] sm:$0xff]
      %v276 = vld [vmem:[%s243 + $0x40] sm:$0xff]
      %v277 = vld [vmem:[%s243 + $0x48] sm:$0xff]
      %v278 = vld [vmem:[%s243 + $0x50] sm:$0xff]
      %v279 = vld [vmem:[%s243 + $0x58] sm:$0xff]
      %v280 = vld [vmem:[%s243 + $0x60] sm:$0xff]
      %v281 = vld [vmem:[%s243 + $0x68] sm:$0xff]
      %v282 = vld [vmem:[%s243 + $0x70] sm:$0xff]
      %v283 = vld [vmem:[%s243 + $0x78] sm:$0xff]
      %v284 = vld [vmem:[%s243 + $0x80] sm:$0xff]
      %v285 = vld [vmem:[%s243 + $0x88] sm:$0xff]
      %v286 = vld [vmem:[%s243 + $0x90] sm:$0xff]
      %v287 = vld [vmem:[%s243 + $0x98] sm:$0xff]
      %v288 = vld [vmem:[%s243 + $0xa0] sm:$0xff]
      %v289 = vld [vmem:[%s243 + $0xa8] sm:$0xff]
      %v290 = vld [vmem:[%s243 + $0xb0] sm:$0xff]
      %v291 = vld [vmem:[%s243 + $0xb8] sm:$0xff]
      %v292 = vld [vmem:[%s243 + $0xc0] sm:$0xff]
      %v293 = vld [vmem:[%s243 + $0xc8] sm:$0xff]
      %v294 = vld [vmem:[%s243 + $0xd0] sm:$0xff]
      %v295 = vld [vmem:[%s243 + $0xd8] sm:$0xff]
      %v296 = vld [vmem:[%s243 + $0xe0] sm:$0xff]
      %v297 = vld [vmem:[%s243 + $0xe8] sm:$0xff]
      %v298 = vld [vmem:[%s243 + $0xf0] sm:$0xff]
      %v299 = vld [vmem:[%s243 + $0xf8] sm:$0xff]
      %v300 = vld [vmem:[%s243 + $0x100] sm:$0xff]
      %v301 = vld [vmem:[%s243 + $0x108] sm:$0xff]
      %v302 = vld [vmem:[%s243 + $0x110] sm:$0xff]
      %v303 = vld [vmem:[%s243 + $0x118] sm:$0xff]
      %v304 = vld [vmem:[%s243 + $0x120] sm:$0xff]
      %v305 = vld [vmem:[%s243 + $0x128] sm:$0xff]
      %v306 = vld [vmem:[%s243 + $0x130] sm:$0xff]
      %v307 = vld [vmem:[%s243 + $0x138] sm:$0xff]
      %v308 = vld [vmem:[%s243 + $0x140] sm:$0xff]
      %v309 = vld [vmem:[%s243 + $0x148] sm:$0xff]
      %v310 = vld [vmem:[%s243 + $0x150] sm:$0xff]
      %v311 = vld [vmem:[%s243 + $0x158] sm:$0xff]
      %v312 = vld [vmem:[%s243 + $0x160] sm:$0xff]
      %v313 = vld [vmem:[%s243 + $0x168] sm:$0xff]
      %v314 = vld [vmem:[%s243 + $0x170] sm:$0xff]
      %v315 = vld [vmem:[%s243 + $0x178] sm:$0xff]
      %v316 = vld [vmem:[%s243 + $0x180] sm:$0xff]
      %v317 = vld [vmem:[%s243 + $0x188] sm:$0xff]
      %v318 = vld [vmem:[%s243 + $0x190] sm:$0xff]
      %v319 = vld [vmem:[%s243 + $0x198] sm:$0xff]
      %v320 = vld [vmem:[%s243 + $0x1a0] sm:$0xff]
      %v321 = vld [vmem:[%s243 + $0x1a8] sm:$0xff]
      %v322 = vld [vmem:[%s243 + $0x1b0] sm:$0xff]
      %v323 = vld [vmem:[%s243 + $0x1b8] sm:$0xff]
      %v324 = vld [vmem:[%s253] sm:$0xf]
      %v325 = vld [vmem:[%s253 + $0x4] sm:$0xf]
      %v326 = vld [vmem:[%s253 + $0x8] sm:$0xf]
      %v327 = vld [vmem:[%s253 + $0xc] sm:$0xf]
      %v328 = vld [vmem:[%s253 + $0x10] sm:$0xf]
      %v329 = vld [vmem:[%s253 + $0x14] sm:$0xf]
      %v330 = vld [vmem:[%s253 + $0x18] sm:$0xf]
      %v331 = vld [vmem:[%s253 + $0x1c] sm:$0xf]
      %v332 = vld [vmem:[%s253 + $0x20] sm:$0xf]
      %v333 = vld [vmem:[%s253 + $0x24] sm:$0xf]
      %v334 = vld [vmem:[%s253 + $0x28] sm:$0xf]
      %v335 = vld [vmem:[%s253 + $0x2c] sm:$0xf]
      %v336 = vld [vmem:[%s253 + $0x30] sm:$0xf]
      %v337 = vld [vmem:[%s253 + $0x34] sm:$0xf]
      %v338 = vld [vmem:[%s253 + $0x38] sm:$0xf]
      %v339 = vld [vmem:[%s253 + $0x3c] sm:$0xf]
      %v340 = vld [vmem:[%s253 + $0x40] sm:$0xf]
      %v341 = vld [vmem:[%s253 + $0x44] sm:$0xf]
      %v342 = vld [vmem:[%s257] sm:$0x1]
      %v344 = vlaneseq
      %v345 = vshrl.u32 %v344, 7
      %v346 = vsub.s32 0, %v345
      %v347 = vrot.slane %v342, %v346
      %v405 = vunpack.c.l.b16 %v268
      %v406 = vunpack.c.h.b16 %v268
      %v407 = vunpack.c.l.b16 %v269
      %v408 = vunpack.c.h.b16 %v269
      %v409 = vunpack.c.l.b16 %v270
      %v410 = vunpack.c.h.b16 %v270
      %v411 = vunpack.c.l.b16 %v271
      %v412 = vunpack.c.h.b16 %v271
      %v413 = vunpack.c.l.b16 %v272
      %v414 = vunpack.c.h.b16 %v272
      %v415 = vunpack.c.l.b16 %v273
      %v416 = vunpack.c.h.b16 %v273
      %v417 = vunpack.c.l.b16 %v274
      %v418 = vunpack.c.h.b16 %v274
      %v419 = vunpack.c.l.b16 %v275
      %v420 = vunpack.c.h.b16 %v275
      %v421 = vunpack.c.l.b16 %v276
      %v422 = vunpack.c.h.b16 %v276
      %v423 = vunpack.c.l.b16 %v277
      %v424 = vunpack.c.h.b16 %v277
      %v425 = vunpack.c.l.b16 %v278
      %v426 = vunpack.c.h.b16 %v278
      %v427 = vunpack.c.l.b16 %v279
      %v428 = vunpack.c.h.b16 %v279
      %v429 = vunpack.c.l.b16 %v280
      %v430 = vunpack.c.h.b16 %v280
      %v431 = vunpack.c.l.b16 %v281
      %v432 = vunpack.c.h.b16 %v281
      %v433 = vunpack.c.l.b16 %v282
      %v434 = vunpack.c.h.b16 %v282
      %v435 = vunpack.c.l.b16 %v283
      %v436 = vunpack.c.h.b16 %v283
      %v437 = vunpack.c.l.b16 %v284
      %v438 = vunpack.c.h.b16 %v284
      %v439 = vunpack.c.l.b16 %v285
      %v440 = vunpack.c.h.b16 %v285
      %v441 = vunpack.c.l.b16 %v286
      %v442 = vunpack.c.h.b16 %v286
      %v443 = vunpack.c.l.b16 %v287
      %v444 = vunpack.c.h.b16 %v287
      %v445 = vunpack.c.l.b16 %v288
      %v446 = vunpack.c.h.b16 %v288
      %v447 = vunpack.c.l.b16 %v289
      %v448 = vunpack.c.h.b16 %v289
      %v449 = vunpack.c.l.b16 %v290
      %v450 = vunpack.c.h.b16 %v290
      %v451 = vunpack.c.l.b16 %v291
      %v452 = vunpack.c.h.b16 %v291
      %v453 = vunpack.c.l.b16 %v292
      %v454 = vunpack.c.h.b16 %v292
      %v455 = vunpack.c.l.b16 %v293
      %v456 = vunpack.c.h.b16 %v293
      %v457 = vunpack.c.l.b16 %v294
      %v458 = vunpack.c.h.b16 %v294
      %v459 = vunpack.c.l.b16 %v295
      %v460 = vunpack.c.h.b16 %v295
      %v461 = vunpack.c.l.b16 %v296
      %v462 = vunpack.c.h.b16 %v296
      %v463 = vunpack.c.l.b16 %v297
      %v464 = vunpack.c.h.b16 %v297
      %v465 = vunpack.c.l.b16 %v298
      %v466 = vunpack.c.h.b16 %v298
      %v467 = vunpack.c.l.b16 %v299
      %v468 = vunpack.c.h.b16 %v299
      %v469 = vunpack.c.l.b16 %v300
      %v470 = vunpack.c.h.b16 %v300
      %v471 = vunpack.c.l.b16 %v301
      %v472 = vunpack.c.h.b16 %v301
      %v473 = vunpack.c.l.b16 %v302
      %v474 = vunpack.c.h.b16 %v302
      %v475 = vunpack.c.l.b16 %v303
      %v476 = vunpack.c.h.b16 %v303
      %v477 = vunpack.c.l.b16 %v304
      %v478 = vunpack.c.h.b16 %v304
      %v479 = vunpack.c.l.b16 %v305
      %v480 = vunpack.c.h.b16 %v305
      %v481 = vunpack.c.l.b16 %v306
      %v482 = vunpack.c.h.b16 %v306
      %v483 = vunpack.c.l.b16 %v307
      %v484 = vunpack.c.h.b16 %v307
      %v485 = vunpack.c.l.b16 %v308
      %v486 = vunpack.c.h.b16 %v308
      %v487 = vunpack.c.l.b16 %v309
      %v488 = vunpack.c.h.b16 %v309
      %v489 = vunpack.c.l.b16 %v310
      %v490 = vunpack.c.h.b16 %v310
      %v491 = vunpack.c.l.b16 %v311
      %v492 = vunpack.c.h.b16 %v311
      %v493 = vunpack.c.l.b16 %v312
      %v494 = vunpack.c.h.b16 %v312
      %v495 = vunpack.c.l.b16 %v313
      %v496 = vunpack.c.h.b16 %v313
      %v497 = vunpack.c.l.b16 %v314
      %v498 = vunpack.c.h.b16 %v314
      %v499 = vunpack.c.l.b16 %v315
      %v500 = vunpack.c.h.b16 %v315
      %v501 = vunpack.c.l.b16 %v316
      %v502 = vunpack.c.h.b16 %v316
      %v503 = vunpack.c.l.b16 %v317
      %v504 = vunpack.c.h.b16 %v317
      %v505 = vunpack.c.l.b16 %v318
      %v506 = vunpack.c.h.b16 %v318
      %v507 = vunpack.c.l.b16 %v319
      %v508 = vunpack.c.h.b16 %v319
      %v509 = vunpack.c.l.b16 %v320
      %v510 = vunpack.c.h.b16 %v320
      %v511 = vunpack.c.l.b16 %v321
      %v512 = vunpack.c.h.b16 %v321
      %v513 = vunpack.c.l.b16 %v322
      %v514 = vunpack.c.h.b16 %v322
      %v515 = vunpack.c.l.b16 %v323
      %v516 = vunpack.c.h.b16 %v323
      %v517 = vpack.c.b16 %v407, %v405
      %v518 = vpack.c.b16 %v408, %v406
      %v519 = vpack.c.b16 %v411, %v409
      %v520 = vpack.c.b16 %v412, %v410
      %v521 = vpack.c.b16 %v415, %v413
      %v522 = vpack.c.b16 %v416, %v414
      %v523 = vpack.c.b16 %v419, %v417
      %v524 = vpack.c.b16 %v420, %v418
      %v525 = vpack.c.b16 %v423, %v421
      %v526 = vpack.c.b16 %v424, %v422
      %v527 = vpack.c.b16 %v427, %v425
      %v528 = vpack.c.b16 %v428, %v426
      %v529 = vpack.c.b16 %v431, %v429
      %v530 = vpack.c.b16 %v432, %v430
      %v531 = vpack.c.b16 %v435, %v433
      %v532 = vpack.c.b16 %v436, %v434
      %v533 = vpack.c.b16 %v439, %v437
      %v534 = vpack.c.b16 %v440, %v438
      %v535 = vpack.c.b16 %v443, %v441
      %v536 = vpack.c.b16 %v444, %v442
      %v537 = vpack.c.b16 %v447, %v445
      %v538 = vpack.c.b16 %v448, %v446
      %v539 = vpack.c.b16 %v451, %v449
      %v540 = vpack.c.b16 %v452, %v450
      %v541 = vpack.c.b16 %v455, %v453
      %v542 = vpack.c.b16 %v456, %v454
      %v543 = vpack.c.b16 %v459, %v457
      %v544 = vpack.c.b16 %v460, %v458
      %v545 = vpack.c.b16 %v463, %v461
      %v546 = vpack.c.b16 %v464, %v462
      %v547 = vpack.c.b16 %v467, %v465
      %v548 = vpack.c.b16 %v468, %v466
      %v549 = vpack.c.b16 %v471, %v469
      %v550 = vpack.c.b16 %v472, %v470
      %v551 = vpack.c.b16 %v475, %v473
      %v552 = vpack.c.b16 %v476, %v474
      %v553 = vpack.c.b16 %v479, %v477
      %v554 = vpack.c.b16 %v480, %v478
      %v555 = vpack.c.b16 %v483, %v481
      %v556 = vpack.c.b16 %v484, %v482
      %v557 = vpack.c.b16 %v487, %v485
      %v558 = vpack.c.b16 %v488, %v486
      %v559 = vpack.c.b16 %v491, %v489
      %v560 = vpack.c.b16 %v492, %v490
      %v561 = vpack.c.b16 %v495, %v493
      %v562 = vpack.c.b16 %v496, %v494
      %v563 = vpack.c.b16 %v499, %v497
      %v564 = vpack.c.b16 %v500, %v498
      %v565 = vpack.c.b16 %v503, %v501
      %v566 = vpack.c.b16 %v504, %v502
      %v567 = vpack.c.b16 %v507, %v505
      %v568 = vpack.c.b16 %v508, %v506
      %v569 = vpack.c.b16 %v511, %v509
      %v570 = vpack.c.b16 %v512, %v510
      %v571 = vpack.c.b16 %v515, %v513
      %v572 = vpack.c.b16 %v516, %v514
      %v619 = vunpack.c.l.b16 %v324
      %v620 = vunpack.c.l.b16 %v325
      %v621 = vunpack.c.l.b16 %v326
      %v622 = vunpack.c.l.b16 %v327
      %v623 = vunpack.c.l.b16 %v328
      %v624 = vunpack.c.l.b16 %v329
      %v625 = vunpack.c.l.b16 %v330
      %v626 = vunpack.c.l.b16 %v331
      %v627 = vunpack.c.l.b16 %v332
      %v628 = vunpack.c.l.b16 %v333
      %v629 = vunpack.c.l.b16 %v334
      %v630 = vunpack.c.l.b16 %v335
      %v631 = vunpack.c.l.b16 %v336
      %v632 = vunpack.c.l.b16 %v337
      %v633 = vunpack.c.l.b16 %v338
      %v634 = vunpack.c.l.b16 %v339
      %v635 = vunpack.c.l.b16 %v340
      %v636 = vunpack.c.l.b16 %v341
      %v637 = vpack.c.b16 %v620, %v619
      %v638 = vpack.c.b16 %v622, %v621
      %v639 = vpack.c.b16 %v624, %v623
      %v640 = vpack.c.b16 %v626, %v625
      %v641 = vpack.c.b16 %v628, %v627
      %v642 = vpack.c.b16 %v630, %v629
      %v643 = vpack.c.b16 %v632, %v631
      %v644 = vpack.c.b16 %v634, %v633
      %v645 = vpack.c.b16 %v636, %v635
      %vm655 = vcmask 130048
      %v657 = vsel %vm655, %v518, 0
      %v660 = vsel %vm655, %v520, 0
      %v663 = vsel %vm655, %v522, 0
      %v666 = vsel %vm655, %v524, 0
      %v669 = vsel %vm655, %v526, 0
      %v672 = vsel %vm655, %v528, 0
      %v675 = vsel %vm655, %v530, 0
      %v678 = vsel %vm655, %v532, 0
      %v681 = vsel %vm655, %v534, 0
      %v684 = vsel %vm655, %v536, 0
      %v687 = vsel %vm655, %v538, 0
      %v690 = vsel %vm655, %v540, 0
      %v693 = vsel %vm655, %v542, 0
      %v696 = vsel %vm655, %v544, 0
      %v699 = vsel %vm655, %v546, 0
      %v702 = vsel %vm655, %v548, 0
      %v705 = vsel %vm655, %v550, 0
      %v708 = vsel %vm655, %v552, 0
      %v711 = vsel %vm655, %v554, 0
      %v714 = vsel %vm655, %v556, 0
      %v717 = vsel %vm655, %v558, 0
      %v720 = vsel %vm655, %v560, 0
      %v723 = vsel %vm655, %v562, 0
      %v726 = vsel %vm655, %v564, 0
      %v729 = vsel %vm655, %v566, 0
      %v732 = vsel %vm655, %v568, 0
      %v735 = vsel %vm655, %v570, 0
      %v738 = vsel %vm655, %v572, 0
      %740 = vmatprep.subr.bf16.mxu0 0
      %741 = vmatpush1.bf16.msra.mxu0 %v637
      %742 = vmatprep.subr.bf16.mxu0 0
      %743 = vmatpush1.bf16.msra.mxu0 %v638
      %744 = vmatprep.subr.bf16.mxu0 0
      %745 = vmatpush1.bf16.msra.mxu0 %v639
      %746 = vmatprep.subr.bf16.mxu0 0
      %747 = vmatpush1.bf16.msra.mxu0 %v640
      %748 = vmatprep.subr.bf16.mxu0 0
      %749 = vmatpush1.bf16.msra.mxu0 %v641
      %750 = vmatprep.subr.bf16.mxu0 0
      %751 = vmatpush1.bf16.msra.mxu0 %v642
      %752 = vmatprep.subr.bf16.mxu0 0
      %753 = vmatpush1.bf16.msra.mxu0 %v643
      %754 = vmatprep.subr.bf16.mxu0 0
      %755 = vmatpush1.bf16.msra.mxu0 %v644
      %756 = vmatprep.subr.bf16.mxu0 0
      %757 = vmatpush1.bf16.msra.mxu0 %v645
      %758 = vmatprep.subr.bf16.mxu0 0
      %759 = vmatpush1.bf16.msra.mxu0 0
      %760 = vmatprep.subr.bf16.mxu0 0
      %761 = vmatpush1.bf16.msra.mxu0 0
      %762 = vmatprep.subr.bf16.mxu0 0
      %763 = vmatpush1.bf16.msra.mxu0 0
      %764 = vmatprep.subr.bf16.mxu0 0
      %765 = vmatpush1.bf16.msra.mxu0 0
      %766 = vmatprep.subr.bf16.mxu0 0
      %767 = vmatpush1.bf16.msra.mxu0 0
      %768 = vmatprep.subr.bf16.mxu0 0
      %769 = vmatpush1.bf16.msra.mxu0 0
      %770 = vmatprep.subr.bf16.mxu0 0
      %771 = vmatpush1.bf16.msra.mxu0 0
      %772 = vmatprep.mubr.bf16.mxu0 %v657
      %773 = vmatmul.mubr.bf16.gmra.mrb[0].mxu0 %v517
      %v774 = vpop.f32.mrb[0].mxu0
      %v775 = vadd.f32 %v347, %v774
      %v776 = vpop.f32.mrb[0].mxu0
      %v777 = vpop.f32.mrb[0].mxu0
      %v778 = vadd.f32 %v347, %v777
      %v779 = vpop.f32.mrb[0].mxu0
      %780 = vmatprep.mubr.bf16.mxu0 %v660
      %781 = vmatmul.mubr.bf16.gmra.mrb[0].mxu0 %v519
      %v782 = vpop.f32.mrb[0].mxu0
      %v783 = vadd.f32 %v347, %v782
      %v784 = vpop.f32.mrb[0].mxu0
      %v785 = vpop.f32.mrb[0].mxu0
      %v786 = vadd.f32 %v347, %v785
      %v787 = vpop.f32.mrb[0].mxu0
      %788 = vmatprep.mubr.bf16.mxu0 %v663
      %789 = vmatmul.mubr.bf16.gmra.mrb[0].mxu0 %v521
      %v790 = vpop.f32.mrb[0].mxu0
      %v791 = vadd.f32 %v347, %v790
      %v792 = vpop.f32.mrb[0].mxu0
      %v793 = vpop.f32.mrb[0].mxu0
      %v794 = vadd.f32 %v347, %v793
      %v795 = vpop.f32.mrb[0].mxu0
      %796 = vmatprep.mubr.bf16.mxu0 %v666
      %797 = vmatmul.mubr.bf16.gmra.mrb[0].mxu0 %v523
      %v798 = vpop.f32.mrb[0].mxu0
      %v799 = vadd.f32 %v347, %v798
      %v800 = vpop.f32.mrb[0].mxu0
      %v801 = vpop.f32.mrb[0].mxu0
      %v802 = vadd.f32 %v347, %v801
      %v803 = vpop.f32.mrb[0].mxu0
      %804 = vmatprep.mubr.bf16.mxu0 %v669
      %805 = vmatmul.mubr.bf16.gmra.mrb[0].mxu0 %v525
      %v806 = vpop.f32.mrb[0].mxu0
      %v807 = vadd.f32 %v347, %v806
      %v808 = vpop.f32.mrb[0].mxu0
      %v809 = vpop.f32.mrb[0].mxu0
      %v810 = vadd.f32 %v347, %v809
      %v811 = vpop.f32.mrb[0].mxu0
      %812 = vmatprep.mubr.bf16.mxu0 %v672
      %813 = vmatmul.mubr.bf16.gmra.mrb[0].mxu0 %v527
      %v814 = vpop.f32.mrb[0].mxu0
      %v815 = vadd.f32 %v347, %v814
      %v816 = vpop.f32.mrb[0].mxu0
      %v817 = vpop.f32.mrb[0].mxu0
      %v818 = vadd.f32 %v347, %v817
      %v819 = vpop.f32.mrb[0].mxu0
      %820 = vmatprep.mubr.bf16.mxu0 %v675
      %821 = vmatmul.mubr.bf16.gmra.mrb[0].mxu0 %v529
      %v822 = vpop.f32.mrb[0].mxu0
      %v823 = vadd.f32 %v347, %v822
      %v824 = vpop.f32.mrb[0].mxu0
      %v825 = vpop.f32.mrb[0].mxu0
      %v826 = vadd.f32 %v347, %v825
      %v827 = vpop.f32.mrb[0].mxu0
      %828 = vmatprep.mubr.bf16.mxu0 %v678
      %829 = vmatmul.mubr.bf16.gmra.mrb[0].mxu0 %v531
      %v830 = vpop.f32.mrb[0].mxu0
      %v831 = vadd.f32 %v347, %v830
      %v832 = vpop.f32.mrb[0].mxu0
      %v833 = vpop.f32.mrb[0].mxu0
      %v834 = vadd.f32 %v347, %v833
      %v835 = vpop.f32.mrb[0].mxu0
      %836 = vmatprep.mubr.bf16.mxu0 %v681
      %837 = vmatmul.mubr.bf16.gmra.mrb[0].mxu0 %v533
      %v838 = vpop.f32.mrb[0].mxu0
      %v839 = vadd.f32 %v347, %v838
      %v840 = vpop.f32.mrb[0].mxu0
      %v841 = vpop.f32.mrb[0].mxu0
      %v842 = vadd.f32 %v347, %v841
      %v843 = vpop.f32.mrb[0].mxu0
      %844 = vmatprep.mubr.bf16.mxu0 %v684
      %845 = vmatmul.mubr.bf16.gmra.mrb[0].mxu0 %v535
      %v846 = vpop.f32.mrb[0].mxu0
      %v847 = vadd.f32 %v347, %v846
      %v848 = vpop.f32.mrb[0].mxu0
      %v849 = vpop.f32.mrb[0].mxu0
      %v850 = vadd.f32 %v347, %v849
      %v851 = vpop.f32.mrb[0].mxu0
      %852 = vmatprep.mubr.bf16.mxu0 %v687
      %853 = vmatmul.mubr.bf16.gmra.mrb[0].mxu0 %v537
      %v854 = vpop.f32.mrb[0].mxu0
      %v855 = vadd.f32 %v347, %v854
      %v856 = vpop.f32.mrb[0].mxu0
      %v857 = vpop.f32.mrb[0].mxu0
      %v858 = vadd.f32 %v347, %v857
      %v859 = vpop.f32.mrb[0].mxu0
      %860 = vmatprep.mubr.bf16.mxu0 %v690
      %861 = vmatmul.mubr.bf16.gmra.mrb[0].mxu0 %v539
      %v862 = vpop.f32.mrb[0].mxu0
      %v863 = vadd.f32 %v347, %v862
      %v864 = vpop.f32.mrb[0].mxu0
      %v865 = vpop.f32.mrb[0].mxu0
      %v866 = vadd.f32 %v347, %v865
      %v867 = vpop.f32.mrb[0].mxu0
      %868 = vmatprep.mubr.bf16.mxu0 %v693
      %869 = vmatmul.mubr.bf16.gmra.mrb[0].mxu0 %v541
      %v870 = vpop.f32.mrb[0].mxu0
      %v871 = vadd.f32 %v347, %v870
      %v872 = vpop.f32.mrb[0].mxu0
      %v873 = vpop.f32.mrb[0].mxu0
      %v874 = vadd.f32 %v347, %v873
      %v875 = vpop.f32.mrb[0].mxu0
      %876 = vmatprep.mubr.bf16.mxu0 %v696
      %877 = vmatmul.mubr.bf16.gmra.mrb[0].mxu0 %v543
      %v878 = vpop.f32.mrb[0].mxu0
      %v879 = vadd.f32 %v347, %v878
      %v880 = vpop.f32.mrb[0].mxu0
      %v881 = vpop.f32.mrb[0].mxu0
      %v882 = vadd.f32 %v347, %v881
      %v883 = vpop.f32.mrb[0].mxu0
      %884 = vmatprep.mubr.bf16.mxu0 %v699
      %885 = vmatmul.mubr.bf16.gmra.mrb[0].mxu0 %v545
      %v886 = vpop.f32.mrb[0].mxu0
      %v887 = vadd.f32 %v347, %v886
      %v888 = vpop.f32.mrb[0].mxu0
      %v889 = vpop.f32.mrb[0].mxu0
      %v890 = vadd.f32 %v347, %v889
      %v891 = vpop.f32.mrb[0].mxu0
      %892 = vmatprep.mubr.bf16.mxu0 %v702
      %893 = vmatmul.mubr.bf16.gmra.mrb[0].mxu0 %v547
      %v894 = vpop.f32.mrb[0].mxu0
      %v895 = vadd.f32 %v347, %v894
      %v896 = vpop.f32.mrb[0].mxu0
      %v897 = vpop.f32.mrb[0].mxu0
      %v898 = vadd.f32 %v347, %v897
      %v899 = vpop.f32.mrb[0].mxu0
      %900 = vmatprep.mubr.bf16.mxu0 %v705
      %901 = vmatmul.mubr.bf16.gmra.mrb[0].mxu0 %v549
      %v902 = vpop.f32.mrb[0].mxu0
      %v903 = vadd.f32 %v347, %v902
      %v904 = vpop.f32.mrb[0].mxu0
      %v905 = vpop.f32.mrb[0].mxu0
      %v906 = vadd.f32 %v347, %v905
      %v907 = vpop.f32.mrb[0].mxu0
      %908 = vmatprep.mubr.bf16.mxu0 %v708
      %909 = vmatmul.mubr.bf16.gmra.mrb[0].mxu0 %v551
      %v910 = vpop.f32.mrb[0].mxu0
      %v911 = vadd.f32 %v347, %v910
      %v912 = vpop.f32.mrb[0].mxu0
      %v913 = vpop.f32.mrb[0].mxu0
      %v914 = vadd.f32 %v347, %v913
      %v915 = vpop.f32.mrb[0].mxu0
      %916 = vmatprep.mubr.bf16.mxu0 %v711
      %917 = vmatmul.mubr.bf16.gmra.mrb[0].mxu0 %v553
      %v918 = vpop.f32.mrb[0].mxu0
      %v919 = vadd.f32 %v347, %v918
      %v920 = vpop.f32.mrb[0].mxu0
      %v921 = vpop.f32.mrb[0].mxu0
      %v922 = vadd.f32 %v347, %v921
      %v923 = vpop.f32.mrb[0].mxu0
      %924 = vmatprep.mubr.bf16.mxu0 %v714
      %925 = vmatmul.mubr.bf16.gmra.mrb[0].mxu0 %v555
      %v926 = vpop.f32.mrb[0].mxu0
      %v927 = vadd.f32 %v347, %v926
      %v928 = vpop.f32.mrb[0].mxu0
      %v929 = vpop.f32.mrb[0].mxu0
      %v930 = vadd.f32 %v347, %v929
      %v931 = vpop.f32.mrb[0].mxu0
      %932 = vmatprep.mubr.bf16.mxu0 %v717
      %933 = vmatmul.mubr.bf16.gmra.mrb[0].mxu0 %v557
      %v934 = vpop.f32.mrb[0].mxu0
      %v935 = vadd.f32 %v347, %v934
      %v936 = vpop.f32.mrb[0].mxu0
      %v937 = vpop.f32.mrb[0].mxu0
      %v938 = vadd.f32 %v347, %v937
      %v939 = vpop.f32.mrb[0].mxu0
      %940 = vmatprep.mubr.bf16.mxu0 %v720
      %941 = vmatmul.mubr.bf16.gmra.mrb[0].mxu0 %v559
      %v942 = vpop.f32.mrb[0].mxu0
      %v943 = vadd.f32 %v347, %v942
      %v944 = vpop.f32.mrb[0].mxu0
      %v945 = vpop.f32.mrb[0].mxu0
      %v946 = vadd.f32 %v347, %v945
      %v947 = vpop.f32.mrb[0].mxu0
      %948 = vmatprep.mubr.bf16.mxu0 %v723
      %949 = vmatmul.mubr.bf16.gmra.mrb[0].mxu0 %v561
      %v950 = vpop.f32.mrb[0].mxu0
      %v951 = vadd.f32 %v347, %v950
      %v952 = vpop.f32.mrb[0].mxu0
      %v953 = vpop.f32.mrb[0].mxu0
      %v954 = vadd.f32 %v347, %v953
      %v955 = vpop.f32.mrb[0].mxu0
      %956 = vmatprep.mubr.bf16.mxu0 %v726
      %957 = vmatmul.mubr.bf16.gmra.mrb[0].mxu0 %v563
      %v958 = vpop.f32.mrb[0].mxu0
      %v959 = vadd.f32 %v347, %v958
      %v960 = vpop.f32.mrb[0].mxu0
      %v961 = vpop.f32.mrb[0].mxu0
      %v962 = vadd.f32 %v347, %v961
      %v963 = vpop.f32.mrb[0].mxu0
      %964 = vmatprep.mubr.bf16.mxu0 %v729
      %965 = vmatmul.mubr.bf16.gmra.mrb[0].mxu0 %v565
      %v966 = vpop.f32.mrb[0].mxu0
      %v967 = vadd.f32 %v347, %v966
      %v968 = vpop.f32.mrb[0].mxu0
      %v969 = vpop.f32.mrb[0].mxu0
      %v970 = vadd.f32 %v347, %v969
      %v971 = vpop.f32.mrb[0].mxu0
      %972 = vmatprep.mubr.bf16.mxu0 %v732
      %973 = vmatmul.mubr.bf16.gmra.mrb[0].mxu0 %v567
      %v974 = vpop.f32.mrb[0].mxu0
      %v975 = vadd.f32 %v347, %v974
      %v976 = vpop.f32.mrb[0].mxu0
      %v977 = vpop.f32.mrb[0].mxu0
      %v978 = vadd.f32 %v347, %v977
      %v979 = vpop.f32.mrb[0].mxu0
      %980 = vmatprep.mubr.bf16.mxu0 %v735
      %981 = vmatmul.mubr.bf16.gmra.mrb[0].mxu0 %v569
      %v982 = vpop.f32.mrb[0].mxu0
      %v983 = vadd.f32 %v347, %v982
      %v984 = vpop.f32.mrb[0].mxu0
      %v985 = vpop.f32.mrb[0].mxu0
      %v986 = vadd.f32 %v347, %v985
      %v987 = vpop.f32.mrb[0].mxu0
      %988 = vmatprep.mubr.bf16.mxu0 %v738
      %989 = vmatmul.mubr.bf16.gmra.mrb[0].mxu0 %v571
      %v990 = vpop.f32.mrb[0].mxu0
      %v991 = vadd.f32 %v347, %v990
      %v992 = vpop.f32.mrb[0].mxu0
      %v993 = vpop.f32.mrb[0].mxu0
      %v994 = vadd.f32 %v347, %v993
      %v995 = vpop.f32.mrb[0].mxu0
      %996 = vdwg.mxu0
      %v997 = vmax.f32 %v775, 0.0
      %v998 = vmax.f32 %v778, 0.0
      %v999 = vmax.f32 %v783, 0.0
      %v1000 = vmax.f32 %v786, 0.0
      %v1001 = vmax.f32 %v791, 0.0
      %v1002 = vmax.f32 %v794, 0.0
      %v1003 = vmax.f32 %v799, 0.0
      %v1004 = vmax.f32 %v802, 0.0
      %v1005 = vmax.f32 %v807, 0.0
      %v1006 = vmax.f32 %v810, 0.0
      %v1007 = vmax.f32 %v815, 0.0
      %v1008 = vmax.f32 %v818, 0.0
      %v1009 = vmax.f32 %v823, 0.0
      %v1010 = vmax.f32 %v826, 0.0
      %v1011 = vmax.f32 %v831, 0.0
      %v1012 = vmax.f32 %v834, 0.0
      %v1013 = vmax.f32 %v839, 0.0
      %v1014 = vmax.f32 %v842, 0.0
      %v1015 = vmax.f32 %v847, 0.0
      %v1016 = vmax.f32 %v850, 0.0
      %v1017 = vmax.f32 %v855, 0.0
      %v1018 = vmax.f32 %v858, 0.0
      %v1019 = vmax.f32 %v863, 0.0
      %v1020 = vmax.f32 %v866, 0.0
      %v1021 = vmax.f32 %v871, 0.0
      %v1022 = vmax.f32 %v874, 0.0
      %v1023 = vmax.f32 %v879, 0.0
      %v1024 = vmax.f32 %v882, 0.0
      %v1025 = vmax.f32 %v887, 0.0
      %v1026 = vmax.f32 %v890, 0.0
      %v1027 = vmax.f32 %v895, 0.0
      %v1028 = vmax.f32 %v898, 0.0
      %v1029 = vmax.f32 %v903, 0.0
      %v1030 = vmax.f32 %v906, 0.0
      %v1031 = vmax.f32 %v911, 0.0
      %v1032 = vmax.f32 %v914, 0.0
      %v1033 = vmax.f32 %v919, 0.0
      %v1034 = vmax.f32 %v922, 0.0
      %v1035 = vmax.f32 %v927, 0.0
      %v1036 = vmax.f32 %v930, 0.0
      %v1037 = vmax.f32 %v935, 0.0
      %v1038 = vmax.f32 %v938, 0.0
      %v1039 = vmax.f32 %v943, 0.0
      %v1040 = vmax.f32 %v946, 0.0
      %v1041 = vmax.f32 %v951, 0.0
      %v1042 = vmax.f32 %v954, 0.0
      %v1043 = vmax.f32 %v959, 0.0
      %v1044 = vmax.f32 %v962, 0.0
      %v1045 = vmax.f32 %v967, 0.0
      %v1046 = vmax.f32 %v970, 0.0
      %v1047 = vmax.f32 %v975, 0.0
      %v1048 = vmax.f32 %v978, 0.0
      %v1049 = vmax.f32 %v983, 0.0
      %v1050 = vmax.f32 %v986, 0.0
      %v1051 = vmax.f32 %v991, 0.0
      %v1052 = vmax.f32 %v994, 0.0
      %v1053 = vpack.c.bf16 %v998, %v997
      %v1054 = vpack.c.bf16 %v1000, %v999
      %v1055 = vpack.c.bf16 %v1002, %v1001
      %v1056 = vpack.c.bf16 %v1004, %v1003
      %v1057 = vpack.c.bf16 %v1006, %v1005
      %v1058 = vpack.c.bf16 %v1008, %v1007
      %v1059 = vpack.c.bf16 %v1010, %v1009
      %v1060 = vpack.c.bf16 %v1012, %v1011
      %v1061 = vpack.c.bf16 %v1014, %v1013
      %v1062 = vpack.c.bf16 %v1016, %v1015
      %v1063 = vpack.c.bf16 %v1018, %v1017
      %v1064 = vpack.c.bf16 %v1020, %v1019
      %v1065 = vpack.c.bf16 %v1022, %v1021
      %v1066 = vpack.c.bf16 %v1024, %v1023
      %v1067 = vpack.c.bf16 %v1026, %v1025
      %v1068 = vpack.c.bf16 %v1028, %v1027
      %v1069 = vpack.c.bf16 %v1030, %v1029
      %v1070 = vpack.c.bf16 %v1032, %v1031
      %v1071 = vpack.c.bf16 %v1034, %v1033
      %v1072 = vpack.c.bf16 %v1036, %v1035
      %v1073 = vpack.c.bf16 %v1038, %v1037
      %v1074 = vpack.c.bf16 %v1040, %v1039
      %v1075 = vpack.c.bf16 %v1042, %v1041
      %v1076 = vpack.c.bf16 %v1044, %v1043
      %v1077 = vpack.c.bf16 %v1046, %v1045
      %v1078 = vpack.c.bf16 %v1048, %v1047
      %v1079 = vpack.c.bf16 %v1050, %v1049
      %v1080 = vpack.c.bf16 %v1052, %v1051
      %v1109 = vunpack.c.l.b16 %v1053
      %v1110 = vunpack.c.h.b16 %v1053
      %v1111 = vunpack.c.l.b16 %v1054
      %v1112 = vunpack.c.h.b16 %v1054
      %v1113 = vunpack.c.l.b16 %v1055
      %v1114 = vunpack.c.h.b16 %v1055
      %v1115 = vunpack.c.l.b16 %v1056
      %v1116 = vunpack.c.h.b16 %v1056
      %v1117 = vunpack.c.l.b16 %v1057
      %v1118 = vunpack.c.h.b16 %v1057
      %v1119 = vunpack.c.l.b16 %v1058
      %v1120 = vunpack.c.h.b16 %v1058
      %v1121 = vunpack.c.l.b16 %v1059
      %v1122 = vunpack.c.h.b16 %v1059
      %v1123 = vunpack.c.l.b16 %v1060
      %v1124 = vunpack.c.h.b16 %v1060
      %v1125 = vunpack.c.l.b16 %v1061
      %v1126 = vunpack.c.h.b16 %v1061
      %v1127 = vunpack.c.l.b16 %v1062
      %v1128 = vunpack.c.h.b16 %v1062
      %v1129 = vunpack.c.l.b16 %v1063
      %v1130 = vunpack.c.h.b16 %v1063
      %v1131 = vunpack.c.l.b16 %v1064
      %v1132 = vunpack.c.h.b16 %v1064
      %v1133 = vunpack.c.l.b16 %v1065
      %v1134 = vunpack.c.h.b16 %v1065
      %v1135 = vunpack.c.l.b16 %v1066
      %v1136 = vunpack.c.h.b16 %v1066
      %v1137 = vunpack.c.l.b16 %v1067
      %v1138 = vunpack.c.h.b16 %v1067
      %v1139 = vunpack.c.l.b16 %v1068
      %v1140 = vunpack.c.h.b16 %v1068
      %v1141 = vunpack.c.l.b16 %v1069
      %v1142 = vunpack.c.h.b16 %v1069
      %v1143 = vunpack.c.l.b16 %v1070
      %v1144 = vunpack.c.h.b16 %v1070
      %v1145 = vunpack.c.l.b16 %v1071
      %v1146 = vunpack.c.h.b16 %v1071
      %v1147 = vunpack.c.l.b16 %v1072
      %v1148 = vunpack.c.h.b16 %v1072
      %v1149 = vunpack.c.l.b16 %v1073
      %v1150 = vunpack.c.h.b16 %v1073
      %v1151 = vunpack.c.l.b16 %v1074
      %v1152 = vunpack.c.h.b16 %v1074
      %v1153 = vunpack.c.l.b16 %v1075
      %v1154 = vunpack.c.h.b16 %v1075
      %v1155 = vunpack.c.l.b16 %v1076
      %v1156 = vunpack.c.h.b16 %v1076
      %v1157 = vunpack.c.l.b16 %v1077
      %v1158 = vunpack.c.h.b16 %v1077
      %v1159 = vunpack.c.l.b16 %v1078
      %v1160 = vunpack.c.h.b16 %v1078
      %v1161 = vunpack.c.l.b16 %v1079
      %v1162 = vunpack.c.h.b16 %v1079
      %v1163 = vunpack.c.l.b16 %v1080
      %v1164 = vunpack.c.h.b16 %v1080
      %v1165 = vpack.c.b16 %v1109, %v1109
      %v1166 = vpack.c.b16 %v1110, %v1110
      %v1167 = vpack.c.b16 %v1111, %v1111
      %v1168 = vpack.c.b16 %v1112, %v1112
      %v1169 = vpack.c.b16 %v1113, %v1113
      %v1170 = vpack.c.b16 %v1114, %v1114
      %v1171 = vpack.c.b16 %v1115, %v1115
      %v1172 = vpack.c.b16 %v1116, %v1116
      %v1173 = vpack.c.b16 %v1117, %v1117
      %v1174 = vpack.c.b16 %v1118, %v1118
      %v1175 = vpack.c.b16 %v1119, %v1119
      %v1176 = vpack.c.b16 %v1120, %v1120
      %v1177 = vpack.c.b16 %v1121, %v1121
      %v1178 = vpack.c.b16 %v1122, %v1122
      %v1179 = vpack.c.b16 %v1123, %v1123
      %v1180 = vpack.c.b16 %v1124, %v1124
      %v1181 = vpack.c.b16 %v1125, %v1125
      %v1182 = vpack.c.b16 %v1126, %v1126
      %v1183 = vpack.c.b16 %v1127, %v1127
      %v1184 = vpack.c.b16 %v1128, %v1128
      %v1185 = vpack.c.b16 %v1129, %v1129
      %v1186 = vpack.c.b16 %v1130, %v1130
      %v1187 = vpack.c.b16 %v1131, %v1131
      %v1188 = vpack.c.b16 %v1132, %v1132
      %v1189 = vpack.c.b16 %v1133, %v1133
      %v1190 = vpack.c.b16 %v1134, %v1134
      %v1191 = vpack.c.b16 %v1135, %v1135
      %v1192 = vpack.c.b16 %v1136, %v1136
      %v1193 = vpack.c.b16 %v1137, %v1137
      %v1194 = vpack.c.b16 %v1138, %v1138
      %v1195 = vpack.c.b16 %v1139, %v1139
      %v1196 = vpack.c.b16 %v1140, %v1140
      %v1197 = vpack.c.b16 %v1141, %v1141
      %v1198 = vpack.c.b16 %v1142, %v1142
      %v1199 = vpack.c.b16 %v1143, %v1143
      %v1200 = vpack.c.b16 %v1144, %v1144
      %v1201 = vpack.c.b16 %v1145, %v1145
      %v1202 = vpack.c.b16 %v1146, %v1146
      %v1203 = vpack.c.b16 %v1147, %v1147
      %v1204 = vpack.c.b16 %v1148, %v1148
      %v1205 = vpack.c.b16 %v1149, %v1149
      %v1206 = vpack.c.b16 %v1150, %v1150
      %v1207 = vpack.c.b16 %v1151, %v1151
      %v1208 = vpack.c.b16 %v1152, %v1152
      %v1209 = vpack.c.b16 %v1153, %v1153
      %v1210 = vpack.c.b16 %v1154, %v1154
      %v1211 = vpack.c.b16 %v1155, %v1155
      %v1212 = vpack.c.b16 %v1156, %v1156
      %v1213 = vpack.c.b16 %v1157, %v1157
      %v1214 = vpack.c.b16 %v1158, %v1158
      %v1215 = vpack.c.b16 %v1159, %v1159
      %v1216 = vpack.c.b16 %v1160, %v1160
      %v1217 = vpack.c.b16 %v1161, %v1161
      %v1218 = vpack.c.b16 %v1162, %v1162
      %v1219 = vpack.c.b16 %v1163, %v1163
      %v1220 = vpack.c.b16 %v1164, %v1164
      %vm1277 = vcmask 257024
      %1278 = vst.msk [vmem:[%s265] sm:$0xf] %vm1277, %v1165
      %1279 = vst.msk [vmem:[%s265 + $0x4] sm:$0xf] %vm1277, %v1166
      %1280 = vst.msk [vmem:[%s265 + $0x8] sm:$0xf] %vm1277, %v1167
      %1281 = vst.msk [vmem:[%s265 + $0xc] sm:$0xf] %vm1277, %v1168
      %1282 = vst.msk [vmem:[%s265 + $0x10] sm:$0xf] %vm1277, %v1169
      %1283 = vst.msk [vmem:[%s265 + $0x14] sm:$0xf] %vm1277, %v1170
      %1284 = vst.msk [vmem:[%s265 + $0x18] sm:$0xf] %vm1277, %v1171
      %1285 = vst.msk [vmem:[%s265 + $0x1c] sm:$0xf] %vm1277, %v1172
      %1286 = vst.msk [vmem:[%s265 + $0x20] sm:$0xf] %vm1277, %v1173
      %1287 = vst.msk [vmem:[%s265 + $0x24] sm:$0xf] %vm1277, %v1174
      %1288 = vst.msk [vmem:[%s265 + $0x28] sm:$0xf] %vm1277, %v1175
      %1289 = vst.msk [vmem:[%s265 + $0x2c] sm:$0xf] %vm1277, %v1176
      %1290 = vst.msk [vmem:[%s265 + $0x30] sm:$0xf] %vm1277, %v1177
      %1291 = vst.msk [vmem:[%s265 + $0x34] sm:$0xf] %vm1277, %v1178
      %1292 = vst.msk [vmem:[%s265 + $0x38] sm:$0xf] %vm1277, %v1179
      %1293 = vst.msk [vmem:[%s265 + $0x3c] sm:$0xf] %vm1277, %v1180
      %1294 = vst.msk [vmem:[%s265 + $0x40] sm:$0xf] %vm1277, %v1181
      %1295 = vst.msk [vmem:[%s265 + $0x44] sm:$0xf] %vm1277, %v1182
      %1296 = vst.msk [vmem:[%s265 + $0x48] sm:$0xf] %vm1277, %v1183
      %1297 = vst.msk [vmem:[%s265 + $0x4c] sm:$0xf] %vm1277, %v1184
      %1298 = vst.msk [vmem:[%s265 + $0x50] sm:$0xf] %vm1277, %v1185
      %1299 = vst.msk [vmem:[%s265 + $0x54] sm:$0xf] %vm1277, %v1186
      %1300 = vst.msk [vmem:[%s265 + $0x58] sm:$0xf] %vm1277, %v1187
      %1301 = vst.msk [vmem:[%s265 + $0x5c] sm:$0xf] %vm1277, %v1188
      %1302 = vst.msk [vmem:[%s265 + $0x60] sm:$0xf] %vm1277, %v1189
      %1303 = vst.msk [vmem:[%s265 + $0x64] sm:$0xf] %vm1277, %v1190
      %1304 = vst.msk [vmem:[%s265 + $0x68] sm:$0xf] %vm1277, %v1191
      %1305 = vst.msk [vmem:[%s265 + $0x6c] sm:$0xf] %vm1277, %v1192
      %1306 = vst.msk [vmem:[%s265 + $0x70] sm:$0xf] %vm1277, %v1193
      %1307 = vst.msk [vmem:[%s265 + $0x74] sm:$0xf] %vm1277, %v1194
      %1308 = vst.msk [vmem:[%s265 + $0x78] sm:$0xf] %vm1277, %v1195
      %1309 = vst.msk [vmem:[%s265 + $0x7c] sm:$0xf] %vm1277, %v1196
      %1310 = vst.msk [vmem:[%s265 + $0x80] sm:$0xf] %vm1277, %v1197
      %1311 = vst.msk [vmem:[%s265 + $0x84] sm:$0xf] %vm1277, %v1198
      %1312 = vst.msk [vmem:[%s265 + $0x88] sm:$0xf] %vm1277, %v1199
      %1313 = vst.msk [vmem:[%s265 + $0x8c] sm:$0xf] %vm1277, %v1200
      %1314 = vst.msk [vmem:[%s265 + $0x90] sm:$0xf] %vm1277, %v1201
      %1315 = vst.msk [vmem:[%s265 + $0x94] sm:$0xf] %vm1277, %v1202
      %1316 = vst.msk [vmem:[%s265 + $0x98] sm:$0xf] %vm1277, %v1203
      %1317 = vst.msk [vmem:[%s265 + $0x9c] sm:$0xf] %vm1277, %v1204
      %1318 = vst.msk [vmem:[%s265 + $0xa0] sm:$0xf] %vm1277, %v1205
      %1319 = vst.msk [vmem:[%s265 + $0xa4] sm:$0xf] %vm1277, %v1206
      %1320 = vst.msk [vmem:[%s265 + $0xa8] sm:$0xf] %vm1277, %v1207
      %1321 = vst.msk [vmem:[%s265 + $0xac] sm:$0xf] %vm1277, %v1208
      %1322 = vst.msk [vmem:[%s265 + $0xb0] sm:$0xf] %vm1277, %v1209
      %1323 = vst.msk [vmem:[%s265 + $0xb4] sm:$0xf] %vm1277, %v1210
      %1324 = vst.msk [vmem:[%s265 + $0xb8] sm:$0xf] %vm1277, %v1211
      %1325 = vst.msk [vmem:[%s265 + $0xbc] sm:$0xf] %vm1277, %v1212
      %1326 = vst.msk [vmem:[%s265 + $0xc0] sm:$0xf] %vm1277, %v1213
      %1327 = vst.msk [vmem:[%s265 + $0xc4] sm:$0xf] %vm1277, %v1214
      %1328 = vst.msk [vmem:[%s265 + $0xc8] sm:$0xf] %vm1277, %v1215
      %1329 = vst.msk [vmem:[%s265 + $0xcc] sm:$0xf] %vm1277, %v1216
      %1330 = vst.msk [vmem:[%s265 + $0xd0] sm:$0xf] %vm1277, %v1217
      %1331 = vst.msk [vmem:[%s265 + $0xd4] sm:$0xf] %vm1277, %v1218
      %1332 = vst.msk [vmem:[%s265 + $0xd8] sm:$0xf] %vm1277, %v1219
      %1333 = vst.msk [vmem:[%s265 + $0xdc] sm:$0xf] %vm1277, %v1220
      %s1334 = smul.u32 56, %s19
      %p1335 = scmp.lt.s32.totalorder %s1334, 783
      %s1336 = scalar_select %p1335, %s1334, 783
      %p1337 = scmp.lt.s32.totalorder %s20, 0
      %s1338 = scalar_select %p1337, %s20, 0
      %s1339 = sadd.s32 %s1338, %s1336
      %s1340 = smul.addr %s1339, 4
      %s1341 = scalar_lea.vmem %s3, %s1340
      // Predicated region
      $region33: #{autoencoder_forward.9} parent=31 // pred_check
        %p1342 = pneg %p135
      $region34: #{autoencoder_forward.9} parent=31 // pred_check_branch
        %1344 = sbr.rel (%p1342) target = $region36
      $region35: #{autoencoder_forward.9} parent=31 // pred_region
        %s1345 = smul.u32 56, %s19
      $region36: #{autoencoder_forward.9} parent=31 // pred_fallthru
        _
    $region32: #{autoencoder_forward.9} parent=5 // pred_fallthru
      _
    %p1346 = scmp.le.s32.totalorder 2, %s9
    // Predicated region
    $region37: #{autoencoder_forward.9} parent=5 // pred_check
      %p1347 = pneg %p1346
    $region38: #{autoencoder_forward.9} parent=5 // pred_check_branch
      %1349 = sbr.rel (%p1347) target = $region40
    $region39: #{autoencoder_forward.9} parent=5 // pred_region
      %s1350 = ssub.s32 %s9, 2
      // Predicated region
      $region41: #{autoencoder_forward.9} parent=39 // pred_check
        %p1351 = pneg %p141
      $region42: #{autoencoder_forward.9} parent=39 // pred_check_branch
        %1353 = sbr.rel (%p1351) target = $region44
      $region43: #{autoencoder_forward.9} parent=39 // pred_region
        %s1354 = smul.u32 56, %s22
        %p1355 = scmp.lt.s32.totalorder %s1354, 783
        %s1356 = scalar_select %p1355, %s1354, 783
        %p1357 = scmp.lt.s32.totalorder %s23, 0
        %s1358 = scalar_select %p1357, %s23, 0
        %s1359 = sadd.s32 %s1358, %s1356
        %s1360 = smul.addr %s1359, 4
        %s1361 = scalar_lea.vmem %s3, %s1360
      $region44: #{autoencoder_forward.9} parent=39 // pred_fallthru
        _
    $region40: #{autoencoder_forward.9} parent=5 // pred_fallthru
      _
  $region6: #{autoencoder_forward.9} parent=0 // loop_footer
    %s13 = sadd.s32 1, %s9
  $region7: #{autoencoder_forward.9} parent=0 // loop_footer_branch
    %8 = sbr.rel target = $region3
  $region8: #{autoencoder_forward.9} parent=0 // loop_exit
    _

// kernel: autoencoder_forward.10
$region0: #{autoencoder_forward.10}
  #allocation0 [shape = 'u32[]', space=smem, size = 0x4, offset = 0x4, fixed_abs, tag = 'smem constant byte address 0x4 - core index']
  #allocation1 [shape = 'u32[144,128]{1,0:T(1,128)}', space=vmem, size = 0x12000, scoped, tag = 'internal scratch']
  %s0 = inlined_call_operand.vmem [shape: bf16[1568,288], index: 0, kind: input, shape index: {}]
  %s1 = inlined_call_operand.vmem [shape: bf16[288,64], index: 1, kind: input, shape index: {}]
  %s2 = inlined_call_operand.vmem [shape: f32[1,64], index: 2, kind: input, shape index: {}]
  %s3 = inlined_call_operand.vmem [shape: bf16[1568,64], index: 3, kind: output, shape index: {}]
  %s4 = sld [smem:[#allocation0]]
  $region45: #{autoencoder_forward.10} parent=0
    _
  %s6 = ssub.s32 1, %s4
  %s7 = scalar_select 0, %s6, %s4
  loop: start=0, step=1, limit=6
  $region2: #{autoencoder_forward.10} parent=0 // loop_pre_header
    _
  $region3: #{autoencoder_forward.10} parent=0 // loop_header
    %s9 = sphi 0, %s13
    %p10 = scmp.ge.s32.totalorder %s9, 6
    %s16 = sphi 0, %s35
    %s17 = sphi 0, %s31
    %s18 = sphi 0, %s27
    %s19 = sphi 0, %s16
    %s20 = sphi 0, %s17
    %s21 = sphi 0, %s18
    %s22 = sphi 0, %s19
    %s23 = sphi 0, %s20
    %s24 = sphi 0, %s21
    %s40 = sphi 0, %s42
    %s43 = sphi 0, %s40
    %s44 = sphi 0, %s43
    %s60 = sphi 0, %s44
    %s68 = sphi 0, %s70
    %s71 = sphi 0, %s68
    %s72 = sphi 0, %s71
    %s88 = sphi 0, %s72
    %s94 = sphi 0, %s96
    %s97 = sphi 0, %s94
    %s98 = sphi 0, %s97
    %s114 = sphi 0, %s98
    %s122 = sphi 0, %s124
    %s125 = sphi 0, %s122
    %s126 = sphi 0, %s125
    %s142 = sphi 0, %s126
  $region4: #{autoencoder_forward.10} parent=0 // loop_header_branch
    %12 = sbr.rel (%p10) target = $region8
  $region5: #{autoencoder_forward.10} parent=0 // loop_body
    %s14 = ssub.s32 %s9, 1
    %s15 = ssub.s32 %s9, 2
    %s25 = sadd.s32 1, %s18
    %p26 = scmp.ge.s32.totalorder %s25, 1
    %s27 = scalar_select %p26, 0, %s25
    %s28 = sadd.s32 1, %s17
    %s29 = scalar_select %p26, %s28, %s17
    %p30 = scmp.ge.s32.totalorder %s29, 1
    %s31 = scalar_select %p30, 0, %s29
    %s32 = sadd.s32 1, %s16
    %s33 = scalar_select %p30, %s32, %s16
    %p34 = scmp.ge.s32.totalorder %s33, 4
    %s35 = scalar_select %p34, 0, %s33
    %s36 = ssub.s32 %s16, %s35
    %s37 = ssub.s32 %s18, %s27
    %s38 = sor.u32 %s36, %s37
    %p39 = scmp.eq.s32.totalorder %s38, 0
    %s41 = sadd.s32 %s40, 1
    %s42 = scalar_select %p39, %s40, %s41
    %p45 = pneg %p39
    %p46 = scmp.eq.s32.totalorder %s9, 3
    %p47 = por %p45, %p46
    %p48 = scmp.ne.s32.totalorder %s40, %s43
    %p49 = scmp.eq.s32.totalorder %s9, 0
    %p50 = por %p48, %p49
    %p51 = scmp.ne.s32.totalorder %s40, %s43
    %p52 = scmp.eq.s32.totalorder %s14, 3
    %p53 = por %p51, %p52
    %p54 = scmp.ne.s32.totalorder %s43, %s44
    %p55 = scmp.eq.s32.totalorder %s14, 0
    %p56 = por %p54, %p55
    %p57 = scmp.ne.s32.totalorder %s43, %s44
    %p58 = scmp.eq.s32.totalorder %s15, 3
    %p59 = por %p57, %p58
    %p61 = scmp.ne.s32.totalorder %s44, %s60
    %p62 = scmp.eq.s32.totalorder %s15, 0
    %p63 = por %p61, %p62
    %s64 = ssub.s32 %s18, %s27
    %s65 = ssub.s32 %s17, %s31
    %s66 = sor.u32 %s64, %s65
    %p67 = scmp.eq.s32.totalorder %s66, 0
    %s69 = sadd.s32 %s68, 1
    %s70 = scalar_select %p67, %s68, %s69
    %p73 = pneg %p67
    %p74 = scmp.eq.s32.totalorder %s9, 3
    %p75 = por %p73, %p74
    %p76 = scmp.ne.s32.totalorder %s68, %s71
    %p77 = scmp.eq.s32.totalorder %s9, 0
    %p78 = por %p76, %p77
    %p79 = scmp.ne.s32.totalorder %s68, %s71
    %p80 = scmp.eq.s32.totalorder %s14, 3
    %p81 = por %p79, %p80
    %p82 = scmp.ne.s32.totalorder %s71, %s72
    %p83 = scmp.eq.s32.totalorder %s14, 0
    %p84 = por %p82, %p83
    %p85 = scmp.ne.s32.totalorder %s71, %s72
    %p86 = scmp.eq.s32.totalorder %s15, 3
    %p87 = por %p85, %p86
    %p89 = scmp.ne.s32.totalorder %s72, %s88
    %p90 = scmp.eq.s32.totalorder %s15, 0
    %p91 = por %p89, %p90
    %s92 = ssub.s32 %s17, %s31
    %p93 = scmp.eq.s32.totalorder %s92, 0
    %s95 = sadd.s32 %s94, 1
    %s96 = scalar_select %p93, %s94, %s95
    %p99 = pneg %p93
    %p100 = scmp.eq.s32.totalorder %s9, 3
    %p101 = por %p99, %p100
    %p102 = scmp.ne.s32.totalorder %s94, %s97
    %p103 = scmp.eq.s32.totalorder %s9, 0
    %p104 = por %p102, %p103
    %p105 = scmp.ne.s32.totalorder %s94, %s97
    %p106 = scmp.eq.s32.totalorder %s14, 3
    %p107 = por %p105, %p106
    %p108 = scmp.ne.s32.totalorder %s97, %s98
    %p109 = scmp.eq.s32.totalorder %s14, 0
    %p110 = por %p108, %p109
    %p111 = scmp.ne.s32.totalorder %s97, %s98
    %p112 = scmp.eq.s32.totalorder %s15, 3
    %p113 = por %p111, %p112
    %p115 = scmp.ne.s32.totalorder %s98, %s114
    %p116 = scmp.eq.s32.totalorder %s15, 0
    %p117 = por %p115, %p116
    %s118 = ssub.s32 %s16, %s35
    %s119 = ssub.s32 %s17, %s31
    %s120 = sor.u32 %s118, %s119
    %p121 = scmp.eq.s32.totalorder %s120, 0
    %s123 = sadd.s32 %s122, 1
    %s124 = scalar_select %p121, %s122, %s123
    %p127 = pneg %p121
    %p128 = scmp.eq.s32.totalorder %s9, 3
    %p129 = por %p127, %p128
    %p130 = scmp.ne.s32.totalorder %s122, %s125
    %p131 = scmp.eq.s32.totalorder %s9, 0
    %p132 = por %p130, %p131
    %p133 = scmp.ne.s32.totalorder %s122, %s125
    %p134 = scmp.eq.s32.totalorder %s14, 3
    %p135 = por %p133, %p134
    %p136 = scmp.ne.s32.totalorder %s125, %s126
    %p137 = scmp.eq.s32.totalorder %s14, 0
    %p138 = por %p136, %p137
    %p139 = scmp.ne.s32.totalorder %s125, %s126
    %p140 = scmp.eq.s32.totalorder %s15, 3
    %p141 = por %p139, %p140
    %p143 = scmp.ne.s32.totalorder %s126, %s142
    %p144 = scmp.eq.s32.totalorder %s15, 0
    %p145 = por %p143, %p144
    %p146 = scmp.le.s32.totalorder 1, %s9
    %p147 = scmp.lt.s32.totalorder %s9, 5
    %p148 = pnand %p146, %p147
    %p149 = pneg %p148
    // Predicated region
    $region9: #{autoencoder_forward.10} parent=5 // pred_check
      _
    $region10: #{autoencoder_forward.10} parent=5 // pred_check_branch
      %151 = sbr.rel (%p148) target = $region12
    $region11: #{autoencoder_forward.10} parent=5 // pred_region
      %s152 = ssub.s32 %s9, 1
      // Predicated region
      $region13: #{autoencoder_forward.10} parent=11 // pred_check
        %p153 = pneg %p84
      $region14: #{autoencoder_forward.10} parent=11 // pred_check_branch
        %155 = sbr.rel (%p153) target = $region16
      $region15: #{autoencoder_forward.10} parent=11 // pred_region
        %s156 = smul.u32 36, %s21
        %p157 = scmp.lt.s32.totalorder %s156, 35
        %s158 = scalar_select %p157, %s156, 35
        %p159 = scmp.lt.s32.totalorder %s20, 0
        %s160 = scalar_select %p159, %s20, 0
        %s161 = sadd.s32 %s160, %s158
        %s162 = smul.addr %s161, 4
        %s163 = scalar_lea.vmem %s1, %s162
        %s164 = smul.u32 36, %s21
      $region16: #{autoencoder_forward.10} parent=11 // pred_fallthru
        _
      // Predicated region
      $region17: #{autoencoder_forward.10} parent=11 // pred_check
        %p165 = pneg %p110
      $region18: #{autoencoder_forward.10} parent=11 // pred_check_branch
        %167 = sbr.rel (%p165) target = $region20
      $region19: #{autoencoder_forward.10} parent=11 // pred_region
        %p168 = scmp.lt.s32.totalorder %s20, 0
        %s169 = scalar_select %p168, %s20, 0
        %s170 = scalar_lea.vmem %s2, %s169
      $region20: #{autoencoder_forward.10} parent=11 // pred_fallthru
        _
    $region12: #{autoencoder_forward.10} parent=5 // pred_fallthru
      _
    %p171 = scmp.lt.s32.totalorder %s9, 4
    // Predicated region
    $region21: #{autoencoder_forward.10} parent=5 // pred_check
      %p172 = pneg %p171
    $region22: #{autoencoder_forward.10} parent=5 // pred_check_branch
      %174 = sbr.rel (%p172) target = $region24
    $region23: #{autoencoder_forward.10} parent=5 // pred_region
      // Predicated region
      $region25: #{autoencoder_forward.10} parent=23 // pred_check
        %p175 = pneg %p50
      $region26: #{autoencoder_forward.10} parent=23 // pred_check_branch
        %177 = sbr.rel (%p175) target = $region28
      $region27: #{autoencoder_forward.10} parent=23 // pred_region
        %s178 = smul.u32 49, %s16
        %s179 = smul.u32 3, %s18
        %p180 = scmp.lt.s32.totalorder %s178, 195
        %s181 = scalar_select %p180, %s178, 195
        %p182 = scmp.lt.s32.totalorder %s179, 2
        %s183 = scalar_select %p182, %s179, 2
        %s184 = smul.addr %s181, 3
        %s185 = sadd.s32 %s183, %s184
        %s186 = smul.addr %s185, 4
        %s187 = scalar_lea.vmem %s0, %s186
        %s188 = smul.u32 49, %s16
        %s189 = smul.u32 3, %s18
      $region28: #{autoencoder_forward.10} parent=23 // pred_fallthru
        _
    $region24: #{autoencoder_forward.10} parent=5 // pred_fallthru
      _
    %p190 = scmp.le.s32.totalorder 1, %s9
    %p191 = scmp.lt.s32.totalorder %s9, 5
    %p192 = pnand %p190, %p191
    %p193 = pneg %p192
    // Predicated region
    $region29: #{autoencoder_forward.10} parent=5 // pred_check
      _
    $region30: #{autoencoder_forward.10} parent=5 // pred_check_branch
      %195 = sbr.rel (%p192) target = $region32
    $region31: #{autoencoder_forward.10} parent=5 // pred_region
      %s196 = ssub.s32 %s9, 1
      %s197 = smul.u32 49, %s19
      %s198 = smul.u32 3, %s21
      %p199 = scmp.lt.s32.totalorder %s197, 195
      %s200 = scalar_select %p199, %s197, 195
      %p201 = scmp.lt.s32.totalorder %s198, 2
      %s202 = scalar_select %p201, %s198, 2
      %s203 = smul.addr %s200, 3
      %s204 = sadd.s32 %s202, %s203
      %s205 = smul.addr %s204, 4
      %s206 = scalar_lea.vmem %s0, %s205
      %p207 = pneg %p56
      %p208 = pneg %p53
      %s209 = smul.u32 36, %s21
      %p210 = scmp.lt.s32.totalorder %s209, 35
      %s211 = scalar_select %p210, %s209, 35
      %p212 = scmp.lt.s32.totalorder %s20, 0
      %s213 = scalar_select %p212, %s20, 0
      %s214 = sadd.s32 %s213, %s211
      %s215 = smul.addr %s214, 4
      %s216 = scalar_lea.vmem %s1, %s215
      %p217 = pneg %p84
      %p218 = pneg %p81
      %p219 = scmp.lt.s32.totalorder %s20, 0
      %s220 = scalar_select %p219, %s20, 0
      %s221 = scalar_lea.vmem %s2, %s220
      %p222 = pneg %p110
      %p223 = pneg %p107
      %p224 = pneg %p138
      %p225 = pneg %p135
      %s226 = smul.u32 49, %s19
      %p227 = scmp.lt.s32.totalorder %s226, 195
      %s228 = scalar_select %p227, %s226, 195
      %p229 = scmp.lt.s32.totalorder %s20, 0
      %s230 = scalar_select %p229, %s20, 0
      %s231 = sadd.s32 %s230, %s228
      %s232 = smul.addr %s231, 4
      %s233 = scalar_lea.vmem %s3, %s232
      %s234 = smul.u32 49, %s19
      %s235 = smul.u32 3, %s21
      %p236 = scmp.lt.s32.totalorder %s234, 195
      %s237 = scalar_select %p236, %s234, 195
      %p238 = scmp.lt.s32.totalorder %s235, 2
      %s239 = scalar_select %p238, %s235, 2
      %s240 = smul.addr %s237, 3
      %s241 = sadd.s32 %s239, %s240
      %s242 = smul.addr %s241, 4
      %s243 = scalar_lea.vmem %s0, %s242
      %s244 = smul.u32 49, %s19
      %s245 = smul.u32 3, %s21
      %s246 = smul.u32 36, %s21
      %p247 = scmp.lt.s32.totalorder %s246, 35
      %s248 = scalar_select %p247, %s246, 35
      %p249 = scmp.lt.s32.totalorder %s20, 0
      %s250 = scalar_select %p249, %s20, 0
      %s251 = sadd.s32 %s250, %s248
      %s252 = smul.addr %s251, 4
      %s253 = scalar_lea.vmem %s1, %s252
      %s254 = smul.u32 36, %s21
      %p255 = scmp.lt.s32.totalorder %s20, 0
      %s256 = scalar_select %p255, %s20, 0
      %s257 = scalar_lea.vmem %s2, %s256
      %s258 = smul.u32 49, %s19
      %p259 = scmp.lt.s32.totalorder %s258, 195
      %s260 = scalar_select %p259, %s258, 195
      %p261 = scmp.lt.s32.totalorder %s20, 0
      %s262 = scalar_select %p261, %s20, 0
      %s263 = sadd.s32 %s262, %s260
      %s264 = smul.addr %s263, 4
      %s265 = scalar_lea.vmem %s3, %s264
      %s266 = smul.u32 49, %s19
      %v268 = vld [vmem:[%s243] sm:$0xff]
      %v269 = vld [vmem:[%s243 + $0x8] sm:$0xf]
      %v270 = vld [vmem:[%s243 + $0xc] sm:$0xff]
      %v271 = vld [vmem:[%s243 + $0x14] sm:$0xf]
      %v272 = vld [vmem:[%s243 + $0x18] sm:$0xff]
      %v273 = vld [vmem:[%s243 + $0x20] sm:$0xf]
      %v274 = vld [vmem:[%s243 + $0x24] sm:$0xff]
      %v275 = vld [vmem:[%s243 + $0x2c] sm:$0xf]
      %v276 = vld [vmem:[%s243 + $0x30] sm:$0xff]
      %v277 = vld [vmem:[%s243 + $0x38] sm:$0xf]
      %v278 = vld [vmem:[%s243 + $0x3c] sm:$0xff]
      %v279 = vld [vmem:[%s243 + $0x44] sm:$0xf]
      %v280 = vld [vmem:[%s243 + $0x48] sm:$0xff]
      %v281 = vld [vmem:[%s243 + $0x50] sm:$0xf]
      %v282 = vld [vmem:[%s243 + $0x54] sm:$0xff]
      %v283 = vld [vmem:[%s243 + $0x5c] sm:$0xf]
      %v284 = vld [vmem:[%s243 + $0x60] sm:$0xff]
      %v285 = vld [vmem:[%s243 + $0x68] sm:$0xf]
      %v286 = vld [vmem:[%s243 + $0x6c] sm:$0xff]
      %v287 = vld [vmem:[%s243 + $0x74] sm:$0xf]
      %v288 = vld [vmem:[%s243 + $0x78] sm:$0xff]
      %v289 = vld [vmem:[%s243 + $0x80] sm:$0xf]
      %v290 = vld [vmem:[%s243 + $0x84] sm:$0xff]
      %v291 = vld [vmem:[%s243 + $0x8c] sm:$0xf]
      %v292 = vld [vmem:[%s243 + $0x90] sm:$0xff]
      %v293 = vld [vmem:[%s243 + $0x98] sm:$0xf]
      %v294 = vld [vmem:[%s243 + $0x9c] sm:$0xff]
      %v295 = vld [vmem:[%s243 + $0xa4] sm:$0xf]
      %v296 = vld [vmem:[%s243 + $0xa8] sm:$0xff]
      %v297 = vld [vmem:[%s243 + $0xb0] sm:$0xf]
      %v298 = vld [vmem:[%s243 + $0xb4] sm:$0xff]
      %v299 = vld [vmem:[%s243 + $0xbc] sm:$0xf]
      %v300 = vld [vmem:[%s243 + $0xc0] sm:$0xff]
      %v301 = vld [vmem:[%s243 + $0xc8] sm:$0xf]
      %v302 = vld [vmem:[%s243 + $0xcc] sm:$0xff]
      %v303 = vld [vmem:[%s243 + $0xd4] sm:$0xf]
      %v304 = vld [vmem:[%s243 + $0xd8] sm:$0xff]
      %v305 = vld [vmem:[%s243 + $0xe0] sm:$0xf]
      %v306 = vld [vmem:[%s243 + $0xe4] sm:$0xff]
      %v307 = vld [vmem:[%s243 + $0xec] sm:$0xf]
      %v308 = vld [vmem:[%s243 + $0xf0] sm:$0xff]
      %v309 = vld [vmem:[%s243 + $0xf8] sm:$0xf]
      %v310 = vld [vmem:[%s243 + $0xfc] sm:$0xff]
      %v311 = vld [vmem:[%s243 + $0x104] sm:$0xf]
      %v312 = vld [vmem:[%s243 + $0x108] sm:$0xff]
      %v313 = vld [vmem:[%s243 + $0x110] sm:$0xf]
      %v314 = vld [vmem:[%s243 + $0x114] sm:$0xff]
      %v315 = vld [vmem:[%s243 + $0x11c] sm:$0xf]
      %v316 = vld [vmem:[%s243 + $0x120] sm:$0xff]
      %v317 = vld [vmem:[%s243 + $0x128] sm:$0xf]
      %v318 = vld [vmem:[%s243 + $0x12c] sm:$0xff]
      %v319 = vld [vmem:[%s243 + $0x134] sm:$0xf]
      %v320 = vld [vmem:[%s243 + $0x138] sm:$0xff]
      %v321 = vld [vmem:[%s243 + $0x140] sm:$0xf]
      %v322 = vld [vmem:[%s243 + $0x144] sm:$0xff]
      %v323 = vld [vmem:[%s243 + $0x14c] sm:$0xf]
      %v324 = vld [vmem:[%s243 + $0x150] sm:$0xff]
      %v325 = vld [vmem:[%s243 + $0x158] sm:$0xf]
      %v326 = vld [vmem:[%s243 + $0x15c] sm:$0xff]
      %v327 = vld [vmem:[%s243 + $0x164] sm:$0xf]
      %v328 = vld [vmem:[%s243 + $0x168] sm:$0xff]
      %v329 = vld [vmem:[%s243 + $0x170] sm:$0xf]
      %v330 = vld [vmem:[%s243 + $0x174] sm:$0xff]
      %v331 = vld [vmem:[%s243 + $0x17c] sm:$0xf]
      %v332 = vld [vmem:[%s243 + $0x180] sm:$0xff]
      %v333 = vld [vmem:[%s243 + $0x188] sm:$0xf]
      %v334 = vld [vmem:[%s243 + $0x18c] sm:$0xff]
      %v335 = vld [vmem:[%s243 + $0x194] sm:$0xf]
      %v336 = vld [vmem:[%s243 + $0x198] sm:$0xff]
      %v337 = vld [vmem:[%s243 + $0x1a0] sm:$0xf]
      %v338 = vld [vmem:[%s243 + $0x1a4] sm:$0xff]
      %v339 = vld [vmem:[%s243 + $0x1ac] sm:$0xf]
      %v340 = vld [vmem:[%s243 + $0x1b0] sm:$0xff]
      %v341 = vld [vmem:[%s243 + $0x1b8] sm:$0xf]
      %v342 = vld [vmem:[%s243 + $0x1bc] sm:$0xff]
      %v343 = vld [vmem:[%s243 + $0x1c4] sm:$0xf]
      %v344 = vld [vmem:[%s243 + $0x1c8] sm:$0xff]
      %v345 = vld [vmem:[%s243 + $0x1d0] sm:$0xf]
      %v346 = vld [vmem:[%s243 + $0x1d4] sm:$0xff]
      %v347 = vld [vmem:[%s243 + $0x1dc] sm:$0xf]
      %v348 = vld [vmem:[%s243 + $0x1e0] sm:$0xff]
      %v349 = vld [vmem:[%s243 + $0x1e8] sm:$0xf]
      %v350 = vld [vmem:[%s243 + $0x1ec] sm:$0xff]
      %v351 = vld [vmem:[%s243 + $0x1f4] sm:$0xf]
      %v352 = vld [vmem:[%s243 + $0x1f8] sm:$0xff]
      %v353 = vld [vmem:[%s243 + $0x200] sm:$0xf]
      %v354 = vld [vmem:[%s243 + $0x204] sm:$0xff]
      %v355 = vld [vmem:[%s243 + $0x20c] sm:$0xf]
      %v356 = vld [vmem:[%s243 + $0x210] sm:$0xff]
      %v357 = vld [vmem:[%s243 + $0x218] sm:$0xf]
      %v358 = vld [vmem:[%s243 + $0x21c] sm:$0xff]
      %v359 = vld [vmem:[%s243 + $0x224] sm:$0xf]
      %v360 = vld [vmem:[%s243 + $0x228] sm:$0xff]
      %v361 = vld [vmem:[%s243 + $0x230] sm:$0xf]
      %v362 = vld [vmem:[%s243 + $0x234] sm:$0xff]
      %v363 = vld [vmem:[%s243 + $0x23c] sm:$0xf]
      %v364 = vld [vmem:[%s243 + $0x240] sm:$0xff]
      %v365 = vld [vmem:[%s243 + $0x248] sm:$0xf]
      %v366 = vld [vmem:[%s253] sm:$0xf]
      %v367 = vld [vmem:[%s253 + $0x4] sm:$0xf]
      %v368 = vld [vmem:[%s253 + $0x8] sm:$0xf]
      %v369 = vld [vmem:[%s253 + $0xc] sm:$0xf]
      %v370 = vld [vmem:[%s253 + $0x10] sm:$0xf]
      %v371 = vld [vmem:[%s253 + $0x14] sm:$0xf]
      %v372 = vld [vmem:[%s253 + $0x18] sm:$0xf]
      %v373 = vld [vmem:[%s253 + $0x1c] sm:$0xf]
      %v374 = vld [vmem:[%s253 + $0x20] sm:$0xf]
      %v375 = vld [vmem:[%s253 + $0x24] sm:$0xf]
      %v376 = vld [vmem:[%s253 + $0x28] sm:$0xf]
      %v377 = vld [vmem:[%s253 + $0x2c] sm:$0xf]
      %v378 = vld [vmem:[%s253 + $0x30] sm:$0xf]
      %v379 = vld [vmem:[%s253 + $0x34] sm:$0xf]
      %v380 = vld [vmem:[%s253 + $0x38] sm:$0xf]
      %v381 = vld [vmem:[%s253 + $0x3c] sm:$0xf]
      %v382 = vld [vmem:[%s253 + $0x40] sm:$0xf]
      %v383 = vld [vmem:[%s253 + $0x44] sm:$0xf]
      %v384 = vld [vmem:[%s253 + $0x48] sm:$0xf]
      %v385 = vld [vmem:[%s253 + $0x4c] sm:$0xf]
      %v386 = vld [vmem:[%s253 + $0x50] sm:$0xf]
      %v387 = vld [vmem:[%s253 + $0x54] sm:$0xf]
      %v388 = vld [vmem:[%s253 + $0x58] sm:$0xf]
      %v389 = vld [vmem:[%s253 + $0x5c] sm:$0xf]
      %v390 = vld [vmem:[%s253 + $0x60] sm:$0xf]
      %v391 = vld [vmem:[%s253 + $0x64] sm:$0xf]
      %v392 = vld [vmem:[%s253 + $0x68] sm:$0xf]
      %v393 = vld [vmem:[%s253 + $0x6c] sm:$0xf]
      %v394 = vld [vmem:[%s253 + $0x70] sm:$0xf]
      %v395 = vld [vmem:[%s253 + $0x74] sm:$0xf]
      %v396 = vld [vmem:[%s253 + $0x78] sm:$0xf]
      %v397 = vld [vmem:[%s253 + $0x7c] sm:$0xf]
      %v398 = vld [vmem:[%s253 + $0x80] sm:$0xf]
      %v399 = vld [vmem:[%s253 + $0x84] sm:$0xf]
      %v400 = vld [vmem:[%s253 + $0x88] sm:$0xf]
      %v401 = vld [vmem:[%s253 + $0x8c] sm:$0xf]
      %v402 = vld [vmem:[%s257] sm:$0x1]
      %v404 = vlaneseq
      %v405 = vshrl.u32 %v404, 7
      %v406 = vsub.s32 0, %v405
      %v407 = vrot.slane %v402, %v406
      %v507 = vunpack.c.l.b16 %v268
      %v508 = vunpack.c.h.b16 %v268
      %v509 = vunpack.c.l.b16 %v269
      %v510 = vunpack.c.l.b16 %v270
      %v511 = vunpack.c.h.b16 %v270
      %v512 = vunpack.c.l.b16 %v271
      %v513 = vunpack.c.l.b16 %v272
      %v514 = vunpack.c.h.b16 %v272
      %v515 = vunpack.c.l.b16 %v273
      %v516 = vunpack.c.l.b16 %v274
      %v517 = vunpack.c.h.b16 %v274
      %v518 = vunpack.c.l.b16 %v275
      %v519 = vunpack.c.l.b16 %v276
      %v520 = vunpack.c.h.b16 %v276
      %v521 = vunpack.c.l.b16 %v277
      %v522 = vunpack.c.l.b16 %v278
      %v523 = vunpack.c.h.b16 %v278
      %v524 = vunpack.c.l.b16 %v279
      %v525 = vunpack.c.l.b16 %v280
      %v526 = vunpack.c.h.b16 %v280
      %v527 = vunpack.c.l.b16 %v281
      %v528 = vunpack.c.l.b16 %v282
      %v529 = vunpack.c.h.b16 %v282
      %v530 = vunpack.c.l.b16 %v283
      %v531 = vunpack.c.l.b16 %v284
      %v532 = vunpack.c.h.b16 %v284
      %v533 = vunpack.c.l.b16 %v285
      %v534 = vunpack.c.l.b16 %v286
      %v535 = vunpack.c.h.b16 %v286
      %v536 = vunpack.c.l.b16 %v287
      %v537 = vunpack.c.l.b16 %v288
      %v538 = vunpack.c.h.b16 %v288
      %v539 = vunpack.c.l.b16 %v289
      %v540 = vunpack.c.l.b16 %v290
      %v541 = vunpack.c.h.b16 %v290
      %v542 = vunpack.c.l.b16 %v291
      %v543 = vunpack.c.l.b16 %v292
      %v544 = vunpack.c.h.b16 %v292
      %v545 = vunpack.c.l.b16 %v293
      %v546 = vunpack.c.l.b16 %v294
      %v547 = vunpack.c.h.b16 %v294
      %v548 = vunpack.c.l.b16 %v295
      %v549 = vunpack.c.l.b16 %v296
      %v550 = vunpack.c.h.b16 %v296
      %v551 = vunpack.c.l.b16 %v297
      %v552 = vunpack.c.l.b16 %v298
      %v553 = vunpack.c.h.b16 %v298
      %v554 = vunpack.c.l.b16 %v299
      %v555 = vunpack.c.l.b16 %v300
      %v556 = vunpack.c.h.b16 %v300
      %v557 = vunpack.c.l.b16 %v301
      %v558 = vunpack.c.l.b16 %v302
      %v559 = vunpack.c.h.b16 %v302
      %v560 = vunpack.c.l.b16 %v303
      %v561 = vunpack.c.l.b16 %v304
      %v562 = vunpack.c.h.b16 %v304
      %v563 = vunpack.c.l.b16 %v305
      %v564 = vunpack.c.l.b16 %v306
      %v565 = vunpack.c.h.b16 %v306
      %v566 = vunpack.c.l.b16 %v307
      %v567 = vunpack.c.l.b16 %v308
      %v568 = vunpack.c.h.b16 %v308
      %v569 = vunpack.c.l.b16 %v309
      %v570 = vunpack.c.l.b16 %v310
      %v571 = vunpack.c.h.b16 %v310
      %v572 = vunpack.c.l.b16 %v311
      %v573 = vunpack.c.l.b16 %v312
      %v574 = vunpack.c.h.b16 %v312
      %v575 = vunpack.c.l.b16 %v313
      %v576 = vunpack.c.l.b16 %v314
      %v577 = vunpack.c.h.b16 %v314
      %v578 = vunpack.c.l.b16 %v315
      %v579 = vunpack.c.l.b16 %v316
      %v580 = vunpack.c.h.b16 %v316
      %v581 = vunpack.c.l.b16 %v317
      %v582 = vunpack.c.l.b16 %v318
      %v583 = vunpack.c.h.b16 %v318
      %v584 = vunpack.c.l.b16 %v319
      %v585 = vunpack.c.l.b16 %v320
      %v586 = vunpack.c.h.b16 %v320
      %v587 = vunpack.c.l.b16 %v321
      %v588 = vunpack.c.l.b16 %v322
      %v589 = vunpack.c.h.b16 %v322
      %v590 = vunpack.c.l.b16 %v323
      %v591 = vunpack.c.l.b16 %v324
      %v592 = vunpack.c.h.b16 %v324
      %v593 = vunpack.c.l.b16 %v325
      %v594 = vunpack.c.l.b16 %v326
      %v595 = vunpack.c.h.b16 %v326
      %v596 = vunpack.c.l.b16 %v327
      %v597 = vunpack.c.l.b16 %v328
      %v598 = vunpack.c.h.b16 %v328
      %v599 = vunpack.c.l.b16 %v329
      %v600 = vunpack.c.l.b16 %v330
      %v601 = vunpack.c.h.b16 %v330
      %v602 = vunpack.c.l.b16 %v331
      %v603 = vunpack.c.l.b16 %v332
      %v604 = vunpack.c.h.b16 %v332
      %v605 = vunpack.c.l.b16 %v333
      %v606 = vunpack.c.l.b16 %v334
      %v607 = vunpack.c.h.b16 %v334
      %v608 = vunpack.c.l.b16 %v335
      %v609 = vunpack.c.l.b16 %v336
      %v610 = vunpack.c.h.b16 %v336
      %v611 = vunpack.c.l.b16 %v337
      %v612 = vunpack.c.l.b16 %v338
      %v613 = vunpack.c.h.b16 %v338
      %v614 = vunpack.c.l.b16 %v339
      %v615 = vunpack.c.l.b16 %v340
      %v616 = vunpack.c.h.b16 %v340
      %v617 = vunpack.c.l.b16 %v341
      %v618 = vunpack.c.l.b16 %v342
      %v619 = vunpack.c.h.b16 %v342
      %v620 = vunpack.c.l.b16 %v343
      %v621 = vunpack.c.l.b16 %v344
      %v622 = vunpack.c.h.b16 %v344
      %v623 = vunpack.c.l.b16 %v345
      %v624 = vunpack.c.l.b16 %v346
      %v625 = vunpack.c.h.b16 %v346
      %v626 = vunpack.c.l.b16 %v347
      %v627 = vunpack.c.l.b16 %v348
      %v628 = vunpack.c.h.b16 %v348
      %v629 = vunpack.c.l.b16 %v349
      %v630 = vunpack.c.l.b16 %v350
      %v631 = vunpack.c.h.b16 %v350
      %v632 = vunpack.c.l.b16 %v351
      %v633 = vunpack.c.l.b16 %v352
      %v634 = vunpack.c.h.b16 %v352
      %v635 = vunpack.c.l.b16 %v353
      %v636 = vunpack.c.l.b16 %v354
      %v637 = vunpack.c.h.b16 %v354
      %v638 = vunpack.c.l.b16 %v355
      %v639 = vunpack.c.l.b16 %v356
      %v640 = vunpack.c.h.b16 %v356
      %v641 = vunpack.c.l.b16 %v357
      %v642 = vunpack.c.l.b16 %v358
      %v643 = vunpack.c.h.b16 %v358
      %v644 = vunpack.c.l.b16 %v359
      %v645 = vunpack.c.l.b16 %v360
      %v646 = vunpack.c.h.b16 %v360
      %v647 = vunpack.c.l.b16 %v361
      %v648 = vunpack.c.l.b16 %v362
      %v649 = vunpack.c.h.b16 %v362
      %v650 = vunpack.c.l.b16 %v363
      %v651 = vunpack.c.l.b16 %v364
      %v652 = vunpack.c.h.b16 %v364
      %v653 = vunpack.c.l.b16 %v365
      %v654 = vpack.c.b16 %v510, %v507
      %v655 = vpack.c.b16 %v511, %v508
      %v656 = vpack.c.b16 %v512, %v509
      %v657 = vpack.c.b16 %v516, %v513
      %v658 = vpack.c.b16 %v517, %v514
      %v659 = vpack.c.b16 %v518, %v515
      %v660 = vpack.c.b16 %v522, %v519
      %v661 = vpack.c.b16 %v523, %v520
      %v662 = vpack.c.b16 %v524, %v521
      %v663 = vpack.c.b16 %v528, %v525
      %v664 = vpack.c.b16 %v529, %v526
      %v665 = vpack.c.b16 %v530, %v527
      %v666 = vpack.c.b16 %v534, %v531
      %v667 = vpack.c.b16 %v535, %v532
      %v668 = vpack.c.b16 %v536, %v533
      %v669 = vpack.c.b16 %v540, %v537
      %v670 = vpack.c.b16 %v541, %v538
      %v671 = vpack.c.b16 %v542, %v539
      %v672 = vpack.c.b16 %v546, %v543
      %v673 = vpack.c.b16 %v547, %v544
      %v674 = vpack.c.b16 %v548, %v545
      %v675 = vpack.c.b16 %v552, %v549
      %v676 = vpack.c.b16 %v553, %v550
      %v677 = vpack.c.b16 %v554, %v551
      %v678 = vpack.c.b16 %v558, %v555
      %v679 = vpack.c.b16 %v559, %v556
      %v680 = vpack.c.b16 %v560, %v557
      %v681 = vpack.c.b16 %v564, %v561
      %v682 = vpack.c.b16 %v565, %v562
      %v683 = vpack.c.b16 %v566, %v563
      %v684 = vpack.c.b16 %v570, %v567
      %v685 = vpack.c.b16 %v571, %v568
      %v686 = vpack.c.b16 %v572, %v569
      %v687 = vpack.c.b16 %v576, %v573
      %v688 = vpack.c.b16 %v577, %v574
      %v689 = vpack.c.b16 %v578, %v575
      %v690 = vpack.c.b16 %v582, %v579
      %v691 = vpack.c.b16 %v583, %v580
      %v692 = vpack.c.b16 %v584, %v581
      %v693 = vpack.c.b16 %v588, %v585
      %v694 = vpack.c.b16 %v589, %v586
      %v695 = vpack.c.b16 %v590, %v587
      %v696 = vpack.c.b16 %v594, %v591
      %v697 = vpack.c.b16 %v595, %v592
      %v698 = vpack.c.b16 %v596, %v593
      %v699 = vpack.c.b16 %v600, %v597
      %v700 = vpack.c.b16 %v601, %v598
      %v701 = vpack.c.b16 %v602, %v599
      %v702 = vpack.c.b16 %v606, %v603
      %v703 = vpack.c.b16 %v607, %v604
      %v704 = vpack.c.b16 %v608, %v605
      %v705 = vpack.c.b16 %v612, %v609
      %v706 = vpack.c.b16 %v613, %v610
      %v707 = vpack.c.b16 %v614, %v611
      %v708 = vpack.c.b16 %v618, %v615
      %v709 = vpack.c.b16 %v619, %v616
      %v710 = vpack.c.b16 %v620, %v617
      %v711 = vpack.c.b16 %v624, %v621
      %v712 = vpack.c.b16 %v625, %v622
      %v713 = vpack.c.b16 %v626, %v623
      %v714 = vpack.c.b16 %v630, %v627
      %v715 = vpack.c.b16 %v631, %v628
      %v716 = vpack.c.b16 %v632, %v629
      %v717 = vpack.c.b16 %v636, %v633
      %v718 = vpack.c.b16 %v637, %v634
      %v719 = vpack.c.b16 %v638, %v635
      %v720 = vpack.c.b16 %v642, %v639
      %v721 = vpack.c.b16 %v643, %v640
      %v722 = vpack.c.b16 %v644, %v641
      %v723 = vpack.c.b16 %v648, %v645
      %v724 = vpack.c.b16 %v649, %v646
      %v725 = vpack.c.b16 %v650, %v647
      %v726 = vpack.c.b16 %v651, %v651
      %v727 = vpack.c.b16 %v652, %v652
      %v728 = vpack.c.b16 %v653, %v653
      %v815 = vunpack.c.l.b16 %v366
      %v816 = vunpack.c.l.b16 %v367
      %v817 = vunpack.c.l.b16 %v368
      %v818 = vunpack.c.l.b16 %v369
      %v819 = vunpack.c.l.b16 %v370
      %v820 = vunpack.c.l.b16 %v371
      %v821 = vunpack.c.l.b16 %v372
      %v822 = vunpack.c.l.b16 %v373
      %v823 = vunpack.c.l.b16 %v374
      %v824 = vunpack.c.l.b16 %v375
      %v825 = vunpack.c.l.b16 %v376
      %v826 = vunpack.c.l.b16 %v377
      %v827 = vunpack.c.l.b16 %v378
      %v828 = vunpack.c.l.b16 %v379
      %v829 = vunpack.c.l.b16 %v380
      %v830 = vunpack.c.l.b16 %v381
      %v831 = vunpack.c.l.b16 %v382
      %v832 = vunpack.c.l.b16 %v383
      %v833 = vunpack.c.l.b16 %v384
      %v834 = vunpack.c.l.b16 %v385
      %v835 = vunpack.c.l.b16 %v386
      %v836 = vunpack.c.l.b16 %v387
      %v837 = vunpack.c.l.b16 %v388
      %v838 = vunpack.c.l.b16 %v389
      %v839 = vunpack.c.l.b16 %v390
      %v840 = vunpack.c.l.b16 %v391
      %v841 = vunpack.c.l.b16 %v392
      %v842 = vunpack.c.l.b16 %v393
      %v843 = vunpack.c.l.b16 %v394
      %v844 = vunpack.c.l.b16 %v395
      %v845 = vunpack.c.l.b16 %v396
      %v846 = vunpack.c.l.b16 %v397
      %v847 = vunpack.c.l.b16 %v398
      %v848 = vunpack.c.l.b16 %v399
      %v849 = vunpack.c.l.b16 %v400
      %v850 = vunpack.c.l.b16 %v401
      %v851 = vpack.c.b16 %v816, %v815
      %v852 = vpack.c.b16 %v818, %v817
      %v853 = vpack.c.b16 %v820, %v819
      %v854 = vpack.c.b16 %v822, %v821
      %v855 = vpack.c.b16 %v824, %v823
      %v856 = vpack.c.b16 %v826, %v825
      %v857 = vpack.c.b16 %v828, %v827
      %v858 = vpack.c.b16 %v830, %v829
      %v859 = vpack.c.b16 %v832, %v831
      %v860 = vpack.c.b16 %v834, %v833
      %v861 = vpack.c.b16 %v836, %v835
      %v862 = vpack.c.b16 %v838, %v837
      %v863 = vpack.c.b16 %v840, %v839
      %v864 = vpack.c.b16 %v842, %v841
      %v865 = vpack.c.b16 %v844, %v843
      %v866 = vpack.c.b16 %v846, %v845
      %v867 = vpack.c.b16 %v848, %v847
      %v868 = vpack.c.b16 %v850, %v849
      %vm887 = vcmask 261120
      %v889 = vsel %vm887, %v656, 0
      %v892 = vsel %vm887, %v659, 0
      %v895 = vsel %vm887, %v662, 0
      %v898 = vsel %vm887, %v665, 0
      %v901 = vsel %vm887, %v668, 0
      %v904 = vsel %vm887, %v671, 0
      %v907 = vsel %vm887, %v674, 0
      %v910 = vsel %vm887, %v677, 0
      %v913 = vsel %vm887, %v680, 0
      %v916 = vsel %vm887, %v683, 0
      %v919 = vsel %vm887, %v686, 0
      %v922 = vsel %vm887, %v689, 0
      %v925 = vsel %vm887, %v692, 0
      %v928 = vsel %vm887, %v695, 0
      %v931 = vsel %vm887, %v698, 0
      %v934 = vsel %vm887, %v701, 0
      %v937 = vsel %vm887, %v704, 0
      %v940 = vsel %vm887, %v707, 0
      %v943 = vsel %vm887, %v710, 0
      %v946 = vsel %vm887, %v713, 0
      %v949 = vsel %vm887, %v716, 0
      %v952 = vsel %vm887, %v719, 0
      %v955 = vsel %vm887, %v722, 0
      %v958 = vsel %vm887, %v725, 0
      %v961 = vsel %vm887, %v728, 0
      %963 = vmatprep.subr.bf16.mxu0 0
      %964 = vmatpush1.bf16.msra.mxu0 %v851
      %965 = vmatprep.subr.bf16.mxu0 0
      %966 = vmatpush1.bf16.msra.mxu0 %v852
      %967 = vmatprep.subr.bf16.mxu0 0
      %968 = vmatpush1.bf16.msra.mxu0 %v853
      %969 = vmatprep.subr.bf16.mxu0 0
      %970 = vmatpush1.bf16.msra.mxu0 %v854
      %971 = vmatprep.subr.bf16.mxu0 0
      %972 = vmatpush1.bf16.msra.mxu0 %v855
      %973 = vmatprep.subr.bf16.mxu0 0
      %974 = vmatpush1.bf16.msra.mxu0 %v856
      %975 = vmatprep.subr.bf16.mxu0 0
      %976 = vmatpush1.bf16.msra.mxu0 %v857
      %977 = vmatprep.subr.bf16.mxu0 0
      %978 = vmatpush1.bf16.msra.mxu0 %v858
      %979 = vmatprep.subr.bf16.mxu0 0
      %980 = vmatpush1.bf16.msra.mxu0 %v859
      %981 = vmatprep.subr.bf16.mxu0 0
      %982 = vmatpush1.bf16.msra.mxu0 %v860
      %983 = vmatprep.subr.bf16.mxu0 0
      %984 = vmatpush1.bf16.msra.mxu0 %v861
      %985 = vmatprep.subr.bf16.mxu0 0
      %986 = vmatpush1.bf16.msra.mxu0 %v862
      %987 = vmatprep.subr.bf16.mxu0 0
      %988 = vmatpush1.bf16.msra.mxu0 %v863
      %989 = vmatprep.subr.bf16.mxu0 0
      %990 = vmatpush1.bf16.msra.mxu0 %v864
      %991 = vmatprep.subr.bf16.mxu0 0
      %992 = vmatpush1.bf16.msra.mxu0 %v865
      %993 = vmatprep.subr.bf16.mxu0 0
      %994 = vmatpush1.bf16.msra.mxu0 %v866
      %995 = vmatprep.mubr.bf16.mxu0 %v655
      %996 = vmatmul.mubr.bf16.gmra.mrb[0].mxu0 %v654
      %v997 = vpop.f32.mrb[0].mxu0
      %v998 = vadd.f32 %v407, %v997
      %v999 = vpop.f32.mrb[0].mxu0
      %v1000 = vpop.f32.mrb[0].mxu0
      %v1001 = vadd.f32 %v407, %v1000
      %v1002 = vpop.f32.mrb[0].mxu0
      %1003 = vmatprep.mubr.bf16.mxu0 %v658
      %1004 = vmatmul.mubr.bf16.gmra.mrb[0].mxu0 %v657
      %v1005 = vpop.f32.mrb[0].mxu0
      %v1006 = vadd.f32 %v407, %v1005
      %v1007 = vpop.f32.mrb[0].mxu0
      %v1008 = vpop.f32.mrb[0].mxu0
      %v1009 = vadd.f32 %v407, %v1008
      %v1010 = vpop.f32.mrb[0].mxu0
      %1011 = vmatprep.mubr.bf16.mxu0 %v661
      %1012 = vmatmul.mubr.bf16.gmra.mrb[0].mxu0 %v660
      %v1013 = vpop.f32.mrb[0].mxu0
      %v1014 = vadd.f32 %v407, %v1013
      %v1015 = vpop.f32.mrb[0].mxu0
      %v1016 = vpop.f32.mrb[0].mxu0
      %v1017 = vadd.f32 %v407, %v1016
      %v1018 = vpop.f32.mrb[0].mxu0
      %1019 = vmatprep.mubr.bf16.mxu0 %v664
      %1020 = vmatmul.mubr.bf16.gmra.mrb[0].mxu0 %v663
      %v1021 = vpop.f32.mrb[0].mxu0
      %v1022 = vadd.f32 %v407, %v1021
      %v1023 = vpop.f32.mrb[0].mxu0
      %v1024 = vpop.f32.mrb[0].mxu0
      %v1025 = vadd.f32 %v407, %v1024
      %v1026 = vpop.f32.mrb[0].mxu0
      %1027 = vmatprep.mubr.bf16.mxu0 %v667
      %1028 = vmatmul.mubr.bf16.gmra.mrb[0].mxu0 %v666
      %v1029 = vpop.f32.mrb[0].mxu0
      %v1030 = vadd.f32 %v407, %v1029
      %v1031 = vpop.f32.mrb[0].mxu0
      %v1032 = vpop.f32.mrb[0].mxu0
      %v1033 = vadd.f32 %v407, %v1032
      %v1034 = vpop.f32.mrb[0].mxu0
      %1035 = vmatprep.mubr.bf16.mxu0 %v670
      %1036 = vmatmul.mubr.bf16.gmra.mrb[0].mxu0 %v669
      %v1037 = vpop.f32.mrb[0].mxu0
      %v1038 = vadd.f32 %v407, %v1037
      %v1039 = vpop.f32.mrb[0].mxu0
      %v1040 = vpop.f32.mrb[0].mxu0
      %v1041 = vadd.f32 %v407, %v1040
      %v1042 = vpop.f32.mrb[0].mxu0
      %1043 = vmatprep.mubr.bf16.mxu0 %v673
      %1044 = vmatmul.mubr.bf16.gmra.mrb[0].mxu0 %v672
      %v1045 = vpop.f32.mrb[0].mxu0
      %v1046 = vadd.f32 %v407, %v1045
      %v1047 = vpop.f32.mrb[0].mxu0
      %v1048 = vpop.f32.mrb[0].mxu0
      %v1049 = vadd.f32 %v407, %v1048
      %v1050 = vpop.f32.mrb[0].mxu0
      %1051 = vmatprep.mubr.bf16.mxu0 %v676
      %1052 = vmatmul.mubr.bf16.gmra.mrb[0].mxu0 %v675
      %v1053 = vpop.f32.mrb[0].mxu0
      %v1054 = vadd.f32 %v407, %v1053
      %v1055 = vpop.f32.mrb[0].mxu0
      %v1056 = vpop.f32.mrb[0].mxu0
      %v1057 = vadd.f32 %v407, %v1056
      %v1058 = vpop.f32.mrb[0].mxu0
      %1059 = vmatprep.mubr.bf16.mxu0 %v679
      %1060 = vmatmul.mubr.bf16.gmra.mrb[0].mxu0 %v678
      %v1061 = vpop.f32.mrb[0].mxu0
      %v1062 = vadd.f32 %v407, %v1061
      %v1063 = vpop.f32.mrb[0].mxu0
      %v1064 = vpop.f32.mrb[0].mxu0
      %v1065 = vadd.f32 %v407, %v1064
      %v1066 = vpop.f32.mrb[0].mxu0
      %1067 = vmatprep.mubr.bf16.mxu0 %v682
      %1068 = vmatmul.mubr.bf16.gmra.mrb[0].mxu0 %v681
      %v1069 = vpop.f32.mrb[0].mxu0
      %v1070 = vadd.f32 %v407, %v1069
      %v1071 = vpop.f32.mrb[0].mxu0
      %v1072 = vpop.f32.mrb[0].mxu0
      %v1073 = vadd.f32 %v407, %v1072
      %v1074 = vpop.f32.mrb[0].mxu0
      %1075 = vmatprep.mubr.bf16.mxu0 %v685
      %1076 = vmatmul.mubr.bf16.gmra.mrb[0].mxu0 %v684
      %v1077 = vpop.f32.mrb[0].mxu0
      %v1078 = vadd.f32 %v407, %v1077
      %v1079 = vpop.f32.mrb[0].mxu0
      %v1080 = vpop.f32.mrb[0].mxu0
      %v1081 = vadd.f32 %v407, %v1080
      %v1082 = vpop.f32.mrb[0].mxu0
      %1083 = vmatprep.mubr.bf16.mxu0 %v688
      %1084 = vmatmul.mubr.bf16.gmra.mrb[0].mxu0 %v687
      %v1085 = vpop.f32.mrb[0].mxu0
      %v1086 = vadd.f32 %v407, %v1085
      %v1087 = vpop.f32.mrb[0].mxu0
      %v1088 = vpop.f32.mrb[0].mxu0
      %v1089 = vadd.f32 %v407, %v1088
      %v1090 = vpop.f32.mrb[0].mxu0
      %1091 = vmatprep.mubr.bf16.mxu0 %v691
      %1092 = vmatmul.mubr.bf16.gmra.mrb[0].mxu0 %v690
      %v1093 = vpop.f32.mrb[0].mxu0
      %v1094 = vadd.f32 %v407, %v1093
      %v1095 = vpop.f32.mrb[0].mxu0
      %v1096 = vpop.f32.mrb[0].mxu0
      %v1097 = vadd.f32 %v407, %v1096
      %v1098 = vpop.f32.mrb[0].mxu0
      %1099 = vmatprep.mubr.bf16.mxu0 %v694
      %1100 = vmatmul.mubr.bf16.gmra.mrb[0].mxu0 %v693
      %v1101 = vpop.f32.mrb[0].mxu0
      %v1102 = vadd.f32 %v407, %v1101
      %v1103 = vpop.f32.mrb[0].mxu0
      %v1104 = vpop.f32.mrb[0].mxu0
      %v1105 = vadd.f32 %v407, %v1104
      %v1106 = vpop.f32.mrb[0].mxu0
      %1107 = vmatprep.mubr.bf16.mxu0 %v697
      %1108 = vmatmul.mubr.bf16.gmra.mrb[0].mxu0 %v696
      %v1109 = vpop.f32.mrb[0].mxu0
      %v1110 = vadd.f32 %v407, %v1109
      %v1111 = vpop.f32.mrb[0].mxu0
      %v1112 = vpop.f32.mrb[0].mxu0
      %v1113 = vadd.f32 %v407, %v1112
      %v1114 = vpop.f32.mrb[0].mxu0
      %1115 = vmatprep.mubr.bf16.mxu0 %v700
      %1116 = vmatmul.mubr.bf16.gmra.mrb[0].mxu0 %v699
      %v1117 = vpop.f32.mrb[0].mxu0
      %v1118 = vadd.f32 %v407, %v1117
      %v1119 = vpop.f32.mrb[0].mxu0
      %v1120 = vpop.f32.mrb[0].mxu0
      %v1121 = vadd.f32 %v407, %v1120
      %v1122 = vpop.f32.mrb[0].mxu0
      %1123 = vmatprep.mubr.bf16.mxu0 %v703
      %1124 = vmatmul.mubr.bf16.gmra.mrb[0].mxu0 %v702
      %v1125 = vpop.f32.mrb[0].mxu0
      %v1126 = vadd.f32 %v407, %v1125
      %v1127 = vpop.f32.mrb[0].mxu0
      %v1128 = vpop.f32.mrb[0].mxu0
      %v1129 = vadd.f32 %v407, %v1128
      %v1130 = vpop.f32.mrb[0].mxu0
      %1131 = vmatprep.mubr.bf16.mxu0 %v706
      %1132 = vmatmul.mubr.bf16.gmra.mrb[0].mxu0 %v705
      %v1133 = vpop.f32.mrb[0].mxu0
      %v1134 = vadd.f32 %v407, %v1133
      %v1135 = vpop.f32.mrb[0].mxu0
      %v1136 = vpop.f32.mrb[0].mxu0
      %v1137 = vadd.f32 %v407, %v1136
      %v1138 = vpop.f32.mrb[0].mxu0
      %1139 = vmatprep.mubr.bf16.mxu0 %v709
      %1140 = vmatmul.mubr.bf16.gmra.mrb[0].mxu0 %v708
      %v1141 = vpop.f32.mrb[0].mxu0
      %v1142 = vadd.f32 %v407, %v1141
      %v1143 = vpop.f32.mrb[0].mxu0
      %v1144 = vpop.f32.mrb[0].mxu0
      %v1145 = vadd.f32 %v407, %v1144
      %v1146 = vpop.f32.mrb[0].mxu0
      %1147 = vmatprep.mubr.bf16.mxu0 %v712
      %1148 = vmatmul.mubr.bf16.gmra.mrb[0].mxu0 %v711
      %v1149 = vpop.f32.mrb[0].mxu0
      %v1150 = vadd.f32 %v407, %v1149
      %v1151 = vpop.f32.mrb[0].mxu0
      %v1152 = vpop.f32.mrb[0].mxu0
      %v1153 = vadd.f32 %v407, %v1152
      %v1154 = vpop.f32.mrb[0].mxu0
      %1155 = vmatprep.mubr.bf16.mxu0 %v715
      %1156 = vmatmul.mubr.bf16.gmra.mrb[0].mxu0 %v714
      %v1157 = vpop.f32.mrb[0].mxu0
      %v1158 = vadd.f32 %v407, %v1157
      %v1159 = vpop.f32.mrb[0].mxu0
      %v1160 = vpop.f32.mrb[0].mxu0
      %v1161 = vadd.f32 %v407, %v1160
      %v1162 = vpop.f32.mrb[0].mxu0
      %1163 = vmatprep.mubr.bf16.mxu0 %v718
      %1164 = vmatmul.mubr.bf16.gmra.mrb[0].mxu0 %v717
      %v1165 = vpop.f32.mrb[0].mxu0
      %v1166 = vadd.f32 %v407, %v1165
      %v1167 = vpop.f32.mrb[0].mxu0
      %v1168 = vpop.f32.mrb[0].mxu0
      %v1169 = vadd.f32 %v407, %v1168
      %v1170 = vpop.f32.mrb[0].mxu0
      %1171 = vmatprep.mubr.bf16.mxu0 %v721
      %1172 = vmatmul.mubr.bf16.gmra.mrb[0].mxu0 %v720
      %v1173 = vpop.f32.mrb[0].mxu0
      %v1174 = vadd.f32 %v407, %v1173
      %v1175 = vpop.f32.mrb[0].mxu0
      %v1176 = vpop.f32.mrb[0].mxu0
      %v1177 = vadd.f32 %v407, %v1176
      %v1178 = vpop.f32.mrb[0].mxu0
      %1179 = vmatprep.mubr.bf16.mxu0 %v724
      %1180 = vmatmul.mubr.bf16.gmra.mrb[0].mxu0 %v723
      %v1181 = vpop.f32.mrb[0].mxu0
      %v1182 = vadd.f32 %v407, %v1181
      %v1183 = vpop.f32.mrb[0].mxu0
      %v1184 = vpop.f32.mrb[0].mxu0
      %v1185 = vadd.f32 %v407, %v1184
      %v1186 = vpop.f32.mrb[0].mxu0
      %1187 = vmatprep.mubr.bf16.mxu0 %v727
      %1188 = vmatmul.mubr.bf16.gmra.mrb[0].mxu0 %v726
      %v1189 = vpop.f32.mrb[0].mxu0
      %v1190 = vadd.f32 %v407, %v1189
      %v1191 = vpop.f32.mrb[0].mxu0
      %v1192 = vpop.f32.mrb[0].mxu0
      %v1193 = vpop.f32.mrb[0].mxu0
      %1194 = vdwg.mxu0
      %1195 = vmatprep.subr.bf16.mxu0 0
      %1196 = vmatpush1.bf16.msra.mxu0 %v867
      %1197 = vmatprep.subr.bf16.mxu0 0
      %1198 = vmatpush1.bf16.msra.mxu0 %v868
      %1199 = vmatprep.subr.bf16.mxu0 0
      %1200 = vmatpush1.bf16.msra.mxu0 0
      %1201 = vmatprep.subr.bf16.mxu0 0
      %1202 = vmatpush1.bf16.msra.mxu0 0
      %1203 = vmatprep.subr.bf16.mxu0 0
      %1204 = vmatpush1.bf16.msra.mxu0 0
      %1205 = vmatprep.subr.bf16.mxu0 0
      %1206 = vmatpush1.bf16.msra.mxu0 0
      %1207 = vmatprep.subr.bf16.mxu0 0
      %1208 = vmatpush1.bf16.msra.mxu0 0
      %1209 = vmatprep.subr.bf16.mxu0 0
      %1210 = vmatpush1.bf16.msra.mxu0 0
      %1211 = vmatprep.subr.bf16.mxu0 0
      %1212 = vmatpush1.bf16.msra.mxu0 0
      %1213 = vmatprep.subr.bf16.mxu0 0
      %1214 = vmatpush1.bf16.msra.mxu0 0
      %1215 = vmatprep.subr.bf16.mxu0 0
      %1216 = vmatpush1.bf16.msra.mxu0 0
      %1217 = vmatprep.subr.bf16.mxu0 0
      %1218 = vmatpush1.bf16.msra.mxu0 0
      %1219 = vmatprep.subr.bf16.mxu0 0
      %1220 = vmatpush1.bf16.msra.mxu0 0
      %1221 = vmatprep.subr.bf16.mxu0 0
      %1222 = vmatpush1.bf16.msra.mxu0 0
      %1223 = vmatprep.subr.bf16.mxu0 0
      %1224 = vmatpush1.bf16.msra.mxu0 0
      %1225 = vmatprep.subr.bf16.mxu0 0
      %1226 = vmatpush1.bf16.msra.mxu0 0
      %1227 = vmatprep.mubr.bf16.mxu0 0
      %1228 = vmatmul.mubr.bf16.gmra.mrb[0].mxu0 %v889
      %v1229 = vpop.f32.mrb[0].mxu0
      %v1230 = vadd.f32 %v998, %v1229
      %v1231 = vpop.f32.mrb[0].mxu0
      %v1232 = vpop.f32.mrb[0].mxu0
      %v1233 = vadd.f32 %v1001, %v1232
      %v1234 = vpop.f32.mrb[0].mxu0
      %1235 = vmatprep.mubr.bf16.mxu0 0
      %1236 = vmatmul.mubr.bf16.gmra.mrb[0].mxu0 %v892
      %v1237 = vpop.f32.mrb[0].mxu0
      %v1238 = vadd.f32 %v1006, %v1237
      %v1239 = vpop.f32.mrb[0].mxu0
      %v1240 = vpop.f32.mrb[0].mxu0
      %v1241 = vadd.f32 %v1009, %v1240
      %v1242 = vpop.f32.mrb[0].mxu0
      %1243 = vmatprep.mubr.bf16.mxu0 0
      %1244 = vmatmul.mubr.bf16.gmra.mrb[0].mxu0 %v895
      %v1245 = vpop.f32.mrb[0].mxu0
      %v1246 = vadd.f32 %v1014, %v1245
      %v1247 = vpop.f32.mrb[0].mxu0
      %v1248 = vpop.f32.mrb[0].mxu0
      %v1249 = vadd.f32 %v1017, %v1248
      %v1250 = vpop.f32.mrb[0].mxu0
      %1251 = vmatprep.mubr.bf16.mxu0 0
      %1252 = vmatmul.mubr.bf16.gmra.mrb[0].mxu0 %v898
      %v1253 = vpop.f32.mrb[0].mxu0
      %v1254 = vadd.f32 %v1022, %v1253
      %v1255 = vpop.f32.mrb[0].mxu0
      %v1256 = vpop.f32.mrb[0].mxu0
      %v1257 = vadd.f32 %v1025, %v1256
      %v1258 = vpop.f32.mrb[0].mxu0
      %1259 = vmatprep.mubr.bf16.mxu0 0
      %1260 = vmatmul.mubr.bf16.gmra.mrb[0].mxu0 %v901
      %v1261 = vpop.f32.mrb[0].mxu0
      %v1262 = vadd.f32 %v1030, %v1261
      %v1263 = vpop.f32.mrb[0].mxu0
      %v1264 = vpop.f32.mrb[0].mxu0
      %v1265 = vadd.f32 %v1033, %v1264
      %v1266 = vpop.f32.mrb[0].mxu0
      %1267 = vmatprep.mubr.bf16.mxu0 0
      %1268 = vmatmul.mubr.bf16.gmra.mrb[0].mxu0 %v904
      %v1269 = vpop.f32.mrb[0].mxu0
      %v1270 = vadd.f32 %v1038, %v1269
      %v1271 = vpop.f32.mrb[0].mxu0
      %v1272 = vpop.f32.mrb[0].mxu0
      %v1273 = vadd.f32 %v1041, %v1272
      %v1274 = vpop.f32.mrb[0].mxu0
      %1275 = vmatprep.mubr.bf16.mxu0 0
      %1276 = vmatmul.mubr.bf16.gmra.mrb[0].mxu0 %v907
      %v1277 = vpop.f32.mrb[0].mxu0
      %v1278 = vadd.f32 %v1046, %v1277
      %v1279 = vpop.f32.mrb[0].mxu0
      %v1280 = vpop.f32.mrb[0].mxu0
      %v1281 = vadd.f32 %v1049, %v1280
      %v1282 = vpop.f32.mrb[0].mxu0
      %1283 = vmatprep.mubr.bf16.mxu0 0
      %1284 = vmatmul.mubr.bf16.gmra.mrb[0].mxu0 %v910
      %v1285 = vpop.f32.mrb[0].mxu0
      %v1286 = vadd.f32 %v1054, %v1285
      %v1287 = vpop.f32.mrb[0].mxu0
      %v1288 = vpop.f32.mrb[0].mxu0
      %v1289 = vadd.f32 %v1057, %v1288
      %v1290 = vpop.f32.mrb[0].mxu0
      %1291 = vmatprep.mubr.bf16.mxu0 0
      %1292 = vmatmul.mubr.bf16.gmra.mrb[0].mxu0 %v913
      %v1293 = vpop.f32.mrb[0].mxu0
      %v1294 = vadd.f32 %v1062, %v1293
      %v1295 = vpop.f32.mrb[0].mxu0
      %v1296 = vpop.f32.mrb[0].mxu0
      %v1297 = vadd.f32 %v1065, %v1296
      %v1298 = vpop.f32.mrb[0].mxu0
      %1299 = vmatprep.mubr.bf16.mxu0 0
      %1300 = vmatmul.mubr.bf16.gmra.mrb[0].mxu0 %v916
      %v1301 = vpop.f32.mrb[0].mxu0
      %v1302 = vadd.f32 %v1070, %v1301
      %v1303 = vpop.f32.mrb[0].mxu0
      %v1304 = vpop.f32.mrb[0].mxu0
      %v1305 = vadd.f32 %v1073, %v1304
      %v1306 = vpop.f32.mrb[0].mxu0
      %1307 = vmatprep.mubr.bf16.mxu0 0
      %1308 = vmatmul.mubr.bf16.gmra.mrb[0].mxu0 %v919
      %v1309 = vpop.f32.mrb[0].mxu0
      %v1310 = vadd.f32 %v1078, %v1309
      %v1311 = vpop.f32.mrb[0].mxu0
      %v1312 = vpop.f32.mrb[0].mxu0
      %v1313 = vadd.f32 %v1081, %v1312
      %v1314 = vpop.f32.mrb[0].mxu0
      %1315 = vmatprep.mubr.bf16.mxu0 0
      %1316 = vmatmul.mubr.bf16.gmra.mrb[0].mxu0 %v922
      %v1317 = vpop.f32.mrb[0].mxu0
      %v1318 = vadd.f32 %v1086, %v1317
      %v1319 = vpop.f32.mrb[0].mxu0
      %v1320 = vpop.f32.mrb[0].mxu0
      %v1321 = vadd.f32 %v1089, %v1320
      %v1322 = vpop.f32.mrb[0].mxu0
      %1323 = vmatprep.mubr.bf16.mxu0 0
      %1324 = vmatmul.mubr.bf16.gmra.mrb[0].mxu0 %v925
      %v1325 = vpop.f32.mrb[0].mxu0
      %v1326 = vadd.f32 %v1094, %v1325
      %v1327 = vpop.f32.mrb[0].mxu0
      %v1328 = vpop.f32.mrb[0].mxu0
      %v1329 = vadd.f32 %v1097, %v1328
      %v1330 = vpop.f32.mrb[0].mxu0
      %1331 = vmatprep.mubr.bf16.mxu0 0
      %1332 = vmatmul.mubr.bf16.gmra.mrb[0].mxu0 %v928
      %v1333 = vpop.f32.mrb[0].mxu0
      %v1334 = vadd.f32 %v1102, %v1333
      %v1335 = vpop.f32.mrb[0].mxu0
      %v1336 = vpop.f32.mrb[0].mxu0
      %v1337 = vadd.f32 %v1105, %v1336
      %v1338 = vpop.f32.mrb[0].mxu0
      %1339 = vmatprep.mubr.bf16.mxu0 0
      %1340 = vmatmul.mubr.bf16.gmra.mrb[0].mxu0 %v931
      %v1341 = vpop.f32.mrb[0].mxu0
      %v1342 = vadd.f32 %v1110, %v1341
      %v1343 = vpop.f32.mrb[0].mxu0
      %v1344 = vpop.f32.mrb[0].mxu0
      %v1345 = vadd.f32 %v1113, %v1344
      %v1346 = vpop.f32.mrb[0].mxu0
      %1347 = vmatprep.mubr.bf16.mxu0 0
      %1348 = vmatmul.mubr.bf16.gmra.mrb[0].mxu0 %v934
      %v1349 = vpop.f32.mrb[0].mxu0
      %v1350 = vadd.f32 %v1118, %v1349
      %v1351 = vpop.f32.mrb[0].mxu0
      %v1352 = vpop.f32.mrb[0].mxu0
      %v1353 = vadd.f32 %v1121, %v1352
      %v1354 = vpop.f32.mrb[0].mxu0
      %1355 = vmatprep.mubr.bf16.mxu0 0
      %1356 = vmatmul.mubr.bf16.gmra.mrb[0].mxu0 %v937
      %v1357 = vpop.f32.mrb[0].mxu0
      %v1358 = vadd.f32 %v1126, %v1357
      %v1359 = vpop.f32.mrb[0].mxu0
      %v1360 = vpop.f32.mrb[0].mxu0
      %v1361 = vadd.f32 %v1129, %v1360
      %v1362 = vpop.f32.mrb[0].mxu0
      %1363 = vmatprep.mubr.bf16.mxu0 0
      %1364 = vmatmul.mubr.bf16.gmra.mrb[0].mxu0 %v940
      %v1365 = vpop.f32.mrb[0].mxu0
      %v1366 = vadd.f32 %v1134, %v1365
      %v1367 = vpop.f32.mrb[0].mxu0
      %v1368 = vpop.f32.mrb[0].mxu0
      %v1369 = vadd.f32 %v1137, %v1368
      %v1370 = vpop.f32.mrb[0].mxu0
      %1371 = vmatprep.mubr.bf16.mxu0 0
      %1372 = vmatmul.mubr.bf16.gmra.mrb[0].mxu0 %v943
      %v1373 = vpop.f32.mrb[0].mxu0
      %v1374 = vadd.f32 %v1142, %v1373
      %v1375 = vpop.f32.mrb[0].mxu0
      %v1376 = vpop.f32.mrb[0].mxu0
      %v1377 = vadd.f32 %v1145, %v1376
      %v1378 = vpop.f32.mrb[0].mxu0
      %1379 = vmatprep.mubr.bf16.mxu0 0
      %1380 = vmatmul.mubr.bf16.gmra.mrb[0].mxu0 %v946
      %v1381 = vpop.f32.mrb[0].mxu0
      %v1382 = vadd.f32 %v1150, %v1381
      %v1383 = vpop.f32.mrb[0].mxu0
      %v1384 = vpop.f32.mrb[0].mxu0
      %v1385 = vadd.f32 %v1153, %v1384
      %v1386 = vpop.f32.mrb[0].mxu0
      %1387 = vmatprep.mubr.bf16.mxu0 0
      %1388 = vmatmul.mubr.bf16.gmra.mrb[0].mxu0 %v949
      %v1389 = vpop.f32.mrb[0].mxu0
      %v1390 = vadd.f32 %v1158, %v1389
      %v1391 = vpop.f32.mrb[0].mxu0
      %v1392 = vpop.f32.mrb[0].mxu0
      %v1393 = vadd.f32 %v1161, %v1392
      %v1394 = vpop.f32.mrb[0].mxu0
      %1395 = vmatprep.mubr.bf16.mxu0 0
      %1396 = vmatmul.mubr.bf16.gmra.mrb[0].mxu0 %v952
      %v1397 = vpop.f32.mrb[0].mxu0
      %v1398 = vadd.f32 %v1166, %v1397
      %v1399 = vpop.f32.mrb[0].mxu0
      %v1400 = vpop.f32.mrb[0].mxu0
      %v1401 = vadd.f32 %v1169, %v1400
      %v1402 = vpop.f32.mrb[0].mxu0
      %1403 = vmatprep.mubr.bf16.mxu0 0
      %1404 = vmatmul.mubr.bf16.gmra.mrb[0].mxu0 %v955
      %v1405 = vpop.f32.mrb[0].mxu0
      %v1406 = vadd.f32 %v1174, %v1405
      %v1407 = vpop.f32.mrb[0].mxu0
      %v1408 = vpop.f32.mrb[0].mxu0
      %v1409 = vadd.f32 %v1177, %v1408
      %v1410 = vpop.f32.mrb[0].mxu0
      %1411 = vmatprep.mubr.bf16.mxu0 0
      %1412 = vmatmul.mubr.bf16.gmra.mrb[0].mxu0 %v958
      %v1413 = vpop.f32.mrb[0].mxu0
      %v1414 = vadd.f32 %v1182, %v1413
      %v1415 = vpop.f32.mrb[0].mxu0
      %v1416 = vpop.f32.mrb[0].mxu0
      %v1417 = vadd.f32 %v1185, %v1416
      %v1418 = vpop.f32.mrb[0].mxu0
      %1419 = vmatprep.mubr.bf16.mxu0 0
      %1420 = vmatmul.mubr.bf16.gmra.mrb[0].mxu0 %v961
      %v1421 = vpop.f32.mrb[0].mxu0
      %v1422 = vadd.f32 %v1190, %v1421
      %v1423 = vpop.f32.mrb[0].mxu0
      %v1424 = vpop.f32.mrb[0].mxu0
      %v1425 = vpop.f32.mrb[0].mxu0
      %1426 = vdwg.mxu0
      %v1427 = vmax.f32 %v1230, 0.0
      %v1428 = vmax.f32 %v1233, 0.0
      %v1429 = vmax.f32 %v1238, 0.0
      %v1430 = vmax.f32 %v1241, 0.0
      %v1431 = vmax.f32 %v1246, 0.0
      %v1432 = vmax.f32 %v1249, 0.0
      %v1433 = vmax.f32 %v1254, 0.0
      %v1434 = vmax.f32 %v1257, 0.0
      %v1435 = vmax.f32 %v1262, 0.0
      %v1436 = vmax.f32 %v1265, 0.0
      %v1437 = vmax.f32 %v1270, 0.0
      %v1438 = vmax.f32 %v1273, 0.0
      %v1439 = vmax.f32 %v1278, 0.0
      %v1440 = vmax.f32 %v1281, 0.0
      %v1441 = vmax.f32 %v1286, 0.0
      %v1442 = vmax.f32 %v1289, 0.0
      %v1443 = vmax.f32 %v1294, 0.0
      %v1444 = vmax.f32 %v1297, 0.0
      %v1445 = vmax.f32 %v1302, 0.0
      %v1446 = vmax.f32 %v1305, 0.0
      %v1447 = vmax.f32 %v1310, 0.0
      %v1448 = vmax.f32 %v1313, 0.0
      %v1449 = vmax.f32 %v1318, 0.0
      %v1450 = vmax.f32 %v1321, 0.0
      %v1451 = vmax.f32 %v1326, 0.0
      %v1452 = vmax.f32 %v1329, 0.0
      %v1453 = vmax.f32 %v1334, 0.0
      %v1454 = vmax.f32 %v1337, 0.0
      %v1455 = vmax.f32 %v1342, 0.0
      %v1456 = vmax.f32 %v1345, 0.0
      %v1457 = vmax.f32 %v1350, 0.0
      %v1458 = vmax.f32 %v1353, 0.0
      %v1459 = vmax.f32 %v1358, 0.0
      %v1460 = vmax.f32 %v1361, 0.0
      %v1461 = vmax.f32 %v1366, 0.0
      %v1462 = vmax.f32 %v1369, 0.0
      %v1463 = vmax.f32 %v1374, 0.0
      %v1464 = vmax.f32 %v1377, 0.0
      %v1465 = vmax.f32 %v1382, 0.0
      %v1466 = vmax.f32 %v1385, 0.0
      %v1467 = vmax.f32 %v1390, 0.0
      %v1468 = vmax.f32 %v1393, 0.0
      %v1469 = vmax.f32 %v1398, 0.0
      %v1470 = vmax.f32 %v1401, 0.0
      %v1471 = vmax.f32 %v1406, 0.0
      %v1472 = vmax.f32 %v1409, 0.0
      %v1473 = vmax.f32 %v1414, 0.0
      %v1474 = vmax.f32 %v1417, 0.0
      %v1475 = vmax.f32 %v1422, 0.0
      %v1476 = vpack.c.bf16 %v1428, %v1427
      %v1477 = vpack.c.bf16 %v1430, %v1429
      %v1478 = vpack.c.bf16 %v1432, %v1431
      %v1479 = vpack.c.bf16 %v1434, %v1433
      %v1480 = vpack.c.bf16 %v1436, %v1435
      %v1481 = vpack.c.bf16 %v1438, %v1437
      %v1482 = vpack.c.bf16 %v1440, %v1439
      %v1483 = vpack.c.bf16 %v1442, %v1441
      %v1484 = vpack.c.bf16 %v1444, %v1443
      %v1485 = vpack.c.bf16 %v1446, %v1445
      %v1486 = vpack.c.bf16 %v1448, %v1447
      %v1487 = vpack.c.bf16 %v1450, %v1449
      %v1488 = vpack.c.bf16 %v1452, %v1451
      %v1489 = vpack.c.bf16 %v1454, %v1453
      %v1490 = vpack.c.bf16 %v1456, %v1455
      %v1491 = vpack.c.bf16 %v1458, %v1457
      %v1492 = vpack.c.bf16 %v1460, %v1459
      %v1493 = vpack.c.bf16 %v1462, %v1461
      %v1494 = vpack.c.bf16 %v1464, %v1463
      %v1495 = vpack.c.bf16 %v1466, %v1465
      %v1496 = vpack.c.bf16 %v1468, %v1467
      %v1497 = vpack.c.bf16 %v1470, %v1469
      %v1498 = vpack.c.bf16 %v1472, %v1471
      %v1499 = vpack.c.bf16 %v1474, %v1473
      %v1500 = vpack.c.bf16 %v1475, %v1475
      %v1526 = vunpack.c.l.b16 %v1476
      %v1527 = vunpack.c.h.b16 %v1476
      %v1528 = vunpack.c.l.b16 %v1477
      %v1529 = vunpack.c.h.b16 %v1477
      %v1530 = vunpack.c.l.b16 %v1478
      %v1531 = vunpack.c.h.b16 %v1478
      %v1532 = vunpack.c.l.b16 %v1479
      %v1533 = vunpack.c.h.b16 %v1479
      %v1534 = vunpack.c.l.b16 %v1480
      %v1535 = vunpack.c.h.b16 %v1480
      %v1536 = vunpack.c.l.b16 %v1481
      %v1537 = vunpack.c.h.b16 %v1481
      %v1538 = vunpack.c.l.b16 %v1482
      %v1539 = vunpack.c.h.b16 %v1482
      %v1540 = vunpack.c.l.b16 %v1483
      %v1541 = vunpack.c.h.b16 %v1483
      %v1542 = vunpack.c.l.b16 %v1484
      %v1543 = vunpack.c.h.b16 %v1484
      %v1544 = vunpack.c.l.b16 %v1485
      %v1545 = vunpack.c.h.b16 %v1485
      %v1546 = vunpack.c.l.b16 %v1486
      %v1547 = vunpack.c.h.b16 %v1486
      %v1548 = vunpack.c.l.b16 %v1487
      %v1549 = vunpack.c.h.b16 %v1487
      %v1550 = vunpack.c.l.b16 %v1488
      %v1551 = vunpack.c.h.b16 %v1488
      %v1552 = vunpack.c.l.b16 %v1489
      %v1553 = vunpack.c.h.b16 %v1489
      %v1554 = vunpack.c.l.b16 %v1490
      %v1555 = vunpack.c.h.b16 %v1490
      %v1556 = vunpack.c.l.b16 %v1491
      %v1557 = vunpack.c.h.b16 %v1491
      %v1558 = vunpack.c.l.b16 %v1492
      %v1559 = vunpack.c.h.b16 %v1492
      %v1560 = vunpack.c.l.b16 %v1493
      %v1561 = vunpack.c.h.b16 %v1493
      %v1562 = vunpack.c.l.b16 %v1494
      %v1563 = vunpack.c.h.b16 %v1494
      %v1564 = vunpack.c.l.b16 %v1495
      %v1565 = vunpack.c.h.b16 %v1495
      %v1566 = vunpack.c.l.b16 %v1496
      %v1567 = vunpack.c.h.b16 %v1496
      %v1568 = vunpack.c.l.b16 %v1497
      %v1569 = vunpack.c.h.b16 %v1497
      %v1570 = vunpack.c.l.b16 %v1498
      %v1571 = vunpack.c.h.b16 %v1498
      %v1572 = vunpack.c.l.b16 %v1499
      %v1573 = vunpack.c.h.b16 %v1499
      %v1574 = vunpack.c.l.b16 %v1500
      %v1575 = vpack.c.b16 %v1526, %v1526
      %v1576 = vpack.c.b16 %v1527, %v1527
      %v1577 = vpack.c.b16 %v1528, %v1528
      %v1578 = vpack.c.b16 %v1529, %v1529
      %v1579 = vpack.c.b16 %v1530, %v1530
      %v1580 = vpack.c.b16 %v1531, %v1531
      %v1581 = vpack.c.b16 %v1532, %v1532
      %v1582 = vpack.c.b16 %v1533, %v1533
      %v1583 = vpack.c.b16 %v1534, %v1534
      %v1584 = vpack.c.b16 %v1535, %v1535
      %v1585 = vpack.c.b16 %v1536, %v1536
      %v1586 = vpack.c.b16 %v1537, %v1537
      %v1587 = vpack.c.b16 %v1538, %v1538
      %v1588 = vpack.c.b16 %v1539, %v1539
      %v1589 = vpack.c.b16 %v1540, %v1540
      %v1590 = vpack.c.b16 %v1541, %v1541
      %v1591 = vpack.c.b16 %v1542, %v1542
      %v1592 = vpack.c.b16 %v1543, %v1543
      %v1593 = vpack.c.b16 %v1544, %v1544
      %v1594 = vpack.c.b16 %v1545, %v1545
      %v1595 = vpack.c.b16 %v1546, %v1546
      %v1596 = vpack.c.b16 %v1547, %v1547
      %v1597 = vpack.c.b16 %v1548, %v1548
      %v1598 = vpack.c.b16 %v1549, %v1549
      %v1599 = vpack.c.b16 %v1550, %v1550
      %v1600 = vpack.c.b16 %v1551, %v1551
      %v1601 = vpack.c.b16 %v1552, %v1552
      %v1602 = vpack.c.b16 %v1553, %v1553
      %v1603 = vpack.c.b16 %v1554, %v1554
      %v1604 = vpack.c.b16 %v1555, %v1555
      %v1605 = vpack.c.b16 %v1556, %v1556
      %v1606 = vpack.c.b16 %v1557, %v1557
      %v1607 = vpack.c.b16 %v1558, %v1558
      %v1608 = vpack.c.b16 %v1559, %v1559
      %v1609 = vpack.c.b16 %v1560, %v1560
      %v1610 = vpack.c.b16 %v1561, %v1561
      %v1611 = vpack.c.b16 %v1562, %v1562
      %v1612 = vpack.c.b16 %v1563, %v1563
      %v1613 = vpack.c.b16 %v1564, %v1564
      %v1614 = vpack.c.b16 %v1565, %v1565
      %v1615 = vpack.c.b16 %v1566, %v1566
      %v1616 = vpack.c.b16 %v1567, %v1567
      %v1617 = vpack.c.b16 %v1568, %v1568
      %v1618 = vpack.c.b16 %v1569, %v1569
      %v1619 = vpack.c.b16 %v1570, %v1570
      %v1620 = vpack.c.b16 %v1571, %v1571
      %v1621 = vpack.c.b16 %v1572, %v1572
      %v1622 = vpack.c.b16 %v1573, %v1573
      %v1623 = vpack.c.b16 %v1574, %v1574
      %vm1673 = vcmask 519168
      %1674 = vst.msk [vmem:[%s265] sm:$0xf] %vm1673, %v1575
      %1675 = vst.msk [vmem:[%s265 + $0x4] sm:$0xf] %vm1673, %v1576
      %1676 = vst.msk [vmem:[%s265 + $0x8] sm:$0xf] %vm1673, %v1577
      %1677 = vst.msk [vmem:[%s265 + $0xc] sm:$0xf] %vm1673, %v1578
      %1678 = vst.msk [vmem:[%s265 + $0x10] sm:$0xf] %vm1673, %v1579
      %1679 = vst.msk [vmem:[%s265 + $0x14] sm:$0xf] %vm1673, %v1580
      %1680 = vst.msk [vmem:[%s265 + $0x18] sm:$0xf] %vm1673, %v1581
      %1681 = vst.msk [vmem:[%s265 + $0x1c] sm:$0xf] %vm1673, %v1582
      %1682 = vst.msk [vmem:[%s265 + $0x20] sm:$0xf] %vm1673, %v1583
      %1683 = vst.msk [vmem:[%s265 + $0x24] sm:$0xf] %vm1673, %v1584
      %1684 = vst.msk [vmem:[%s265 + $0x28] sm:$0xf] %vm1673, %v1585
      %1685 = vst.msk [vmem:[%s265 + $0x2c] sm:$0xf] %vm1673, %v1586
      %1686 = vst.msk [vmem:[%s265 + $0x30] sm:$0xf] %vm1673, %v1587
      %1687 = vst.msk [vmem:[%s265 + $0x34] sm:$0xf] %vm1673, %v1588
      %1688 = vst.msk [vmem:[%s265 + $0x38] sm:$0xf] %vm1673, %v1589
      %1689 = vst.msk [vmem:[%s265 + $0x3c] sm:$0xf] %vm1673, %v1590
      %1690 = vst.msk [vmem:[%s265 + $0x40] sm:$0xf] %vm1673, %v1591
      %1691 = vst.msk [vmem:[%s265 + $0x44] sm:$0xf] %vm1673, %v1592
      %1692 = vst.msk [vmem:[%s265 + $0x48] sm:$0xf] %vm1673, %v1593
      %1693 = vst.msk [vmem:[%s265 + $0x4c] sm:$0xf] %vm1673, %v1594
      %1694 = vst.msk [vmem:[%s265 + $0x50] sm:$0xf] %vm1673, %v1595
      %1695 = vst.msk [vmem:[%s265 + $0x54] sm:$0xf] %vm1673, %v1596
      %1696 = vst.msk [vmem:[%s265 + $0x58] sm:$0xf] %vm1673, %v1597
      %1697 = vst.msk [vmem:[%s265 + $0x5c] sm:$0xf] %vm1673, %v1598
      %1698 = vst.msk [vmem:[%s265 + $0x60] sm:$0xf] %vm1673, %v1599
      %1699 = vst.msk [vmem:[%s265 + $0x64] sm:$0xf] %vm1673, %v1600
      %1700 = vst.msk [vmem:[%s265 + $0x68] sm:$0xf] %vm1673, %v1601
      %1701 = vst.msk [vmem:[%s265 + $0x6c] sm:$0xf] %vm1673, %v1602
      %1702 = vst.msk [vmem:[%s265 + $0x70] sm:$0xf] %vm1673, %v1603
      %1703 = vst.msk [vmem:[%s265 + $0x74] sm:$0xf] %vm1673, %v1604
      %1704 = vst.msk [vmem:[%s265 + $0x78] sm:$0xf] %vm1673, %v1605
      %1705 = vst.msk [vmem:[%s265 + $0x7c] sm:$0xf] %vm1673, %v1606
      %1706 = vst.msk [vmem:[%s265 + $0x80] sm:$0xf] %vm1673, %v1607
      %1707 = vst.msk [vmem:[%s265 + $0x84] sm:$0xf] %vm1673, %v1608
      %1708 = vst.msk [vmem:[%s265 + $0x88] sm:$0xf] %vm1673, %v1609
      %1709 = vst.msk [vmem:[%s265 + $0x8c] sm:$0xf] %vm1673, %v1610
      %1710 = vst.msk [vmem:[%s265 + $0x90] sm:$0xf] %vm1673, %v1611
      %1711 = vst.msk [vmem:[%s265 + $0x94] sm:$0xf] %vm1673, %v1612
      %1712 = vst.msk [vmem:[%s265 + $0x98] sm:$0xf] %vm1673, %v1613
      %1713 = vst.msk [vmem:[%s265 + $0x9c] sm:$0xf] %vm1673, %v1614
      %1714 = vst.msk [vmem:[%s265 + $0xa0] sm:$0xf] %vm1673, %v1615
      %1715 = vst.msk [vmem:[%s265 + $0xa4] sm:$0xf] %vm1673, %v1616
      %1716 = vst.msk [vmem:[%s265 + $0xa8] sm:$0xf] %vm1673, %v1617
      %1717 = vst.msk [vmem:[%s265 + $0xac] sm:$0xf] %vm1673, %v1618
      %1718 = vst.msk [vmem:[%s265 + $0xb0] sm:$0xf] %vm1673, %v1619
      %1719 = vst.msk [vmem:[%s265 + $0xb4] sm:$0xf] %vm1673, %v1620
      %1720 = vst.msk [vmem:[%s265 + $0xb8] sm:$0xf] %vm1673, %v1621
      %1721 = vst.msk [vmem:[%s265 + $0xbc] sm:$0xf] %vm1673, %v1622
      %1722 = vst.msk [vmem:[%s265 + $0xc0] sm:$0xf] %vm1673, %v1623
      %s1723 = smul.u32 49, %s19
      %p1724 = scmp.lt.s32.totalorder %s1723, 195
      %s1725 = scalar_select %p1724, %s1723, 195
      %p1726 = scmp.lt.s32.totalorder %s20, 0
      %s1727 = scalar_select %p1726, %s20, 0
      %s1728 = sadd.s32 %s1727, %s1725
      %s1729 = smul.addr %s1728, 4
      %s1730 = scalar_lea.vmem %s3, %s1729
      // Predicated region
      $region33: #{autoencoder_forward.10} parent=31 // pred_check
        %p1731 = pneg %p135
      $region34: #{autoencoder_forward.10} parent=31 // pred_check_branch
        %1733 = sbr.rel (%p1731) target = $region36
      $region35: #{autoencoder_forward.10} parent=31 // pred_region
        %s1734 = smul.u32 49, %s19
      $region36: #{autoencoder_forward.10} parent=31 // pred_fallthru
        _
    $region32: #{autoencoder_forward.10} parent=5 // pred_fallthru
      _
    %p1735 = scmp.le.s32.totalorder 2, %s9
    // Predicated region
    $region37: #{autoencoder_forward.10} parent=5 // pred_check
      %p1736 = pneg %p1735
    $region38: #{autoencoder_forward.10} parent=5 // pred_check_branch
      %1738 = sbr.rel (%p1736) target = $region40
    $region39: #{autoencoder_forward.10} parent=5 // pred_region
      %s1739 = ssub.s32 %s9, 2
      // Predicated region
      $region41: #{autoencoder_forward.10} parent=39 // pred_check
        %p1740 = pneg %p141
      $region42: #{autoencoder_forward.10} parent=39 // pred_check_branch
        %1742 = sbr.rel (%p1740) target = $region44
      $region43: #{autoencoder_forward.10} parent=39 // pred_region
        %s1743 = smul.u32 49, %s22
        %p1744 = scmp.lt.s32.totalorder %s1743, 195
        %s1745 = scalar_select %p1744, %s1743, 195
        %p1746 = scmp.lt.s32.totalorder %s23, 0
        %s1747 = scalar_select %p1746, %s23, 0
        %s1748 = sadd.s32 %s1747, %s1745
        %s1749 = smul.addr %s1748, 4
        %s1750 = scalar_lea.vmem %s3, %s1749
      $region44: #{autoencoder_forward.10} parent=39 // pred_fallthru
        _
    $region40: #{autoencoder_forward.10} parent=5 // pred_fallthru
      _
  $region6: #{autoencoder_forward.10} parent=0 // loop_footer
    %s13 = sadd.s32 1, %s9
  $region7: #{autoencoder_forward.10} parent=0 // loop_footer_branch
    %8 = sbr.rel target = $region3
  $region8: #{autoencoder_forward.10} parent=0 // loop_exit
    _

// kernel: autoencoder_forward.11
$region0: #{autoencoder_forward.11}
  #allocation0 [shape = 'u32[]', space=smem, size = 0x4, offset = 0x4, fixed_abs, tag = 'smem constant byte address 0x4 - core index']
  #allocation1 [shape = 'u32[144,128]{1,0:T(1,128)}', space=vmem, size = 0x12000, scoped, tag = 'internal scratch']
  %s0 = inlined_call_operand.vmem [shape: bf16[2,50176], index: 0, kind: input, shape index: {}]
  %s1 = inlined_call_operand.vmem [shape: bf16[50176,128], index: 1, kind: input, shape index: {}]
  %s2 = inlined_call_operand.vmem [shape: f32[1,128], index: 2, kind: input, shape index: {}]
  %s3 = inlined_call_operand.vmem [shape: f32[2,128], index: 3, kind: output, shape index: {}]
  %s4 = sld [smem:[#allocation0]]
  $region53: #{autoencoder_forward.11} parent=0
    _
  %s6 = ssub.s32 1, %s4
  %s7 = scalar_select 0, %s6, %s4
  loop: start=0, step=1, limit=100
  $region2: #{autoencoder_forward.11} parent=0 // loop_pre_header
    _
  $region3: #{autoencoder_forward.11} parent=0 // loop_header
    %s9 = sphi 0, %s13
    %p10 = scmp.ge.s32.totalorder %s9, 100
    %s16 = sphi 0, %s35
    %s17 = sphi 0, %s31
    %s18 = sphi 0, %s27
    %s19 = sphi 0, %s16
    %s20 = sphi 0, %s17
    %s21 = sphi 0, %s18
    %s22 = sphi 0, %s19
    %s23 = sphi 0, %s20
    %s24 = sphi 0, %s21
    %s40 = sphi 0, %s42
    %s43 = sphi 0, %s40
    %s44 = sphi 0, %s43
    %s60 = sphi 0, %s44
    %s68 = sphi 0, %s70
    %s71 = sphi 0, %s68
    %s72 = sphi 0, %s71
    %s88 = sphi 0, %s72
    %s94 = sphi 0, %s96
    %s97 = sphi 0, %s94
    %s98 = sphi 0, %s97
    %s114 = sphi 0, %s98
    %s122 = sphi 0, %s124
    %s125 = sphi 0, %s122
    %s126 = sphi 0, %s125
    %s142 = sphi 0, %s126
  $region4: #{autoencoder_forward.11} parent=0 // loop_header_branch
    %12 = sbr.rel (%p10) target = $region8
  $region5: #{autoencoder_forward.11} parent=0 // loop_body
    %s14 = ssub.s32 %s9, 1
    %s15 = ssub.s32 %s9, 2
    %s25 = sadd.s32 1, %s18
    %p26 = scmp.ge.s32.totalorder %s25, 98
    %s27 = scalar_select %p26, 0, %s25
    %s28 = sadd.s32 1, %s17
    %s29 = scalar_select %p26, %s28, %s17
    %p30 = scmp.ge.s32.totalorder %s29, 1
    %s31 = scalar_select %p30, 0, %s29
    %s32 = sadd.s32 1, %s16
    %s33 = scalar_select %p30, %s32, %s16
    %p34 = scmp.ge.s32.totalorder %s33, 1
    %s35 = scalar_select %p34, 0, %s33
    %s36 = ssub.s32 %s16, %s35
    %s37 = ssub.s32 %s18, %s27
    %s38 = sor.u32 %s36, %s37
    %p39 = scmp.eq.s32.totalorder %s38, 0
    %s41 = sadd.s32 %s40, 1
    %s42 = scalar_select %p39, %s40, %s41
    %p45 = pneg %p39
    %p46 = scmp.eq.s32.totalorder %s9, 97
    %p47 = por %p45, %p46
    %p48 = scmp.ne.s32.totalorder %s40, %s43
    %p49 = scmp.eq.s32.totalorder %s9, 0
    %p50 = por %p48, %p49
    %p51 = scmp.ne.s32.totalorder %s40, %s43
    %p52 = scmp.eq.s32.totalorder %s14, 97
    %p53 = por %p51, %p52
    %p54 = scmp.ne.s32.totalorder %s43, %s44
    %p55 = scmp.eq.s32.totalorder %s14, 0
    %p56 = por %p54, %p55
    %p57 = scmp.ne.s32.totalorder %s43, %s44
    %p58 = scmp.eq.s32.totalorder %s15, 97
    %p59 = por %p57, %p58
    %p61 = scmp.ne.s32.totalorder %s44, %s60
    %p62 = scmp.eq.s32.totalorder %s15, 0
    %p63 = por %p61, %p62
    %s64 = ssub.s32 %s18, %s27
    %s65 = ssub.s32 %s17, %s31
    %s66 = sor.u32 %s64, %s65
    %p67 = scmp.eq.s32.totalorder %s66, 0
    %s69 = sadd.s32 %s68, 1
    %s70 = scalar_select %p67, %s68, %s69
    %p73 = pneg %p67
    %p74 = scmp.eq.s32.totalorder %s9, 97
    %p75 = por %p73, %p74
    %p76 = scmp.ne.s32.totalorder %s68, %s71
    %p77 = scmp.eq.s32.totalorder %s9, 0
    %p78 = por %p76, %p77
    %p79 = scmp.ne.s32.totalorder %s68, %s71
    %p80 = scmp.eq.s32.totalorder %s14, 97
    %p81 = por %p79, %p80
    %p82 = scmp.ne.s32.totalorder %s71, %s72
    %p83 = scmp.eq.s32.totalorder %s14, 0
    %p84 = por %p82, %p83
    %p85 = scmp.ne.s32.totalorder %s71, %s72
    %p86 = scmp.eq.s32.totalorder %s15, 97
    %p87 = por %p85, %p86
    %p89 = scmp.ne.s32.totalorder %s72, %s88
    %p90 = scmp.eq.s32.totalorder %s15, 0
    %p91 = por %p89, %p90
    %s92 = ssub.s32 %s17, %s31
    %p93 = scmp.eq.s32.totalorder %s92, 0
    %s95 = sadd.s32 %s94, 1
    %s96 = scalar_select %p93, %s94, %s95
    %p99 = pneg %p93
    %p100 = scmp.eq.s32.totalorder %s9, 97
    %p101 = por %p99, %p100
    %p102 = scmp.ne.s32.totalorder %s94, %s97
    %p103 = scmp.eq.s32.totalorder %s9, 0
    %p104 = por %p102, %p103
    %p105 = scmp.ne.s32.totalorder %s94, %s97
    %p106 = scmp.eq.s32.totalorder %s14, 97
    %p107 = por %p105, %p106
    %p108 = scmp.ne.s32.totalorder %s97, %s98
    %p109 = scmp.eq.s32.totalorder %s14, 0
    %p110 = por %p108, %p109
    %p111 = scmp.ne.s32.totalorder %s97, %s98
    %p112 = scmp.eq.s32.totalorder %s15, 97
    %p113 = por %p111, %p112
    %p115 = scmp.ne.s32.totalorder %s98, %s114
    %p116 = scmp.eq.s32.totalorder %s15, 0
    %p117 = por %p115, %p116
    %s118 = ssub.s32 %s16, %s35
    %s119 = ssub.s32 %s17, %s31
    %s120 = sor.u32 %s118, %s119
    %p121 = scmp.eq.s32.totalorder %s120, 0
    %s123 = sadd.s32 %s122, 1
    %s124 = scalar_select %p121, %s122, %s123
    %p127 = pneg %p121
    %p128 = scmp.eq.s32.totalorder %s9, 97
    %p129 = por %p127, %p128
    %p130 = scmp.ne.s32.totalorder %s122, %s125
    %p131 = scmp.eq.s32.totalorder %s9, 0
    %p132 = por %p130, %p131
    %p133 = scmp.ne.s32.totalorder %s122, %s125
    %p134 = scmp.eq.s32.totalorder %s14, 97
    %p135 = por %p133, %p134
    %p136 = scmp.ne.s32.totalorder %s125, %s126
    %p137 = scmp.eq.s32.totalorder %s14, 0
    %p138 = por %p136, %p137
    %p139 = scmp.ne.s32.totalorder %s125, %s126
    %p140 = scmp.eq.s32.totalorder %s15, 97
    %p141 = por %p139, %p140
    %p143 = scmp.ne.s32.totalorder %s126, %s142
    %p144 = scmp.eq.s32.totalorder %s15, 0
    %p145 = por %p143, %p144
    %p146 = scmp.le.s32.totalorder 1, %s9
    %p147 = scmp.lt.s32.totalorder %s9, 99
    %p148 = pnand %p146, %p147
    %p149 = pneg %p148
    // Predicated region
    $region9: #{autoencoder_forward.11} parent=5 // pred_check
      _
    $region10: #{autoencoder_forward.11} parent=5 // pred_check_branch
      %151 = sbr.rel (%p148) target = $region12
    $region11: #{autoencoder_forward.11} parent=5 // pred_region
      %s152 = ssub.s32 %s9, 1
      // Predicated region
      $region13: #{autoencoder_forward.11} parent=11 // pred_check
        %p153 = pneg %p110
      $region14: #{autoencoder_forward.11} parent=11 // pred_check_branch
        %155 = sbr.rel (%p153) target = $region16
      $region15: #{autoencoder_forward.11} parent=11 // pred_region
        %p156 = scmp.lt.s32.totalorder %s20, 0
        %s157 = scalar_select %p156, %s20, 0
        %s158 = scalar_lea.vmem %s2, %s157
      $region16: #{autoencoder_forward.11} parent=11 // pred_fallthru
        _
    $region12: #{autoencoder_forward.11} parent=5 // pred_fallthru
      _
    %p159 = scmp.lt.s32.totalorder %s9, 98
    // Predicated region
    $region17: #{autoencoder_forward.11} parent=5 // pred_check
      %p160 = pneg %p159
    $region18: #{autoencoder_forward.11} parent=5 // pred_check_branch
      %162 = sbr.rel (%p160) target = $region20
    $region19: #{autoencoder_forward.11} parent=5 // pred_region
      // Predicated region
      $region21: #{autoencoder_forward.11} parent=19 // pred_check
        %p163 = pneg %p50
      $region22: #{autoencoder_forward.11} parent=19 // pred_check_branch
        %165 = sbr.rel (%p163) target = $region24
      $region23: #{autoencoder_forward.11} parent=19 // pred_region
        %s166 = smul.u32 4, %s18
        %p167 = scmp.lt.s32.totalorder %s16, 0
        %s168 = scalar_select %p167, %s16, 0
        %p169 = scmp.lt.s32.totalorder %s166, 391
        %s170 = scalar_select %p169, %s166, 391
        %s171 = smul.addr %s168, 392
        %s172 = sadd.s32 %s170, %s171
        %s173 = scalar_lea.vmem %s0, %s172
        %s174 = smul.u32 4, %s18
      $region24: #{autoencoder_forward.11} parent=19 // pred_fallthru
        _
      // Predicated region
      $region25: #{autoencoder_forward.11} parent=19 // pred_check
        %p175 = pneg %p78
      $region26: #{autoencoder_forward.11} parent=19 // pred_check_branch
        %177 = sbr.rel (%p175) target = $region28
      $region27: #{autoencoder_forward.11} parent=19 // pred_region
        %s178 = smul.u32 64, %s18
        %p179 = scmp.lt.s32.totalorder %s178, 6271
        %s180 = scalar_select %p179, %s178, 6271
        %p181 = scmp.lt.s32.totalorder %s17, 0
        %s182 = scalar_select %p181, %s17, 0
        %s183 = sadd.s32 %s182, %s180
        %s184 = smul.addr %s183, 4
        %s185 = scalar_lea.vmem %s1, %s184
        %s186 = smul.u32 64, %s18
      $region28: #{autoencoder_forward.11} parent=19 // pred_fallthru
        _
    $region20: #{autoencoder_forward.11} parent=5 // pred_fallthru
      _
    %p187 = scmp.le.s32.totalorder 1, %s9
    %p188 = scmp.lt.s32.totalorder %s9, 99
    %p189 = pnand %p187, %p188
    %p190 = pneg %p189
    // Predicated region
    $region29: #{autoencoder_forward.11} parent=5 // pred_check
      _
    $region30: #{autoencoder_forward.11} parent=5 // pred_check_branch
      %192 = sbr.rel (%p189) target = $region32
    $region31: #{autoencoder_forward.11} parent=5 // pred_region
      %s193 = ssub.s32 %s9, 1
      %s194 = smul.u32 4, %s21
      %p195 = scmp.lt.s32.totalorder %s19, 0
      %s196 = scalar_select %p195, %s19, 0
      %p197 = scmp.lt.s32.totalorder %s194, 391
      %s198 = scalar_select %p197, %s194, 391
      %s199 = smul.addr %s196, 392
      %s200 = sadd.s32 %s198, %s199
      %s201 = scalar_lea.vmem %s0, %s200
      %p202 = pneg %p56
      %p203 = pneg %p53
      %s204 = smul.u32 64, %s21
      %p205 = scmp.lt.s32.totalorder %s204, 6271
      %s206 = scalar_select %p205, %s204, 6271
      %p207 = scmp.lt.s32.totalorder %s20, 0
      %s208 = scalar_select %p207, %s20, 0
      %s209 = sadd.s32 %s208, %s206
      %s210 = smul.addr %s209, 4
      %s211 = scalar_lea.vmem %s1, %s210
      %p212 = pneg %p84
      %p213 = pneg %p81
      %p214 = scmp.lt.s32.totalorder %s20, 0
      %s215 = scalar_select %p214, %s20, 0
      %s216 = scalar_lea.vmem %s2, %s215
      %p217 = pneg %p110
      %p218 = pneg %p107
      %p219 = pneg %p138
      %p220 = pneg %p135
      %p221 = scmp.lt.s32.totalorder %s19, 0
      %s222 = scalar_select %p221, %s19, 0
      %p223 = scmp.lt.s32.totalorder %s20, 0
      %s224 = scalar_select %p223, %s20, 0
      %s225 = sadd.s32 %s224, %s222
      %s226 = smul.addr %s225, 2
      %s227 = scalar_lea.vmem %s3, %s226
      %s228 = smul.u32 4, %s21
      %p229 = scmp.lt.s32.totalorder %s19, 0
      %s230 = scalar_select %p229, %s19, 0
      %p231 = scmp.lt.s32.totalorder %s228, 391
      %s232 = scalar_select %p231, %s228, 391
      %s233 = smul.addr %s230, 392
      %s234 = sadd.s32 %s232, %s233
      %s235 = scalar_lea.vmem %s0, %s234
      %s236 = smul.u32 4, %s21
      %s237 = smul.u32 64, %s21
      %p238 = scmp.lt.s32.totalorder %s237, 6271
      %s239 = scalar_select %p238, %s237, 6271
      %p240 = scmp.lt.s32.totalorder %s20, 0
      %s241 = scalar_select %p240, %s20, 0
      %s242 = sadd.s32 %s241, %s239
      %s243 = smul.addr %s242, 4
      %s244 = scalar_lea.vmem %s1, %s243
      %s245 = smul.u32 64, %s21
      %p246 = scmp.lt.s32.totalorder %s20, 0
      %s247 = scalar_select %p246, %s20, 0
      %s248 = scalar_lea.vmem %s2, %s247
      %p249 = scmp.lt.s32.totalorder %s19, 0
      %s250 = scalar_select %p249, %s19, 0
      %p251 = scmp.lt.s32.totalorder %s20, 0
      %s252 = scalar_select %p251, %s20, 0
      %s253 = sadd.s32 %s252, %s250
      %s254 = smul.addr %s253, 2
      %s255 = scalar_lea.vmem %s3, %s254
      %v257 = vld [vmem:[%s235] sm:$0xf]
      %v258 = vld [vmem:[%s244] sm:$0xf]
      %v259 = vld [vmem:[%s244 + $0x4] sm:$0xf]
      %v260 = vld [vmem:[%s244 + $0x8] sm:$0xf]
      %v261 = vld [vmem:[%s244 + $0xc] sm:$0xf]
      %v262 = vld [vmem:[%s244 + $0x10] sm:$0xf]
      %v263 = vld [vmem:[%s244 + $0x14] sm:$0xf]
      %v264 = vld [vmem:[%s244 + $0x18] sm:$0xf]
      %v265 = vld [vmem:[%s244 + $0x1c] sm:$0xf]
      %v266 = vld [vmem:[%s244 + $0x20] sm:$0xf]
      %v267 = vld [vmem:[%s244 + $0x24] sm:$0xf]
      %v268 = vld [vmem:[%s244 + $0x28] sm:$0xf]
      %v269 = vld [vmem:[%s244 + $0x2c] sm:$0xf]
      %v270 = vld [vmem:[%s244 + $0x30] sm:$0xf]
      %v271 = vld [vmem:[%s244 + $0x34] sm:$0xf]
      %v272 = vld [vmem:[%s244 + $0x38] sm:$0xf]
      %v273 = vld [vmem:[%s244 + $0x3c] sm:$0xf]
      %v274 = vld [vmem:[%s244 + $0x40] sm:$0xf]
      %v275 = vld [vmem:[%s244 + $0x44] sm:$0xf]
      %v276 = vld [vmem:[%s244 + $0x48] sm:$0xf]
      %v277 = vld [vmem:[%s244 + $0x4c] sm:$0xf]
      %v278 = vld [vmem:[%s244 + $0x50] sm:$0xf]
      %v279 = vld [vmem:[%s244 + $0x54] sm:$0xf]
      %v280 = vld [vmem:[%s244 + $0x58] sm:$0xf]
      %v281 = vld [vmem:[%s244 + $0x5c] sm:$0xf]
      %v282 = vld [vmem:[%s244 + $0x60] sm:$0xf]
      %v283 = vld [vmem:[%s244 + $0x64] sm:$0xf]
      %v284 = vld [vmem:[%s244 + $0x68] sm:$0xf]
      %v285 = vld [vmem:[%s244 + $0x6c] sm:$0xf]
      %v286 = vld [vmem:[%s244 + $0x70] sm:$0xf]
      %v287 = vld [vmem:[%s244 + $0x74] sm:$0xf]
      %v288 = vld [vmem:[%s244 + $0x78] sm:$0xf]
      %v289 = vld [vmem:[%s244 + $0x7c] sm:$0xf]
      %v290 = vld [vmem:[%s244 + $0x80] sm:$0xf]
      %v291 = vld [vmem:[%s244 + $0x84] sm:$0xf]
      %v292 = vld [vmem:[%s244 + $0x88] sm:$0xf]
      %v293 = vld [vmem:[%s244 + $0x8c] sm:$0xf]
      %v294 = vld [vmem:[%s244 + $0x90] sm:$0xf]
      %v295 = vld [vmem:[%s244 + $0x94] sm:$0xf]
      %v296 = vld [vmem:[%s244 + $0x98] sm:$0xf]
      %v297 = vld [vmem:[%s244 + $0x9c] sm:$0xf]
      %v298 = vld [vmem:[%s244 + $0xa0] sm:$0xf]
      %v299 = vld [vmem:[%s244 + $0xa4] sm:$0xf]
      %v300 = vld [vmem:[%s244 + $0xa8] sm:$0xf]
      %v301 = vld [vmem:[%s244 + $0xac] sm:$0xf]
      %v302 = vld [vmem:[%s244 + $0xb0] sm:$0xf]
      %v303 = vld [vmem:[%s244 + $0xb4] sm:$0xf]
      %v304 = vld [vmem:[%s244 + $0xb8] sm:$0xf]
      %v305 = vld [vmem:[%s244 + $0xbc] sm:$0xf]
      %v306 = vld [vmem:[%s244 + $0xc0] sm:$0xf]
      %v307 = vld [vmem:[%s244 + $0xc4] sm:$0xf]
      %v308 = vld [vmem:[%s244 + $0xc8] sm:$0xf]
      %v309 = vld [vmem:[%s244 + $0xcc] sm:$0xf]
      %v310 = vld [vmem:[%s244 + $0xd0] sm:$0xf]
      %v311 = vld [vmem:[%s244 + $0xd4] sm:$0xf]
      %v312 = vld [vmem:[%s244 + $0xd8] sm:$0xf]
      %v313 = vld [vmem:[%s244 + $0xdc] sm:$0xf]
      %v314 = vld [vmem:[%s244 + $0xe0] sm:$0xf]
      %v315 = vld [vmem:[%s244 + $0xe4] sm:$0xf]
      %v316 = vld [vmem:[%s244 + $0xe8] sm:$0xf]
      %v317 = vld [vmem:[%s244 + $0xec] sm:$0xf]
      %v318 = vld [vmem:[%s244 + $0xf0] sm:$0xf]
      %v319 = vld [vmem:[%s244 + $0xf4] sm:$0xf]
      %v320 = vld [vmem:[%s244 + $0xf8] sm:$0xf]
      %v321 = vld [vmem:[%s244 + $0xfc] sm:$0xf]
      %v324 = vunpack.c.l.s4 1966171168
      %v325 = vunpack.c.0.s8 %v324
      %v326 = vlaneseq
      %v327 = vshrl.u32 %v326, 7
      %v328 = vsub.s32 %v325, %v327
      %v329 = vrot.slane %v257, %v328
      %v330 = vcombine.high %v329, %v329
      %v332 = vunpack.c.l.s4 1966171168
      %v333 = vunpack.c.0.s8 %v332
      %v334 = vlaneseq
      %v335 = vshrl.u32 %v334, 7
      %v336 = vsub.s32 %v333, %v335
      %v337 = vrot.slane %v329, %v336
      %v339 = vunpack.c.l.s4 1966171168
      %v340 = vunpack.c.0.s8 %v339
      %v341 = vlaneseq
      %v342 = vshrl.u32 %v341, 7
      %v343 = vsub.s32 %v340, %v342
      %v344 = vrot.slane %v330, %v343
      %v345 = vcombine.high %v337, %v337
      %v346 = vcombine.high %v344, %v344
      %v415 = vunpack.c.l.b16 %v258
      %v416 = vunpack.c.l.b16 %v259
      %v417 = vunpack.c.l.b16 %v260
      %v418 = vunpack.c.l.b16 %v261
      %v419 = vunpack.c.l.b16 %v262
      %v420 = vunpack.c.l.b16 %v263
      %v421 = vunpack.c.l.b16 %v264
      %v422 = vunpack.c.l.b16 %v265
      %v423 = vunpack.c.l.b16 %v266
      %v424 = vunpack.c.l.b16 %v267
      %v425 = vunpack.c.l.b16 %v268
      %v426 = vunpack.c.l.b16 %v269
      %v427 = vunpack.c.l.b16 %v270
      %v428 = vunpack.c.l.b16 %v271
      %v429 = vunpack.c.l.b16 %v272
      %v430 = vunpack.c.l.b16 %v273
      %v431 = vunpack.c.l.b16 %v274
      %v432 = vunpack.c.l.b16 %v275
      %v433 = vunpack.c.l.b16 %v276
      %v434 = vunpack.c.l.b16 %v277
      %v435 = vunpack.c.l.b16 %v278
      %v436 = vunpack.c.l.b16 %v279
      %v437 = vunpack.c.l.b16 %v280
      %v438 = vunpack.c.l.b16 %v281
      %v439 = vunpack.c.l.b16 %v282
      %v440 = vunpack.c.l.b16 %v283
      %v441 = vunpack.c.l.b16 %v284
      %v442 = vunpack.c.l.b16 %v285
      %v443 = vunpack.c.l.b16 %v286
      %v444 = vunpack.c.l.b16 %v287
      %v445 = vunpack.c.l.b16 %v288
      %v446 = vunpack.c.l.b16 %v289
      %v447 = vunpack.c.l.b16 %v290
      %v448 = vunpack.c.l.b16 %v291
      %v449 = vunpack.c.l.b16 %v292
      %v450 = vunpack.c.l.b16 %v293
      %v451 = vunpack.c.l.b16 %v294
      %v452 = vunpack.c.l.b16 %v295
      %v453 = vunpack.c.l.b16 %v296
      %v454 = vunpack.c.l.b16 %v297
      %v455 = vunpack.c.l.b16 %v298
      %v456 = vunpack.c.l.b16 %v299
      %v457 = vunpack.c.l.b16 %v300
      %v458 = vunpack.c.l.b16 %v301
      %v459 = vunpack.c.l.b16 %v302
      %v460 = vunpack.c.l.b16 %v303
      %v461 = vunpack.c.l.b16 %v304
      %v462 = vunpack.c.l.b16 %v305
      %v463 = vunpack.c.l.b16 %v306
      %v464 = vunpack.c.l.b16 %v307
      %v465 = vunpack.c.l.b16 %v308
      %v466 = vunpack.c.l.b16 %v309
      %v467 = vunpack.c.l.b16 %v310
      %v468 = vunpack.c.l.b16 %v311
      %v469 = vunpack.c.l.b16 %v312
      %v470 = vunpack.c.l.b16 %v313
      %v471 = vunpack.c.l.b16 %v314
      %v472 = vunpack.c.l.b16 %v315
      %v473 = vunpack.c.l.b16 %v316
      %v474 = vunpack.c.l.b16 %v317
      %v475 = vunpack.c.l.b16 %v318
      %v476 = vunpack.c.l.b16 %v319
      %v477 = vunpack.c.l.b16 %v320
      %v478 = vunpack.c.l.b16 %v321
      %v479 = vpack.c.b16 %v416, %v415
      %v480 = vpack.c.b16 %v418, %v417
      %v481 = vpack.c.b16 %v420, %v419
      %v482 = vpack.c.b16 %v422, %v421
      %v483 = vpack.c.b16 %v424, %v423
      %v484 = vpack.c.b16 %v426, %v425
      %v485 = vpack.c.b16 %v428, %v427
      %v486 = vpack.c.b16 %v430, %v429
      %v487 = vpack.c.b16 %v432, %v431
      %v488 = vpack.c.b16 %v434, %v433
      %v489 = vpack.c.b16 %v436, %v435
      %v490 = vpack.c.b16 %v438, %v437
      %v491 = vpack.c.b16 %v440, %v439
      %v492 = vpack.c.b16 %v442, %v441
      %v493 = vpack.c.b16 %v444, %v443
      %v494 = vpack.c.b16 %v446, %v445
      %v495 = vpack.c.b16 %v448, %v447
      %v496 = vpack.c.b16 %v450, %v449
      %v497 = vpack.c.b16 %v452, %v451
      %v498 = vpack.c.b16 %v454, %v453
      %v499 = vpack.c.b16 %v456, %v455
      %v500 = vpack.c.b16 %v458, %v457
      %v501 = vpack.c.b16 %v460, %v459
      %v502 = vpack.c.b16 %v462, %v461
      %v503 = vpack.c.b16 %v464, %v463
      %v504 = vpack.c.b16 %v466, %v465
      %v505 = vpack.c.b16 %v468, %v467
      %v506 = vpack.c.b16 %v470, %v469
      %v507 = vpack.c.b16 %v472, %v471
      %v508 = vpack.c.b16 %v474, %v473
      %v509 = vpack.c.b16 %v476, %v475
      %v510 = vpack.c.b16 %v478, %v477
      %543 = vmatprep.subr.bf16.mxu0 0
      %544 = vmatpush1.bf16.msra.mxu0 %v479
      %545 = vmatprep.subr.bf16.mxu0 0
      %546 = vmatpush1.bf16.msra.mxu0 %v480
      %547 = vmatprep.subr.bf16.mxu0 0
      %548 = vmatpush1.bf16.msra.mxu0 %v481
      %549 = vmatprep.subr.bf16.mxu0 0
      %550 = vmatpush1.bf16.msra.mxu0 %v482
      %551 = vmatprep.subr.bf16.mxu0 0
      %552 = vmatpush1.bf16.msra.mxu0 %v483
      %553 = vmatprep.subr.bf16.mxu0 0
      %554 = vmatpush1.bf16.msra.mxu0 %v484
      %555 = vmatprep.subr.bf16.mxu0 0
      %556 = vmatpush1.bf16.msra.mxu0 %v485
      %557 = vmatprep.subr.bf16.mxu0 0
      %558 = vmatpush1.bf16.msra.mxu0 %v486
      %559 = vmatprep.subr.bf16.mxu0 0
      %560 = vmatpush1.bf16.msra.mxu0 %v487
      %561 = vmatprep.subr.bf16.mxu0 0
      %562 = vmatpush1.bf16.msra.mxu0 %v488
      %563 = vmatprep.subr.bf16.mxu0 0
      %564 = vmatpush1.bf16.msra.mxu0 %v489
      %565 = vmatprep.subr.bf16.mxu0 0
      %566 = vmatpush1.bf16.msra.mxu0 %v490
      %567 = vmatprep.subr.bf16.mxu0 0
      %568 = vmatpush1.bf16.msra.mxu0 %v491
      %569 = vmatprep.subr.bf16.mxu0 0
      %570 = vmatpush1.bf16.msra.mxu0 %v492
      %571 = vmatprep.subr.bf16.mxu0 0
      %572 = vmatpush1.bf16.msra.mxu0 %v493
      %573 = vmatprep.subr.bf16.mxu0 0
      %574 = vmatpush1.bf16.msra.mxu0 %v494
      %575 = vmatprep.mubr.bf16.mxu0 %v344
      %576 = vmatmul.mubr.bf16.gmra.mrb[0].mxu0 %v337
      %v577 = vpop.f32.mrb[0].mxu0
      %v578 = vadd.f32 0.0, %v577
      %v579 = vpop.f32.mrb[0].mxu0
      %v580 = vpop.f32.mrb[0].mxu0
      %v581 = vpop.f32.mrb[0].mxu0
      %582 = vdwg.mxu0
      %583 = vmatprep.subr.bf16.mxu0 0
      %584 = vmatpush1.bf16.msra.mxu0 %v495
      %585 = vmatprep.subr.bf16.mxu0 0
      %586 = vmatpush1.bf16.msra.mxu0 %v496
      %587 = vmatprep.subr.bf16.mxu0 0
      %588 = vmatpush1.bf16.msra.mxu0 %v497
      %589 = vmatprep.subr.bf16.mxu0 0
      %590 = vmatpush1.bf16.msra.mxu0 %v498
      %591 = vmatprep.subr.bf16.mxu0 0
      %592 = vmatpush1.bf16.msra.mxu0 %v499
      %593 = vmatprep.subr.bf16.mxu0 0
      %594 = vmatpush1.bf16.msra.mxu0 %v500
      %595 = vmatprep.subr.bf16.mxu0 0
      %596 = vmatpush1.bf16.msra.mxu0 %v501
      %597 = vmatprep.subr.bf16.mxu0 0
      %598 = vmatpush1.bf16.msra.mxu0 %v502
      %599 = vmatprep.subr.bf16.mxu0 0
      %600 = vmatpush1.bf16.msra.mxu0 %v503
      %601 = vmatprep.subr.bf16.mxu0 0
      %602 = vmatpush1.bf16.msra.mxu0 %v504
      %603 = vmatprep.subr.bf16.mxu0 0
      %604 = vmatpush1.bf16.msra.mxu0 %v505
      %605 = vmatprep.subr.bf16.mxu0 0
      %606 = vmatpush1.bf16.msra.mxu0 %v506
      %607 = vmatprep.subr.bf16.mxu0 0
      %608 = vmatpush1.bf16.msra.mxu0 %v507
      %609 = vmatprep.subr.bf16.mxu0 0
      %610 = vmatpush1.bf16.msra.mxu0 %v508
      %611 = vmatprep.subr.bf16.mxu0 0
      %612 = vmatpush1.bf16.msra.mxu0 %v509
      %613 = vmatprep.subr.bf16.mxu0 0
      %614 = vmatpush1.bf16.msra.mxu0 %v510
      %615 = vmatprep.mubr.bf16.mxu0 %v346
      %616 = vmatmul.mubr.bf16.gmra.mrb[0].mxu0 %v345
      %v617 = vpop.f32.mrb[0].mxu0
      %v618 = vadd.f32 %v578, %v617
      %v619 = vpop.f32.mrb[0].mxu0
      %v620 = vpop.f32.mrb[0].mxu0
      %v621 = vpop.f32.mrb[0].mxu0
      %622 = vdwg.mxu0
      %p623 = scmp.eq.s32.totalorder %s21, 0
      // Predicated region
      $region33: #{autoencoder_forward.11} parent=31 // pred_check
        %p624 = pneg %p623
      $region34: #{autoencoder_forward.11} parent=31 // pred_check_branch
        %626 = sbr.rel (%p624) target = $region36
      $region35: #{autoencoder_forward.11} parent=31 // pred_region
        %627 = vst [vmem:[%s255] sm:$0x3] 0.0
      $region36: #{autoencoder_forward.11} parent=31 // pred_fallthru
        _
      %v628 = vld [vmem:[%s255] sm:$0x3]
      %v629 = vadd.f32 %v628, %v618
      %630 = vst [vmem:[%s255] sm:$0x3] %v629
      %p631 = scmp.eq.s32.totalorder %s21, 97
      // Predicated region
      $region37: #{autoencoder_forward.11} parent=31 // pred_check
        %p632 = pneg %p631
      $region38: #{autoencoder_forward.11} parent=31 // pred_check_branch
        %634 = sbr.rel (%p632) target = $region40
      $region39: #{autoencoder_forward.11} parent=31 // pred_region
        %v635 = vld [vmem:[%s255] sm:$0x3]
        %v636 = vld [vmem:[%s248] sm:$0x1]
        %v638 = vlaneseq
        %v639 = vshrl.u32 %v638, 7
        %v640 = vsub.s32 0, %v639
        %v641 = vrot.slane %v636, %v640
        %v643 = vadd.f32 %v635, %v641
        %644 = vst [vmem:[%s255] sm:$0x3] %v643
      $region40: #{autoencoder_forward.11} parent=31 // pred_fallthru
        _
      %p645 = scmp.lt.s32.totalorder %s19, 0
      %s646 = scalar_select %p645, %s19, 0
      %p647 = scmp.lt.s32.totalorder %s20, 0
      %s648 = scalar_select %p647, %s20, 0
      %s649 = sadd.s32 %s648, %s646
      %s650 = smul.addr %s649, 2
      %s651 = scalar_lea.vmem %s3, %s650
      // Predicated region
      $region41: #{autoencoder_forward.11} parent=31 // pred_check
        %p652 = pneg %p135
      $region42: #{autoencoder_forward.11} parent=31 // pred_check_branch
        %654 = sbr.rel (%p652) target = $region44
      $region43: #{autoencoder_forward.11} parent=31 // pred_region
        _
      $region44: #{autoencoder_forward.11} parent=31 // pred_fallthru
        _
      // Predicated region
      $region45: #{autoencoder_forward.11} parent=31 // pred_check
        %p655 = pneg %p135
      $region46: #{autoencoder_forward.11} parent=31 // pred_check_branch
        %657 = sbr.rel (%p655) target = $region48
      $region47: #{autoencoder_forward.11} parent=31 // pred_region
        %p658 = scmp.lt.s32.totalorder %s19, 0
        %s659 = scalar_select %p658, %s19, 0
        %p660 = scmp.lt.s32.totalorder %s20, 0
        %s661 = scalar_select %p660, %s20, 0
        %s662 = sadd.s32 %s661, %s659
        %s663 = smul.addr %s662, 2
        %s664 = scalar_lea.vmem %s3, %s663
      $region48: #{autoencoder_forward.11} parent=31 // pred_fallthru
        _
    $region32: #{autoencoder_forward.11} parent=5 // pred_fallthru
      _
    %p665 = scmp.le.s32.totalorder 2, %s9
    // Predicated region
    $region49: #{autoencoder_forward.11} parent=5 // pred_check
      %p666 = pneg %p665
    $region50: #{autoencoder_forward.11} parent=5 // pred_check_branch
      %668 = sbr.rel (%p666) target = $region52
    $region51: #{autoencoder_forward.11} parent=5 // pred_region
      %s669 = ssub.s32 %s9, 2
    $region52: #{autoencoder_forward.11} parent=5 // pred_fallthru
      _
  $region6: #{autoencoder_forward.11} parent=0 // loop_footer
    %s13 = sadd.s32 1, %s9
  $region7: #{autoencoder_forward.11} parent=0 // loop_footer_branch
    %8 = sbr.rel target = $region3
  $region8: #{autoencoder_forward.11} parent=0 // loop_exit
    _

// kernel: autoencoder_forward.12
$region0: #{autoencoder_forward.12}
  #allocation0 [shape = 'u32[]', space=smem, size = 0x4, offset = 0x4, fixed_abs, tag = 'smem constant byte address 0x4 - core index']
  #allocation1 [shape = 'u32[144,128]{1,0:T(1,128)}', space=vmem, size = 0x12000, scoped, tag = 'internal scratch']
  %s0 = inlined_call_operand.vmem [shape: bf16[2,128], index: 0, kind: input, shape index: {}]
  %s1 = inlined_call_operand.vmem [shape: bf16[128,50176], index: 1, kind: input, shape index: {}]
  %s2 = inlined_call_operand.vmem [shape: f32[1,50176], index: 2, kind: input, shape index: {}]
  %s3 = inlined_call_operand.vmem [shape: f32[2,50176], index: 3, kind: output, shape index: {}]
  %s4 = sld [smem:[#allocation0]]
  $region68: #{autoencoder_forward.12} parent=0
    _
  %s6 = ssub.s32 1, %s4
  %s7 = scalar_select 0, %s6, %s4
  $region1: #{autoencoder_forward.12} parent=0
    #allocation2 [shape = 'u8[262144]{0}', space=vmem, size = 0x40000, scoped, tag = 'input window, operand 1']
    loop: start=0, step=1, limit=100
    $region2: #{autoencoder_forward.12} parent=1 // loop_pre_header
      _
    $region3: #{autoencoder_forward.12} parent=1 // loop_header
      %s9 = sphi 0, %s13
      %p10 = scmp.ge.s32.totalorder %s9, 100
      %s16 = sphi 0, %s35
      %s17 = sphi 0, %s31
      %s18 = sphi 0, %s27
      %s19 = sphi 0, %s16
      %s20 = sphi 0, %s17
      %s21 = sphi 0, %s18
      %s22 = sphi 0, %s19
      %s23 = sphi 0, %s20
      %s24 = sphi 0, %s21
      %s40 = sphi 0, %s42
      %s43 = sphi 0, %s40
      %s44 = sphi 0, %s43
      %s60 = sphi 0, %s44
      %s68 = sphi 0, %s70
      %s71 = sphi 0, %s68
      %s72 = sphi 0, %s71
      %s88 = sphi 0, %s72
      %s94 = sphi 0, %s96
      %s97 = sphi 0, %s94
      %s98 = sphi 0, %s97
      %s114 = sphi 0, %s98
      %s122 = sphi 0, %s124
      %s125 = sphi 0, %s122
      %s126 = sphi 0, %s125
      %s142 = sphi 0, %s126
    $region4: #{autoencoder_forward.12} parent=1 // loop_header_branch
      %12 = sbr.rel (%p10) target = $region8
    $region5: #{autoencoder_forward.12} parent=1 // loop_body
      %s14 = ssub.s32 %s9, 1
      %s15 = ssub.s32 %s9, 2
      %s25 = sadd.s32 1, %s18
      %p26 = scmp.ge.s32.totalorder %s25, 1
      %s27 = scalar_select %p26, 0, %s25
      %s28 = sadd.s32 1, %s17
      %s29 = scalar_select %p26, %s28, %s17
      %p30 = scmp.ge.s32.totalorder %s29, 98
      %s31 = scalar_select %p30, 0, %s29
      %s32 = sadd.s32 1, %s16
      %s33 = scalar_select %p30, %s32, %s16
      %p34 = scmp.ge.s32.totalorder %s33, 1
      %s35 = scalar_select %p34, 0, %s33
      %s36 = ssub.s32 %s16, %s35
      %s37 = ssub.s32 %s18, %s27
      %s38 = sor.u32 %s36, %s37
      %p39 = scmp.eq.s32.totalorder %s38, 0
      %s41 = sadd.s32 %s40, 1
      %s42 = scalar_select %p39, %s40, %s41
      %p45 = pneg %p39
      %p46 = scmp.eq.s32.totalorder %s9, 97
      %p47 = por %p45, %p46
      %p48 = scmp.ne.s32.totalorder %s40, %s43
      %p49 = scmp.eq.s32.totalorder %s9, 0
      %p50 = por %p48, %p49
      %p51 = scmp.ne.s32.totalorder %s40, %s43
      %p52 = scmp.eq.s32.totalorder %s14, 97
      %p53 = por %p51, %p52
      %p54 = scmp.ne.s32.totalorder %s43, %s44
      %p55 = scmp.eq.s32.totalorder %s14, 0
      %p56 = por %p54, %p55
      %p57 = scmp.ne.s32.totalorder %s43, %s44
      %p58 = scmp.eq.s32.totalorder %s15, 97
      %p59 = por %p57, %p58
      %p61 = scmp.ne.s32.totalorder %s44, %s60
      %p62 = scmp.eq.s32.totalorder %s15, 0
      %p63 = por %p61, %p62
      %s64 = ssub.s32 %s18, %s27
      %s65 = ssub.s32 %s17, %s31
      %s66 = sor.u32 %s64, %s65
      %p67 = scmp.eq.s32.totalorder %s66, 0
      %s69 = sadd.s32 %s68, 1
      %s70 = scalar_select %p67, %s68, %s69
      %p73 = pneg %p67
      %p74 = scmp.eq.s32.totalorder %s9, 97
      %p75 = por %p73, %p74
      %p76 = scmp.ne.s32.totalorder %s68, %s71
      %p77 = scmp.eq.s32.totalorder %s9, 0
      %p78 = por %p76, %p77
      %p79 = scmp.ne.s32.totalorder %s68, %s71
      %p80 = scmp.eq.s32.totalorder %s14, 97
      %p81 = por %p79, %p80
      %p82 = scmp.ne.s32.totalorder %s71, %s72
      %p83 = scmp.eq.s32.totalorder %s14, 0
      %p84 = por %p82, %p83
      %p85 = scmp.ne.s32.totalorder %s71, %s72
      %p86 = scmp.eq.s32.totalorder %s15, 97
      %p87 = por %p85, %p86
      %p89 = scmp.ne.s32.totalorder %s72, %s88
      %p90 = scmp.eq.s32.totalorder %s15, 0
      %p91 = por %p89, %p90
      %s92 = ssub.s32 %s17, %s31
      %p93 = scmp.eq.s32.totalorder %s92, 0
      %s95 = sadd.s32 %s94, 1
      %s96 = scalar_select %p93, %s94, %s95
      %p99 = pneg %p93
      %p100 = scmp.eq.s32.totalorder %s9, 97
      %p101 = por %p99, %p100
      %p102 = scmp.ne.s32.totalorder %s94, %s97
      %p103 = scmp.eq.s32.totalorder %s9, 0
      %p104 = por %p102, %p103
      %p105 = scmp.ne.s32.totalorder %s94, %s97
      %p106 = scmp.eq.s32.totalorder %s14, 97
      %p107 = por %p105, %p106
      %p108 = scmp.ne.s32.totalorder %s97, %s98
      %p109 = scmp.eq.s32.totalorder %s14, 0
      %p110 = por %p108, %p109
      %p111 = scmp.ne.s32.totalorder %s97, %s98
      %p112 = scmp.eq.s32.totalorder %s15, 97
      %p113 = por %p111, %p112
      %p115 = scmp.ne.s32.totalorder %s98, %s114
      %p116 = scmp.eq.s32.totalorder %s15, 0
      %p117 = por %p115, %p116
      %s118 = ssub.s32 %s16, %s35
      %s119 = ssub.s32 %s17, %s31
      %s120 = sor.u32 %s118, %s119
      %p121 = scmp.eq.s32.totalorder %s120, 0
      %s123 = sadd.s32 %s122, 1
      %s124 = scalar_select %p121, %s122, %s123
      %p127 = pneg %p121
      %p128 = scmp.eq.s32.totalorder %s9, 97
      %p129 = por %p127, %p128
      %p130 = scmp.ne.s32.totalorder %s122, %s125
      %p131 = scmp.eq.s32.totalorder %s9, 0
      %p132 = por %p130, %p131
      %p133 = scmp.ne.s32.totalorder %s122, %s125
      %p134 = scmp.eq.s32.totalorder %s14, 97
      %p135 = por %p133, %p134
      %p136 = scmp.ne.s32.totalorder %s125, %s126
      %p137 = scmp.eq.s32.totalorder %s14, 0
      %p138 = por %p136, %p137
      %p139 = scmp.ne.s32.totalorder %s125, %s126
      %p140 = scmp.eq.s32.totalorder %s15, 97
      %p141 = por %p139, %p140
      %p143 = scmp.ne.s32.totalorder %s126, %s142
      %p144 = scmp.eq.s32.totalorder %s15, 0
      %p145 = por %p143, %p144
      %p146 = scmp.le.s32.totalorder 1, %s9
      %p147 = scmp.lt.s32.totalorder %s9, 99
      %p148 = pnand %p146, %p147
      %p149 = pneg %p148
      // Predicated region
      $region9: #{autoencoder_forward.12} parent=5 // pred_check
        _
      $region10: #{autoencoder_forward.12} parent=5 // pred_check_branch
        %151 = sbr.rel (%p148) target = $region12
      $region11: #{autoencoder_forward.12} parent=5 // pred_region
        %s152 = ssub.s32 %s9, 1
        // Predicated region
        $region13: #{autoencoder_forward.12} parent=11 // pred_check
          %p153 = pneg %p56
        $region14: #{autoencoder_forward.12} parent=11 // pred_check_branch
          %155 = sbr.rel (%p153) target = $region16
        $region15: #{autoencoder_forward.12} parent=11 // pred_region
          %p156 = scmp.lt.s32.totalorder %s19, 0
          %s157 = scalar_select %p156, %s19, 0
          %p158 = scmp.lt.s32.totalorder %s21, 0
          %s159 = scalar_select %p158, %s21, 0
          %s160 = sadd.s32 %s159, %s157
          %s161 = scalar_lea.vmem %s0, %s160
        $region16: #{autoencoder_forward.12} parent=11 // pred_fallthru
          _
      $region12: #{autoencoder_forward.12} parent=5 // pred_fallthru
        _
      %p162 = scmp.lt.s32.totalorder %s9, 98
      // Predicated region
      $region17: #{autoencoder_forward.12} parent=5 // pred_check
        %p163 = pneg %p162
      $region18: #{autoencoder_forward.12} parent=5 // pred_check_branch
        %165 = sbr.rel (%p163) target = $region20
      $region19: #{autoencoder_forward.12} parent=5 // pred_region
        // Predicated region
        $region21: #{autoencoder_forward.12} parent=19 // pred_check
          %p166 = pneg %p78
        $region22: #{autoencoder_forward.12} parent=19 // pred_check_branch
          %168 = sbr.rel (%p166) target = $region24
        $region23: #{autoencoder_forward.12} parent=19 // pred_region
          %s169 = sand.u32 %s68, 1
          %s170 = sand.u32 %s68, 1
          %s171 = smul.addr %s170, 256
          %s172 = scalar_lea.vmem [#allocation2], %s171
          %s173 = smul.u32 16, %s18
          %s174 = smul.u32 4, %s17
          %s175 = smul.addr %s173, 392
          %s176 = sadd.s32 %s174, %s175
          %s177 = smul.addr %s176, 4
          %s178 = scalar_lea.vmem %s1, %s177
          // Predicated region
          $region25: #{autoencoder_forward.12} parent=23 // pred_check
            _
          $region26: #{autoencoder_forward.12} parent=23 // pred_check_branch
            %180 = sbr.rel (0) target = $region28
          $region27: #{autoencoder_forward.12} parent=23 // pred_region
            // Predicated region
            $region29: #{autoencoder_forward.12} parent=27 // pred_check
              _
            $region30: #{autoencoder_forward.12} parent=27 // pred_check_branch
              %182 = sbr.rel (0) target = $region32
            $region31: #{autoencoder_forward.12} parent=27 // pred_region
              loop: start=0, step=1, limit=1
              $region33: #{autoencoder_forward.12} parent=31 // loop_pre_header
                _
              $region34: #{autoencoder_forward.12} parent=31 // loop_header
                %s184 = sphi 0, %s188
                %p185 = scmp.ge.s32.totalorder %s184, 1
                %s189 = sphi %s178, %s178
                %s190 = sphi %s172, %s172
              $region35: #{autoencoder_forward.12} parent=31 // loop_header_branch
                %187 = sbr.rel (%p185) target = $region39
              $region36: #{autoencoder_forward.12} parent=31 // loop_body
                %v191 = vld [vmem:[%s189] sm:$0xff]
                %192 = vst [vmem:[%s190] sm:$0xff] %v191
                %v193 = vld [vmem:[%s189 + $0x8] sm:$0xff]
                %194 = vst [vmem:[%s190 + $0x8] sm:$0xff] %v193
                %v195 = vld [vmem:[%s189 + $0x620] sm:$0xff]
                %196 = vst [vmem:[%s190 + $0x10] sm:$0xff] %v195
                %v197 = vld [vmem:[%s189 + $0x628] sm:$0xff]
                %198 = vst [vmem:[%s190 + $0x18] sm:$0xff] %v197
                %v199 = vld [vmem:[%s189 + $0xc40] sm:$0xff]
                %200 = vst [vmem:[%s190 + $0x20] sm:$0xff] %v199
                %v201 = vld [vmem:[%s189 + $0xc48] sm:$0xff]
                %202 = vst [vmem:[%s190 + $0x28] sm:$0xff] %v201
                %v203 = vld [vmem:[%s189 + $0x1260] sm:$0xff]
                %204 = vst [vmem:[%s190 + $0x30] sm:$0xff] %v203
                %v205 = vld [vmem:[%s189 + $0x1268] sm:$0xff]
                %206 = vst [vmem:[%s190 + $0x38] sm:$0xff] %v205
                %v207 = vld [vmem:[%s189 + $0x1880] sm:$0xff]
                %208 = vst [vmem:[%s190 + $0x40] sm:$0xff] %v207
                %v209 = vld [vmem:[%s189 + $0x1888] sm:$0xff]
                %210 = vst [vmem:[%s190 + $0x48] sm:$0xff] %v209
                %v211 = vld [vmem:[%s189 + $0x1ea0] sm:$0xff]
                %212 = vst [vmem:[%s190 + $0x50] sm:$0xff] %v211
                %v213 = vld [vmem:[%s189 + $0x1ea8] sm:$0xff]
                %214 = vst [vmem:[%s190 + $0x58] sm:$0xff] %v213
                %v215 = vld [vmem:[%s189 + $0x24c0] sm:$0xff]
                %216 = vst [vmem:[%s190 + $0x60] sm:$0xff] %v215
                %v217 = vld [vmem:[%s189 + $0x24c8] sm:$0xff]
                %218 = vst [vmem:[%s190 + $0x68] sm:$0xff] %v217
                %v219 = vld [vmem:[%s189 + $0x2ae0] sm:$0xff]
                %220 = vst [vmem:[%s190 + $0x70] sm:$0xff] %v219
                %v221 = vld [vmem:[%s189 + $0x2ae8] sm:$0xff]
                %222 = vst [vmem:[%s190 + $0x78] sm:$0xff] %v221
                %v223 = vld [vmem:[%s189 + $0x3100] sm:$0xff]
                %224 = vst [vmem:[%s190 + $0x80] sm:$0xff] %v223
                %v225 = vld [vmem:[%s189 + $0x3108] sm:$0xff]
                %226 = vst [vmem:[%s190 + $0x88] sm:$0xff] %v225
                %v227 = vld [vmem:[%s189 + $0x3720] sm:$0xff]
                %228 = vst [vmem:[%s190 + $0x90] sm:$0xff] %v227
                %v229 = vld [vmem:[%s189 + $0x3728] sm:$0xff]
                %230 = vst [vmem:[%s190 + $0x98] sm:$0xff] %v229
                %v231 = vld [vmem:[%s189 + $0x3d40] sm:$0xff]
                %232 = vst [vmem:[%s190 + $0xa0] sm:$0xff] %v231
                %v233 = vld [vmem:[%s189 + $0x3d48] sm:$0xff]
                %234 = vst [vmem:[%s190 + $0xa8] sm:$0xff] %v233
                %v235 = vld [vmem:[%s189 + $0x4360] sm:$0xff]
                %236 = vst [vmem:[%s190 + $0xb0] sm:$0xff] %v235
                %v237 = vld [vmem:[%s189 + $0x4368] sm:$0xff]
                %238 = vst [vmem:[%s190 + $0xb8] sm:$0xff] %v237
                %v239 = vld [vmem:[%s189 + $0x4980] sm:$0xff]
                %240 = vst [vmem:[%s190 + $0xc0] sm:$0xff] %v239
                %v241 = vld [vmem:[%s189 + $0x4988] sm:$0xff]
                %242 = vst [vmem:[%s190 + $0xc8] sm:$0xff] %v241
                %v243 = vld [vmem:[%s189 + $0x4fa0] sm:$0xff]
                %244 = vst [vmem:[%s190 + $0xd0] sm:$0xff] %v243
                %v245 = vld [vmem:[%s189 + $0x4fa8] sm:$0xff]
                %246 = vst [vmem:[%s190 + $0xd8] sm:$0xff] %v245
                %v247 = vld [vmem:[%s189 + $0x55c0] sm:$0xff]
                %248 = vst [vmem:[%s190 + $0xe0] sm:$0xff] %v247
                %v249 = vld [vmem:[%s189 + $0x55c8] sm:$0xff]
                %250 = vst [vmem:[%s190 + $0xe8] sm:$0xff] %v249
                %v251 = vld [vmem:[%s189 + $0x5be0] sm:$0xff]
                %252 = vst [vmem:[%s190 + $0xf0] sm:$0xff] %v251
                %v253 = vld [vmem:[%s189 + $0x5be8] sm:$0xff]
                %254 = vst [vmem:[%s190 + $0xf8] sm:$0xff] %v253
              $region37: #{autoencoder_forward.12} parent=31 // loop_footer
                %s188 = sadd.s32 1, %s184
              $region38: #{autoencoder_forward.12} parent=31 // loop_footer_branch
                %183 = sbr.rel target = $region34
              $region39: #{autoencoder_forward.12} parent=31 // loop_exit
                _
            $region32: #{autoencoder_forward.12} parent=27 // pred_fallthru
              _
            // Predicated region
            $region40: #{autoencoder_forward.12} parent=27 // pred_check
              _
            $region41: #{autoencoder_forward.12} parent=27 // pred_check_branch
              %256 = sbr.rel target = $region43
            $region42: #{autoencoder_forward.12} parent=27 // pred_region
              _
            $region43: #{autoencoder_forward.12} parent=27 // pred_fallthru
              _
          $region28: #{autoencoder_forward.12} parent=23 // pred_fallthru
            _
          %257 = vnop
        $region24: #{autoencoder_forward.12} parent=19 // pred_fallthru
          _
        // Predicated region
        $region44: #{autoencoder_forward.12} parent=19 // pred_check
          %p258 = pneg %p104
        $region45: #{autoencoder_forward.12} parent=19 // pred_check_branch
          %260 = sbr.rel (%p258) target = $region47
        $region46: #{autoencoder_forward.12} parent=19 // pred_region
          %s261 = smul.u32 4, %s17
          %p262 = scmp.lt.s32.totalorder %s261, 391
          %s263 = scalar_select %p262, %s261, 391
          %s264 = scalar_lea.vmem %s2, %s263
          %s265 = smul.u32 4, %s17
        $region47: #{autoencoder_forward.12} parent=19 // pred_fallthru
          _
      $region20: #{autoencoder_forward.12} parent=5 // pred_fallthru
        _
      %p266 = scmp.le.s32.totalorder 1, %s9
      %p267 = scmp.lt.s32.totalorder %s9, 99
      %p268 = pnand %p266, %p267
      %p269 = pneg %p268
      // Predicated region
      $region48: #{autoencoder_forward.12} parent=5 // pred_check
        _
      $region49: #{autoencoder_forward.12} parent=5 // pred_check_branch
        %271 = sbr.rel (%p268) target = $region51
      $region50: #{autoencoder_forward.12} parent=5 // pred_region
        %s272 = ssub.s32 %s9, 1
        %s273 = sand.u32 %s71, 1
        %s274 = sand.u32 %s71, 1
        %s275 = smul.addr %s274, 256
        %s276 = scalar_lea.vmem [#allocation2], %s275
        // Predicated region
        $region52: #{autoencoder_forward.12} parent=50 // pred_check
          %p277 = pneg %p84
        $region53: #{autoencoder_forward.12} parent=50 // pred_check_branch
          %279 = sbr.rel (%p277) target = $region55
        $region54: #{autoencoder_forward.12} parent=50 // pred_region
          _
        $region55: #{autoencoder_forward.12} parent=50 // pred_fallthru
          _
        %p280 = scmp.lt.s32.totalorder %s19, 0
        %s281 = scalar_select %p280, %s19, 0
        %p282 = scmp.lt.s32.totalorder %s21, 0
        %s283 = scalar_select %p282, %s21, 0
        %s284 = sadd.s32 %s283, %s281
        %s285 = scalar_lea.vmem %s0, %s284
        %p286 = pneg %p56
        %p287 = pneg %p53
        %s288 = sand.u32 %s71, 1
        %s289 = sand.u32 %s71, 1
        %s290 = smul.addr %s289, 256
        %s291 = scalar_lea.vmem [#allocation2], %s290
        %p292 = pneg %p84
        %p293 = pneg %p81
        %s294 = smul.u32 4, %s20
        %p295 = scmp.lt.s32.totalorder %s294, 391
        %s296 = scalar_select %p295, %s294, 391
        %s297 = scalar_lea.vmem %s2, %s296
        %p298 = pneg %p110
        %p299 = pneg %p107
        %p300 = pneg %p138
        %p301 = pneg %p135
        %s302 = smul.u32 4, %s20
        %p303 = scmp.lt.s32.totalorder %s19, 0
        %s304 = scalar_select %p303, %s19, 0
        %p305 = scmp.lt.s32.totalorder %s302, 391
        %s306 = scalar_select %p305, %s302, 391
        %s307 = smul.addr %s304, 392
        %s308 = sadd.s32 %s306, %s307
        %s309 = smul.addr %s308, 2
        %s310 = scalar_lea.vmem %s3, %s309
        %p311 = scmp.lt.s32.totalorder %s19, 0
        %s312 = scalar_select %p311, %s19, 0
        %p313 = scmp.lt.s32.totalorder %s21, 0
        %s314 = scalar_select %p313, %s21, 0
        %s315 = sadd.s32 %s314, %s312
        %s316 = scalar_lea.vmem %s0, %s315
        %s317 = smul.u32 16, %s21
        %s318 = smul.u32 4, %s20
        %s319 = smul.u32 4, %s20
        %p320 = scmp.lt.s32.totalorder %s319, 391
        %s321 = scalar_select %p320, %s319, 391
        %s322 = scalar_lea.vmem %s2, %s321
        %s323 = smul.u32 4, %s20
        %s324 = smul.u32 4, %s20
        %p325 = scmp.lt.s32.totalorder %s19, 0
        %s326 = scalar_select %p325, %s19, 0
        %p327 = scmp.lt.s32.totalorder %s324, 391
        %s328 = scalar_select %p327, %s324, 391
        %s329 = smul.addr %s326, 392
        %s330 = sadd.s32 %s328, %s329
        %s331 = smul.addr %s330, 2
        %s332 = scalar_lea.vmem %s3, %s331
        %s333 = smul.u32 4, %s20
        %v335 = vld [vmem:[%s316] sm:$0x1]
        %v336 = vld [vmem:[%s276] sm:$0xff]
        %v337 = vld [vmem:[%s276 + $0x8] sm:$0xff]
        %v338 = vld [vmem:[%s276 + $0x10] sm:$0xff]
        %v339 = vld [vmem:[%s276 + $0x18] sm:$0xff]
        %v340 = vld [vmem:[%s276 + $0x20] sm:$0xff]
        %v341 = vld [vmem:[%s276 + $0x28] sm:$0xff]
        %v342 = vld [vmem:[%s276 + $0x30] sm:$0xff]
        %v343 = vld [vmem:[%s276 + $0x38] sm:$0xff]
        %v344 = vld [vmem:[%s276 + $0x40] sm:$0xff]
        %v345 = vld [vmem:[%s276 + $0x48] sm:$0xff]
        %v346 = vld [vmem:[%s276 + $0x50] sm:$0xff]
        %v347 = vld [vmem:[%s276 + $0x58] sm:$0xff]
        %v348 = vld [vmem:[%s276 + $0x60] sm:$0xff]
        %v349 = vld [vmem:[%s276 + $0x68] sm:$0xff]
        %v350 = vld [vmem:[%s276 + $0x70] sm:$0xff]
        %v351 = vld [vmem:[%s276 + $0x78] sm:$0xff]
        %v352 = vld [vmem:[%s276 + $0x80] sm:$0xff]
        %v353 = vld [vmem:[%s276 + $0x88] sm:$0xff]
        %v354 = vld [vmem:[%s276 + $0x90] sm:$0xff]
        %v355 = vld [vmem:[%s276 + $0x98] sm:$0xff]
        %v356 = vld [vmem:[%s276 + $0xa0] sm:$0xff]
        %v357 = vld [vmem:[%s276 + $0xa8] sm:$0xff]
        %v358 = vld [vmem:[%s276 + $0xb0] sm:$0xff]
        %v359 = vld [vmem:[%s276 + $0xb8] sm:$0xff]
        %v360 = vld [vmem:[%s276 + $0xc0] sm:$0xff]
        %v361 = vld [vmem:[%s276 + $0xc8] sm:$0xff]
        %v362 = vld [vmem:[%s276 + $0xd0] sm:$0xff]
        %v363 = vld [vmem:[%s276 + $0xd8] sm:$0xff]
        %v364 = vld [vmem:[%s276 + $0xe0] sm:$0xff]
        %v365 = vld [vmem:[%s276 + $0xe8] sm:$0xff]
        %v366 = vld [vmem:[%s276 + $0xf0] sm:$0xff]
        %v367 = vld [vmem:[%s276 + $0xf8] sm:$0xff]
        %v368 = vld [vmem:[%s322] sm:$0xf]
        %v370 = vlaneseq
        %v371 = vshrl.u32 %v370, 7
        %v372 = vsub.s32 0, %v371
        %v373 = vrot.slane %v368, %v372
        %v374 = vlaneseq
        %v375 = vshrl.u32 %v374, 7
        %v376 = vsub.s32 1, %v375
        %v377 = vrot.slane %v368, %v376
        %v378 = vlaneseq
        %v379 = vshrl.u32 %v378, 7
        %v380 = vsub.s32 2, %v379
        %v381 = vrot.slane %v368, %v380
        %v382 = vlaneseq
        %v383 = vshrl.u32 %v382, 7
        %v384 = vsub.s32 3, %v383
        %v385 = vrot.slane %v368, %v384
        %v422 = vunpack.c.l.b16 %v336
        %v423 = vunpack.c.h.b16 %v336
        %v424 = vunpack.c.l.b16 %v337
        %v425 = vunpack.c.h.b16 %v337
        %v426 = vunpack.c.l.b16 %v338
        %v427 = vunpack.c.h.b16 %v338
        %v428 = vunpack.c.l.b16 %v339
        %v429 = vunpack.c.h.b16 %v339
        %v430 = vunpack.c.l.b16 %v340
        %v431 = vunpack.c.h.b16 %v340
        %v432 = vunpack.c.l.b16 %v341
        %v433 = vunpack.c.h.b16 %v341
        %v434 = vunpack.c.l.b16 %v342
        %v435 = vunpack.c.h.b16 %v342
        %v436 = vunpack.c.l.b16 %v343
        %v437 = vunpack.c.h.b16 %v343
        %v438 = vunpack.c.l.b16 %v344
        %v439 = vunpack.c.h.b16 %v344
        %v440 = vunpack.c.l.b16 %v345
        %v441 = vunpack.c.h.b16 %v345
        %v442 = vunpack.c.l.b16 %v346
        %v443 = vunpack.c.h.b16 %v346
        %v444 = vunpack.c.l.b16 %v347
        %v445 = vunpack.c.h.b16 %v347
        %v446 = vunpack.c.l.b16 %v348
        %v447 = vunpack.c.h.b16 %v348
        %v448 = vunpack.c.l.b16 %v349
        %v449 = vunpack.c.h.b16 %v349
        %v450 = vunpack.c.l.b16 %v350
        %v451 = vunpack.c.h.b16 %v350
        %v452 = vunpack.c.l.b16 %v351
        %v453 = vunpack.c.h.b16 %v351
        %v454 = vunpack.c.l.b16 %v352
        %v455 = vunpack.c.h.b16 %v352
        %v456 = vunpack.c.l.b16 %v353
        %v457 = vunpack.c.h.b16 %v353
        %v458 = vunpack.c.l.b16 %v354
        %v459 = vunpack.c.h.b16 %v354
        %v460 = vunpack.c.l.b16 %v355
        %v461 = vunpack.c.h.b16 %v355
        %v462 = vunpack.c.l.b16 %v356
        %v463 = vunpack.c.h.b16 %v356
        %v464 = vunpack.c.l.b16 %v357
        %v465 = vunpack.c.h.b16 %v357
        %v466 = vunpack.c.l.b16 %v358
        %v467 = vunpack.c.h.b16 %v358
        %v468 = vunpack.c.l.b16 %v359
        %v469 = vunpack.c.h.b16 %v359
        %v470 = vunpack.c.l.b16 %v360
        %v471 = vunpack.c.h.b16 %v360
        %v472 = vunpack.c.l.b16 %v361
        %v473 = vunpack.c.h.b16 %v361
        %v474 = vunpack.c.l.b16 %v362
        %v475 = vunpack.c.h.b16 %v362
        %v476 = vunpack.c.l.b16 %v363
        %v477 = vunpack.c.h.b16 %v363
        %v478 = vunpack.c.l.b16 %v364
        %v479 = vunpack.c.h.b16 %v364
        %v480 = vunpack.c.l.b16 %v365
        %v481 = vunpack.c.h.b16 %v365
        %v482 = vunpack.c.l.b16 %v366
        %v483 = vunpack.c.h.b16 %v366
        %v484 = vunpack.c.l.b16 %v367
        %v485 = vunpack.c.h.b16 %v367
        %v486 = vpack.c.b16 %v426, %v422
        %v487 = vpack.c.b16 %v427, %v423
        %v488 = vpack.c.b16 %v428, %v424
        %v489 = vpack.c.b16 %v429, %v425
        %v490 = vpack.c.b16 %v434, %v430
        %v491 = vpack.c.b16 %v435, %v431
        %v492 = vpack.c.b16 %v436, %v432
        %v493 = vpack.c.b16 %v437, %v433
        %v494 = vpack.c.b16 %v442, %v438
        %v495 = vpack.c.b16 %v443, %v439
        %v496 = vpack.c.b16 %v444, %v440
        %v497 = vpack.c.b16 %v445, %v441
        %v498 = vpack.c.b16 %v450, %v446
        %v499 = vpack.c.b16 %v451, %v447
        %v500 = vpack.c.b16 %v452, %v448
        %v501 = vpack.c.b16 %v453, %v449
        %v502 = vpack.c.b16 %v458, %v454
        %v503 = vpack.c.b16 %v459, %v455
        %v504 = vpack.c.b16 %v460, %v456
        %v505 = vpack.c.b16 %v461, %v457
        %v506 = vpack.c.b16 %v466, %v462
        %v507 = vpack.c.b16 %v467, %v463
        %v508 = vpack.c.b16 %v468, %v464
        %v509 = vpack.c.b16 %v469, %v465
        %v510 = vpack.c.b16 %v474, %v470
        %v511 = vpack.c.b16 %v475, %v471
        %v512 = vpack.c.b16 %v476, %v472
        %v513 = vpack.c.b16 %v477, %v473
        %v514 = vpack.c.b16 %v482, %v478
        %v515 = vpack.c.b16 %v483, %v479
        %v516 = vpack.c.b16 %v484, %v480
        %v517 = vpack.c.b16 %v485, %v481
        %550 = vmatprep.subr.bf16.mxu0 %v487
        %551 = vmatpush1.bf16.msra.mxu0 %v486
        %552 = vmatprep.subr.bf16.mxu0 %v491
        %553 = vmatpush1.bf16.msra.mxu0 %v490
        %554 = vmatprep.subr.bf16.mxu0 %v495
        %555 = vmatpush1.bf16.msra.mxu0 %v494
        %556 = vmatprep.subr.bf16.mxu0 %v499
        %557 = vmatpush1.bf16.msra.mxu0 %v498
        %558 = vmatprep.subr.bf16.mxu0 %v503
        %559 = vmatpush1.bf16.msra.mxu0 %v502
        %560 = vmatprep.subr.bf16.mxu0 %v507
        %561 = vmatpush1.bf16.msra.mxu0 %v506
        %562 = vmatprep.subr.bf16.mxu0 %v511
        %563 = vmatpush1.bf16.msra.mxu0 %v510
        %564 = vmatprep.subr.bf16.mxu0 %v515
        %565 = vmatpush1.bf16.msra.mxu0 %v514
        %566 = vmatprep.subr.bf16.mxu0 0
        %567 = vmatpush1.bf16.msra.mxu0 0
        %568 = vmatprep.subr.bf16.mxu0 0
        %569 = vmatpush1.bf16.msra.mxu0 0
        %570 = vmatprep.subr.bf16.mxu0 0
        %571 = vmatpush1.bf16.msra.mxu0 0
        %572 = vmatprep.subr.bf16.mxu0 0
        %573 = vmatpush1.bf16.msra.mxu0 0
        %574 = vmatprep.subr.bf16.mxu0 0
        %575 = vmatpush1.bf16.msra.mxu0 0
        %576 = vmatprep.subr.bf16.mxu0 0
        %577 = vmatpush1.bf16.msra.mxu0 0
        %578 = vmatprep.subr.bf16.mxu0 0
        %579 = vmatpush1.bf16.msra.mxu0 0
        %580 = vmatprep.subr.bf16.mxu0 0
        %581 = vmatpush1.bf16.msra.mxu0 0
        %582 = vmatprep.mubr.bf16.mxu0 0
        %583 = vmatmul.mubr.bf16.gmra.mrb[0].mxu0 %v335
        %v584 = vpop.f32.mrb[0].mxu0
        %v585 = vadd.f32 %v373, %v584
        %v586 = vpop.f32.mrb[0].mxu0
        %v587 = vadd.f32 %v377, %v586
        %v588 = vpop.f32.mrb[0].mxu0
        %v589 = vpop.f32.mrb[0].mxu0
        %590 = vdwg.mxu0
        %591 = vmatprep.subr.bf16.mxu0 %v489
        %592 = vmatpush1.bf16.msra.mxu0 %v488
        %593 = vmatprep.subr.bf16.mxu0 %v493
        %594 = vmatpush1.bf16.msra.mxu0 %v492
        %595 = vmatprep.subr.bf16.mxu0 %v497
        %596 = vmatpush1.bf16.msra.mxu0 %v496
        %597 = vmatprep.subr.bf16.mxu0 %v501
        %598 = vmatpush1.bf16.msra.mxu0 %v500
        %599 = vmatprep.subr.bf16.mxu0 %v505
        %600 = vmatpush1.bf16.msra.mxu0 %v504
        %601 = vmatprep.subr.bf16.mxu0 %v509
        %602 = vmatpush1.bf16.msra.mxu0 %v508
        %603 = vmatprep.subr.bf16.mxu0 %v513
        %604 = vmatpush1.bf16.msra.mxu0 %v512
        %605 = vmatprep.subr.bf16.mxu0 %v517
        %606 = vmatpush1.bf16.msra.mxu0 %v516
        %607 = vmatprep.subr.bf16.mxu0 0
        %608 = vmatpush1.bf16.msra.mxu0 0
        %609 = vmatprep.subr.bf16.mxu0 0
        %610 = vmatpush1.bf16.msra.mxu0 0
        %611 = vmatprep.subr.bf16.mxu0 0
        %612 = vmatpush1.bf16.msra.mxu0 0
        %613 = vmatprep.subr.bf16.mxu0 0
        %614 = vmatpush1.bf16.msra.mxu0 0
        %615 = vmatprep.subr.bf16.mxu0 0
        %616 = vmatpush1.bf16.msra.mxu0 0
        %617 = vmatprep.subr.bf16.mxu0 0
        %618 = vmatpush1.bf16.msra.mxu0 0
        %619 = vmatprep.subr.bf16.mxu0 0
        %620 = vmatpush1.bf16.msra.mxu0 0
        %621 = vmatprep.subr.bf16.mxu0 0
        %622 = vmatpush1.bf16.msra.mxu0 0
        %623 = vmatprep.mubr.bf16.mxu0 0
        %624 = vmatmul.mubr.bf16.gmra.mrb[0].mxu0 %v335
        %v625 = vpop.f32.mrb[0].mxu0
        %v626 = vadd.f32 %v381, %v625
        %v627 = vpop.f32.mrb[0].mxu0
        %v628 = vadd.f32 %v385, %v627
        %v629 = vpop.f32.mrb[0].mxu0
        %v630 = vpop.f32.mrb[0].mxu0
        %631 = vdwg.mxu0
        %v636 = vcombine.low %v585, %v587
        %v637 = vcombine.low %v626, %v628
        %v639 = vunpack.c.l.s4 1983009808
        %v640 = vunpack.c.0.s8 %v639
        %v641 = vlaneseq
        %v642 = vshrl.u32 %v641, 7
        %v643 = vsub.s32 %v640, %v642
        %v644 = vrot.slane %v636, %v643
        %v646 = vunpack.c.l.s4 1983009808
        %v647 = vunpack.c.0.s8 %v646
        %v648 = vlaneseq
        %v649 = vshrl.u32 %v648, 7
        %v650 = vsub.s32 %v647, %v649
        %v651 = vrot.slane %v637, %v650
        %v652 = vcombine.low %v644, %v651
        %654 = vst [vmem:[%s332] sm:$0xff] %v652
        %s655 = smul.u32 4, %s20
        %p656 = scmp.lt.s32.totalorder %s19, 0
        %s657 = scalar_select %p656, %s19, 0
        %p658 = scmp.lt.s32.totalorder %s655, 391
        %s659 = scalar_select %p658, %s655, 391
        %s660 = smul.addr %s657, 392
        %s661 = sadd.s32 %s659, %s660
        %s662 = smul.addr %s661, 2
        %s663 = scalar_lea.vmem %s3, %s662
        // Predicated region
        $region56: #{autoencoder_forward.12} parent=50 // pred_check
          %p664 = pneg %p135
        $region57: #{autoencoder_forward.12} parent=50 // pred_check_branch
          %666 = sbr.rel (%p664) target = $region59
        $region58: #{autoencoder_forward.12} parent=50 // pred_region
          %s667 = smul.u32 4, %s20
        $region59: #{autoencoder_forward.12} parent=50 // pred_fallthru
          _
      $region51: #{autoencoder_forward.12} parent=5 // pred_fallthru
        _
      %p668 = scmp.le.s32.totalorder 2, %s9
      // Predicated region
      $region60: #{autoencoder_forward.12} parent=5 // pred_check
        %p669 = pneg %p668
      $region61: #{autoencoder_forward.12} parent=5 // pred_check_branch
        %671 = sbr.rel (%p669) target = $region63
      $region62: #{autoencoder_forward.12} parent=5 // pred_region
        %s672 = ssub.s32 %s9, 2
        // Predicated region
        $region64: #{autoencoder_forward.12} parent=62 // pred_check
          %p673 = pneg %p141
        $region65: #{autoencoder_forward.12} parent=62 // pred_check_branch
          %675 = sbr.rel (%p673) target = $region67
        $region66: #{autoencoder_forward.12} parent=62 // pred_region
          %s676 = smul.u32 4, %s23
          %p677 = scmp.lt.s32.totalorder %s22, 0
          %s678 = scalar_select %p677, %s22, 0
          %p679 = scmp.lt.s32.totalorder %s676, 391
          %s680 = scalar_select %p679, %s676, 391
          %s681 = smul.addr %s678, 392
          %s682 = sadd.s32 %s680, %s681
          %s683 = smul.addr %s682, 2
          %s684 = scalar_lea.vmem %s3, %s683
        $region67: #{autoencoder_forward.12} parent=62 // pred_fallthru
          _
      $region63: #{autoencoder_forward.12} parent=5 // pred_fallthru
        _
    $region6: #{autoencoder_forward.12} parent=1 // loop_footer
      %s13 = sadd.s32 1, %s9
    $region7: #{autoencoder_forward.12} parent=1 // loop_footer_branch
      %8 = sbr.rel target = $region3
    $region8: #{autoencoder_forward.12} parent=1 // loop_exit
      _

// kernel: autoencoder_forward.13
$region0: #{autoencoder_forward.13}
  #allocation0 [shape = 'u32[]', space=smem, size = 0x4, offset = 0x4, fixed_abs, tag = 'smem constant byte address 0x4 - core index']
  #allocation1 [shape = 'u32[144,128]{1,0:T(1,128)}', space=vmem, size = 0x12000, scoped, tag = 'internal scratch']
  %s0 = inlined_call_operand.vmem [shape: bf16[1568,256], index: 0, kind: input, shape index: {}]
  %s1 = inlined_call_operand.vmem [shape: bf16[256,128], index: 1, kind: input, shape index: {}]
  %s2 = inlined_call_operand.vmem [shape: f32[1,128], index: 2, kind: input, shape index: {}]
  %s3 = inlined_call_operand.vmem [shape: bf16[1568,128], index: 3, kind: output, shape index: {}]
  %s4 = sld [smem:[#allocation0]]
  $region45: #{autoencoder_forward.13} parent=0
    _
  %s6 = ssub.s32 1, %s4
  %s7 = scalar_select 0, %s6, %s4
  loop: start=0, step=1, limit=6
  $region2: #{autoencoder_forward.13} parent=0 // loop_pre_header
    _
  $region3: #{autoencoder_forward.13} parent=0 // loop_header
    %s9 = sphi 0, %s13
    %p10 = scmp.ge.s32.totalorder %s9, 6
    %s16 = sphi 0, %s35
    %s17 = sphi 0, %s31
    %s18 = sphi 0, %s27
    %s19 = sphi 0, %s16
    %s20 = sphi 0, %s17
    %s21 = sphi 0, %s18
    %s22 = sphi 0, %s19
    %s23 = sphi 0, %s20
    %s24 = sphi 0, %s21
    %s40 = sphi 0, %s42
    %s43 = sphi 0, %s40
    %s44 = sphi 0, %s43
    %s60 = sphi 0, %s44
    %s68 = sphi 0, %s70
    %s71 = sphi 0, %s68
    %s72 = sphi 0, %s71
    %s88 = sphi 0, %s72
    %s94 = sphi 0, %s96
    %s97 = sphi 0, %s94
    %s98 = sphi 0, %s97
    %s114 = sphi 0, %s98
    %s122 = sphi 0, %s124
    %s125 = sphi 0, %s122
    %s126 = sphi 0, %s125
    %s142 = sphi 0, %s126
  $region4: #{autoencoder_forward.13} parent=0 // loop_header_branch
    %12 = sbr.rel (%p10) target = $region8
  $region5: #{autoencoder_forward.13} parent=0 // loop_body
    %s14 = ssub.s32 %s9, 1
    %s15 = ssub.s32 %s9, 2
    %s25 = sadd.s32 1, %s18
    %p26 = scmp.ge.s32.totalorder %s25, 1
    %s27 = scalar_select %p26, 0, %s25
    %s28 = sadd.s32 1, %s17
    %s29 = scalar_select %p26, %s28, %s17
    %p30 = scmp.ge.s32.totalorder %s29, 1
    %s31 = scalar_select %p30, 0, %s29
    %s32 = sadd.s32 1, %s16
    %s33 = scalar_select %p30, %s32, %s16
    %p34 = scmp.ge.s32.totalorder %s33, 4
    %s35 = scalar_select %p34, 0, %s33
    %s36 = ssub.s32 %s16, %s35
    %s37 = ssub.s32 %s18, %s27
    %s38 = sor.u32 %s36, %s37
    %p39 = scmp.eq.s32.totalorder %s38, 0
    %s41 = sadd.s32 %s40, 1
    %s42 = scalar_select %p39, %s40, %s41
    %p45 = pneg %p39
    %p46 = scmp.eq.s32.totalorder %s9, 3
    %p47 = por %p45, %p46
    %p48 = scmp.ne.s32.totalorder %s40, %s43
    %p49 = scmp.eq.s32.totalorder %s9, 0
    %p50 = por %p48, %p49
    %p51 = scmp.ne.s32.totalorder %s40, %s43
    %p52 = scmp.eq.s32.totalorder %s14, 3
    %p53 = por %p51, %p52
    %p54 = scmp.ne.s32.totalorder %s43, %s44
    %p55 = scmp.eq.s32.totalorder %s14, 0
    %p56 = por %p54, %p55
    %p57 = scmp.ne.s32.totalorder %s43, %s44
    %p58 = scmp.eq.s32.totalorder %s15, 3
    %p59 = por %p57, %p58
    %p61 = scmp.ne.s32.totalorder %s44, %s60
    %p62 = scmp.eq.s32.totalorder %s15, 0
    %p63 = por %p61, %p62
    %s64 = ssub.s32 %s18, %s27
    %s65 = ssub.s32 %s17, %s31
    %s66 = sor.u32 %s64, %s65
    %p67 = scmp.eq.s32.totalorder %s66, 0
    %s69 = sadd.s32 %s68, 1
    %s70 = scalar_select %p67, %s68, %s69
    %p73 = pneg %p67
    %p74 = scmp.eq.s32.totalorder %s9, 3
    %p75 = por %p73, %p74
    %p76 = scmp.ne.s32.totalorder %s68, %s71
    %p77 = scmp.eq.s32.totalorder %s9, 0
    %p78 = por %p76, %p77
    %p79 = scmp.ne.s32.totalorder %s68, %s71
    %p80 = scmp.eq.s32.totalorder %s14, 3
    %p81 = por %p79, %p80
    %p82 = scmp.ne.s32.totalorder %s71, %s72
    %p83 = scmp.eq.s32.totalorder %s14, 0
    %p84 = por %p82, %p83
    %p85 = scmp.ne.s32.totalorder %s71, %s72
    %p86 = scmp.eq.s32.totalorder %s15, 3
    %p87 = por %p85, %p86
    %p89 = scmp.ne.s32.totalorder %s72, %s88
    %p90 = scmp.eq.s32.totalorder %s15, 0
    %p91 = por %p89, %p90
    %s92 = ssub.s32 %s17, %s31
    %p93 = scmp.eq.s32.totalorder %s92, 0
    %s95 = sadd.s32 %s94, 1
    %s96 = scalar_select %p93, %s94, %s95
    %p99 = pneg %p93
    %p100 = scmp.eq.s32.totalorder %s9, 3
    %p101 = por %p99, %p100
    %p102 = scmp.ne.s32.totalorder %s94, %s97
    %p103 = scmp.eq.s32.totalorder %s9, 0
    %p104 = por %p102, %p103
    %p105 = scmp.ne.s32.totalorder %s94, %s97
    %p106 = scmp.eq.s32.totalorder %s14, 3
    %p107 = por %p105, %p106
    %p108 = scmp.ne.s32.totalorder %s97, %s98
    %p109 = scmp.eq.s32.totalorder %s14, 0
    %p110 = por %p108, %p109
    %p111 = scmp.ne.s32.totalorder %s97, %s98
    %p112 = scmp.eq.s32.totalorder %s15, 3
    %p113 = por %p111, %p112
    %p115 = scmp.ne.s32.totalorder %s98, %s114
    %p116 = scmp.eq.s32.totalorder %s15, 0
    %p117 = por %p115, %p116
    %s118 = ssub.s32 %s16, %s35
    %s119 = ssub.s32 %s17, %s31
    %s120 = sor.u32 %s118, %s119
    %p121 = scmp.eq.s32.totalorder %s120, 0
    %s123 = sadd.s32 %s122, 1
    %s124 = scalar_select %p121, %s122, %s123
    %p127 = pneg %p121
    %p128 = scmp.eq.s32.totalorder %s9, 3
    %p129 = por %p127, %p128
    %p130 = scmp.ne.s32.totalorder %s122, %s125
    %p131 = scmp.eq.s32.totalorder %s9, 0
    %p132 = por %p130, %p131
    %p133 = scmp.ne.s32.totalorder %s122, %s125
    %p134 = scmp.eq.s32.totalorder %s14, 3
    %p135 = por %p133, %p134
    %p136 = scmp.ne.s32.totalorder %s125, %s126
    %p137 = scmp.eq.s32.totalorder %s14, 0
    %p138 = por %p136, %p137
    %p139 = scmp.ne.s32.totalorder %s125, %s126
    %p140 = scmp.eq.s32.totalorder %s15, 3
    %p141 = por %p139, %p140
    %p143 = scmp.ne.s32.totalorder %s126, %s142
    %p144 = scmp.eq.s32.totalorder %s15, 0
    %p145 = por %p143, %p144
    %p146 = scmp.le.s32.totalorder 1, %s9
    %p147 = scmp.lt.s32.totalorder %s9, 5
    %p148 = pnand %p146, %p147
    %p149 = pneg %p148
    // Predicated region
    $region9: #{autoencoder_forward.13} parent=5 // pred_check
      _
    $region10: #{autoencoder_forward.13} parent=5 // pred_check_branch
      %151 = sbr.rel (%p148) target = $region12
    $region11: #{autoencoder_forward.13} parent=5 // pred_region
      %s152 = ssub.s32 %s9, 1
      // Predicated region
      $region13: #{autoencoder_forward.13} parent=11 // pred_check
        %p153 = pneg %p84
      $region14: #{autoencoder_forward.13} parent=11 // pred_check_branch
        %155 = sbr.rel (%p153) target = $region16
      $region15: #{autoencoder_forward.13} parent=11 // pred_region
        %s156 = smul.u32 32, %s21
        %p157 = scmp.lt.s32.totalorder %s156, 31
        %s158 = scalar_select %p157, %s156, 31
        %p159 = scmp.lt.s32.totalorder %s20, 0
        %s160 = scalar_select %p159, %s20, 0
        %s161 = sadd.s32 %s160, %s158
        %s162 = smul.addr %s161, 4
        %s163 = scalar_lea.vmem %s1, %s162
        %s164 = smul.u32 32, %s21
      $region16: #{autoencoder_forward.13} parent=11 // pred_fallthru
        _
      // Predicated region
      $region17: #{autoencoder_forward.13} parent=11 // pred_check
        %p165 = pneg %p110
      $region18: #{autoencoder_forward.13} parent=11 // pred_check_branch
        %167 = sbr.rel (%p165) target = $region20
      $region19: #{autoencoder_forward.13} parent=11 // pred_region
        %p168 = scmp.lt.s32.totalorder %s20, 0
        %s169 = scalar_select %p168, %s20, 0
        %s170 = scalar_lea.vmem %s2, %s169
      $region20: #{autoencoder_forward.13} parent=11 // pred_fallthru
        _
    $region12: #{autoencoder_forward.13} parent=5 // pred_fallthru
      _
    %p171 = scmp.lt.s32.totalorder %s9, 4
    // Predicated region
    $region21: #{autoencoder_forward.13} parent=5 // pred_check
      %p172 = pneg %p171
    $region22: #{autoencoder_forward.13} parent=5 // pred_check_branch
      %174 = sbr.rel (%p172) target = $region24
    $region23: #{autoencoder_forward.13} parent=5 // pred_region
      // Predicated region
      $region25: #{autoencoder_forward.13} parent=23 // pred_check
        %p175 = pneg %p50
      $region26: #{autoencoder_forward.13} parent=23 // pred_check_branch
        %177 = sbr.rel (%p175) target = $region28
      $region27: #{autoencoder_forward.13} parent=23 // pred_region
        %s178 = smul.u32 49, %s16
        %s179 = smul.u32 2, %s18
        %p180 = scmp.lt.s32.totalorder %s178, 195
        %s181 = scalar_select %p180, %s178, 195
        %p182 = scmp.lt.s32.totalorder %s179, 1
        %s183 = scalar_select %p182, %s179, 1
        %s184 = smul.addr %s181, 2
        %s185 = sadd.s32 %s183, %s184
        %s186 = smul.addr %s185, 4
        %s187 = scalar_lea.vmem %s0, %s186
        %s188 = smul.u32 49, %s16
        %s189 = smul.u32 2, %s18
      $region28: #{autoencoder_forward.13} parent=23 // pred_fallthru
        _
    $region24: #{autoencoder_forward.13} parent=5 // pred_fallthru
      _
    %p190 = scmp.le.s32.totalorder 1, %s9
    %p191 = scmp.lt.s32.totalorder %s9, 5
    %p192 = pnand %p190, %p191
    %p193 = pneg %p192
    // Predicated region
    $region29: #{autoencoder_forward.13} parent=5 // pred_check
      _
    $region30: #{autoencoder_forward.13} parent=5 // pred_check_branch
      %195 = sbr.rel (%p192) target = $region32
    $region31: #{autoencoder_forward.13} parent=5 // pred_region
      %s196 = ssub.s32 %s9, 1
      %s197 = smul.u32 49, %s19
      %s198 = smul.u32 2, %s21
      %p199 = scmp.lt.s32.totalorder %s197, 195
      %s200 = scalar_select %p199, %s197, 195
      %p201 = scmp.lt.s32.totalorder %s198, 1
      %s202 = scalar_select %p201, %s198, 1
      %s203 = smul.addr %s200, 2
      %s204 = sadd.s32 %s202, %s203
      %s205 = smul.addr %s204, 4
      %s206 = scalar_lea.vmem %s0, %s205
      %p207 = pneg %p56
      %p208 = pneg %p53
      %s209 = smul.u32 32, %s21
      %p210 = scmp.lt.s32.totalorder %s209, 31
      %s211 = scalar_select %p210, %s209, 31
      %p212 = scmp.lt.s32.totalorder %s20, 0
      %s213 = scalar_select %p212, %s20, 0
      %s214 = sadd.s32 %s213, %s211
      %s215 = smul.addr %s214, 4
      %s216 = scalar_lea.vmem %s1, %s215
      %p217 = pneg %p84
      %p218 = pneg %p81
      %p219 = scmp.lt.s32.totalorder %s20, 0
      %s220 = scalar_select %p219, %s20, 0
      %s221 = scalar_lea.vmem %s2, %s220
      %p222 = pneg %p110
      %p223 = pneg %p107
      %p224 = pneg %p138
      %p225 = pneg %p135
      %s226 = smul.u32 49, %s19
      %p227 = scmp.lt.s32.totalorder %s226, 195
      %s228 = scalar_select %p227, %s226, 195
      %p229 = scmp.lt.s32.totalorder %s20, 0
      %s230 = scalar_select %p229, %s20, 0
      %s231 = sadd.s32 %s230, %s228
      %s232 = smul.addr %s231, 4
      %s233 = scalar_lea.vmem %s3, %s232
      %s234 = smul.u32 49, %s19
      %s235 = smul.u32 2, %s21
      %p236 = scmp.lt.s32.totalorder %s234, 195
      %s237 = scalar_select %p236, %s234, 195
      %p238 = scmp.lt.s32.totalorder %s235, 1
      %s239 = scalar_select %p238, %s235, 1
      %s240 = smul.addr %s237, 2
      %s241 = sadd.s32 %s239, %s240
      %s242 = smul.addr %s241, 4
      %s243 = scalar_lea.vmem %s0, %s242
      %s244 = smul.u32 49, %s19
      %s245 = smul.u32 2, %s21
      %s246 = smul.u32 32, %s21
      %p247 = scmp.lt.s32.totalorder %s246, 31
      %s248 = scalar_select %p247, %s246, 31
      %p249 = scmp.lt.s32.totalorder %s20, 0
      %s250 = scalar_select %p249, %s20, 0
      %s251 = sadd.s32 %s250, %s248
      %s252 = smul.addr %s251, 4
      %s253 = scalar_lea.vmem %s1, %s252
      %s254 = smul.u32 32, %s21
      %p255 = scmp.lt.s32.totalorder %s20, 0
      %s256 = scalar_select %p255, %s20, 0
      %s257 = scalar_lea.vmem %s2, %s256
      %s258 = smul.u32 49, %s19
      %p259 = scmp.lt.s32.totalorder %s258, 195
      %s260 = scalar_select %p259, %s258, 195
      %p261 = scmp.lt.s32.totalorder %s20, 0
      %s262 = scalar_select %p261, %s20, 0
      %s263 = sadd.s32 %s262, %s260
      %s264 = smul.addr %s263, 4
      %s265 = scalar_lea.vmem %s3, %s264
      %s266 = smul.u32 49, %s19
      %v268 = vld [vmem:[%s243] sm:$0xff]
      %v269 = vld [vmem:[%s243 + $0x8] sm:$0xff]
      %v270 = vld [vmem:[%s243 + $0x10] sm:$0xff]
      %v271 = vld [vmem:[%s243 + $0x18] sm:$0xff]
      %v272 = vld [vmem:[%s243 + $0x20] sm:$0xff]
      %v273 = vld [vmem:[%s243 + $0x28] sm:$0xff]
      %v274 = vld [vmem:[%s243 + $0x30] sm:$0xff]
      %v275 = vld [vmem:[%s243 + $0x38] sm:$0xff]
      %v276 = vld [vmem:[%s243 + $0x40] sm:$0xff]
      %v277 = vld [vmem:[%s243 + $0x48] sm:$0xff]
      %v278 = vld [vmem:[%s243 + $0x50] sm:$0xff]
      %v279 = vld [vmem:[%s243 + $0x58] sm:$0xff]
      %v280 = vld [vmem:[%s243 + $0x60] sm:$0xff]
      %v281 = vld [vmem:[%s243 + $0x68] sm:$0xff]
      %v282 = vld [vmem:[%s243 + $0x70] sm:$0xff]
      %v283 = vld [vmem:[%s243 + $0x78] sm:$0xff]
      %v284 = vld [vmem:[%s243 + $0x80] sm:$0xff]
      %v285 = vld [vmem:[%s243 + $0x88] sm:$0xff]
      %v286 = vld [vmem:[%s243 + $0x90] sm:$0xff]
      %v287 = vld [vmem:[%s243 + $0x98] sm:$0xff]
      %v288 = vld [vmem:[%s243 + $0xa0] sm:$0xff]
      %v289 = vld [vmem:[%s243 + $0xa8] sm:$0xff]
      %v290 = vld [vmem:[%s243 + $0xb0] sm:$0xff]
      %v291 = vld [vmem:[%s243 + $0xb8] sm:$0xff]
      %v292 = vld [vmem:[%s243 + $0xc0] sm:$0xff]
      %v293 = vld [vmem:[%s243 + $0xc8] sm:$0xff]
      %v294 = vld [vmem:[%s243 + $0xd0] sm:$0xff]
      %v295 = vld [vmem:[%s243 + $0xd8] sm:$0xff]
      %v296 = vld [vmem:[%s243 + $0xe0] sm:$0xff]
      %v297 = vld [vmem:[%s243 + $0xe8] sm:$0xff]
      %v298 = vld [vmem:[%s243 + $0xf0] sm:$0xff]
      %v299 = vld [vmem:[%s243 + $0xf8] sm:$0xff]
      %v300 = vld [vmem:[%s243 + $0x100] sm:$0xff]
      %v301 = vld [vmem:[%s243 + $0x108] sm:$0xff]
      %v302 = vld [vmem:[%s243 + $0x110] sm:$0xff]
      %v303 = vld [vmem:[%s243 + $0x118] sm:$0xff]
      %v304 = vld [vmem:[%s243 + $0x120] sm:$0xff]
      %v305 = vld [vmem:[%s243 + $0x128] sm:$0xff]
      %v306 = vld [vmem:[%s243 + $0x130] sm:$0xff]
      %v307 = vld [vmem:[%s243 + $0x138] sm:$0xff]
      %v308 = vld [vmem:[%s243 + $0x140] sm:$0xff]
      %v309 = vld [vmem:[%s243 + $0x148] sm:$0xff]
      %v310 = vld [vmem:[%s243 + $0x150] sm:$0xff]
      %v311 = vld [vmem:[%s243 + $0x158] sm:$0xff]
      %v312 = vld [vmem:[%s243 + $0x160] sm:$0xff]
      %v313 = vld [vmem:[%s243 + $0x168] sm:$0xff]
      %v314 = vld [vmem:[%s243 + $0x170] sm:$0xff]
      %v315 = vld [vmem:[%s243 + $0x178] sm:$0xff]
      %v316 = vld [vmem:[%s243 + $0x180] sm:$0xff]
      %v317 = vld [vmem:[%s253] sm:$0xf]
      %v318 = vld [vmem:[%s253 + $0x4] sm:$0xf]
      %v319 = vld [vmem:[%s253 + $0x8] sm:$0xf]
      %v320 = vld [vmem:[%s253 + $0xc] sm:$0xf]
      %v321 = vld [vmem:[%s253 + $0x10] sm:$0xf]
      %v322 = vld [vmem:[%s253 + $0x14] sm:$0xf]
      %v323 = vld [vmem:[%s253 + $0x18] sm:$0xf]
      %v324 = vld [vmem:[%s253 + $0x1c] sm:$0xf]
      %v325 = vld [vmem:[%s253 + $0x20] sm:$0xf]
      %v326 = vld [vmem:[%s253 + $0x24] sm:$0xf]
      %v327 = vld [vmem:[%s253 + $0x28] sm:$0xf]
      %v328 = vld [vmem:[%s253 + $0x2c] sm:$0xf]
      %v329 = vld [vmem:[%s253 + $0x30] sm:$0xf]
      %v330 = vld [vmem:[%s253 + $0x34] sm:$0xf]
      %v331 = vld [vmem:[%s253 + $0x38] sm:$0xf]
      %v332 = vld [vmem:[%s253 + $0x3c] sm:$0xf]
      %v333 = vld [vmem:[%s253 + $0x40] sm:$0xf]
      %v334 = vld [vmem:[%s253 + $0x44] sm:$0xf]
      %v335 = vld [vmem:[%s253 + $0x48] sm:$0xf]
      %v336 = vld [vmem:[%s253 + $0x4c] sm:$0xf]
      %v337 = vld [vmem:[%s253 + $0x50] sm:$0xf]
      %v338 = vld [vmem:[%s253 + $0x54] sm:$0xf]
      %v339 = vld [vmem:[%s253 + $0x58] sm:$0xf]
      %v340 = vld [vmem:[%s253 + $0x5c] sm:$0xf]
      %v341 = vld [vmem:[%s253 + $0x60] sm:$0xf]
      %v342 = vld [vmem:[%s253 + $0x64] sm:$0xf]
      %v343 = vld [vmem:[%s253 + $0x68] sm:$0xf]
      %v344 = vld [vmem:[%s253 + $0x6c] sm:$0xf]
      %v345 = vld [vmem:[%s253 + $0x70] sm:$0xf]
      %v346 = vld [vmem:[%s253 + $0x74] sm:$0xf]
      %v347 = vld [vmem:[%s253 + $0x78] sm:$0xf]
      %v348 = vld [vmem:[%s253 + $0x7c] sm:$0xf]
      %v349 = vld [vmem:[%s257] sm:$0x1]
      %v351 = vlaneseq
      %v352 = vshrl.u32 %v351, 7
      %v353 = vsub.s32 0, %v352
      %v354 = vrot.slane %v349, %v353
      %v405 = vunpack.c.l.b16 %v268
      %v406 = vunpack.c.h.b16 %v268
      %v407 = vunpack.c.l.b16 %v269
      %v408 = vunpack.c.h.b16 %v269
      %v409 = vunpack.c.l.b16 %v270
      %v410 = vunpack.c.h.b16 %v270
      %v411 = vunpack.c.l.b16 %v271
      %v412 = vunpack.c.h.b16 %v271
      %v413 = vunpack.c.l.b16 %v272
      %v414 = vunpack.c.h.b16 %v272
      %v415 = vunpack.c.l.b16 %v273
      %v416 = vunpack.c.h.b16 %v273
      %v417 = vunpack.c.l.b16 %v274
      %v418 = vunpack.c.h.b16 %v274
      %v419 = vunpack.c.l.b16 %v275
      %v420 = vunpack.c.h.b16 %v275
      %v421 = vunpack.c.l.b16 %v276
      %v422 = vunpack.c.h.b16 %v276
      %v423 = vunpack.c.l.b16 %v277
      %v424 = vunpack.c.h.b16 %v277
      %v425 = vunpack.c.l.b16 %v278
      %v426 = vunpack.c.h.b16 %v278
      %v427 = vunpack.c.l.b16 %v279
      %v428 = vunpack.c.h.b16 %v279
      %v429 = vunpack.c.l.b16 %v280
      %v430 = vunpack.c.h.b16 %v280
      %v431 = vunpack.c.l.b16 %v281
      %v432 = vunpack.c.h.b16 %v281
      %v433 = vunpack.c.l.b16 %v282
      %v434 = vunpack.c.h.b16 %v282
      %v435 = vunpack.c.l.b16 %v283
      %v436 = vunpack.c.h.b16 %v283
      %v437 = vunpack.c.l.b16 %v284
      %v438 = vunpack.c.h.b16 %v284
      %v439 = vunpack.c.l.b16 %v285
      %v440 = vunpack.c.h.b16 %v285
      %v441 = vunpack.c.l.b16 %v286
      %v442 = vunpack.c.h.b16 %v286
      %v443 = vunpack.c.l.b16 %v287
      %v444 = vunpack.c.h.b16 %v287
      %v445 = vunpack.c.l.b16 %v288
      %v446 = vunpack.c.h.b16 %v288
      %v447 = vunpack.c.l.b16 %v289
      %v448 = vunpack.c.h.b16 %v289
      %v449 = vunpack.c.l.b16 %v290
      %v450 = vunpack.c.h.b16 %v290
      %v451 = vunpack.c.l.b16 %v291
      %v452 = vunpack.c.h.b16 %v291
      %v453 = vunpack.c.l.b16 %v292
      %v454 = vunpack.c.h.b16 %v292
      %v455 = vunpack.c.l.b16 %v293
      %v456 = vunpack.c.h.b16 %v293
      %v457 = vunpack.c.l.b16 %v294
      %v458 = vunpack.c.h.b16 %v294
      %v459 = vunpack.c.l.b16 %v295
      %v460 = vunpack.c.h.b16 %v295
      %v461 = vunpack.c.l.b16 %v296
      %v462 = vunpack.c.h.b16 %v296
      %v463 = vunpack.c.l.b16 %v297
      %v464 = vunpack.c.h.b16 %v297
      %v465 = vunpack.c.l.b16 %v298
      %v466 = vunpack.c.h.b16 %v298
      %v467 = vunpack.c.l.b16 %v299
      %v468 = vunpack.c.h.b16 %v299
      %v469 = vunpack.c.l.b16 %v300
      %v470 = vunpack.c.h.b16 %v300
      %v471 = vunpack.c.l.b16 %v301
      %v472 = vunpack.c.h.b16 %v301
      %v473 = vunpack.c.l.b16 %v302
      %v474 = vunpack.c.h.b16 %v302
      %v475 = vunpack.c.l.b16 %v303
      %v476 = vunpack.c.h.b16 %v303
      %v477 = vunpack.c.l.b16 %v304
      %v478 = vunpack.c.h.b16 %v304
      %v479 = vunpack.c.l.b16 %v305
      %v480 = vunpack.c.h.b16 %v305
      %v481 = vunpack.c.l.b16 %v306
      %v482 = vunpack.c.h.b16 %v306
      %v483 = vunpack.c.l.b16 %v307
      %v484 = vunpack.c.h.b16 %v307
      %v485 = vunpack.c.l.b16 %v308
      %v486 = vunpack.c.h.b16 %v308
      %v487 = vunpack.c.l.b16 %v309
      %v488 = vunpack.c.h.b16 %v309
      %v489 = vunpack.c.l.b16 %v310
      %v490 = vunpack.c.h.b16 %v310
      %v491 = vunpack.c.l.b16 %v311
      %v492 = vunpack.c.h.b16 %v311
      %v493 = vunpack.c.l.b16 %v312
      %v494 = vunpack.c.h.b16 %v312
      %v495 = vunpack.c.l.b16 %v313
      %v496 = vunpack.c.h.b16 %v313
      %v497 = vunpack.c.l.b16 %v314
      %v498 = vunpack.c.h.b16 %v314
      %v499 = vunpack.c.l.b16 %v315
      %v500 = vunpack.c.h.b16 %v315
      %v501 = vunpack.c.l.b16 %v316
      %v502 = vunpack.c.h.b16 %v316
      %v503 = vpack.c.b16 %v407, %v405
      %v504 = vpack.c.b16 %v408, %v406
      %v505 = vpack.c.b16 %v411, %v409
      %v506 = vpack.c.b16 %v412, %v410
      %v507 = vpack.c.b16 %v415, %v413
      %v508 = vpack.c.b16 %v416, %v414
      %v509 = vpack.c.b16 %v419, %v417
      %v510 = vpack.c.b16 %v420, %v418
      %v511 = vpack.c.b16 %v423, %v421
      %v512 = vpack.c.b16 %v424, %v422
      %v513 = vpack.c.b16 %v427, %v425
      %v514 = vpack.c.b16 %v428, %v426
      %v515 = vpack.c.b16 %v431, %v429
      %v516 = vpack.c.b16 %v432, %v430
      %v517 = vpack.c.b16 %v435, %v433
      %v518 = vpack.c.b16 %v436, %v434
      %v519 = vpack.c.b16 %v439, %v437
      %v520 = vpack.c.b16 %v440, %v438
      %v521 = vpack.c.b16 %v443, %v441
      %v522 = vpack.c.b16 %v444, %v442
      %v523 = vpack.c.b16 %v447, %v445
      %v524 = vpack.c.b16 %v448, %v446
      %v525 = vpack.c.b16 %v451, %v449
      %v526 = vpack.c.b16 %v452, %v450
      %v527 = vpack.c.b16 %v455, %v453
      %v528 = vpack.c.b16 %v456, %v454
      %v529 = vpack.c.b16 %v459, %v457
      %v530 = vpack.c.b16 %v460, %v458
      %v531 = vpack.c.b16 %v463, %v461
      %v532 = vpack.c.b16 %v464, %v462
      %v533 = vpack.c.b16 %v467, %v465
      %v534 = vpack.c.b16 %v468, %v466
      %v535 = vpack.c.b16 %v471, %v469
      %v536 = vpack.c.b16 %v472, %v470
      %v537 = vpack.c.b16 %v475, %v473
      %v538 = vpack.c.b16 %v476, %v474
      %v539 = vpack.c.b16 %v479, %v477
      %v540 = vpack.c.b16 %v480, %v478
      %v541 = vpack.c.b16 %v483, %v481
      %v542 = vpack.c.b16 %v484, %v482
      %v543 = vpack.c.b16 %v487, %v485
      %v544 = vpack.c.b16 %v488, %v486
      %v545 = vpack.c.b16 %v491, %v489
      %v546 = vpack.c.b16 %v492, %v490
      %v547 = vpack.c.b16 %v495, %v493
      %v548 = vpack.c.b16 %v496, %v494
      %v549 = vpack.c.b16 %v499, %v497
      %v550 = vpack.c.b16 %v500, %v498
      %v551 = vpack.c.b16 %v501, %v501
      %v552 = vpack.c.b16 %v502, %v502
      %v635 = vunpack.c.l.b16 %v317
      %v636 = vunpack.c.l.b16 %v318
      %v637 = vunpack.c.l.b16 %v319
      %v638 = vunpack.c.l.b16 %v320
      %v639 = vunpack.c.l.b16 %v321
      %v640 = vunpack.c.l.b16 %v322
      %v641 = vunpack.c.l.b16 %v323
      %v642 = vunpack.c.l.b16 %v324
      %v643 = vunpack.c.l.b16 %v325
      %v644 = vunpack.c.l.b16 %v326
      %v645 = vunpack.c.l.b16 %v327
      %v646 = vunpack.c.l.b16 %v328
      %v647 = vunpack.c.l.b16 %v329
      %v648 = vunpack.c.l.b16 %v330
      %v649 = vunpack.c.l.b16 %v331
      %v650 = vunpack.c.l.b16 %v332
      %v651 = vunpack.c.l.b16 %v333
      %v652 = vunpack.c.l.b16 %v334
      %v653 = vunpack.c.l.b16 %v335
      %v654 = vunpack.c.l.b16 %v336
      %v655 = vunpack.c.l.b16 %v337
      %v656 = vunpack.c.l.b16 %v338
      %v657 = vunpack.c.l.b16 %v339
      %v658 = vunpack.c.l.b16 %v340
      %v659 = vunpack.c.l.b16 %v341
      %v660 = vunpack.c.l.b16 %v342
      %v661 = vunpack.c.l.b16 %v343
      %v662 = vunpack.c.l.b16 %v344
      %v663 = vunpack.c.l.b16 %v345
      %v664 = vunpack.c.l.b16 %v346
      %v665 = vunpack.c.l.b16 %v347
      %v666 = vunpack.c.l.b16 %v348
      %v667 = vpack.c.b16 %v636, %v635
      %v668 = vpack.c.b16 %v638, %v637
      %v669 = vpack.c.b16 %v640, %v639
      %v670 = vpack.c.b16 %v642, %v641
      %v671 = vpack.c.b16 %v644, %v643
      %v672 = vpack.c.b16 %v646, %v645
      %v673 = vpack.c.b16 %v648, %v647
      %v674 = vpack.c.b16 %v650, %v649
      %v675 = vpack.c.b16 %v652, %v651
      %v676 = vpack.c.b16 %v654, %v653
      %v677 = vpack.c.b16 %v656, %v655
      %v678 = vpack.c.b16 %v658, %v657
      %v679 = vpack.c.b16 %v660, %v659
      %v680 = vpack.c.b16 %v662, %v661
      %v681 = vpack.c.b16 %v664, %v663
      %v682 = vpack.c.b16 %v666, %v665
      %699 = vmatprep.subr.bf16.mxu0 0
      %700 = vmatpush1.bf16.msra.mxu0 %v667
      %701 = vmatprep.subr.bf16.mxu0 0
      %702 = vmatpush1.bf16.msra.mxu0 %v668
      %703 = vmatprep.subr.bf16.mxu0 0
      %704 = vmatpush1.bf16.msra.mxu0 %v669
      %705 = vmatprep.subr.bf16.mxu0 0
      %706 = vmatpush1.bf16.msra.mxu0 %v670
      %707 = vmatprep.subr.bf16.mxu0 0
      %708 = vmatpush1.bf16.msra.mxu0 %v671
      %709 = vmatprep.subr.bf16.mxu0 0
      %710 = vmatpush1.bf16.msra.mxu0 %v672
      %711 = vmatprep.subr.bf16.mxu0 0
      %712 = vmatpush1.bf16.msra.mxu0 %v673
      %713 = vmatprep.subr.bf16.mxu0 0
      %714 = vmatpush1.bf16.msra.mxu0 %v674
      %715 = vmatprep.subr.bf16.mxu0 0
      %716 = vmatpush1.bf16.msra.mxu0 %v675
      %717 = vmatprep.subr.bf16.mxu0 0
      %718 = vmatpush1.bf16.msra.mxu0 %v676
      %719 = vmatprep.subr.bf16.mxu0 0
      %720 = vmatpush1.bf16.msra.mxu0 %v677
      %721 = vmatprep.subr.bf16.mxu0 0
      %722 = vmatpush1.bf16.msra.mxu0 %v678
      %723 = vmatprep.subr.bf16.mxu0 0
      %724 = vmatpush1.bf16.msra.mxu0 %v679
      %725 = vmatprep.subr.bf16.mxu0 0
      %726 = vmatpush1.bf16.msra.mxu0 %v680
      %727 = vmatprep.subr.bf16.mxu0 0
      %728 = vmatpush1.bf16.msra.mxu0 %v681
      %729 = vmatprep.subr.bf16.mxu0 0
      %730 = vmatpush1.bf16.msra.mxu0 %v682
      %731 = vmatprep.mubr.bf16.mxu0 %v504
      %732 = vmatmul.mubr.bf16.gmra.mrb[0].mxu0 %v503
      %v733 = vpop.f32.mrb[0].mxu0
      %v734 = vadd.f32 %v354, %v733
      %v735 = vpop.f32.mrb[0].mxu0
      %v736 = vpop.f32.mrb[0].mxu0
      %v737 = vadd.f32 %v354, %v736
      %v738 = vpop.f32.mrb[0].mxu0
      %739 = vmatprep.mubr.bf16.mxu0 %v506
      %740 = vmatmul.mubr.bf16.gmra.mrb[0].mxu0 %v505
      %v741 = vpop.f32.mrb[0].mxu0
      %v742 = vadd.f32 %v354, %v741
      %v743 = vpop.f32.mrb[0].mxu0
      %v744 = vpop.f32.mrb[0].mxu0
      %v745 = vadd.f32 %v354, %v744
      %v746 = vpop.f32.mrb[0].mxu0
      %747 = vmatprep.mubr.bf16.mxu0 %v508
      %748 = vmatmul.mubr.bf16.gmra.mrb[0].mxu0 %v507
      %v749 = vpop.f32.mrb[0].mxu0
      %v750 = vadd.f32 %v354, %v749
      %v751 = vpop.f32.mrb[0].mxu0
      %v752 = vpop.f32.mrb[0].mxu0
      %v753 = vadd.f32 %v354, %v752
      %v754 = vpop.f32.mrb[0].mxu0
      %755 = vmatprep.mubr.bf16.mxu0 %v510
      %756 = vmatmul.mubr.bf16.gmra.mrb[0].mxu0 %v509
      %v757 = vpop.f32.mrb[0].mxu0
      %v758 = vadd.f32 %v354, %v757
      %v759 = vpop.f32.mrb[0].mxu0
      %v760 = vpop.f32.mrb[0].mxu0
      %v761 = vadd.f32 %v354, %v760
      %v762 = vpop.f32.mrb[0].mxu0
      %763 = vmatprep.mubr.bf16.mxu0 %v512
      %764 = vmatmul.mubr.bf16.gmra.mrb[0].mxu0 %v511
      %v765 = vpop.f32.mrb[0].mxu0
      %v766 = vadd.f32 %v354, %v765
      %v767 = vpop.f32.mrb[0].mxu0
      %v768 = vpop.f32.mrb[0].mxu0
      %v769 = vadd.f32 %v354, %v768
      %v770 = vpop.f32.mrb[0].mxu0
      %771 = vmatprep.mubr.bf16.mxu0 %v514
      %772 = vmatmul.mubr.bf16.gmra.mrb[0].mxu0 %v513
      %v773 = vpop.f32.mrb[0].mxu0
      %v774 = vadd.f32 %v354, %v773
      %v775 = vpop.f32.mrb[0].mxu0
      %v776 = vpop.f32.mrb[0].mxu0
      %v777 = vadd.f32 %v354, %v776
      %v778 = vpop.f32.mrb[0].mxu0
      %779 = vmatprep.mubr.bf16.mxu0 %v516
      %780 = vmatmul.mubr.bf16.gmra.mrb[0].mxu0 %v515
      %v781 = vpop.f32.mrb[0].mxu0
      %v782 = vadd.f32 %v354, %v781
      %v783 = vpop.f32.mrb[0].mxu0
      %v784 = vpop.f32.mrb[0].mxu0
      %v785 = vadd.f32 %v354, %v784
      %v786 = vpop.f32.mrb[0].mxu0
      %787 = vmatprep.mubr.bf16.mxu0 %v518
      %788 = vmatmul.mubr.bf16.gmra.mrb[0].mxu0 %v517
      %v789 = vpop.f32.mrb[0].mxu0
      %v790 = vadd.f32 %v354, %v789
      %v791 = vpop.f32.mrb[0].mxu0
      %v792 = vpop.f32.mrb[0].mxu0
      %v793 = vadd.f32 %v354, %v792
      %v794 = vpop.f32.mrb[0].mxu0
      %795 = vmatprep.mubr.bf16.mxu0 %v520
      %796 = vmatmul.mubr.bf16.gmra.mrb[0].mxu0 %v519
      %v797 = vpop.f32.mrb[0].mxu0
      %v798 = vadd.f32 %v354, %v797
      %v799 = vpop.f32.mrb[0].mxu0
      %v800 = vpop.f32.mrb[0].mxu0
      %v801 = vadd.f32 %v354, %v800
      %v802 = vpop.f32.mrb[0].mxu0
      %803 = vmatprep.mubr.bf16.mxu0 %v522
      %804 = vmatmul.mubr.bf16.gmra.mrb[0].mxu0 %v521
      %v805 = vpop.f32.mrb[0].mxu0
      %v806 = vadd.f32 %v354, %v805
      %v807 = vpop.f32.mrb[0].mxu0
      %v808 = vpop.f32.mrb[0].mxu0
      %v809 = vadd.f32 %v354, %v808
      %v810 = vpop.f32.mrb[0].mxu0
      %811 = vmatprep.mubr.bf16.mxu0 %v524
      %812 = vmatmul.mubr.bf16.gmra.mrb[0].mxu0 %v523
      %v813 = vpop.f32.mrb[0].mxu0
      %v814 = vadd.f32 %v354, %v813
      %v815 = vpop.f32.mrb[0].mxu0
      %v816 = vpop.f32.mrb[0].mxu0
      %v817 = vadd.f32 %v354, %v816
      %v818 = vpop.f32.mrb[0].mxu0
      %819 = vmatprep.mubr.bf16.mxu0 %v526
      %820 = vmatmul.mubr.bf16.gmra.mrb[0].mxu0 %v525
      %v821 = vpop.f32.mrb[0].mxu0
      %v822 = vadd.f32 %v354, %v821
      %v823 = vpop.f32.mrb[0].mxu0
      %v824 = vpop.f32.mrb[0].mxu0
      %v825 = vadd.f32 %v354, %v824
      %v826 = vpop.f32.mrb[0].mxu0
      %827 = vmatprep.mubr.bf16.mxu0 %v528
      %828 = vmatmul.mubr.bf16.gmra.mrb[0].mxu0 %v527
      %v829 = vpop.f32.mrb[0].mxu0
      %v830 = vadd.f32 %v354, %v829
      %v831 = vpop.f32.mrb[0].mxu0
      %v832 = vpop.f32.mrb[0].mxu0
      %v833 = vadd.f32 %v354, %v832
      %v834 = vpop.f32.mrb[0].mxu0
      %835 = vmatprep.mubr.bf16.mxu0 %v530
      %836 = vmatmul.mubr.bf16.gmra.mrb[0].mxu0 %v529
      %v837 = vpop.f32.mrb[0].mxu0
      %v838 = vadd.f32 %v354, %v837
      %v839 = vpop.f32.mrb[0].mxu0
      %v840 = vpop.f32.mrb[0].mxu0
      %v841 = vadd.f32 %v354, %v840
      %v842 = vpop.f32.mrb[0].mxu0
      %843 = vmatprep.mubr.bf16.mxu0 %v532
      %844 = vmatmul.mubr.bf16.gmra.mrb[0].mxu0 %v531
      %v845 = vpop.f32.mrb[0].mxu0
      %v846 = vadd.f32 %v354, %v845
      %v847 = vpop.f32.mrb[0].mxu0
      %v848 = vpop.f32.mrb[0].mxu0
      %v849 = vadd.f32 %v354, %v848
      %v850 = vpop.f32.mrb[0].mxu0
      %851 = vmatprep.mubr.bf16.mxu0 %v534
      %852 = vmatmul.mubr.bf16.gmra.mrb[0].mxu0 %v533
      %v853 = vpop.f32.mrb[0].mxu0
      %v854 = vadd.f32 %v354, %v853
      %v855 = vpop.f32.mrb[0].mxu0
      %v856 = vpop.f32.mrb[0].mxu0
      %v857 = vadd.f32 %v354, %v856
      %v858 = vpop.f32.mrb[0].mxu0
      %859 = vmatprep.mubr.bf16.mxu0 %v536
      %860 = vmatmul.mubr.bf16.gmra.mrb[0].mxu0 %v535
      %v861 = vpop.f32.mrb[0].mxu0
      %v862 = vadd.f32 %v354, %v861
      %v863 = vpop.f32.mrb[0].mxu0
      %v864 = vpop.f32.mrb[0].mxu0
      %v865 = vadd.f32 %v354, %v864
      %v866 = vpop.f32.mrb[0].mxu0
      %867 = vmatprep.mubr.bf16.mxu0 %v538
      %868 = vmatmul.mubr.bf16.gmra.mrb[0].mxu0 %v537
      %v869 = vpop.f32.mrb[0].mxu0
      %v870 = vadd.f32 %v354, %v869
      %v871 = vpop.f32.mrb[0].mxu0
      %v872 = vpop.f32.mrb[0].mxu0
      %v873 = vadd.f32 %v354, %v872
      %v874 = vpop.f32.mrb[0].mxu0
      %875 = vmatprep.mubr.bf16.mxu0 %v540
      %876 = vmatmul.mubr.bf16.gmra.mrb[0].mxu0 %v539
      %v877 = vpop.f32.mrb[0].mxu0
      %v878 = vadd.f32 %v354, %v877
      %v879 = vpop.f32.mrb[0].mxu0
      %v880 = vpop.f32.mrb[0].mxu0
      %v881 = vadd.f32 %v354, %v880
      %v882 = vpop.f32.mrb[0].mxu0
      %883 = vmatprep.mubr.bf16.mxu0 %v542
      %884 = vmatmul.mubr.bf16.gmra.mrb[0].mxu0 %v541
      %v885 = vpop.f32.mrb[0].mxu0
      %v886 = vadd.f32 %v354, %v885
      %v887 = vpop.f32.mrb[0].mxu0
      %v888 = vpop.f32.mrb[0].mxu0
      %v889 = vadd.f32 %v354, %v888
      %v890 = vpop.f32.mrb[0].mxu0
      %891 = vmatprep.mubr.bf16.mxu0 %v544
      %892 = vmatmul.mubr.bf16.gmra.mrb[0].mxu0 %v543
      %v893 = vpop.f32.mrb[0].mxu0
      %v894 = vadd.f32 %v354, %v893
      %v895 = vpop.f32.mrb[0].mxu0
      %v896 = vpop.f32.mrb[0].mxu0
      %v897 = vadd.f32 %v354, %v896
      %v898 = vpop.f32.mrb[0].mxu0
      %899 = vmatprep.mubr.bf16.mxu0 %v546
      %900 = vmatmul.mubr.bf16.gmra.mrb[0].mxu0 %v545
      %v901 = vpop.f32.mrb[0].mxu0
      %v902 = vadd.f32 %v354, %v901
      %v903 = vpop.f32.mrb[0].mxu0
      %v904 = vpop.f32.mrb[0].mxu0
      %v905 = vadd.f32 %v354, %v904
      %v906 = vpop.f32.mrb[0].mxu0
      %907 = vmatprep.mubr.bf16.mxu0 %v548
      %908 = vmatmul.mubr.bf16.gmra.mrb[0].mxu0 %v547
      %v909 = vpop.f32.mrb[0].mxu0
      %v910 = vadd.f32 %v354, %v909
      %v911 = vpop.f32.mrb[0].mxu0
      %v912 = vpop.f32.mrb[0].mxu0
      %v913 = vadd.f32 %v354, %v912
      %v914 = vpop.f32.mrb[0].mxu0
      %915 = vmatprep.mubr.bf16.mxu0 %v550
      %916 = vmatmul.mubr.bf16.gmra.mrb[0].mxu0 %v549
      %v917 = vpop.f32.mrb[0].mxu0
      %v918 = vadd.f32 %v354, %v917
      %v919 = vpop.f32.mrb[0].mxu0
      %v920 = vpop.f32.mrb[0].mxu0
      %v921 = vadd.f32 %v354, %v920
      %v922 = vpop.f32.mrb[0].mxu0
      %923 = vmatprep.mubr.bf16.mxu0 %v552
      %924 = vmatmul.mubr.bf16.gmra.mrb[0].mxu0 %v551
      %v925 = vpop.f32.mrb[0].mxu0
      %v926 = vadd.f32 %v354, %v925
      %v927 = vpop.f32.mrb[0].mxu0
      %v928 = vpop.f32.mrb[0].mxu0
      %v929 = vpop.f32.mrb[0].mxu0
      %930 = vdwg.mxu0
      %v931 = vmax.f32 %v734, 0.0
      %v932 = vmax.f32 %v737, 0.0
      %v933 = vmax.f32 %v742, 0.0
      %v934 = vmax.f32 %v745, 0.0
      %v935 = vmax.f32 %v750, 0.0
      %v936 = vmax.f32 %v753, 0.0
      %v937 = vmax.f32 %v758, 0.0
      %v938 = vmax.f32 %v761, 0.0
      %v939 = vmax.f32 %v766, 0.0
      %v940 = vmax.f32 %v769, 0.0
      %v941 = vmax.f32 %v774, 0.0
      %v942 = vmax.f32 %v777, 0.0
      %v943 = vmax.f32 %v782, 0.0
      %v944 = vmax.f32 %v785, 0.0
      %v945 = vmax.f32 %v790, 0.0
      %v946 = vmax.f32 %v793, 0.0
      %v947 = vmax.f32 %v798, 0.0
      %v948 = vmax.f32 %v801, 0.0
      %v949 = vmax.f32 %v806, 0.0
      %v950 = vmax.f32 %v809, 0.0
      %v951 = vmax.f32 %v814, 0.0
      %v952 = vmax.f32 %v817, 0.0
      %v953 = vmax.f32 %v822, 0.0
      %v954 = vmax.f32 %v825, 0.0
      %v955 = vmax.f32 %v830, 0.0
      %v956 = vmax.f32 %v833, 0.0
      %v957 = vmax.f32 %v838, 0.0
      %v958 = vmax.f32 %v841, 0.0
      %v959 = vmax.f32 %v846, 0.0
      %v960 = vmax.f32 %v849, 0.0
      %v961 = vmax.f32 %v854, 0.0
      %v962 = vmax.f32 %v857, 0.0
      %v963 = vmax.f32 %v862, 0.0
      %v964 = vmax.f32 %v865, 0.0
      %v965 = vmax.f32 %v870, 0.0
      %v966 = vmax.f32 %v873, 0.0
      %v967 = vmax.f32 %v878, 0.0
      %v968 = vmax.f32 %v881, 0.0
      %v969 = vmax.f32 %v886, 0.0
      %v970 = vmax.f32 %v889, 0.0
      %v971 = vmax.f32 %v894, 0.0
      %v972 = vmax.f32 %v897, 0.0
      %v973 = vmax.f32 %v902, 0.0
      %v974 = vmax.f32 %v905, 0.0
      %v975 = vmax.f32 %v910, 0.0
      %v976 = vmax.f32 %v913, 0.0
      %v977 = vmax.f32 %v918, 0.0
      %v978 = vmax.f32 %v921, 0.0
      %v979 = vmax.f32 %v926, 0.0
      %v980 = vpack.c.bf16 %v932, %v931
      %v981 = vpack.c.bf16 %v934, %v933
      %v982 = vpack.c.bf16 %v936, %v935
      %v983 = vpack.c.bf16 %v938, %v937
      %v984 = vpack.c.bf16 %v940, %v939
      %v985 = vpack.c.bf16 %v942, %v941
      %v986 = vpack.c.bf16 %v944, %v943
      %v987 = vpack.c.bf16 %v946, %v945
      %v988 = vpack.c.bf16 %v948, %v947
      %v989 = vpack.c.bf16 %v950, %v949
      %v990 = vpack.c.bf16 %v952, %v951
      %v991 = vpack.c.bf16 %v954, %v953
      %v992 = vpack.c.bf16 %v956, %v955
      %v993 = vpack.c.bf16 %v958, %v957
      %v994 = vpack.c.bf16 %v960, %v959
      %v995 = vpack.c.bf16 %v962, %v961
      %v996 = vpack.c.bf16 %v964, %v963
      %v997 = vpack.c.bf16 %v966, %v965
      %v998 = vpack.c.bf16 %v968, %v967
      %v999 = vpack.c.bf16 %v970, %v969
      %v1000 = vpack.c.bf16 %v972, %v971
      %v1001 = vpack.c.bf16 %v974, %v973
      %v1002 = vpack.c.bf16 %v976, %v975
      %v1003 = vpack.c.bf16 %v978, %v977
      %v1004 = vpack.c.bf16 %v979, %v979
      %v1030 = vunpack.c.l.b16 %v980
      %v1031 = vunpack.c.h.b16 %v980
      %v1032 = vunpack.c.l.b16 %v981
      %v1033 = vunpack.c.h.b16 %v981
      %v1034 = vunpack.c.l.b16 %v982
      %v1035 = vunpack.c.h.b16 %v982
      %v1036 = vunpack.c.l.b16 %v983
      %v1037 = vunpack.c.h.b16 %v983
      %v1038 = vunpack.c.l.b16 %v984
      %v1039 = vunpack.c.h.b16 %v984
      %v1040 = vunpack.c.l.b16 %v985
      %v1041 = vunpack.c.h.b16 %v985
      %v1042 = vunpack.c.l.b16 %v986
      %v1043 = vunpack.c.h.b16 %v986
      %v1044 = vunpack.c.l.b16 %v987
      %v1045 = vunpack.c.h.b16 %v987
      %v1046 = vunpack.c.l.b16 %v988
      %v1047 = vunpack.c.h.b16 %v988
      %v1048 = vunpack.c.l.b16 %v989
      %v1049 = vunpack.c.h.b16 %v989
      %v1050 = vunpack.c.l.b16 %v990
      %v1051 = vunpack.c.h.b16 %v990
      %v1052 = vunpack.c.l.b16 %v991
      %v1053 = vunpack.c.h.b16 %v991
      %v1054 = vunpack.c.l.b16 %v992
      %v1055 = vunpack.c.h.b16 %v992
      %v1056 = vunpack.c.l.b16 %v993
      %v1057 = vunpack.c.h.b16 %v993
      %v1058 = vunpack.c.l.b16 %v994
      %v1059 = vunpack.c.h.b16 %v994
      %v1060 = vunpack.c.l.b16 %v995
      %v1061 = vunpack.c.h.b16 %v995
      %v1062 = vunpack.c.l.b16 %v996
      %v1063 = vunpack.c.h.b16 %v996
      %v1064 = vunpack.c.l.b16 %v997
      %v1065 = vunpack.c.h.b16 %v997
      %v1066 = vunpack.c.l.b16 %v998
      %v1067 = vunpack.c.h.b16 %v998
      %v1068 = vunpack.c.l.b16 %v999
      %v1069 = vunpack.c.h.b16 %v999
      %v1070 = vunpack.c.l.b16 %v1000
      %v1071 = vunpack.c.h.b16 %v1000
      %v1072 = vunpack.c.l.b16 %v1001
      %v1073 = vunpack.c.h.b16 %v1001
      %v1074 = vunpack.c.l.b16 %v1002
      %v1075 = vunpack.c.h.b16 %v1002
      %v1076 = vunpack.c.l.b16 %v1003
      %v1077 = vunpack.c.h.b16 %v1003
      %v1078 = vunpack.c.l.b16 %v1004
      %v1079 = vpack.c.b16 %v1030, %v1030
      %v1080 = vpack.c.b16 %v1031, %v1031
      %v1081 = vpack.c.b16 %v1032, %v1032
      %v1082 = vpack.c.b16 %v1033, %v1033
      %v1083 = vpack.c.b16 %v1034, %v1034
      %v1084 = vpack.c.b16 %v1035, %v1035
      %v1085 = vpack.c.b16 %v1036, %v1036
      %v1086 = vpack.c.b16 %v1037, %v1037
      %v1087 = vpack.c.b16 %v1038, %v1038
      %v1088 = vpack.c.b16 %v1039, %v1039
      %v1089 = vpack.c.b16 %v1040, %v1040
      %v1090 = vpack.c.b16 %v1041, %v1041
      %v1091 = vpack.c.b16 %v1042, %v1042
      %v1092 = vpack.c.b16 %v1043, %v1043
      %v1093 = vpack.c.b16 %v1044, %v1044
      %v1094 = vpack.c.b16 %v1045, %v1045
      %v1095 = vpack.c.b16 %v1046, %v1046
      %v1096 = vpack.c.b16 %v1047, %v1047
      %v1097 = vpack.c.b16 %v1048, %v1048
      %v1098 = vpack.c.b16 %v1049, %v1049
      %v1099 = vpack.c.b16 %v1050, %v1050
      %v1100 = vpack.c.b16 %v1051, %v1051
      %v1101 = vpack.c.b16 %v1052, %v1052
      %v1102 = vpack.c.b16 %v1053, %v1053
      %v1103 = vpack.c.b16 %v1054, %v1054
      %v1104 = vpack.c.b16 %v1055, %v1055
      %v1105 = vpack.c.b16 %v1056, %v1056
      %v1106 = vpack.c.b16 %v1057, %v1057
      %v1107 = vpack.c.b16 %v1058, %v1058
      %v1108 = vpack.c.b16 %v1059, %v1059
      %v1109 = vpack.c.b16 %v1060, %v1060
      %v1110 = vpack.c.b16 %v1061, %v1061
      %v1111 = vpack.c.b16 %v1062, %v1062
      %v1112 = vpack.c.b16 %v1063, %v1063
      %v1113 = vpack.c.b16 %v1064, %v1064
      %v1114 = vpack.c.b16 %v1065, %v1065
      %v1115 = vpack.c.b16 %v1066, %v1066
      %v1116 = vpack.c.b16 %v1067, %v1067
      %v1117 = vpack.c.b16 %v1068, %v1068
      %v1118 = vpack.c.b16 %v1069, %v1069
      %v1119 = vpack.c.b16 %v1070, %v1070
      %v1120 = vpack.c.b16 %v1071, %v1071
      %v1121 = vpack.c.b16 %v1072, %v1072
      %v1122 = vpack.c.b16 %v1073, %v1073
      %v1123 = vpack.c.b16 %v1074, %v1074
      %v1124 = vpack.c.b16 %v1075, %v1075
      %v1125 = vpack.c.b16 %v1076, %v1076
      %v1126 = vpack.c.b16 %v1077, %v1077
      %v1127 = vpack.c.b16 %v1078, %v1078
      %1177 = vst [vmem:[%s265] sm:$0xf] %v1079
      %1178 = vst [vmem:[%s265 + $0x4] sm:$0xf] %v1080
      %1179 = vst [vmem:[%s265 + $0x8] sm:$0xf] %v1081
      %1180 = vst [vmem:[%s265 + $0xc] sm:$0xf] %v1082
      %1181 = vst [vmem:[%s265 + $0x10] sm:$0xf] %v1083
      %1182 = vst [vmem:[%s265 + $0x14] sm:$0xf] %v1084
      %1183 = vst [vmem:[%s265 + $0x18] sm:$0xf] %v1085
      %1184 = vst [vmem:[%s265 + $0x1c] sm:$0xf] %v1086
      %1185 = vst [vmem:[%s265 + $0x20] sm:$0xf] %v1087
      %1186 = vst [vmem:[%s265 + $0x24] sm:$0xf] %v1088
      %1187 = vst [vmem:[%s265 + $0x28] sm:$0xf] %v1089
      %1188 = vst [vmem:[%s265 + $0x2c] sm:$0xf] %v1090
      %1189 = vst [vmem:[%s265 + $0x30] sm:$0xf] %v1091
      %1190 = vst [vmem:[%s265 + $0x34] sm:$0xf] %v1092
      %1191 = vst [vmem:[%s265 + $0x38] sm:$0xf] %v1093
      %1192 = vst [vmem:[%s265 + $0x3c] sm:$0xf] %v1094
      %1193 = vst [vmem:[%s265 + $0x40] sm:$0xf] %v1095
      %1194 = vst [vmem:[%s265 + $0x44] sm:$0xf] %v1096
      %1195 = vst [vmem:[%s265 + $0x48] sm:$0xf] %v1097
      %1196 = vst [vmem:[%s265 + $0x4c] sm:$0xf] %v1098
      %1197 = vst [vmem:[%s265 + $0x50] sm:$0xf] %v1099
      %1198 = vst [vmem:[%s265 + $0x54] sm:$0xf] %v1100
      %1199 = vst [vmem:[%s265 + $0x58] sm:$0xf] %v1101
      %1200 = vst [vmem:[%s265 + $0x5c] sm:$0xf] %v1102
      %1201 = vst [vmem:[%s265 + $0x60] sm:$0xf] %v1103
      %1202 = vst [vmem:[%s265 + $0x64] sm:$0xf] %v1104
      %1203 = vst [vmem:[%s265 + $0x68] sm:$0xf] %v1105
      %1204 = vst [vmem:[%s265 + $0x6c] sm:$0xf] %v1106
      %1205 = vst [vmem:[%s265 + $0x70] sm:$0xf] %v1107
      %1206 = vst [vmem:[%s265 + $0x74] sm:$0xf] %v1108
      %1207 = vst [vmem:[%s265 + $0x78] sm:$0xf] %v1109
      %1208 = vst [vmem:[%s265 + $0x7c] sm:$0xf] %v1110
      %1209 = vst [vmem:[%s265 + $0x80] sm:$0xf] %v1111
      %1210 = vst [vmem:[%s265 + $0x84] sm:$0xf] %v1112
      %1211 = vst [vmem:[%s265 + $0x88] sm:$0xf] %v1113
      %1212 = vst [vmem:[%s265 + $0x8c] sm:$0xf] %v1114
      %1213 = vst [vmem:[%s265 + $0x90] sm:$0xf] %v1115
      %1214 = vst [vmem:[%s265 + $0x94] sm:$0xf] %v1116
      %1215 = vst [vmem:[%s265 + $0x98] sm:$0xf] %v1117
      %1216 = vst [vmem:[%s265 + $0x9c] sm:$0xf] %v1118
      %1217 = vst [vmem:[%s265 + $0xa0] sm:$0xf] %v1119
      %1218 = vst [vmem:[%s265 + $0xa4] sm:$0xf] %v1120
      %1219 = vst [vmem:[%s265 + $0xa8] sm:$0xf] %v1121
      %1220 = vst [vmem:[%s265 + $0xac] sm:$0xf] %v1122
      %1221 = vst [vmem:[%s265 + $0xb0] sm:$0xf] %v1123
      %1222 = vst [vmem:[%s265 + $0xb4] sm:$0xf] %v1124
      %1223 = vst [vmem:[%s265 + $0xb8] sm:$0xf] %v1125
      %1224 = vst [vmem:[%s265 + $0xbc] sm:$0xf] %v1126
      %1225 = vst [vmem:[%s265 + $0xc0] sm:$0xf] %v1127
      %s1226 = smul.u32 49, %s19
      %p1227 = scmp.lt.s32.totalorder %s1226, 195
      %s1228 = scalar_select %p1227, %s1226, 195
      %p1229 = scmp.lt.s32.totalorder %s20, 0
      %s1230 = scalar_select %p1229, %s20, 0
      %s1231 = sadd.s32 %s1230, %s1228
      %s1232 = smul.addr %s1231, 4
      %s1233 = scalar_lea.vmem %s3, %s1232
      // Predicated region
      $region33: #{autoencoder_forward.13} parent=31 // pred_check
        %p1234 = pneg %p135
      $region34: #{autoencoder_forward.13} parent=31 // pred_check_branch
        %1236 = sbr.rel (%p1234) target = $region36
      $region35: #{autoencoder_forward.13} parent=31 // pred_region
        %s1237 = smul.u32 49, %s19
      $region36: #{autoencoder_forward.13} parent=31 // pred_fallthru
        _
    $region32: #{autoencoder_forward.13} parent=5 // pred_fallthru
      _
    %p1238 = scmp.le.s32.totalorder 2, %s9
    // Predicated region
    $region37: #{autoencoder_forward.13} parent=5 // pred_check
      %p1239 = pneg %p1238
    $region38: #{autoencoder_forward.13} parent=5 // pred_check_branch
      %1241 = sbr.rel (%p1239) target = $region40
    $region39: #{autoencoder_forward.13} parent=5 // pred_region
      %s1242 = ssub.s32 %s9, 2
      // Predicated region
      $region41: #{autoencoder_forward.13} parent=39 // pred_check
        %p1243 = pneg %p141
      $region42: #{autoencoder_forward.13} parent=39 // pred_check_branch
        %1245 = sbr.rel (%p1243) target = $region44
      $region43: #{autoencoder_forward.13} parent=39 // pred_region
        %s1246 = smul.u32 49, %s22
        %p1247 = scmp.lt.s32.totalorder %s1246, 195
        %s1248 = scalar_select %p1247, %s1246, 195
        %p1249 = scmp.lt.s32.totalorder %s23, 0
        %s1250 = scalar_select %p1249, %s23, 0
        %s1251 = sadd.s32 %s1250, %s1248
        %s1252 = smul.addr %s1251, 4
        %s1253 = scalar_lea.vmem %s3, %s1252
      $region44: #{autoencoder_forward.13} parent=39 // pred_fallthru
        _
    $region40: #{autoencoder_forward.13} parent=5 // pred_fallthru
      _
  $region6: #{autoencoder_forward.13} parent=0 // loop_footer
    %s13 = sadd.s32 1, %s9
  $region7: #{autoencoder_forward.13} parent=0 // loop_footer_branch
    %8 = sbr.rel target = $region3
  $region8: #{autoencoder_forward.13} parent=0 // loop_exit
    _

// kernel: autoencoder_forward.14
$region0: #{autoencoder_forward.14}
  #allocation0 [shape = 'u32[]', space=smem, size = 0x4, offset = 0x4, fixed_abs, tag = 'smem constant byte address 0x4 - core index']
  #allocation1 [shape = 'u32[144,128]{1,0:T(1,128)}', space=vmem, size = 0x12000, scoped, tag = 'internal scratch']
  %s0 = inlined_call_operand.vmem [shape: bf16[6272,128], index: 0, kind: input, shape index: {}]
  %s1 = inlined_call_operand.vmem [shape: bf16[128,64], index: 1, kind: input, shape index: {}]
  %s2 = inlined_call_operand.vmem [shape: f32[1,64], index: 2, kind: input, shape index: {}]
  %s3 = inlined_call_operand.vmem [shape: bf16[6272,64], index: 3, kind: output, shape index: {}]
  %s4 = sld [smem:[#allocation0]]
  $region45: #{autoencoder_forward.14} parent=0
    _
  %s6 = ssub.s32 1, %s4
  %s7 = scalar_select 0, %s6, %s4
  loop: start=0, step=1, limit=16
  $region2: #{autoencoder_forward.14} parent=0 // loop_pre_header
    _
  $region3: #{autoencoder_forward.14} parent=0 // loop_header
    %s9 = sphi 0, %s13
    %p10 = scmp.ge.s32.totalorder %s9, 16
    %s16 = sphi 0, %s35
    %s17 = sphi 0, %s31
    %s18 = sphi 0, %s27
    %s19 = sphi 0, %s16
    %s20 = sphi 0, %s17
    %s21 = sphi 0, %s18
    %s22 = sphi 0, %s19
    %s23 = sphi 0, %s20
    %s24 = sphi 0, %s21
    %s40 = sphi 0, %s42
    %s43 = sphi 0, %s40
    %s44 = sphi 0, %s43
    %s60 = sphi 0, %s44
    %s68 = sphi 0, %s70
    %s71 = sphi 0, %s68
    %s72 = sphi 0, %s71
    %s88 = sphi 0, %s72
    %s94 = sphi 0, %s96
    %s97 = sphi 0, %s94
    %s98 = sphi 0, %s97
    %s114 = sphi 0, %s98
    %s122 = sphi 0, %s124
    %s125 = sphi 0, %s122
    %s126 = sphi 0, %s125
    %s142 = sphi 0, %s126
  $region4: #{autoencoder_forward.14} parent=0 // loop_header_branch
    %12 = sbr.rel (%p10) target = $region8
  $region5: #{autoencoder_forward.14} parent=0 // loop_body
    %s14 = ssub.s32 %s9, 1
    %s15 = ssub.s32 %s9, 2
    %s25 = sadd.s32 1, %s18
    %p26 = scmp.ge.s32.totalorder %s25, 1
    %s27 = scalar_select %p26, 0, %s25
    %s28 = sadd.s32 1, %s17
    %s29 = scalar_select %p26, %s28, %s17
    %p30 = scmp.ge.s32.totalorder %s29, 1
    %s31 = scalar_select %p30, 0, %s29
    %s32 = sadd.s32 1, %s16
    %s33 = scalar_select %p30, %s32, %s16
    %p34 = scmp.ge.s32.totalorder %s33, 14
    %s35 = scalar_select %p34, 0, %s33
    %s36 = ssub.s32 %s16, %s35
    %s37 = ssub.s32 %s18, %s27
    %s38 = sor.u32 %s36, %s37
    %p39 = scmp.eq.s32.totalorder %s38, 0
    %s41 = sadd.s32 %s40, 1
    %s42 = scalar_select %p39, %s40, %s41
    %p45 = pneg %p39
    %p46 = scmp.eq.s32.totalorder %s9, 13
    %p47 = por %p45, %p46
    %p48 = scmp.ne.s32.totalorder %s40, %s43
    %p49 = scmp.eq.s32.totalorder %s9, 0
    %p50 = por %p48, %p49
    %p51 = scmp.ne.s32.totalorder %s40, %s43
    %p52 = scmp.eq.s32.totalorder %s14, 13
    %p53 = por %p51, %p52
    %p54 = scmp.ne.s32.totalorder %s43, %s44
    %p55 = scmp.eq.s32.totalorder %s14, 0
    %p56 = por %p54, %p55
    %p57 = scmp.ne.s32.totalorder %s43, %s44
    %p58 = scmp.eq.s32.totalorder %s15, 13
    %p59 = por %p57, %p58
    %p61 = scmp.ne.s32.totalorder %s44, %s60
    %p62 = scmp.eq.s32.totalorder %s15, 0
    %p63 = por %p61, %p62
    %s64 = ssub.s32 %s18, %s27
    %s65 = ssub.s32 %s17, %s31
    %s66 = sor.u32 %s64, %s65
    %p67 = scmp.eq.s32.totalorder %s66, 0
    %s69 = sadd.s32 %s68, 1
    %s70 = scalar_select %p67, %s68, %s69
    %p73 = pneg %p67
    %p74 = scmp.eq.s32.totalorder %s9, 13
    %p75 = por %p73, %p74
    %p76 = scmp.ne.s32.totalorder %s68, %s71
    %p77 = scmp.eq.s32.totalorder %s9, 0
    %p78 = por %p76, %p77
    %p79 = scmp.ne.s32.totalorder %s68, %s71
    %p80 = scmp.eq.s32.totalorder %s14, 13
    %p81 = por %p79, %p80
    %p82 = scmp.ne.s32.totalorder %s71, %s72
    %p83 = scmp.eq.s32.totalorder %s14, 0
    %p84 = por %p82, %p83
    %p85 = scmp.ne.s32.totalorder %s71, %s72
    %p86 = scmp.eq.s32.totalorder %s15, 13
    %p87 = por %p85, %p86
    %p89 = scmp.ne.s32.totalorder %s72, %s88
    %p90 = scmp.eq.s32.totalorder %s15, 0
    %p91 = por %p89, %p90
    %s92 = ssub.s32 %s17, %s31
    %p93 = scmp.eq.s32.totalorder %s92, 0
    %s95 = sadd.s32 %s94, 1
    %s96 = scalar_select %p93, %s94, %s95
    %p99 = pneg %p93
    %p100 = scmp.eq.s32.totalorder %s9, 13
    %p101 = por %p99, %p100
    %p102 = scmp.ne.s32.totalorder %s94, %s97
    %p103 = scmp.eq.s32.totalorder %s9, 0
    %p104 = por %p102, %p103
    %p105 = scmp.ne.s32.totalorder %s94, %s97
    %p106 = scmp.eq.s32.totalorder %s14, 13
    %p107 = por %p105, %p106
    %p108 = scmp.ne.s32.totalorder %s97, %s98
    %p109 = scmp.eq.s32.totalorder %s14, 0
    %p110 = por %p108, %p109
    %p111 = scmp.ne.s32.totalorder %s97, %s98
    %p112 = scmp.eq.s32.totalorder %s15, 13
    %p113 = por %p111, %p112
    %p115 = scmp.ne.s32.totalorder %s98, %s114
    %p116 = scmp.eq.s32.totalorder %s15, 0
    %p117 = por %p115, %p116
    %s118 = ssub.s32 %s16, %s35
    %s119 = ssub.s32 %s17, %s31
    %s120 = sor.u32 %s118, %s119
    %p121 = scmp.eq.s32.totalorder %s120, 0
    %s123 = sadd.s32 %s122, 1
    %s124 = scalar_select %p121, %s122, %s123
    %p127 = pneg %p121
    %p128 = scmp.eq.s32.totalorder %s9, 13
    %p129 = por %p127, %p128
    %p130 = scmp.ne.s32.totalorder %s122, %s125
    %p131 = scmp.eq.s32.totalorder %s9, 0
    %p132 = por %p130, %p131
    %p133 = scmp.ne.s32.totalorder %s122, %s125
    %p134 = scmp.eq.s32.totalorder %s14, 13
    %p135 = por %p133, %p134
    %p136 = scmp.ne.s32.totalorder %s125, %s126
    %p137 = scmp.eq.s32.totalorder %s14, 0
    %p138 = por %p136, %p137
    %p139 = scmp.ne.s32.totalorder %s125, %s126
    %p140 = scmp.eq.s32.totalorder %s15, 13
    %p141 = por %p139, %p140
    %p143 = scmp.ne.s32.totalorder %s126, %s142
    %p144 = scmp.eq.s32.totalorder %s15, 0
    %p145 = por %p143, %p144
    %p146 = scmp.le.s32.totalorder 1, %s9
    %p147 = scmp.lt.s32.totalorder %s9, 15
    %p148 = pnand %p146, %p147
    %p149 = pneg %p148
    // Predicated region
    $region9: #{autoencoder_forward.14} parent=5 // pred_check
      _
    $region10: #{autoencoder_forward.14} parent=5 // pred_check_branch
      %151 = sbr.rel (%p148) target = $region12
    $region11: #{autoencoder_forward.14} parent=5 // pred_region
      %s152 = ssub.s32 %s9, 1
      // Predicated region
      $region13: #{autoencoder_forward.14} parent=11 // pred_check
        %p153 = pneg %p84
      $region14: #{autoencoder_forward.14} parent=11 // pred_check_branch
        %155 = sbr.rel (%p153) target = $region16
      $region15: #{autoencoder_forward.14} parent=11 // pred_region
        %s156 = smul.u32 16, %s21
        %p157 = scmp.lt.s32.totalorder %s156, 15
        %s158 = scalar_select %p157, %s156, 15
        %p159 = scmp.lt.s32.totalorder %s20, 0
        %s160 = scalar_select %p159, %s20, 0
        %s161 = sadd.s32 %s160, %s158
        %s162 = smul.addr %s161, 4
        %s163 = scalar_lea.vmem %s1, %s162
        %s164 = smul.u32 16, %s21
      $region16: #{autoencoder_forward.14} parent=11 // pred_fallthru
        _
      // Predicated region
      $region17: #{autoencoder_forward.14} parent=11 // pred_check
        %p165 = pneg %p110
      $region18: #{autoencoder_forward.14} parent=11 // pred_check_branch
        %167 = sbr.rel (%p165) target = $region20
      $region19: #{autoencoder_forward.14} parent=11 // pred_region
        %p168 = scmp.lt.s32.totalorder %s20, 0
        %s169 = scalar_select %p168, %s20, 0
        %s170 = scalar_lea.vmem %s2, %s169
      $region20: #{autoencoder_forward.14} parent=11 // pred_fallthru
        _
    $region12: #{autoencoder_forward.14} parent=5 // pred_fallthru
      _
    %p171 = scmp.lt.s32.totalorder %s9, 14
    // Predicated region
    $region21: #{autoencoder_forward.14} parent=5 // pred_check
      %p172 = pneg %p171
    $region22: #{autoencoder_forward.14} parent=5 // pred_check_branch
      %174 = sbr.rel (%p172) target = $region24
    $region23: #{autoencoder_forward.14} parent=5 // pred_region
      // Predicated region
      $region25: #{autoencoder_forward.14} parent=23 // pred_check
        %p175 = pneg %p50
      $region26: #{autoencoder_forward.14} parent=23 // pred_check_branch
        %177 = sbr.rel (%p175) target = $region28
      $region27: #{autoencoder_forward.14} parent=23 // pred_region
        %s178 = smul.u32 56, %s16
        %p179 = scmp.lt.s32.totalorder %s178, 783
        %s180 = scalar_select %p179, %s178, 783
        %p181 = scmp.lt.s32.totalorder %s18, 0
        %s182 = scalar_select %p181, %s18, 0
        %s183 = sadd.s32 %s182, %s180
        %s184 = smul.addr %s183, 4
        %s185 = scalar_lea.vmem %s0, %s184
        %s186 = smul.u32 56, %s16
      $region28: #{autoencoder_forward.14} parent=23 // pred_fallthru
        _
    $region24: #{autoencoder_forward.14} parent=5 // pred_fallthru
      _
    %p187 = scmp.le.s32.totalorder 1, %s9
    %p188 = scmp.lt.s32.totalorder %s9, 15
    %p189 = pnand %p187, %p188
    %p190 = pneg %p189
    // Predicated region
    $region29: #{autoencoder_forward.14} parent=5 // pred_check
      _
    $region30: #{autoencoder_forward.14} parent=5 // pred_check_branch
      %192 = sbr.rel (%p189) target = $region32
    $region31: #{autoencoder_forward.14} parent=5 // pred_region
      %s193 = ssub.s32 %s9, 1
      %s194 = smul.u32 56, %s19
      %p195 = scmp.lt.s32.totalorder %s194, 783
      %s196 = scalar_select %p195, %s194, 783
      %p197 = scmp.lt.s32.totalorder %s21, 0
      %s198 = scalar_select %p197, %s21, 0
      %s199 = sadd.s32 %s198, %s196
      %s200 = smul.addr %s199, 4
      %s201 = scalar_lea.vmem %s0, %s200
      %p202 = pneg %p56
      %p203 = pneg %p53
      %s204 = smul.u32 16, %s21
      %p205 = scmp.lt.s32.totalorder %s204, 15
      %s206 = scalar_select %p205, %s204, 15
      %p207 = scmp.lt.s32.totalorder %s20, 0
      %s208 = scalar_select %p207, %s20, 0
      %s209 = sadd.s32 %s208, %s206
      %s210 = smul.addr %s209, 4
      %s211 = scalar_lea.vmem %s1, %s210
      %p212 = pneg %p84
      %p213 = pneg %p81
      %p214 = scmp.lt.s32.totalorder %s20, 0
      %s215 = scalar_select %p214, %s20, 0
      %s216 = scalar_lea.vmem %s2, %s215
      %p217 = pneg %p110
      %p218 = pneg %p107
      %p219 = pneg %p138
      %p220 = pneg %p135
      %s221 = smul.u32 56, %s19
      %p222 = scmp.lt.s32.totalorder %s221, 783
      %s223 = scalar_select %p222, %s221, 783
      %p224 = scmp.lt.s32.totalorder %s20, 0
      %s225 = scalar_select %p224, %s20, 0
      %s226 = sadd.s32 %s225, %s223
      %s227 = smul.addr %s226, 4
      %s228 = scalar_lea.vmem %s3, %s227
      %s229 = smul.u32 56, %s19
      %p230 = scmp.lt.s32.totalorder %s229, 783
      %s231 = scalar_select %p230, %s229, 783
      %p232 = scmp.lt.s32.totalorder %s21, 0
      %s233 = scalar_select %p232, %s21, 0
      %s234 = sadd.s32 %s233, %s231
      %s235 = smul.addr %s234, 4
      %s236 = scalar_lea.vmem %s0, %s235
      %s237 = smul.u32 56, %s19
      %s238 = smul.u32 16, %s21
      %p239 = scmp.lt.s32.totalorder %s238, 15
      %s240 = scalar_select %p239, %s238, 15
      %p241 = scmp.lt.s32.totalorder %s20, 0
      %s242 = scalar_select %p241, %s20, 0
      %s243 = sadd.s32 %s242, %s240
      %s244 = smul.addr %s243, 4
      %s245 = scalar_lea.vmem %s1, %s244
      %s246 = smul.u32 16, %s21
      %p247 = scmp.lt.s32.totalorder %s20, 0
      %s248 = scalar_select %p247, %s20, 0
      %s249 = scalar_lea.vmem %s2, %s248
      %s250 = smul.u32 56, %s19
      %p251 = scmp.lt.s32.totalorder %s250, 783
      %s252 = scalar_select %p251, %s250, 783
      %p253 = scmp.lt.s32.totalorder %s20, 0
      %s254 = scalar_select %p253, %s20, 0
      %s255 = sadd.s32 %s254, %s252
      %s256 = smul.addr %s255, 4
      %s257 = scalar_lea.vmem %s3, %s256
      %s258 = smul.u32 56, %s19
      %v260 = vld [vmem:[%s236] sm:$0xf]
      %v261 = vld [vmem:[%s236 + $0x4] sm:$0xf]
      %v262 = vld [vmem:[%s236 + $0x8] sm:$0xf]
      %v263 = vld [vmem:[%s236 + $0xc] sm:$0xf]
      %v264 = vld [vmem:[%s236 + $0x10] sm:$0xf]
      %v265 = vld [vmem:[%s236 + $0x14] sm:$0xf]
      %v266 = vld [vmem:[%s236 + $0x18] sm:$0xf]
      %v267 = vld [vmem:[%s236 + $0x1c] sm:$0xf]
      %v268 = vld [vmem:[%s236 + $0x20] sm:$0xf]
      %v269 = vld [vmem:[%s236 + $0x24] sm:$0xf]
      %v270 = vld [vmem:[%s236 + $0x28] sm:$0xf]
      %v271 = vld [vmem:[%s236 + $0x2c] sm:$0xf]
      %v272 = vld [vmem:[%s236 + $0x30] sm:$0xf]
      %v273 = vld [vmem:[%s236 + $0x34] sm:$0xf]
      %v274 = vld [vmem:[%s236 + $0x38] sm:$0xf]
      %v275 = vld [vmem:[%s236 + $0x3c] sm:$0xf]
      %v276 = vld [vmem:[%s236 + $0x40] sm:$0xf]
      %v277 = vld [vmem:[%s236 + $0x44] sm:$0xf]
      %v278 = vld [vmem:[%s236 + $0x48] sm:$0xf]
      %v279 = vld [vmem:[%s236 + $0x4c] sm:$0xf]
      %v280 = vld [vmem:[%s236 + $0x50] sm:$0xf]
      %v281 = vld [vmem:[%s236 + $0x54] sm:$0xf]
      %v282 = vld [vmem:[%s236 + $0x58] sm:$0xf]
      %v283 = vld [vmem:[%s236 + $0x5c] sm:$0xf]
      %v284 = vld [vmem:[%s236 + $0x60] sm:$0xf]
      %v285 = vld [vmem:[%s236 + $0x64] sm:$0xf]
      %v286 = vld [vmem:[%s236 + $0x68] sm:$0xf]
      %v287 = vld [vmem:[%s236 + $0x6c] sm:$0xf]
      %v288 = vld [vmem:[%s236 + $0x70] sm:$0xf]
      %v289 = vld [vmem:[%s236 + $0x74] sm:$0xf]
      %v290 = vld [vmem:[%s236 + $0x78] sm:$0xf]
      %v291 = vld [vmem:[%s236 + $0x7c] sm:$0xf]
      %v292 = vld [vmem:[%s236 + $0x80] sm:$0xf]
      %v293 = vld [vmem:[%s236 + $0x84] sm:$0xf]
      %v294 = vld [vmem:[%s236 + $0x88] sm:$0xf]
      %v295 = vld [vmem:[%s236 + $0x8c] sm:$0xf]
      %v296 = vld [vmem:[%s236 + $0x90] sm:$0xf]
      %v297 = vld [vmem:[%s236 + $0x94] sm:$0xf]
      %v298 = vld [vmem:[%s236 + $0x98] sm:$0xf]
      %v299 = vld [vmem:[%s236 + $0x9c] sm:$0xf]
      %v300 = vld [vmem:[%s236 + $0xa0] sm:$0xf]
      %v301 = vld [vmem:[%s236 + $0xa4] sm:$0xf]
      %v302 = vld [vmem:[%s236 + $0xa8] sm:$0xf]
      %v303 = vld [vmem:[%s236 + $0xac] sm:$0xf]
      %v304 = vld [vmem:[%s236 + $0xb0] sm:$0xf]
      %v305 = vld [vmem:[%s236 + $0xb4] sm:$0xf]
      %v306 = vld [vmem:[%s236 + $0xb8] sm:$0xf]
      %v307 = vld [vmem:[%s236 + $0xbc] sm:$0xf]
      %v308 = vld [vmem:[%s236 + $0xc0] sm:$0xf]
      %v309 = vld [vmem:[%s236 + $0xc4] sm:$0xf]
      %v310 = vld [vmem:[%s236 + $0xc8] sm:$0xf]
      %v311 = vld [vmem:[%s236 + $0xcc] sm:$0xf]
      %v312 = vld [vmem:[%s236 + $0xd0] sm:$0xf]
      %v313 = vld [vmem:[%s236 + $0xd4] sm:$0xf]
      %v314 = vld [vmem:[%s236 + $0xd8] sm:$0xf]
      %v315 = vld [vmem:[%s236 + $0xdc] sm:$0xf]
      %v316 = vld [vmem:[%s245] sm:$0xf]
      %v317 = vld [vmem:[%s245 + $0x4] sm:$0xf]
      %v318 = vld [vmem:[%s245 + $0x8] sm:$0xf]
      %v319 = vld [vmem:[%s245 + $0xc] sm:$0xf]
      %v320 = vld [vmem:[%s245 + $0x10] sm:$0xf]
      %v321 = vld [vmem:[%s245 + $0x14] sm:$0xf]
      %v322 = vld [vmem:[%s245 + $0x18] sm:$0xf]
      %v323 = vld [vmem:[%s245 + $0x1c] sm:$0xf]
      %v324 = vld [vmem:[%s245 + $0x20] sm:$0xf]
      %v325 = vld [vmem:[%s245 + $0x24] sm:$0xf]
      %v326 = vld [vmem:[%s245 + $0x28] sm:$0xf]
      %v327 = vld [vmem:[%s245 + $0x2c] sm:$0xf]
      %v328 = vld [vmem:[%s245 + $0x30] sm:$0xf]
      %v329 = vld [vmem:[%s245 + $0x34] sm:$0xf]
      %v330 = vld [vmem:[%s245 + $0x38] sm:$0xf]
      %v331 = vld [vmem:[%s245 + $0x3c] sm:$0xf]
      %v332 = vld [vmem:[%s249] sm:$0x1]
      %v334 = vlaneseq
      %v335 = vshrl.u32 %v334, 7
      %v336 = vsub.s32 0, %v335
      %v337 = vrot.slane %v332, %v336
      %v395 = vunpack.c.l.b16 %v260
      %v396 = vunpack.c.l.b16 %v261
      %v397 = vunpack.c.l.b16 %v262
      %v398 = vunpack.c.l.b16 %v263
      %v399 = vunpack.c.l.b16 %v264
      %v400 = vunpack.c.l.b16 %v265
      %v401 = vunpack.c.l.b16 %v266
      %v402 = vunpack.c.l.b16 %v267
      %v403 = vunpack.c.l.b16 %v268
      %v404 = vunpack.c.l.b16 %v269
      %v405 = vunpack.c.l.b16 %v270
      %v406 = vunpack.c.l.b16 %v271
      %v407 = vunpack.c.l.b16 %v272
      %v408 = vunpack.c.l.b16 %v273
      %v409 = vunpack.c.l.b16 %v274
      %v410 = vunpack.c.l.b16 %v275
      %v411 = vunpack.c.l.b16 %v276
      %v412 = vunpack.c.l.b16 %v277
      %v413 = vunpack.c.l.b16 %v278
      %v414 = vunpack.c.l.b16 %v279
      %v415 = vunpack.c.l.b16 %v280
      %v416 = vunpack.c.l.b16 %v281
      %v417 = vunpack.c.l.b16 %v282
      %v418 = vunpack.c.l.b16 %v283
      %v419 = vunpack.c.l.b16 %v284
      %v420 = vunpack.c.l.b16 %v285
      %v421 = vunpack.c.l.b16 %v286
      %v422 = vunpack.c.l.b16 %v287
      %v423 = vunpack.c.l.b16 %v288
      %v424 = vunpack.c.l.b16 %v289
      %v425 = vunpack.c.l.b16 %v290
      %v426 = vunpack.c.l.b16 %v291
      %v427 = vunpack.c.l.b16 %v292
      %v428 = vunpack.c.l.b16 %v293
      %v429 = vunpack.c.l.b16 %v294
      %v430 = vunpack.c.l.b16 %v295
      %v431 = vunpack.c.l.b16 %v296
      %v432 = vunpack.c.l.b16 %v297
      %v433 = vunpack.c.l.b16 %v298
      %v434 = vunpack.c.l.b16 %v299
      %v435 = vunpack.c.l.b16 %v300
      %v436 = vunpack.c.l.b16 %v301
      %v437 = vunpack.c.l.b16 %v302
      %v438 = vunpack.c.l.b16 %v303
      %v439 = vunpack.c.l.b16 %v304
      %v440 = vunpack.c.l.b16 %v305
      %v441 = vunpack.c.l.b16 %v306
      %v442 = vunpack.c.l.b16 %v307
      %v443 = vunpack.c.l.b16 %v308
      %v444 = vunpack.c.l.b16 %v309
      %v445 = vunpack.c.l.b16 %v310
      %v446 = vunpack.c.l.b16 %v311
      %v447 = vunpack.c.l.b16 %v312
      %v448 = vunpack.c.l.b16 %v313
      %v449 = vunpack.c.l.b16 %v314
      %v450 = vunpack.c.l.b16 %v315
      %v451 = vpack.c.b16 %v396, %v395
      %v452 = vpack.c.b16 %v398, %v397
      %v453 = vpack.c.b16 %v400, %v399
      %v454 = vpack.c.b16 %v402, %v401
      %v455 = vpack.c.b16 %v404, %v403
      %v456 = vpack.c.b16 %v406, %v405
      %v457 = vpack.c.b16 %v408, %v407
      %v458 = vpack.c.b16 %v410, %v409
      %v459 = vpack.c.b16 %v412, %v411
      %v460 = vpack.c.b16 %v414, %v413
      %v461 = vpack.c.b16 %v416, %v415
      %v462 = vpack.c.b16 %v418, %v417
      %v463 = vpack.c.b16 %v420, %v419
      %v464 = vpack.c.b16 %v422, %v421
      %v465 = vpack.c.b16 %v424, %v423
      %v466 = vpack.c.b16 %v426, %v425
      %v467 = vpack.c.b16 %v428, %v427
      %v468 = vpack.c.b16 %v430, %v429
      %v469 = vpack.c.b16 %v432, %v431
      %v470 = vpack.c.b16 %v434, %v433
      %v471 = vpack.c.b16 %v436, %v435
      %v472 = vpack.c.b16 %v438, %v437
      %v473 = vpack.c.b16 %v440, %v439
      %v474 = vpack.c.b16 %v442, %v441
      %v475 = vpack.c.b16 %v444, %v443
      %v476 = vpack.c.b16 %v446, %v445
      %v477 = vpack.c.b16 %v448, %v447
      %v478 = vpack.c.b16 %v450, %v449
      %v523 = vunpack.c.l.b16 %v316
      %v524 = vunpack.c.l.b16 %v317
      %v525 = vunpack.c.l.b16 %v318
      %v526 = vunpack.c.l.b16 %v319
      %v527 = vunpack.c.l.b16 %v320
      %v528 = vunpack.c.l.b16 %v321
      %v529 = vunpack.c.l.b16 %v322
      %v530 = vunpack.c.l.b16 %v323
      %v531 = vunpack.c.l.b16 %v324
      %v532 = vunpack.c.l.b16 %v325
      %v533 = vunpack.c.l.b16 %v326
      %v534 = vunpack.c.l.b16 %v327
      %v535 = vunpack.c.l.b16 %v328
      %v536 = vunpack.c.l.b16 %v329
      %v537 = vunpack.c.l.b16 %v330
      %v538 = vunpack.c.l.b16 %v331
      %v539 = vpack.c.b16 %v524, %v523
      %v540 = vpack.c.b16 %v526, %v525
      %v541 = vpack.c.b16 %v528, %v527
      %v542 = vpack.c.b16 %v530, %v529
      %v543 = vpack.c.b16 %v532, %v531
      %v544 = vpack.c.b16 %v534, %v533
      %v545 = vpack.c.b16 %v536, %v535
      %v546 = vpack.c.b16 %v538, %v537
      %555 = vmatprep.subr.bf16.mxu0 0
      %556 = vmatpush1.bf16.msra.mxu0 %v539
      %557 = vmatprep.subr.bf16.mxu0 0
      %558 = vmatpush1.bf16.msra.mxu0 %v540
      %559 = vmatprep.subr.bf16.mxu0 0
      %560 = vmatpush1.bf16.msra.mxu0 %v541
      %561 = vmatprep.subr.bf16.mxu0 0
      %562 = vmatpush1.bf16.msra.mxu0 %v542
      %563 = vmatprep.subr.bf16.mxu0 0
      %564 = vmatpush1.bf16.msra.mxu0 %v543
      %565 = vmatprep.subr.bf16.mxu0 0
      %566 = vmatpush1.bf16.msra.mxu0 %v544
      %567 = vmatprep.subr.bf16.mxu0 0
      %568 = vmatpush1.bf16.msra.mxu0 %v545
      %569 = vmatprep.subr.bf16.mxu0 0
      %570 = vmatpush1.bf16.msra.mxu0 %v546
      %571 = vmatprep.subr.bf16.mxu0 0
      %572 = vmatpush1.bf16.msra.mxu0 0
      %573 = vmatprep.subr.bf16.mxu0 0
      %574 = vmatpush1.bf16.msra.mxu0 0
      %575 = vmatprep.subr.bf16.mxu0 0
      %576 = vmatpush1.bf16.msra.mxu0 0
      %577 = vmatprep.subr.bf16.mxu0 0
      %578 = vmatpush1.bf16.msra.mxu0 0
      %579 = vmatprep.subr.bf16.mxu0 0
      %580 = vmatpush1.bf16.msra.mxu0 0
      %581 = vmatprep.subr.bf16.mxu0 0
      %582 = vmatpush1.bf16.msra.mxu0 0
      %583 = vmatprep.subr.bf16.mxu0 0
      %584 = vmatpush1.bf16.msra.mxu0 0
      %585 = vmatprep.subr.bf16.mxu0 0
      %586 = vmatpush1.bf16.msra.mxu0 0
      %587 = vmatprep.mubr.bf16.mxu0 0
      %588 = vmatmul.mubr.bf16.gmra.mrb[0].mxu0 %v451
      %v589 = vpop.f32.mrb[0].mxu0
      %v590 = vadd.f32 %v337, %v589
      %v591 = vpop.f32.mrb[0].mxu0
      %v592 = vpop.f32.mrb[0].mxu0
      %v593 = vadd.f32 %v337, %v592
      %v594 = vpop.f32.mrb[0].mxu0
      %595 = vmatprep.mubr.bf16.mxu0 0
      %596 = vmatmul.mubr.bf16.gmra.mrb[0].mxu0 %v452
      %v597 = vpop.f32.mrb[0].mxu0
      %v598 = vadd.f32 %v337, %v597
      %v599 = vpop.f32.mrb[0].mxu0
      %v600 = vpop.f32.mrb[0].mxu0
      %v601 = vadd.f32 %v337, %v600
      %v602 = vpop.f32.mrb[0].mxu0
      %603 = vmatprep.mubr.bf16.mxu0 0
      %604 = vmatmul.mubr.bf16.gmra.mrb[0].mxu0 %v453
      %v605 = vpop.f32.mrb[0].mxu0
      %v606 = vadd.f32 %v337, %v605
      %v607 = vpop.f32.mrb[0].mxu0
      %v608 = vpop.f32.mrb[0].mxu0
      %v609 = vadd.f32 %v337, %v608
      %v610 = vpop.f32.mrb[0].mxu0
      %611 = vmatprep.mubr.bf16.mxu0 0
      %612 = vmatmul.mubr.bf16.gmra.mrb[0].mxu0 %v454
      %v613 = vpop.f32.mrb[0].mxu0
      %v614 = vadd.f32 %v337, %v613
      %v615 = vpop.f32.mrb[0].mxu0
      %v616 = vpop.f32.mrb[0].mxu0
      %v617 = vadd.f32 %v337, %v616
      %v618 = vpop.f32.mrb[0].mxu0
      %619 = vmatprep.mubr.bf16.mxu0 0
      %620 = vmatmul.mubr.bf16.gmra.mrb[0].mxu0 %v455
      %v621 = vpop.f32.mrb[0].mxu0
      %v622 = vadd.f32 %v337, %v621
      %v623 = vpop.f32.mrb[0].mxu0
      %v624 = vpop.f32.mrb[0].mxu0
      %v625 = vadd.f32 %v337, %v624
      %v626 = vpop.f32.mrb[0].mxu0
      %627 = vmatprep.mubr.bf16.mxu0 0
      %628 = vmatmul.mubr.bf16.gmra.mrb[0].mxu0 %v456
      %v629 = vpop.f32.mrb[0].mxu0
      %v630 = vadd.f32 %v337, %v629
      %v631 = vpop.f32.mrb[0].mxu0
      %v632 = vpop.f32.mrb[0].mxu0
      %v633 = vadd.f32 %v337, %v632
      %v634 = vpop.f32.mrb[0].mxu0
      %635 = vmatprep.mubr.bf16.mxu0 0
      %636 = vmatmul.mubr.bf16.gmra.mrb[0].mxu0 %v457
      %v637 = vpop.f32.mrb[0].mxu0
      %v638 = vadd.f32 %v337, %v637
      %v639 = vpop.f32.mrb[0].mxu0
      %v640 = vpop.f32.mrb[0].mxu0
      %v641 = vadd.f32 %v337, %v640
      %v642 = vpop.f32.mrb[0].mxu0
      %643 = vmatprep.mubr.bf16.mxu0 0
      %644 = vmatmul.mubr.bf16.gmra.mrb[0].mxu0 %v458
      %v645 = vpop.f32.mrb[0].mxu0
      %v646 = vadd.f32 %v337, %v645
      %v647 = vpop.f32.mrb[0].mxu0
      %v648 = vpop.f32.mrb[0].mxu0
      %v649 = vadd.f32 %v337, %v648
      %v650 = vpop.f32.mrb[0].mxu0
      %651 = vmatprep.mubr.bf16.mxu0 0
      %652 = vmatmul.mubr.bf16.gmra.mrb[0].mxu0 %v459
      %v653 = vpop.f32.mrb[0].mxu0
      %v654 = vadd.f32 %v337, %v653
      %v655 = vpop.f32.mrb[0].mxu0
      %v656 = vpop.f32.mrb[0].mxu0
      %v657 = vadd.f32 %v337, %v656
      %v658 = vpop.f32.mrb[0].mxu0
      %659 = vmatprep.mubr.bf16.mxu0 0
      %660 = vmatmul.mubr.bf16.gmra.mrb[0].mxu0 %v460
      %v661 = vpop.f32.mrb[0].mxu0
      %v662 = vadd.f32 %v337, %v661
      %v663 = vpop.f32.mrb[0].mxu0
      %v664 = vpop.f32.mrb[0].mxu0
      %v665 = vadd.f32 %v337, %v664
      %v666 = vpop.f32.mrb[0].mxu0
      %667 = vmatprep.mubr.bf16.mxu0 0
      %668 = vmatmul.mubr.bf16.gmra.mrb[0].mxu0 %v461
      %v669 = vpop.f32.mrb[0].mxu0
      %v670 = vadd.f32 %v337, %v669
      %v671 = vpop.f32.mrb[0].mxu0
      %v672 = vpop.f32.mrb[0].mxu0
      %v673 = vadd.f32 %v337, %v672
      %v674 = vpop.f32.mrb[0].mxu0
      %675 = vmatprep.mubr.bf16.mxu0 0
      %676 = vmatmul.mubr.bf16.gmra.mrb[0].mxu0 %v462
      %v677 = vpop.f32.mrb[0].mxu0
      %v678 = vadd.f32 %v337, %v677
      %v679 = vpop.f32.mrb[0].mxu0
      %v680 = vpop.f32.mrb[0].mxu0
      %v681 = vadd.f32 %v337, %v680
      %v682 = vpop.f32.mrb[0].mxu0
      %683 = vmatprep.mubr.bf16.mxu0 0
      %684 = vmatmul.mubr.bf16.gmra.mrb[0].mxu0 %v463
      %v685 = vpop.f32.mrb[0].mxu0
      %v686 = vadd.f32 %v337, %v685
      %v687 = vpop.f32.mrb[0].mxu0
      %v688 = vpop.f32.mrb[0].mxu0
      %v689 = vadd.f32 %v337, %v688
      %v690 = vpop.f32.mrb[0].mxu0
      %691 = vmatprep.mubr.bf16.mxu0 0
      %692 = vmatmul.mubr.bf16.gmra.mrb[0].mxu0 %v464
      %v693 = vpop.f32.mrb[0].mxu0
      %v694 = vadd.f32 %v337, %v693
      %v695 = vpop.f32.mrb[0].mxu0
      %v696 = vpop.f32.mrb[0].mxu0
      %v697 = vadd.f32 %v337, %v696
      %v698 = vpop.f32.mrb[0].mxu0
      %699 = vmatprep.mubr.bf16.mxu0 0
      %700 = vmatmul.mubr.bf16.gmra.mrb[0].mxu0 %v465
      %v701 = vpop.f32.mrb[0].mxu0
      %v702 = vadd.f32 %v337, %v701
      %v703 = vpop.f32.mrb[0].mxu0
      %v704 = vpop.f32.mrb[0].mxu0
      %v705 = vadd.f32 %v337, %v704
      %v706 = vpop.f32.mrb[0].mxu0
      %707 = vmatprep.mubr.bf16.mxu0 0
      %708 = vmatmul.mubr.bf16.gmra.mrb[0].mxu0 %v466
      %v709 = vpop.f32.mrb[0].mxu0
      %v710 = vadd.f32 %v337, %v709
      %v711 = vpop.f32.mrb[0].mxu0
      %v712 = vpop.f32.mrb[0].mxu0
      %v713 = vadd.f32 %v337, %v712
      %v714 = vpop.f32.mrb[0].mxu0
      %715 = vmatprep.mubr.bf16.mxu0 0
      %716 = vmatmul.mubr.bf16.gmra.mrb[0].mxu0 %v467
      %v717 = vpop.f32.mrb[0].mxu0
      %v718 = vadd.f32 %v337, %v717
      %v719 = vpop.f32.mrb[0].mxu0
      %v720 = vpop.f32.mrb[0].mxu0
      %v721 = vadd.f32 %v337, %v720
      %v722 = vpop.f32.mrb[0].mxu0
      %723 = vmatprep.mubr.bf16.mxu0 0
      %724 = vmatmul.mubr.bf16.gmra.mrb[0].mxu0 %v468
      %v725 = vpop.f32.mrb[0].mxu0
      %v726 = vadd.f32 %v337, %v725
      %v727 = vpop.f32.mrb[0].mxu0
      %v728 = vpop.f32.mrb[0].mxu0
      %v729 = vadd.f32 %v337, %v728
      %v730 = vpop.f32.mrb[0].mxu0
      %731 = vmatprep.mubr.bf16.mxu0 0
      %732 = vmatmul.mubr.bf16.gmra.mrb[0].mxu0 %v469
      %v733 = vpop.f32.mrb[0].mxu0
      %v734 = vadd.f32 %v337, %v733
      %v735 = vpop.f32.mrb[0].mxu0
      %v736 = vpop.f32.mrb[0].mxu0
      %v737 = vadd.f32 %v337, %v736
      %v738 = vpop.f32.mrb[0].mxu0
      %739 = vmatprep.mubr.bf16.mxu0 0
      %740 = vmatmul.mubr.bf16.gmra.mrb[0].mxu0 %v470
      %v741 = vpop.f32.mrb[0].mxu0
      %v742 = vadd.f32 %v337, %v741
      %v743 = vpop.f32.mrb[0].mxu0
      %v744 = vpop.f32.mrb[0].mxu0
      %v745 = vadd.f32 %v337, %v744
      %v746 = vpop.f32.mrb[0].mxu0
      %747 = vmatprep.mubr.bf16.mxu0 0
      %748 = vmatmul.mubr.bf16.gmra.mrb[0].mxu0 %v471
      %v749 = vpop.f32.mrb[0].mxu0
      %v750 = vadd.f32 %v337, %v749
      %v751 = vpop.f32.mrb[0].mxu0
      %v752 = vpop.f32.mrb[0].mxu0
      %v753 = vadd.f32 %v337, %v752
      %v754 = vpop.f32.mrb[0].mxu0
      %755 = vmatprep.mubr.bf16.mxu0 0
      %756 = vmatmul.mubr.bf16.gmra.mrb[0].mxu0 %v472
      %v757 = vpop.f32.mrb[0].mxu0
      %v758 = vadd.f32 %v337, %v757
      %v759 = vpop.f32.mrb[0].mxu0
      %v760 = vpop.f32.mrb[0].mxu0
      %v761 = vadd.f32 %v337, %v760
      %v762 = vpop.f32.mrb[0].mxu0
      %763 = vmatprep.mubr.bf16.mxu0 0
      %764 = vmatmul.mubr.bf16.gmra.mrb[0].mxu0 %v473
      %v765 = vpop.f32.mrb[0].mxu0
      %v766 = vadd.f32 %v337, %v765
      %v767 = vpop.f32.mrb[0].mxu0
      %v768 = vpop.f32.mrb[0].mxu0
      %v769 = vadd.f32 %v337, %v768
      %v770 = vpop.f32.mrb[0].mxu0
      %771 = vmatprep.mubr.bf16.mxu0 0
      %772 = vmatmul.mubr.bf16.gmra.mrb[0].mxu0 %v474
      %v773 = vpop.f32.mrb[0].mxu0
      %v774 = vadd.f32 %v337, %v773
      %v775 = vpop.f32.mrb[0].mxu0
      %v776 = vpop.f32.mrb[0].mxu0
      %v777 = vadd.f32 %v337, %v776
      %v778 = vpop.f32.mrb[0].mxu0
      %779 = vmatprep.mubr.bf16.mxu0 0
      %780 = vmatmul.mubr.bf16.gmra.mrb[0].mxu0 %v475
      %v781 = vpop.f32.mrb[0].mxu0
      %v782 = vadd.f32 %v337, %v781
      %v783 = vpop.f32.mrb[0].mxu0
      %v784 = vpop.f32.mrb[0].mxu0
      %v785 = vadd.f32 %v337, %v784
      %v786 = vpop.f32.mrb[0].mxu0
      %787 = vmatprep.mubr.bf16.mxu0 0
      %788 = vmatmul.mubr.bf16.gmra.mrb[0].mxu0 %v476
      %v789 = vpop.f32.mrb[0].mxu0
      %v790 = vadd.f32 %v337, %v789
      %v791 = vpop.f32.mrb[0].mxu0
      %v792 = vpop.f32.mrb[0].mxu0
      %v793 = vadd.f32 %v337, %v792
      %v794 = vpop.f32.mrb[0].mxu0
      %795 = vmatprep.mubr.bf16.mxu0 0
      %796 = vmatmul.mubr.bf16.gmra.mrb[0].mxu0 %v477
      %v797 = vpop.f32.mrb[0].mxu0
      %v798 = vadd.f32 %v337, %v797
      %v799 = vpop.f32.mrb[0].mxu0
      %v800 = vpop.f32.mrb[0].mxu0
      %v801 = vadd.f32 %v337, %v800
      %v802 = vpop.f32.mrb[0].mxu0
      %803 = vmatprep.mubr.bf16.mxu0 0
      %804 = vmatmul.mubr.bf16.gmra.mrb[0].mxu0 %v478
      %v805 = vpop.f32.mrb[0].mxu0
      %v806 = vadd.f32 %v337, %v805
      %v807 = vpop.f32.mrb[0].mxu0
      %v808 = vpop.f32.mrb[0].mxu0
      %v809 = vadd.f32 %v337, %v808
      %v810 = vpop.f32.mrb[0].mxu0
      %811 = vdwg.mxu0
      %v812 = vmax.f32 %v590, 0.0
      %v813 = vmax.f32 %v593, 0.0
      %v814 = vmax.f32 %v598, 0.0
      %v815 = vmax.f32 %v601, 0.0
      %v816 = vmax.f32 %v606, 0.0
      %v817 = vmax.f32 %v609, 0.0
      %v818 = vmax.f32 %v614, 0.0
      %v819 = vmax.f32 %v617, 0.0
      %v820 = vmax.f32 %v622, 0.0
      %v821 = vmax.f32 %v625, 0.0
      %v822 = vmax.f32 %v630, 0.0
      %v823 = vmax.f32 %v633, 0.0
      %v824 = vmax.f32 %v638, 0.0
      %v825 = vmax.f32 %v641, 0.0
      %v826 = vmax.f32 %v646, 0.0
      %v827 = vmax.f32 %v649, 0.0
      %v828 = vmax.f32 %v654, 0.0
      %v829 = vmax.f32 %v657, 0.0
      %v830 = vmax.f32 %v662, 0.0
      %v831 = vmax.f32 %v665, 0.0
      %v832 = vmax.f32 %v670, 0.0
      %v833 = vmax.f32 %v673, 0.0
      %v834 = vmax.f32 %v678, 0.0
      %v835 = vmax.f32 %v681, 0.0
      %v836 = vmax.f32 %v686, 0.0
      %v837 = vmax.f32 %v689, 0.0
      %v838 = vmax.f32 %v694, 0.0
      %v839 = vmax.f32 %v697, 0.0
      %v840 = vmax.f32 %v702, 0.0
      %v841 = vmax.f32 %v705, 0.0
      %v842 = vmax.f32 %v710, 0.0
      %v843 = vmax.f32 %v713, 0.0
      %v844 = vmax.f32 %v718, 0.0
      %v845 = vmax.f32 %v721, 0.0
      %v846 = vmax.f32 %v726, 0.0
      %v847 = vmax.f32 %v729, 0.0
      %v848 = vmax.f32 %v734, 0.0
      %v849 = vmax.f32 %v737, 0.0
      %v850 = vmax.f32 %v742, 0.0
      %v851 = vmax.f32 %v745, 0.0
      %v852 = vmax.f32 %v750, 0.0
      %v853 = vmax.f32 %v753, 0.0
      %v854 = vmax.f32 %v758, 0.0
      %v855 = vmax.f32 %v761, 0.0
      %v856 = vmax.f32 %v766, 0.0
      %v857 = vmax.f32 %v769, 0.0
      %v858 = vmax.f32 %v774, 0.0
      %v859 = vmax.f32 %v777, 0.0
      %v860 = vmax.f32 %v782, 0.0
      %v861 = vmax.f32 %v785, 0.0
      %v862 = vmax.f32 %v790, 0.0
      %v863 = vmax.f32 %v793, 0.0
      %v864 = vmax.f32 %v798, 0.0
      %v865 = vmax.f32 %v801, 0.0
      %v866 = vmax.f32 %v806, 0.0
      %v867 = vmax.f32 %v809, 0.0
      %v868 = vpack.c.bf16 %v813, %v812
      %v869 = vpack.c.bf16 %v815, %v814
      %v870 = vpack.c.bf16 %v817, %v816
      %v871 = vpack.c.bf16 %v819, %v818
      %v872 = vpack.c.bf16 %v821, %v820
      %v873 = vpack.c.bf16 %v823, %v822
      %v874 = vpack.c.bf16 %v825, %v824
      %v875 = vpack.c.bf16 %v827, %v826
      %v876 = vpack.c.bf16 %v829, %v828
      %v877 = vpack.c.bf16 %v831, %v830
      %v878 = vpack.c.bf16 %v833, %v832
      %v879 = vpack.c.bf16 %v835, %v834
      %v880 = vpack.c.bf16 %v837, %v836
      %v881 = vpack.c.bf16 %v839, %v838
      %v882 = vpack.c.bf16 %v841, %v840
      %v883 = vpack.c.bf16 %v843, %v842
      %v884 = vpack.c.bf16 %v845, %v844
      %v885 = vpack.c.bf16 %v847, %v846
      %v886 = vpack.c.bf16 %v849, %v848
      %v887 = vpack.c.bf16 %v851, %v850
      %v888 = vpack.c.bf16 %v853, %v852
      %v889 = vpack.c.bf16 %v855, %v854
      %v890 = vpack.c.bf16 %v857, %v856
      %v891 = vpack.c.bf16 %v859, %v858
      %v892 = vpack.c.bf16 %v861, %v860
      %v893 = vpack.c.bf16 %v863, %v862
      %v894 = vpack.c.bf16 %v865, %v864
      %v895 = vpack.c.bf16 %v867, %v866
      %v924 = vunpack.c.l.b16 %v868
      %v925 = vunpack.c.h.b16 %v868
      %v926 = vunpack.c.l.b16 %v869
      %v927 = vunpack.c.h.b16 %v869
      %v928 = vunpack.c.l.b16 %v870
      %v929 = vunpack.c.h.b16 %v870
      %v930 = vunpack.c.l.b16 %v871
      %v931 = vunpack.c.h.b16 %v871
      %v932 = vunpack.c.l.b16 %v872
      %v933 = vunpack.c.h.b16 %v872
      %v934 = vunpack.c.l.b16 %v873
      %v935 = vunpack.c.h.b16 %v873
      %v936 = vunpack.c.l.b16 %v874
      %v937 = vunpack.c.h.b16 %v874
      %v938 = vunpack.c.l.b16 %v875
      %v939 = vunpack.c.h.b16 %v875
      %v940 = vunpack.c.l.b16 %v876
      %v941 = vunpack.c.h.b16 %v876
      %v942 = vunpack.c.l.b16 %v877
      %v943 = vunpack.c.h.b16 %v877
      %v944 = vunpack.c.l.b16 %v878
      %v945 = vunpack.c.h.b16 %v878
      %v946 = vunpack.c.l.b16 %v879
      %v947 = vunpack.c.h.b16 %v879
      %v948 = vunpack.c.l.b16 %v880
      %v949 = vunpack.c.h.b16 %v880
      %v950 = vunpack.c.l.b16 %v881
      %v951 = vunpack.c.h.b16 %v881
      %v952 = vunpack.c.l.b16 %v882
      %v953 = vunpack.c.h.b16 %v882
      %v954 = vunpack.c.l.b16 %v883
      %v955 = vunpack.c.h.b16 %v883
      %v956 = vunpack.c.l.b16 %v884
      %v957 = vunpack.c.h.b16 %v884
      %v958 = vunpack.c.l.b16 %v885
      %v959 = vunpack.c.h.b16 %v885
      %v960 = vunpack.c.l.b16 %v886
      %v961 = vunpack.c.h.b16 %v886
      %v962 = vunpack.c.l.b16 %v887
      %v963 = vunpack.c.h.b16 %v887
      %v964 = vunpack.c.l.b16 %v888
      %v965 = vunpack.c.h.b16 %v888
      %v966 = vunpack.c.l.b16 %v889
      %v967 = vunpack.c.h.b16 %v889
      %v968 = vunpack.c.l.b16 %v890
      %v969 = vunpack.c.h.b16 %v890
      %v970 = vunpack.c.l.b16 %v891
      %v971 = vunpack.c.h.b16 %v891
      %v972 = vunpack.c.l.b16 %v892
      %v973 = vunpack.c.h.b16 %v892
      %v974 = vunpack.c.l.b16 %v893
      %v975 = vunpack.c.h.b16 %v893
      %v976 = vunpack.c.l.b16 %v894
      %v977 = vunpack.c.h.b16 %v894
      %v978 = vunpack.c.l.b16 %v895
      %v979 = vunpack.c.h.b16 %v895
      %v980 = vpack.c.b16 %v924, %v924
      %v981 = vpack.c.b16 %v925, %v925
      %v982 = vpack.c.b16 %v926, %v926
      %v983 = vpack.c.b16 %v927, %v927
      %v984 = vpack.c.b16 %v928, %v928
      %v985 = vpack.c.b16 %v929, %v929
      %v986 = vpack.c.b16 %v930, %v930
      %v987 = vpack.c.b16 %v931, %v931
      %v988 = vpack.c.b16 %v932, %v932
      %v989 = vpack.c.b16 %v933, %v933
      %v990 = vpack.c.b16 %v934, %v934
      %v991 = vpack.c.b16 %v935, %v935
      %v992 = vpack.c.b16 %v936, %v936
      %v993 = vpack.c.b16 %v937, %v937
      %v994 = vpack.c.b16 %v938, %v938
      %v995 = vpack.c.b16 %v939, %v939
      %v996 = vpack.c.b16 %v940, %v940
      %v997 = vpack.c.b16 %v941, %v941
      %v998 = vpack.c.b16 %v942, %v942
      %v999 = vpack.c.b16 %v943, %v943
      %v1000 = vpack.c.b16 %v944, %v944
      %v1001 = vpack.c.b16 %v945, %v945
      %v1002 = vpack.c.b16 %v946, %v946
      %v1003 = vpack.c.b16 %v947, %v947
      %v1004 = vpack.c.b16 %v948, %v948
      %v1005 = vpack.c.b16 %v949, %v949
      %v1006 = vpack.c.b16 %v950, %v950
      %v1007 = vpack.c.b16 %v951, %v951
      %v1008 = vpack.c.b16 %v952, %v952
      %v1009 = vpack.c.b16 %v953, %v953
      %v1010 = vpack.c.b16 %v954, %v954
      %v1011 = vpack.c.b16 %v955, %v955
      %v1012 = vpack.c.b16 %v956, %v956
      %v1013 = vpack.c.b16 %v957, %v957
      %v1014 = vpack.c.b16 %v958, %v958
      %v1015 = vpack.c.b16 %v959, %v959
      %v1016 = vpack.c.b16 %v960, %v960
      %v1017 = vpack.c.b16 %v961, %v961
      %v1018 = vpack.c.b16 %v962, %v962
      %v1019 = vpack.c.b16 %v963, %v963
      %v1020 = vpack.c.b16 %v964, %v964
      %v1021 = vpack.c.b16 %v965, %v965
      %v1022 = vpack.c.b16 %v966, %v966
      %v1023 = vpack.c.b16 %v967, %v967
      %v1024 = vpack.c.b16 %v968, %v968
      %v1025 = vpack.c.b16 %v969, %v969
      %v1026 = vpack.c.b16 %v970, %v970
      %v1027 = vpack.c.b16 %v971, %v971
      %v1028 = vpack.c.b16 %v972, %v972
      %v1029 = vpack.c.b16 %v973, %v973
      %v1030 = vpack.c.b16 %v974, %v974
      %v1031 = vpack.c.b16 %v975, %v975
      %v1032 = vpack.c.b16 %v976, %v976
      %v1033 = vpack.c.b16 %v977, %v977
      %v1034 = vpack.c.b16 %v978, %v978
      %v1035 = vpack.c.b16 %v979, %v979
      %vm1092 = vcmask 519168
      %1093 = vst.msk [vmem:[%s257] sm:$0xf] %vm1092, %v980
      %1094 = vst.msk [vmem:[%s257 + $0x4] sm:$0xf] %vm1092, %v981
      %1095 = vst.msk [vmem:[%s257 + $0x8] sm:$0xf] %vm1092, %v982
      %1096 = vst.msk [vmem:[%s257 + $0xc] sm:$0xf] %vm1092, %v983
      %1097 = vst.msk [vmem:[%s257 + $0x10] sm:$0xf] %vm1092, %v984
      %1098 = vst.msk [vmem:[%s257 + $0x14] sm:$0xf] %vm1092, %v985
      %1099 = vst.msk [vmem:[%s257 + $0x18] sm:$0xf] %vm1092, %v986
      %1100 = vst.msk [vmem:[%s257 + $0x1c] sm:$0xf] %vm1092, %v987
      %1101 = vst.msk [vmem:[%s257 + $0x20] sm:$0xf] %vm1092, %v988
      %1102 = vst.msk [vmem:[%s257 + $0x24] sm:$0xf] %vm1092, %v989
      %1103 = vst.msk [vmem:[%s257 + $0x28] sm:$0xf] %vm1092, %v990
      %1104 = vst.msk [vmem:[%s257 + $0x2c] sm:$0xf] %vm1092, %v991
      %1105 = vst.msk [vmem:[%s257 + $0x30] sm:$0xf] %vm1092, %v992
      %1106 = vst.msk [vmem:[%s257 + $0x34] sm:$0xf] %vm1092, %v993
      %1107 = vst.msk [vmem:[%s257 + $0x38] sm:$0xf] %vm1092, %v994
      %1108 = vst.msk [vmem:[%s257 + $0x3c] sm:$0xf] %vm1092, %v995
      %1109 = vst.msk [vmem:[%s257 + $0x40] sm:$0xf] %vm1092, %v996
      %1110 = vst.msk [vmem:[%s257 + $0x44] sm:$0xf] %vm1092, %v997
      %1111 = vst.msk [vmem:[%s257 + $0x48] sm:$0xf] %vm1092, %v998
      %1112 = vst.msk [vmem:[%s257 + $0x4c] sm:$0xf] %vm1092, %v999
      %1113 = vst.msk [vmem:[%s257 + $0x50] sm:$0xf] %vm1092, %v1000
      %1114 = vst.msk [vmem:[%s257 + $0x54] sm:$0xf] %vm1092, %v1001
      %1115 = vst.msk [vmem:[%s257 + $0x58] sm:$0xf] %vm1092, %v1002
      %1116 = vst.msk [vmem:[%s257 + $0x5c] sm:$0xf] %vm1092, %v1003
      %1117 = vst.msk [vmem:[%s257 + $0x60] sm:$0xf] %vm1092, %v1004
      %1118 = vst.msk [vmem:[%s257 + $0x64] sm:$0xf] %vm1092, %v1005
      %1119 = vst.msk [vmem:[%s257 + $0x68] sm:$0xf] %vm1092, %v1006
      %1120 = vst.msk [vmem:[%s257 + $0x6c] sm:$0xf] %vm1092, %v1007
      %1121 = vst.msk [vmem:[%s257 + $0x70] sm:$0xf] %vm1092, %v1008
      %1122 = vst.msk [vmem:[%s257 + $0x74] sm:$0xf] %vm1092, %v1009
      %1123 = vst.msk [vmem:[%s257 + $0x78] sm:$0xf] %vm1092, %v1010
      %1124 = vst.msk [vmem:[%s257 + $0x7c] sm:$0xf] %vm1092, %v1011
      %1125 = vst.msk [vmem:[%s257 + $0x80] sm:$0xf] %vm1092, %v1012
      %1126 = vst.msk [vmem:[%s257 + $0x84] sm:$0xf] %vm1092, %v1013
      %1127 = vst.msk [vmem:[%s257 + $0x88] sm:$0xf] %vm1092, %v1014
      %1128 = vst.msk [vmem:[%s257 + $0x8c] sm:$0xf] %vm1092, %v1015
      %1129 = vst.msk [vmem:[%s257 + $0x90] sm:$0xf] %vm1092, %v1016
      %1130 = vst.msk [vmem:[%s257 + $0x94] sm:$0xf] %vm1092, %v1017
      %1131 = vst.msk [vmem:[%s257 + $0x98] sm:$0xf] %vm1092, %v1018
      %1132 = vst.msk [vmem:[%s257 + $0x9c] sm:$0xf] %vm1092, %v1019
      %1133 = vst.msk [vmem:[%s257 + $0xa0] sm:$0xf] %vm1092, %v1020
      %1134 = vst.msk [vmem:[%s257 + $0xa4] sm:$0xf] %vm1092, %v1021
      %1135 = vst.msk [vmem:[%s257 + $0xa8] sm:$0xf] %vm1092, %v1022
      %1136 = vst.msk [vmem:[%s257 + $0xac] sm:$0xf] %vm1092, %v1023
      %1137 = vst.msk [vmem:[%s257 + $0xb0] sm:$0xf] %vm1092, %v1024
      %1138 = vst.msk [vmem:[%s257 + $0xb4] sm:$0xf] %vm1092, %v1025
      %1139 = vst.msk [vmem:[%s257 + $0xb8] sm:$0xf] %vm1092, %v1026
      %1140 = vst.msk [vmem:[%s257 + $0xbc] sm:$0xf] %vm1092, %v1027
      %1141 = vst.msk [vmem:[%s257 + $0xc0] sm:$0xf] %vm1092, %v1028
      %1142 = vst.msk [vmem:[%s257 + $0xc4] sm:$0xf] %vm1092, %v1029
      %1143 = vst.msk [vmem:[%s257 + $0xc8] sm:$0xf] %vm1092, %v1030
      %1144 = vst.msk [vmem:[%s257 + $0xcc] sm:$0xf] %vm1092, %v1031
      %1145 = vst.msk [vmem:[%s257 + $0xd0] sm:$0xf] %vm1092, %v1032
      %1146 = vst.msk [vmem:[%s257 + $0xd4] sm:$0xf] %vm1092, %v1033
      %1147 = vst.msk [vmem:[%s257 + $0xd8] sm:$0xf] %vm1092, %v1034
      %1148 = vst.msk [vmem:[%s257 + $0xdc] sm:$0xf] %vm1092, %v1035
      %s1149 = smul.u32 56, %s19
      %p1150 = scmp.lt.s32.totalorder %s1149, 783
      %s1151 = scalar_select %p1150, %s1149, 783
      %p1152 = scmp.lt.s32.totalorder %s20, 0
      %s1153 = scalar_select %p1152, %s20, 0
      %s1154 = sadd.s32 %s1153, %s1151
      %s1155 = smul.addr %s1154, 4
      %s1156 = scalar_lea.vmem %s3, %s1155
      // Predicated region
      $region33: #{autoencoder_forward.14} parent=31 // pred_check
        %p1157 = pneg %p135
      $region34: #{autoencoder_forward.14} parent=31 // pred_check_branch
        %1159 = sbr.rel (%p1157) target = $region36
      $region35: #{autoencoder_forward.14} parent=31 // pred_region
        %s1160 = smul.u32 56, %s19
      $region36: #{autoencoder_forward.14} parent=31 // pred_fallthru
        _
    $region32: #{autoencoder_forward.14} parent=5 // pred_fallthru
      _
    %p1161 = scmp.le.s32.totalorder 2, %s9
    // Predicated region
    $region37: #{autoencoder_forward.14} parent=5 // pred_check
      %p1162 = pneg %p1161
    $region38: #{autoencoder_forward.14} parent=5 // pred_check_branch
      %1164 = sbr.rel (%p1162) target = $region40
    $region39: #{autoencoder_forward.14} parent=5 // pred_region
      %s1165 = ssub.s32 %s9, 2
      // Predicated region
      $region41: #{autoencoder_forward.14} parent=39 // pred_check
        %p1166 = pneg %p141
      $region42: #{autoencoder_forward.14} parent=39 // pred_check_branch
        %1168 = sbr.rel (%p1166) target = $region44
      $region43: #{autoencoder_forward.14} parent=39 // pred_region
        %s1169 = smul.u32 56, %s22
        %p1170 = scmp.lt.s32.totalorder %s1169, 783
        %s1171 = scalar_select %p1170, %s1169, 783
        %p1172 = scmp.lt.s32.totalorder %s23, 0
        %s1173 = scalar_select %p1172, %s23, 0
        %s1174 = sadd.s32 %s1173, %s1171
        %s1175 = smul.addr %s1174, 4
        %s1176 = scalar_lea.vmem %s3, %s1175
      $region44: #{autoencoder_forward.14} parent=39 // pred_fallthru
        _
    $region40: #{autoencoder_forward.14} parent=5 // pred_fallthru
      _
  $region6: #{autoencoder_forward.14} parent=0 // loop_footer
    %s13 = sadd.s32 1, %s9
  $region7: #{autoencoder_forward.14} parent=0 // loop_footer_branch
    %8 = sbr.rel target = $region3
  $region8: #{autoencoder_forward.14} parent=0 // loop_exit
    _

// kernel: autoencoder_forward.15
$region0: #{autoencoder_forward.15}
  #allocation0 [shape = 'u32[]', space=smem, size = 0x4, offset = 0x4, fixed_abs, tag = 'smem constant byte address 0x4 - core index']
  #allocation1 [shape = 'u32[144,128]{1,0:T(1,128)}', space=vmem, size = 0x12000, scoped, tag = 'internal scratch']
  %s0 = inlined_call_operand.vmem [shape: bf16[25088,64], index: 0, kind: input, shape index: {}]
  %s1 = inlined_call_operand.vmem [shape: bf16[64,4], index: 1, kind: input, shape index: {}]
  %s2 = inlined_call_operand.vmem [shape: f32[1,4], index: 2, kind: input, shape index: {}]
  %s3 = inlined_call_operand.vmem [shape: f32[25088,4], index: 3, kind: output, shape index: {}]
  %s4 = sld [smem:[#allocation0]]
  $region45: #{autoencoder_forward.15} parent=0
    _
  %s6 = ssub.s32 1, %s4
  %s7 = scalar_select 0, %s6, %s4
  loop: start=0, step=1, limit=51
  $region2: #{autoencoder_forward.15} parent=0 // loop_pre_header
    _
  $region3: #{autoencoder_forward.15} parent=0 // loop_header
    %s9 = sphi 0, %s13
    %p10 = scmp.ge.s32.totalorder %s9, 51
    %s16 = sphi 0, %s35
    %s17 = sphi 0, %s31
    %s18 = sphi 0, %s27
    %s19 = sphi 0, %s16
    %s20 = sphi 0, %s17
    %s21 = sphi 0, %s18
    %s22 = sphi 0, %s19
    %s23 = sphi 0, %s20
    %s24 = sphi 0, %s21
    %s40 = sphi 0, %s42
    %s43 = sphi 0, %s40
    %s44 = sphi 0, %s43
    %s60 = sphi 0, %s44
    %s68 = sphi 0, %s70
    %s71 = sphi 0, %s68
    %s72 = sphi 0, %s71
    %s88 = sphi 0, %s72
    %s94 = sphi 0, %s96
    %s97 = sphi 0, %s94
    %s98 = sphi 0, %s97
    %s114 = sphi 0, %s98
    %s122 = sphi 0, %s124
    %s125 = sphi 0, %s122
    %s126 = sphi 0, %s125
    %s142 = sphi 0, %s126
  $region4: #{autoencoder_forward.15} parent=0 // loop_header_branch
    %12 = sbr.rel (%p10) target = $region8
  $region5: #{autoencoder_forward.15} parent=0 // loop_body
    %s14 = ssub.s32 %s9, 1
    %s15 = ssub.s32 %s9, 2
    %s25 = sadd.s32 1, %s18
    %p26 = scmp.ge.s32.totalorder %s25, 1
    %s27 = scalar_select %p26, 0, %s25
    %s28 = sadd.s32 1, %s17
    %s29 = scalar_select %p26, %s28, %s17
    %p30 = scmp.ge.s32.totalorder %s29, 1
    %s31 = scalar_select %p30, 0, %s29
    %s32 = sadd.s32 1, %s16
    %s33 = scalar_select %p30, %s32, %s16
    %p34 = scmp.ge.s32.totalorder %s33, 49
    %s35 = scalar_select %p34, 0, %s33
    %s36 = ssub.s32 %s16, %s35
    %s37 = ssub.s32 %s18, %s27
    %s38 = sor.u32 %s36, %s37
    %p39 = scmp.eq.s32.totalorder %s38, 0
    %s41 = sadd.s32 %s40, 1
    %s42 = scalar_select %p39, %s40, %s41
    %p45 = pneg %p39
    %p46 = scmp.eq.s32.totalorder %s9, 48
    %p47 = por %p45, %p46
    %p48 = scmp.ne.s32.totalorder %s40, %s43
    %p49 = scmp.eq.s32.totalorder %s9, 0
    %p50 = por %p48, %p49
    %p51 = scmp.ne.s32.totalorder %s40, %s43
    %p52 = scmp.eq.s32.totalorder %s14, 48
    %p53 = por %p51, %p52
    %p54 = scmp.ne.s32.totalorder %s43, %s44
    %p55 = scmp.eq.s32.totalorder %s14, 0
    %p56 = por %p54, %p55
    %p57 = scmp.ne.s32.totalorder %s43, %s44
    %p58 = scmp.eq.s32.totalorder %s15, 48
    %p59 = por %p57, %p58
    %p61 = scmp.ne.s32.totalorder %s44, %s60
    %p62 = scmp.eq.s32.totalorder %s15, 0
    %p63 = por %p61, %p62
    %s64 = ssub.s32 %s18, %s27
    %s65 = ssub.s32 %s17, %s31
    %s66 = sor.u32 %s64, %s65
    %p67 = scmp.eq.s32.totalorder %s66, 0
    %s69 = sadd.s32 %s68, 1
    %s70 = scalar_select %p67, %s68, %s69
    %p73 = pneg %p67
    %p74 = scmp.eq.s32.totalorder %s9, 48
    %p75 = por %p73, %p74
    %p76 = scmp.ne.s32.totalorder %s68, %s71
    %p77 = scmp.eq.s32.totalorder %s9, 0
    %p78 = por %p76, %p77
    %p79 = scmp.ne.s32.totalorder %s68, %s71
    %p80 = scmp.eq.s32.totalorder %s14, 48
    %p81 = por %p79, %p80
    %p82 = scmp.ne.s32.totalorder %s71, %s72
    %p83 = scmp.eq.s32.totalorder %s14, 0
    %p84 = por %p82, %p83
    %p85 = scmp.ne.s32.totalorder %s71, %s72
    %p86 = scmp.eq.s32.totalorder %s15, 48
    %p87 = por %p85, %p86
    %p89 = scmp.ne.s32.totalorder %s72, %s88
    %p90 = scmp.eq.s32.totalorder %s15, 0
    %p91 = por %p89, %p90
    %s92 = ssub.s32 %s17, %s31
    %p93 = scmp.eq.s32.totalorder %s92, 0
    %s95 = sadd.s32 %s94, 1
    %s96 = scalar_select %p93, %s94, %s95
    %p99 = pneg %p93
    %p100 = scmp.eq.s32.totalorder %s9, 48
    %p101 = por %p99, %p100
    %p102 = scmp.ne.s32.totalorder %s94, %s97
    %p103 = scmp.eq.s32.totalorder %s9, 0
    %p104 = por %p102, %p103
    %p105 = scmp.ne.s32.totalorder %s94, %s97
    %p106 = scmp.eq.s32.totalorder %s14, 48
    %p107 = por %p105, %p106
    %p108 = scmp.ne.s32.totalorder %s97, %s98
    %p109 = scmp.eq.s32.totalorder %s14, 0
    %p110 = por %p108, %p109
    %p111 = scmp.ne.s32.totalorder %s97, %s98
    %p112 = scmp.eq.s32.totalorder %s15, 48
    %p113 = por %p111, %p112
    %p115 = scmp.ne.s32.totalorder %s98, %s114
    %p116 = scmp.eq.s32.totalorder %s15, 0
    %p117 = por %p115, %p116
    %s118 = ssub.s32 %s16, %s35
    %s119 = ssub.s32 %s17, %s31
    %s120 = sor.u32 %s118, %s119
    %p121 = scmp.eq.s32.totalorder %s120, 0
    %s123 = sadd.s32 %s122, 1
    %s124 = scalar_select %p121, %s122, %s123
    %p127 = pneg %p121
    %p128 = scmp.eq.s32.totalorder %s9, 48
    %p129 = por %p127, %p128
    %p130 = scmp.ne.s32.totalorder %s122, %s125
    %p131 = scmp.eq.s32.totalorder %s9, 0
    %p132 = por %p130, %p131
    %p133 = scmp.ne.s32.totalorder %s122, %s125
    %p134 = scmp.eq.s32.totalorder %s14, 48
    %p135 = por %p133, %p134
    %p136 = scmp.ne.s32.totalorder %s125, %s126
    %p137 = scmp.eq.s32.totalorder %s14, 0
    %p138 = por %p136, %p137
    %p139 = scmp.ne.s32.totalorder %s125, %s126
    %p140 = scmp.eq.s32.totalorder %s15, 48
    %p141 = por %p139, %p140
    %p143 = scmp.ne.s32.totalorder %s126, %s142
    %p144 = scmp.eq.s32.totalorder %s15, 0
    %p145 = por %p143, %p144
    %p146 = scmp.le.s32.totalorder 1, %s9
    %p147 = scmp.lt.s32.totalorder %s9, 50
    %p148 = pnand %p146, %p147
    %p149 = pneg %p148
    // Predicated region
    $region9: #{autoencoder_forward.15} parent=5 // pred_check
      _
    $region10: #{autoencoder_forward.15} parent=5 // pred_check_branch
      %151 = sbr.rel (%p148) target = $region12
    $region11: #{autoencoder_forward.15} parent=5 // pred_region
      %s152 = ssub.s32 %s9, 1
      // Predicated region
      $region13: #{autoencoder_forward.15} parent=11 // pred_check
        %p153 = pneg %p84
      $region14: #{autoencoder_forward.15} parent=11 // pred_check_branch
        %155 = sbr.rel (%p153) target = $region16
      $region15: #{autoencoder_forward.15} parent=11 // pred_region
        %s156 = smul.u32 8, %s21
        %p157 = scmp.lt.s32.totalorder %s156, 7
        %s158 = scalar_select %p157, %s156, 7
        %p159 = scmp.lt.s32.totalorder %s20, 0
        %s160 = scalar_select %p159, %s20, 0
        %s161 = sadd.s32 %s160, %s158
        %s162 = smul.addr %s161, 4
        %s163 = scalar_lea.vmem %s1, %s162
        %s164 = smul.u32 8, %s21
      $region16: #{autoencoder_forward.15} parent=11 // pred_fallthru
        _
      // Predicated region
      $region17: #{autoencoder_forward.15} parent=11 // pred_check
        %p165 = pneg %p110
      $region18: #{autoencoder_forward.15} parent=11 // pred_check_branch
        %167 = sbr.rel (%p165) target = $region20
      $region19: #{autoencoder_forward.15} parent=11 // pred_region
        %p168 = scmp.lt.s32.totalorder %s20, 0
        %s169 = scalar_select %p168, %s20, 0
        %s170 = scalar_lea.vmem %s2, %s169
      $region20: #{autoencoder_forward.15} parent=11 // pred_fallthru
        _
    $region12: #{autoencoder_forward.15} parent=5 // pred_fallthru
      _
    %p171 = scmp.lt.s32.totalorder %s9, 49
    // Predicated region
    $region21: #{autoencoder_forward.15} parent=5 // pred_check
      %p172 = pneg %p171
    $region22: #{autoencoder_forward.15} parent=5 // pred_check_branch
      %174 = sbr.rel (%p172) target = $region24
    $region23: #{autoencoder_forward.15} parent=5 // pred_region
      // Predicated region
      $region25: #{autoencoder_forward.15} parent=23 // pred_check
        %p175 = pneg %p50
      $region26: #{autoencoder_forward.15} parent=23 // pred_check_branch
        %177 = sbr.rel (%p175) target = $region28
      $region27: #{autoencoder_forward.15} parent=23 // pred_region
        %s178 = smul.u32 64, %s16
        %p179 = scmp.lt.s32.totalorder %s178, 3135
        %s180 = scalar_select %p179, %s178, 3135
        %p181 = scmp.lt.s32.totalorder %s18, 0
        %s182 = scalar_select %p181, %s18, 0
        %s183 = sadd.s32 %s182, %s180
        %s184 = smul.addr %s183, 4
        %s185 = scalar_lea.vmem %s0, %s184
        %s186 = smul.u32 64, %s16
      $region28: #{autoencoder_forward.15} parent=23 // pred_fallthru
        _
    $region24: #{autoencoder_forward.15} parent=5 // pred_fallthru
      _
    %p187 = scmp.le.s32.totalorder 1, %s9
    %p188 = scmp.lt.s32.totalorder %s9, 50
    %p189 = pnand %p187, %p188
    %p190 = pneg %p189
    // Predicated region
    $region29: #{autoencoder_forward.15} parent=5 // pred_check
      _
    $region30: #{autoencoder_forward.15} parent=5 // pred_check_branch
      %192 = sbr.rel (%p189) target = $region32
    $region31: #{autoencoder_forward.15} parent=5 // pred_region
      %s193 = ssub.s32 %s9, 1
      %s194 = smul.u32 64, %s19
      %p195 = scmp.lt.s32.totalorder %s194, 3135
      %s196 = scalar_select %p195, %s194, 3135
      %p197 = scmp.lt.s32.totalorder %s21, 0
      %s198 = scalar_select %p197, %s21, 0
      %s199 = sadd.s32 %s198, %s196
      %s200 = smul.addr %s199, 4
      %s201 = scalar_lea.vmem %s0, %s200
      %p202 = pneg %p56
      %p203 = pneg %p53
      %s204 = smul.u32 8, %s21
      %p205 = scmp.lt.s32.totalorder %s204, 7
      %s206 = scalar_select %p205, %s204, 7
      %p207 = scmp.lt.s32.totalorder %s20, 0
      %s208 = scalar_select %p207, %s20, 0
      %s209 = sadd.s32 %s208, %s206
      %s210 = smul.addr %s209, 4
      %s211 = scalar_lea.vmem %s1, %s210
      %p212 = pneg %p84
      %p213 = pneg %p81
      %p214 = scmp.lt.s32.totalorder %s20, 0
      %s215 = scalar_select %p214, %s20, 0
      %s216 = scalar_lea.vmem %s2, %s215
      %p217 = pneg %p110
      %p218 = pneg %p107
      %p219 = pneg %p138
      %p220 = pneg %p135
      %s221 = smul.u32 64, %s19
      %p222 = scmp.lt.s32.totalorder %s221, 3135
      %s223 = scalar_select %p222, %s221, 3135
      %p224 = scmp.lt.s32.totalorder %s20, 0
      %s225 = scalar_select %p224, %s20, 0
      %s226 = sadd.s32 %s225, %s223
      %s227 = smul.addr %s226, 8
      %s228 = scalar_lea.vmem %s3, %s227
      %s229 = smul.u32 64, %s19
      %p230 = scmp.lt.s32.totalorder %s229, 3135
      %s231 = scalar_select %p230, %s229, 3135
      %p232 = scmp.lt.s32.totalorder %s21, 0
      %s233 = scalar_select %p232, %s21, 0
      %s234 = sadd.s32 %s233, %s231
      %s235 = smul.addr %s234, 4
      %s236 = scalar_lea.vmem %s0, %s235
      %s237 = smul.u32 64, %s19
      %s238 = smul.u32 8, %s21
      %p239 = scmp.lt.s32.totalorder %s238, 7
      %s240 = scalar_select %p239, %s238, 7
      %p241 = scmp.lt.s32.totalorder %s20, 0
      %s242 = scalar_select %p241, %s20, 0
      %s243 = sadd.s32 %s242, %s240
      %s244 = smul.addr %s243, 4
      %s245 = scalar_lea.vmem %s1, %s244
      %s246 = smul.u32 8, %s21
      %p247 = scmp.lt.s32.totalorder %s20, 0
      %s248 = scalar_select %p247, %s20, 0
      %s249 = scalar_lea.vmem %s2, %s248
      %s250 = smul.u32 64, %s19
      %p251 = scmp.lt.s32.totalorder %s250, 3135
      %s252 = scalar_select %p251, %s250, 3135
      %p253 = scmp.lt.s32.totalorder %s20, 0
      %s254 = scalar_select %p253, %s20, 0
      %s255 = sadd.s32 %s254, %s252
      %s256 = smul.addr %s255, 8
      %s257 = scalar_lea.vmem %s3, %s256
      %s258 = smul.u32 64, %s19
      %v260 = vld [vmem:[%s236] sm:$0xf]
      %v261 = vld [vmem:[%s236 + $0x4] sm:$0xf]
      %v262 = vld [vmem:[%s236 + $0x8] sm:$0xf]
      %v263 = vld [vmem:[%s236 + $0xc] sm:$0xf]
      %v264 = vld [vmem:[%s236 + $0x10] sm:$0xf]
      %v265 = vld [vmem:[%s236 + $0x14] sm:$0xf]
      %v266 = vld [vmem:[%s236 + $0x18] sm:$0xf]
      %v267 = vld [vmem:[%s236 + $0x1c] sm:$0xf]
      %v268 = vld [vmem:[%s236 + $0x20] sm:$0xf]
      %v269 = vld [vmem:[%s236 + $0x24] sm:$0xf]
      %v270 = vld [vmem:[%s236 + $0x28] sm:$0xf]
      %v271 = vld [vmem:[%s236 + $0x2c] sm:$0xf]
      %v272 = vld [vmem:[%s236 + $0x30] sm:$0xf]
      %v273 = vld [vmem:[%s236 + $0x34] sm:$0xf]
      %v274 = vld [vmem:[%s236 + $0x38] sm:$0xf]
      %v275 = vld [vmem:[%s236 + $0x3c] sm:$0xf]
      %v276 = vld [vmem:[%s236 + $0x40] sm:$0xf]
      %v277 = vld [vmem:[%s236 + $0x44] sm:$0xf]
      %v278 = vld [vmem:[%s236 + $0x48] sm:$0xf]
      %v279 = vld [vmem:[%s236 + $0x4c] sm:$0xf]
      %v280 = vld [vmem:[%s236 + $0x50] sm:$0xf]
      %v281 = vld [vmem:[%s236 + $0x54] sm:$0xf]
      %v282 = vld [vmem:[%s236 + $0x58] sm:$0xf]
      %v283 = vld [vmem:[%s236 + $0x5c] sm:$0xf]
      %v284 = vld [vmem:[%s236 + $0x60] sm:$0xf]
      %v285 = vld [vmem:[%s236 + $0x64] sm:$0xf]
      %v286 = vld [vmem:[%s236 + $0x68] sm:$0xf]
      %v287 = vld [vmem:[%s236 + $0x6c] sm:$0xf]
      %v288 = vld [vmem:[%s236 + $0x70] sm:$0xf]
      %v289 = vld [vmem:[%s236 + $0x74] sm:$0xf]
      %v290 = vld [vmem:[%s236 + $0x78] sm:$0xf]
      %v291 = vld [vmem:[%s236 + $0x7c] sm:$0xf]
      %v292 = vld [vmem:[%s236 + $0x80] sm:$0xf]
      %v293 = vld [vmem:[%s236 + $0x84] sm:$0xf]
      %v294 = vld [vmem:[%s236 + $0x88] sm:$0xf]
      %v295 = vld [vmem:[%s236 + $0x8c] sm:$0xf]
      %v296 = vld [vmem:[%s236 + $0x90] sm:$0xf]
      %v297 = vld [vmem:[%s236 + $0x94] sm:$0xf]
      %v298 = vld [vmem:[%s236 + $0x98] sm:$0xf]
      %v299 = vld [vmem:[%s236 + $0x9c] sm:$0xf]
      %v300 = vld [vmem:[%s236 + $0xa0] sm:$0xf]
      %v301 = vld [vmem:[%s236 + $0xa4] sm:$0xf]
      %v302 = vld [vmem:[%s236 + $0xa8] sm:$0xf]
      %v303 = vld [vmem:[%s236 + $0xac] sm:$0xf]
      %v304 = vld [vmem:[%s236 + $0xb0] sm:$0xf]
      %v305 = vld [vmem:[%s236 + $0xb4] sm:$0xf]
      %v306 = vld [vmem:[%s236 + $0xb8] sm:$0xf]
      %v307 = vld [vmem:[%s236 + $0xbc] sm:$0xf]
      %v308 = vld [vmem:[%s236 + $0xc0] sm:$0xf]
      %v309 = vld [vmem:[%s236 + $0xc4] sm:$0xf]
      %v310 = vld [vmem:[%s236 + $0xc8] sm:$0xf]
      %v311 = vld [vmem:[%s236 + $0xcc] sm:$0xf]
      %v312 = vld [vmem:[%s236 + $0xd0] sm:$0xf]
      %v313 = vld [vmem:[%s236 + $0xd4] sm:$0xf]
      %v314 = vld [vmem:[%s236 + $0xd8] sm:$0xf]
      %v315 = vld [vmem:[%s236 + $0xdc] sm:$0xf]
      %v316 = vld [vmem:[%s236 + $0xe0] sm:$0xf]
      %v317 = vld [vmem:[%s236 + $0xe4] sm:$0xf]
      %v318 = vld [vmem:[%s236 + $0xe8] sm:$0xf]
      %v319 = vld [vmem:[%s236 + $0xec] sm:$0xf]
      %v320 = vld [vmem:[%s236 + $0xf0] sm:$0xf]
      %v321 = vld [vmem:[%s236 + $0xf4] sm:$0xf]
      %v322 = vld [vmem:[%s236 + $0xf8] sm:$0xf]
      %v323 = vld [vmem:[%s236 + $0xfc] sm:$0xf]
      %v324 = vld [vmem:[%s245] sm:$0xf]
      %v325 = vld [vmem:[%s245 + $0x4] sm:$0xf]
      %v326 = vld [vmem:[%s245 + $0x8] sm:$0xf]
      %v327 = vld [vmem:[%s245 + $0xc] sm:$0xf]
      %v328 = vld [vmem:[%s245 + $0x10] sm:$0xf]
      %v329 = vld [vmem:[%s245 + $0x14] sm:$0xf]
      %v330 = vld [vmem:[%s245 + $0x18] sm:$0xf]
      %v331 = vld [vmem:[%s245 + $0x1c] sm:$0xf]
      %v332 = vld [vmem:[%s249] sm:$0x1]
      %v334 = vlaneseq
      %v335 = vshrl.u32 %v334, 7
      %v336 = vsub.s32 0, %v335
      %v337 = vrot.slane %v332, %v336
      %v403 = vunpack.c.l.b16 %v260
      %v404 = vunpack.c.l.b16 %v261
      %v405 = vunpack.c.l.b16 %v262
      %v406 = vunpack.c.l.b16 %v263
      %v407 = vunpack.c.l.b16 %v264
      %v408 = vunpack.c.l.b16 %v265
      %v409 = vunpack.c.l.b16 %v266
      %v410 = vunpack.c.l.b16 %v267
      %v411 = vunpack.c.l.b16 %v268
      %v412 = vunpack.c.l.b16 %v269
      %v413 = vunpack.c.l.b16 %v270
      %v414 = vunpack.c.l.b16 %v271
      %v415 = vunpack.c.l.b16 %v272
      %v416 = vunpack.c.l.b16 %v273
      %v417 = vunpack.c.l.b16 %v274
      %v418 = vunpack.c.l.b16 %v275
      %v419 = vunpack.c.l.b16 %v276
      %v420 = vunpack.c.l.b16 %v277
      %v421 = vunpack.c.l.b16 %v278
      %v422 = vunpack.c.l.b16 %v279
      %v423 = vunpack.c.l.b16 %v280
      %v424 = vunpack.c.l.b16 %v281
      %v425 = vunpack.c.l.b16 %v282
      %v426 = vunpack.c.l.b16 %v283
      %v427 = vunpack.c.l.b16 %v284
      %v428 = vunpack.c.l.b16 %v285
      %v429 = vunpack.c.l.b16 %v286
      %v430 = vunpack.c.l.b16 %v287
      %v431 = vunpack.c.l.b16 %v288
      %v432 = vunpack.c.l.b16 %v289
      %v433 = vunpack.c.l.b16 %v290
      %v434 = vunpack.c.l.b16 %v291
      %v435 = vunpack.c.l.b16 %v292
      %v436 = vunpack.c.l.b16 %v293
      %v437 = vunpack.c.l.b16 %v294
      %v438 = vunpack.c.l.b16 %v295
      %v439 = vunpack.c.l.b16 %v296
      %v440 = vunpack.c.l.b16 %v297
      %v441 = vunpack.c.l.b16 %v298
      %v442 = vunpack.c.l.b16 %v299
      %v443 = vunpack.c.l.b16 %v300
      %v444 = vunpack.c.l.b16 %v301
      %v445 = vunpack.c.l.b16 %v302
      %v446 = vunpack.c.l.b16 %v303
      %v447 = vunpack.c.l.b16 %v304
      %v448 = vunpack.c.l.b16 %v305
      %v449 = vunpack.c.l.b16 %v306
      %v450 = vunpack.c.l.b16 %v307
      %v451 = vunpack.c.l.b16 %v308
      %v452 = vunpack.c.l.b16 %v309
      %v453 = vunpack.c.l.b16 %v310
      %v454 = vunpack.c.l.b16 %v311
      %v455 = vunpack.c.l.b16 %v312
      %v456 = vunpack.c.l.b16 %v313
      %v457 = vunpack.c.l.b16 %v314
      %v458 = vunpack.c.l.b16 %v315
      %v459 = vunpack.c.l.b16 %v316
      %v460 = vunpack.c.l.b16 %v317
      %v461 = vunpack.c.l.b16 %v318
      %v462 = vunpack.c.l.b16 %v319
      %v463 = vunpack.c.l.b16 %v320
      %v464 = vunpack.c.l.b16 %v321
      %v465 = vunpack.c.l.b16 %v322
      %v466 = vunpack.c.l.b16 %v323
      %v467 = vpack.c.b16 %v404, %v403
      %v468 = vpack.c.b16 %v406, %v405
      %v469 = vpack.c.b16 %v408, %v407
      %v470 = vpack.c.b16 %v410, %v409
      %v471 = vpack.c.b16 %v412, %v411
      %v472 = vpack.c.b16 %v414, %v413
      %v473 = vpack.c.b16 %v416, %v415
      %v474 = vpack.c.b16 %v418, %v417
      %v475 = vpack.c.b16 %v420, %v419
      %v476 = vpack.c.b16 %v422, %v421
      %v477 = vpack.c.b16 %v424, %v423
      %v478 = vpack.c.b16 %v426, %v425
      %v479 = vpack.c.b16 %v428, %v427
      %v480 = vpack.c.b16 %v430, %v429
      %v481 = vpack.c.b16 %v432, %v431
      %v482 = vpack.c.b16 %v434, %v433
      %v483 = vpack.c.b16 %v436, %v435
      %v484 = vpack.c.b16 %v438, %v437
      %v485 = vpack.c.b16 %v440, %v439
      %v486 = vpack.c.b16 %v442, %v441
      %v487 = vpack.c.b16 %v444, %v443
      %v488 = vpack.c.b16 %v446, %v445
      %v489 = vpack.c.b16 %v448, %v447
      %v490 = vpack.c.b16 %v450, %v449
      %v491 = vpack.c.b16 %v452, %v451
      %v492 = vpack.c.b16 %v454, %v453
      %v493 = vpack.c.b16 %v456, %v455
      %v494 = vpack.c.b16 %v458, %v457
      %v495 = vpack.c.b16 %v460, %v459
      %v496 = vpack.c.b16 %v462, %v461
      %v497 = vpack.c.b16 %v464, %v463
      %v498 = vpack.c.b16 %v466, %v465
      %v507 = vunpack.c.l.b16 %v324
      %v508 = vunpack.c.l.b16 %v325
      %v509 = vunpack.c.l.b16 %v326
      %v510 = vunpack.c.l.b16 %v327
      %v511 = vunpack.c.l.b16 %v328
      %v512 = vunpack.c.l.b16 %v329
      %v513 = vunpack.c.l.b16 %v330
      %v514 = vunpack.c.l.b16 %v331
      %v515 = vpack.c.b16 %v508, %v507
      %v516 = vpack.c.b16 %v510, %v509
      %v517 = vpack.c.b16 %v512, %v511
      %v518 = vpack.c.b16 %v514, %v513
      %vm523 = vcmask 523264
      %v525 = vsel %vm523, %v467, 0
      %v528 = vsel %vm523, %v468, 0
      %v531 = vsel %vm523, %v469, 0
      %v534 = vsel %vm523, %v470, 0
      %v537 = vsel %vm523, %v471, 0
      %v540 = vsel %vm523, %v472, 0
      %v543 = vsel %vm523, %v473, 0
      %v546 = vsel %vm523, %v474, 0
      %v549 = vsel %vm523, %v475, 0
      %v552 = vsel %vm523, %v476, 0
      %v555 = vsel %vm523, %v477, 0
      %v558 = vsel %vm523, %v478, 0
      %v561 = vsel %vm523, %v479, 0
      %v564 = vsel %vm523, %v480, 0
      %v567 = vsel %vm523, %v481, 0
      %v570 = vsel %vm523, %v482, 0
      %v573 = vsel %vm523, %v483, 0
      %v576 = vsel %vm523, %v484, 0
      %v579 = vsel %vm523, %v485, 0
      %v582 = vsel %vm523, %v486, 0
      %v585 = vsel %vm523, %v487, 0
      %v588 = vsel %vm523, %v488, 0
      %v591 = vsel %vm523, %v489, 0
      %v594 = vsel %vm523, %v490, 0
      %v597 = vsel %vm523, %v491, 0
      %v600 = vsel %vm523, %v492, 0
      %v603 = vsel %vm523, %v493, 0
      %v606 = vsel %vm523, %v494, 0
      %v609 = vsel %vm523, %v495, 0
      %v612 = vsel %vm523, %v496, 0
      %v615 = vsel %vm523, %v497, 0
      %v618 = vsel %vm523, %v498, 0
      %620 = vmatprep.subr.bf16.mxu0 0
      %621 = vmatpush1.bf16.msra.mxu0 %v515
      %622 = vmatprep.subr.bf16.mxu0 0
      %623 = vmatpush1.bf16.msra.mxu0 %v516
      %624 = vmatprep.subr.bf16.mxu0 0
      %625 = vmatpush1.bf16.msra.mxu0 %v517
      %626 = vmatprep.subr.bf16.mxu0 0
      %627 = vmatpush1.bf16.msra.mxu0 %v518
      %628 = vmatprep.subr.bf16.mxu0 0
      %629 = vmatpush1.bf16.msra.mxu0 0
      %630 = vmatprep.subr.bf16.mxu0 0
      %631 = vmatpush1.bf16.msra.mxu0 0
      %632 = vmatprep.subr.bf16.mxu0 0
      %633 = vmatpush1.bf16.msra.mxu0 0
      %634 = vmatprep.subr.bf16.mxu0 0
      %635 = vmatpush1.bf16.msra.mxu0 0
      %636 = vmatprep.subr.bf16.mxu0 0
      %637 = vmatpush1.bf16.msra.mxu0 0
      %638 = vmatprep.subr.bf16.mxu0 0
      %639 = vmatpush1.bf16.msra.mxu0 0
      %640 = vmatprep.subr.bf16.mxu0 0
      %641 = vmatpush1.bf16.msra.mxu0 0
      %642 = vmatprep.subr.bf16.mxu0 0
      %643 = vmatpush1.bf16.msra.mxu0 0
      %644 = vmatprep.subr.bf16.mxu0 0
      %645 = vmatpush1.bf16.msra.mxu0 0
      %646 = vmatprep.subr.bf16.mxu0 0
      %647 = vmatpush1.bf16.msra.mxu0 0
      %648 = vmatprep.subr.bf16.mxu0 0
      %649 = vmatpush1.bf16.msra.mxu0 0
      %650 = vmatprep.subr.bf16.mxu0 0
      %651 = vmatpush1.bf16.msra.mxu0 0
      %652 = vmatprep.mubr.bf16.mxu0 0
      %653 = vmatmul.mubr.bf16.gmra.mrb[0].mxu0 %v525
      %v654 = vpop.f32.mrb[0].mxu0
      %v655 = vadd.f32 %v337, %v654
      %v656 = vpop.f32.mrb[0].mxu0
      %v657 = vpop.f32.mrb[0].mxu0
      %v658 = vadd.f32 %v337, %v657
      %v659 = vpop.f32.mrb[0].mxu0
      %660 = vmatprep.mubr.bf16.mxu0 0
      %661 = vmatmul.mubr.bf16.gmra.mrb[0].mxu0 %v528
      %v662 = vpop.f32.mrb[0].mxu0
      %v663 = vadd.f32 %v337, %v662
      %v664 = vpop.f32.mrb[0].mxu0
      %v665 = vpop.f32.mrb[0].mxu0
      %v666 = vadd.f32 %v337, %v665
      %v667 = vpop.f32.mrb[0].mxu0
      %668 = vmatprep.mubr.bf16.mxu0 0
      %669 = vmatmul.mubr.bf16.gmra.mrb[0].mxu0 %v531
      %v670 = vpop.f32.mrb[0].mxu0
      %v671 = vadd.f32 %v337, %v670
      %v672 = vpop.f32.mrb[0].mxu0
      %v673 = vpop.f32.mrb[0].mxu0
      %v674 = vadd.f32 %v337, %v673
      %v675 = vpop.f32.mrb[0].mxu0
      %676 = vmatprep.mubr.bf16.mxu0 0
      %677 = vmatmul.mubr.bf16.gmra.mrb[0].mxu0 %v534
      %v678 = vpop.f32.mrb[0].mxu0
      %v679 = vadd.f32 %v337, %v678
      %v680 = vpop.f32.mrb[0].mxu0
      %v681 = vpop.f32.mrb[0].mxu0
      %v682 = vadd.f32 %v337, %v681
      %v683 = vpop.f32.mrb[0].mxu0
      %684 = vmatprep.mubr.bf16.mxu0 0
      %685 = vmatmul.mubr.bf16.gmra.mrb[0].mxu0 %v537
      %v686 = vpop.f32.mrb[0].mxu0
      %v687 = vadd.f32 %v337, %v686
      %v688 = vpop.f32.mrb[0].mxu0
      %v689 = vpop.f32.mrb[0].mxu0
      %v690 = vadd.f32 %v337, %v689
      %v691 = vpop.f32.mrb[0].mxu0
      %692 = vmatprep.mubr.bf16.mxu0 0
      %693 = vmatmul.mubr.bf16.gmra.mrb[0].mxu0 %v540
      %v694 = vpop.f32.mrb[0].mxu0
      %v695 = vadd.f32 %v337, %v694
      %v696 = vpop.f32.mrb[0].mxu0
      %v697 = vpop.f32.mrb[0].mxu0
      %v698 = vadd.f32 %v337, %v697
      %v699 = vpop.f32.mrb[0].mxu0
      %700 = vmatprep.mubr.bf16.mxu0 0
      %701 = vmatmul.mubr.bf16.gmra.mrb[0].mxu0 %v543
      %v702 = vpop.f32.mrb[0].mxu0
      %v703 = vadd.f32 %v337, %v702
      %v704 = vpop.f32.mrb[0].mxu0
      %v705 = vpop.f32.mrb[0].mxu0
      %v706 = vadd.f32 %v337, %v705
      %v707 = vpop.f32.mrb[0].mxu0
      %708 = vmatprep.mubr.bf16.mxu0 0
      %709 = vmatmul.mubr.bf16.gmra.mrb[0].mxu0 %v546
      %v710 = vpop.f32.mrb[0].mxu0
      %v711 = vadd.f32 %v337, %v710
      %v712 = vpop.f32.mrb[0].mxu0
      %v713 = vpop.f32.mrb[0].mxu0
      %v714 = vadd.f32 %v337, %v713
      %v715 = vpop.f32.mrb[0].mxu0
      %716 = vmatprep.mubr.bf16.mxu0 0
      %717 = vmatmul.mubr.bf16.gmra.mrb[0].mxu0 %v549
      %v718 = vpop.f32.mrb[0].mxu0
      %v719 = vadd.f32 %v337, %v718
      %v720 = vpop.f32.mrb[0].mxu0
      %v721 = vpop.f32.mrb[0].mxu0
      %v722 = vadd.f32 %v337, %v721
      %v723 = vpop.f32.mrb[0].mxu0
      %724 = vmatprep.mubr.bf16.mxu0 0
      %725 = vmatmul.mubr.bf16.gmra.mrb[0].mxu0 %v552
      %v726 = vpop.f32.mrb[0].mxu0
      %v727 = vadd.f32 %v337, %v726
      %v728 = vpop.f32.mrb[0].mxu0
      %v729 = vpop.f32.mrb[0].mxu0
      %v730 = vadd.f32 %v337, %v729
      %v731 = vpop.f32.mrb[0].mxu0
      %732 = vmatprep.mubr.bf16.mxu0 0
      %733 = vmatmul.mubr.bf16.gmra.mrb[0].mxu0 %v555
      %v734 = vpop.f32.mrb[0].mxu0
      %v735 = vadd.f32 %v337, %v734
      %v736 = vpop.f32.mrb[0].mxu0
      %v737 = vpop.f32.mrb[0].mxu0
      %v738 = vadd.f32 %v337, %v737
      %v739 = vpop.f32.mrb[0].mxu0
      %740 = vmatprep.mubr.bf16.mxu0 0
      %741 = vmatmul.mubr.bf16.gmra.mrb[0].mxu0 %v558
      %v742 = vpop.f32.mrb[0].mxu0
      %v743 = vadd.f32 %v337, %v742
      %v744 = vpop.f32.mrb[0].mxu0
      %v745 = vpop.f32.mrb[0].mxu0
      %v746 = vadd.f32 %v337, %v745
      %v747 = vpop.f32.mrb[0].mxu0
      %748 = vmatprep.mubr.bf16.mxu0 0
      %749 = vmatmul.mubr.bf16.gmra.mrb[0].mxu0 %v561
      %v750 = vpop.f32.mrb[0].mxu0
      %v751 = vadd.f32 %v337, %v750
      %v752 = vpop.f32.mrb[0].mxu0
      %v753 = vpop.f32.mrb[0].mxu0
      %v754 = vadd.f32 %v337, %v753
      %v755 = vpop.f32.mrb[0].mxu0
      %756 = vmatprep.mubr.bf16.mxu0 0
      %757 = vmatmul.mubr.bf16.gmra.mrb[0].mxu0 %v564
      %v758 = vpop.f32.mrb[0].mxu0
      %v759 = vadd.f32 %v337, %v758
      %v760 = vpop.f32.mrb[0].mxu0
      %v761 = vpop.f32.mrb[0].mxu0
      %v762 = vadd.f32 %v337, %v761
      %v763 = vpop.f32.mrb[0].mxu0
      %764 = vmatprep.mubr.bf16.mxu0 0
      %765 = vmatmul.mubr.bf16.gmra.mrb[0].mxu0 %v567
      %v766 = vpop.f32.mrb[0].mxu0
      %v767 = vadd.f32 %v337, %v766
      %v768 = vpop.f32.mrb[0].mxu0
      %v769 = vpop.f32.mrb[0].mxu0
      %v770 = vadd.f32 %v337, %v769
      %v771 = vpop.f32.mrb[0].mxu0
      %772 = vmatprep.mubr.bf16.mxu0 0
      %773 = vmatmul.mubr.bf16.gmra.mrb[0].mxu0 %v570
      %v774 = vpop.f32.mrb[0].mxu0
      %v775 = vadd.f32 %v337, %v774
      %v776 = vpop.f32.mrb[0].mxu0
      %v777 = vpop.f32.mrb[0].mxu0
      %v778 = vadd.f32 %v337, %v777
      %v779 = vpop.f32.mrb[0].mxu0
      %780 = vmatprep.mubr.bf16.mxu0 0
      %781 = vmatmul.mubr.bf16.gmra.mrb[0].mxu0 %v573
      %v782 = vpop.f32.mrb[0].mxu0
      %v783 = vadd.f32 %v337, %v782
      %v784 = vpop.f32.mrb[0].mxu0
      %v785 = vpop.f32.mrb[0].mxu0
      %v786 = vadd.f32 %v337, %v785
      %v787 = vpop.f32.mrb[0].mxu0
      %788 = vmatprep.mubr.bf16.mxu0 0
      %789 = vmatmul.mubr.bf16.gmra.mrb[0].mxu0 %v576
      %v790 = vpop.f32.mrb[0].mxu0
      %v791 = vadd.f32 %v337, %v790
      %v792 = vpop.f32.mrb[0].mxu0
      %v793 = vpop.f32.mrb[0].mxu0
      %v794 = vadd.f32 %v337, %v793
      %v795 = vpop.f32.mrb[0].mxu0
      %796 = vmatprep.mubr.bf16.mxu0 0
      %797 = vmatmul.mubr.bf16.gmra.mrb[0].mxu0 %v579
      %v798 = vpop.f32.mrb[0].mxu0
      %v799 = vadd.f32 %v337, %v798
      %v800 = vpop.f32.mrb[0].mxu0
      %v801 = vpop.f32.mrb[0].mxu0
      %v802 = vadd.f32 %v337, %v801
      %v803 = vpop.f32.mrb[0].mxu0
      %804 = vmatprep.mubr.bf16.mxu0 0
      %805 = vmatmul.mubr.bf16.gmra.mrb[0].mxu0 %v582
      %v806 = vpop.f32.mrb[0].mxu0
      %v807 = vadd.f32 %v337, %v806
      %v808 = vpop.f32.mrb[0].mxu0
      %v809 = vpop.f32.mrb[0].mxu0
      %v810 = vadd.f32 %v337, %v809
      %v811 = vpop.f32.mrb[0].mxu0
      %812 = vmatprep.mubr.bf16.mxu0 0
      %813 = vmatmul.mubr.bf16.gmra.mrb[0].mxu0 %v585
      %v814 = vpop.f32.mrb[0].mxu0
      %v815 = vadd.f32 %v337, %v814
      %v816 = vpop.f32.mrb[0].mxu0
      %v817 = vpop.f32.mrb[0].mxu0
      %v818 = vadd.f32 %v337, %v817
      %v819 = vpop.f32.mrb[0].mxu0
      %820 = vmatprep.mubr.bf16.mxu0 0
      %821 = vmatmul.mubr.bf16.gmra.mrb[0].mxu0 %v588
      %v822 = vpop.f32.mrb[0].mxu0
      %v823 = vadd.f32 %v337, %v822
      %v824 = vpop.f32.mrb[0].mxu0
      %v825 = vpop.f32.mrb[0].mxu0
      %v826 = vadd.f32 %v337, %v825
      %v827 = vpop.f32.mrb[0].mxu0
      %828 = vmatprep.mubr.bf16.mxu0 0
      %829 = vmatmul.mubr.bf16.gmra.mrb[0].mxu0 %v591
      %v830 = vpop.f32.mrb[0].mxu0
      %v831 = vadd.f32 %v337, %v830
      %v832 = vpop.f32.mrb[0].mxu0
      %v833 = vpop.f32.mrb[0].mxu0
      %v834 = vadd.f32 %v337, %v833
      %v835 = vpop.f32.mrb[0].mxu0
      %836 = vmatprep.mubr.bf16.mxu0 0
      %837 = vmatmul.mubr.bf16.gmra.mrb[0].mxu0 %v594
      %v838 = vpop.f32.mrb[0].mxu0
      %v839 = vadd.f32 %v337, %v838
      %v840 = vpop.f32.mrb[0].mxu0
      %v841 = vpop.f32.mrb[0].mxu0
      %v842 = vadd.f32 %v337, %v841
      %v843 = vpop.f32.mrb[0].mxu0
      %844 = vmatprep.mubr.bf16.mxu0 0
      %845 = vmatmul.mubr.bf16.gmra.mrb[0].mxu0 %v597
      %v846 = vpop.f32.mrb[0].mxu0
      %v847 = vadd.f32 %v337, %v846
      %v848 = vpop.f32.mrb[0].mxu0
      %v849 = vpop.f32.mrb[0].mxu0
      %v850 = vadd.f32 %v337, %v849
      %v851 = vpop.f32.mrb[0].mxu0
      %852 = vmatprep.mubr.bf16.mxu0 0
      %853 = vmatmul.mubr.bf16.gmra.mrb[0].mxu0 %v600
      %v854 = vpop.f32.mrb[0].mxu0
      %v855 = vadd.f32 %v337, %v854
      %v856 = vpop.f32.mrb[0].mxu0
      %v857 = vpop.f32.mrb[0].mxu0
      %v858 = vadd.f32 %v337, %v857
      %v859 = vpop.f32.mrb[0].mxu0
      %860 = vmatprep.mubr.bf16.mxu0 0
      %861 = vmatmul.mubr.bf16.gmra.mrb[0].mxu0 %v603
      %v862 = vpop.f32.mrb[0].mxu0
      %v863 = vadd.f32 %v337, %v862
      %v864 = vpop.f32.mrb[0].mxu0
      %v865 = vpop.f32.mrb[0].mxu0
      %v866 = vadd.f32 %v337, %v865
      %v867 = vpop.f32.mrb[0].mxu0
      %868 = vmatprep.mubr.bf16.mxu0 0
      %869 = vmatmul.mubr.bf16.gmra.mrb[0].mxu0 %v606
      %v870 = vpop.f32.mrb[0].mxu0
      %v871 = vadd.f32 %v337, %v870
      %v872 = vpop.f32.mrb[0].mxu0
      %v873 = vpop.f32.mrb[0].mxu0
      %v874 = vadd.f32 %v337, %v873
      %v875 = vpop.f32.mrb[0].mxu0
      %876 = vmatprep.mubr.bf16.mxu0 0
      %877 = vmatmul.mubr.bf16.gmra.mrb[0].mxu0 %v609
      %v878 = vpop.f32.mrb[0].mxu0
      %v879 = vadd.f32 %v337, %v878
      %v880 = vpop.f32.mrb[0].mxu0
      %v881 = vpop.f32.mrb[0].mxu0
      %v882 = vadd.f32 %v337, %v881
      %v883 = vpop.f32.mrb[0].mxu0
      %884 = vmatprep.mubr.bf16.mxu0 0
      %885 = vmatmul.mubr.bf16.gmra.mrb[0].mxu0 %v612
      %v886 = vpop.f32.mrb[0].mxu0
      %v887 = vadd.f32 %v337, %v886
      %v888 = vpop.f32.mrb[0].mxu0
      %v889 = vpop.f32.mrb[0].mxu0
      %v890 = vadd.f32 %v337, %v889
      %v891 = vpop.f32.mrb[0].mxu0
      %892 = vmatprep.mubr.bf16.mxu0 0
      %893 = vmatmul.mubr.bf16.gmra.mrb[0].mxu0 %v615
      %v894 = vpop.f32.mrb[0].mxu0
      %v895 = vadd.f32 %v337, %v894
      %v896 = vpop.f32.mrb[0].mxu0
      %v897 = vpop.f32.mrb[0].mxu0
      %v898 = vadd.f32 %v337, %v897
      %v899 = vpop.f32.mrb[0].mxu0
      %900 = vmatprep.mubr.bf16.mxu0 0
      %901 = vmatmul.mubr.bf16.gmra.mrb[0].mxu0 %v618
      %v902 = vpop.f32.mrb[0].mxu0
      %v903 = vadd.f32 %v337, %v902
      %v904 = vpop.f32.mrb[0].mxu0
      %v905 = vpop.f32.mrb[0].mxu0
      %v906 = vadd.f32 %v337, %v905
      %v907 = vpop.f32.mrb[0].mxu0
      %908 = vdwg.mxu0
      %v909 = vxor.u32 %v655, 2147483648
      %v910 = vxor.u32 %v658, 2147483648
      %v911 = vxor.u32 %v663, 2147483648
      %v912 = vxor.u32 %v666, 2147483648
      %v913 = vxor.u32 %v671, 2147483648
      %v914 = vxor.u32 %v674, 2147483648
      %v915 = vxor.u32 %v679, 2147483648
      %v916 = vxor.u32 %v682, 2147483648
      %v917 = vxor.u32 %v687, 2147483648
      %v918 = vxor.u32 %v690, 2147483648
      %v919 = vxor.u32 %v695, 2147483648
      %v920 = vxor.u32 %v698, 2147483648
      %v921 = vxor.u32 %v703, 2147483648
      %v922 = vxor.u32 %v706, 2147483648
      %v923 = vxor.u32 %v711, 2147483648
      %v924 = vxor.u32 %v714, 2147483648
      %v925 = vxor.u32 %v719, 2147483648
      %v926 = vxor.u32 %v722, 2147483648
      %v927 = vxor.u32 %v727, 2147483648
      %v928 = vxor.u32 %v730, 2147483648
      %v929 = vxor.u32 %v735, 2147483648
      %v930 = vxor.u32 %v738, 2147483648
      %v931 = vxor.u32 %v743, 2147483648
      %v932 = vxor.u32 %v746, 2147483648
      %v933 = vxor.u32 %v751, 2147483648
      %v934 = vxor.u32 %v754, 2147483648
      %v935 = vxor.u32 %v759, 2147483648
      %v936 = vxor.u32 %v762, 2147483648
      %v937 = vxor.u32 %v767, 2147483648
      %v938 = vxor.u32 %v770, 2147483648
      %v939 = vxor.u32 %v775, 2147483648
      %v940 = vxor.u32 %v778, 2147483648
      %v941 = vxor.u32 %v783, 2147483648
      %v942 = vxor.u32 %v786, 2147483648
      %v943 = vxor.u32 %v791, 2147483648
      %v944 = vxor.u32 %v794, 2147483648
      %v945 = vxor.u32 %v799, 2147483648
      %v946 = vxor.u32 %v802, 2147483648
      %v947 = vxor.u32 %v807, 2147483648
      %v948 = vxor.u32 %v810, 2147483648
      %v949 = vxor.u32 %v815, 2147483648
      %v950 = vxor.u32 %v818, 2147483648
      %v951 = vxor.u32 %v823, 2147483648
      %v952 = vxor.u32 %v826, 2147483648
      %v953 = vxor.u32 %v831, 2147483648
      %v954 = vxor.u32 %v834, 2147483648
      %v955 = vxor.u32 %v839, 2147483648
      %v956 = vxor.u32 %v842, 2147483648
      %v957 = vxor.u32 %v847, 2147483648
      %v958 = vxor.u32 %v850, 2147483648
      %v959 = vxor.u32 %v855, 2147483648
      %v960 = vxor.u32 %v858, 2147483648
      %v961 = vxor.u32 %v863, 2147483648
      %v962 = vxor.u32 %v866, 2147483648
      %v963 = vxor.u32 %v871, 2147483648
      %v964 = vxor.u32 %v874, 2147483648
      %v965 = vxor.u32 %v879, 2147483648
      %v966 = vxor.u32 %v882, 2147483648
      %v967 = vxor.u32 %v887, 2147483648
      %v968 = vxor.u32 %v890, 2147483648
      %v969 = vxor.u32 %v895, 2147483648
      %v970 = vxor.u32 %v898, 2147483648
      %v971 = vxor.u32 %v903, 2147483648
      %v972 = vxor.u32 %v906, 2147483648
      %v973 = vmul.f32 %v909, 1.442695
      %v974 = vpow.pop %v973
      %v975 = vmul.f32 %v910, 1.442695
      %v976 = vpow.pop %v975
      %v977 = vmul.f32 %v911, 1.442695
      %v978 = vpow.pop %v977
      %v979 = vmul.f32 %v912, 1.442695
      %v980 = vpow.pop %v979
      %v981 = vmul.f32 %v913, 1.442695
      %v982 = vpow.pop %v981
      %v983 = vmul.f32 %v914, 1.442695
      %v984 = vpow.pop %v983
      %v985 = vmul.f32 %v915, 1.442695
      %v986 = vpow.pop %v985
      %v987 = vmul.f32 %v916, 1.442695
      %v988 = vpow.pop %v987
      %v989 = vmul.f32 %v917, 1.442695
      %v990 = vpow.pop %v989
      %v991 = vmul.f32 %v918, 1.442695
      %v992 = vpow.pop %v991
      %v993 = vmul.f32 %v919, 1.442695
      %v994 = vpow.pop %v993
      %v995 = vmul.f32 %v920, 1.442695
      %v996 = vpow.pop %v995
      %v997 = vmul.f32 %v921, 1.442695
      %v998 = vpow.pop %v997
      %v999 = vmul.f32 %v922, 1.442695
      %v1000 = vpow.pop %v999
      %v1001 = vmul.f32 %v923, 1.442695
      %v1002 = vpow.pop %v1001
      %v1003 = vmul.f32 %v924, 1.442695
      %v1004 = vpow.pop %v1003
      %v1005 = vmul.f32 %v925, 1.442695
      %v1006 = vpow.pop %v1005
      %v1007 = vmul.f32 %v926, 1.442695
      %v1008 = vpow.pop %v1007
      %v1009 = vmul.f32 %v927, 1.442695
      %v1010 = vpow.pop %v1009
      %v1011 = vmul.f32 %v928, 1.442695
      %v1012 = vpow.pop %v1011
      %v1013 = vmul.f32 %v929, 1.442695
      %v1014 = vpow.pop %v1013
      %v1015 = vmul.f32 %v930, 1.442695
      %v1016 = vpow.pop %v1015
      %v1017 = vmul.f32 %v931, 1.442695
      %v1018 = vpow.pop %v1017
      %v1019 = vmul.f32 %v932, 1.442695
      %v1020 = vpow.pop %v1019
      %v1021 = vmul.f32 %v933, 1.442695
      %v1022 = vpow.pop %v1021
      %v1023 = vmul.f32 %v934, 1.442695
      %v1024 = vpow.pop %v1023
      %v1025 = vmul.f32 %v935, 1.442695
      %v1026 = vpow.pop %v1025
      %v1027 = vmul.f32 %v936, 1.442695
      %v1028 = vpow.pop %v1027
      %v1029 = vmul.f32 %v937, 1.442695
      %v1030 = vpow.pop %v1029
      %v1031 = vmul.f32 %v938, 1.442695
      %v1032 = vpow.pop %v1031
      %v1033 = vmul.f32 %v939, 1.442695
      %v1034 = vpow.pop %v1033
      %v1035 = vmul.f32 %v940, 1.442695
      %v1036 = vpow.pop %v1035
      %v1037 = vmul.f32 %v941, 1.442695
      %v1038 = vpow.pop %v1037
      %v1039 = vmul.f32 %v942, 1.442695
      %v1040 = vpow.pop %v1039
      %v1041 = vmul.f32 %v943, 1.442695
      %v1042 = vpow.pop %v1041
      %v1043 = vmul.f32 %v944, 1.442695
      %v1044 = vpow.pop %v1043
      %v1045 = vmul.f32 %v945, 1.442695
      %v1046 = vpow.pop %v1045
      %v1047 = vmul.f32 %v946, 1.442695
      %v1048 = vpow.pop %v1047
      %v1049 = vmul.f32 %v947, 1.442695
      %v1050 = vpow.pop %v1049
      %v1051 = vmul.f32 %v948, 1.442695
      %v1052 = vpow.pop %v1051
      %v1053 = vmul.f32 %v949, 1.442695
      %v1054 = vpow.pop %v1053
      %v1055 = vmul.f32 %v950, 1.442695
      %v1056 = vpow.pop %v1055
      %v1057 = vmul.f32 %v951, 1.442695
      %v1058 = vpow.pop %v1057
      %v1059 = vmul.f32 %v952, 1.442695
      %v1060 = vpow.pop %v1059
      %v1061 = vmul.f32 %v953, 1.442695
      %v1062 = vpow.pop %v1061
      %v1063 = vmul.f32 %v954, 1.442695
      %v1064 = vpow.pop %v1063
      %v1065 = vmul.f32 %v955, 1.442695
      %v1066 = vpow.pop %v1065
      %v1067 = vmul.f32 %v956, 1.442695
      %v1068 = vpow.pop %v1067
      %v1069 = vmul.f32 %v957, 1.442695
      %v1070 = vpow.pop %v1069
      %v1071 = vmul.f32 %v958, 1.442695
      %v1072 = vpow.pop %v1071
      %v1073 = vmul.f32 %v959, 1.442695
      %v1074 = vpow.pop %v1073
      %v1075 = vmul.f32 %v960, 1.442695
      %v1076 = vpow.pop %v1075
      %v1077 = vmul.f32 %v961, 1.442695
      %v1078 = vpow.pop %v1077
      %v1079 = vmul.f32 %v962, 1.442695
      %v1080 = vpow.pop %v1079
      %v1081 = vmul.f32 %v963, 1.442695
      %v1082 = vpow.pop %v1081
      %v1083 = vmul.f32 %v964, 1.442695
      %v1084 = vpow.pop %v1083
      %v1085 = vmul.f32 %v965, 1.442695
      %v1086 = vpow.pop %v1085
      %v1087 = vmul.f32 %v966, 1.442695
      %v1088 = vpow.pop %v1087
      %v1089 = vmul.f32 %v967, 1.442695
      %v1090 = vpow.pop %v1089
      %v1091 = vmul.f32 %v968, 1.442695
      %v1092 = vpow.pop %v1091
      %v1093 = vmul.f32 %v969, 1.442695
      %v1094 = vpow.pop %v1093
      %v1095 = vmul.f32 %v970, 1.442695
      %v1096 = vpow.pop %v1095
      %v1097 = vmul.f32 %v971, 1.442695
      %v1098 = vpow.pop %v1097
      %v1099 = vmul.f32 %v972, 1.442695
      %v1100 = vpow.pop %v1099
      %v1101 = vadd.f32 %v974, 1.0
      %v1102 = vadd.f32 %v976, 1.0
      %v1103 = vadd.f32 %v978, 1.0
      %v1104 = vadd.f32 %v980, 1.0
      %v1105 = vadd.f32 %v982, 1.0
      %v1106 = vadd.f32 %v984, 1.0
      %v1107 = vadd.f32 %v986, 1.0
      %v1108 = vadd.f32 %v988, 1.0
      %v1109 = vadd.f32 %v990, 1.0
      %v1110 = vadd.f32 %v992, 1.0
      %v1111 = vadd.f32 %v994, 1.0
      %v1112 = vadd.f32 %v996, 1.0
      %v1113 = vadd.f32 %v998, 1.0
      %v1114 = vadd.f32 %v1000, 1.0
      %v1115 = vadd.f32 %v1002, 1.0
      %v1116 = vadd.f32 %v1004, 1.0
      %v1117 = vadd.f32 %v1006, 1.0
      %v1118 = vadd.f32 %v1008, 1.0
      %v1119 = vadd.f32 %v1010, 1.0
      %v1120 = vadd.f32 %v1012, 1.0
      %v1121 = vadd.f32 %v1014, 1.0
      %v1122 = vadd.f32 %v1016, 1.0
      %v1123 = vadd.f32 %v1018, 1.0
      %v1124 = vadd.f32 %v1020, 1.0
      %v1125 = vadd.f32 %v1022, 1.0
      %v1126 = vadd.f32 %v1024, 1.0
      %v1127 = vadd.f32 %v1026, 1.0
      %v1128 = vadd.f32 %v1028, 1.0
      %v1129 = vadd.f32 %v1030, 1.0
      %v1130 = vadd.f32 %v1032, 1.0
      %v1131 = vadd.f32 %v1034, 1.0
      %v1132 = vadd.f32 %v1036, 1.0
      %v1133 = vadd.f32 %v1038, 1.0
      %v1134 = vadd.f32 %v1040, 1.0
      %v1135 = vadd.f32 %v1042, 1.0
      %v1136 = vadd.f32 %v1044, 1.0
      %v1137 = vadd.f32 %v1046, 1.0
      %v1138 = vadd.f32 %v1048, 1.0
      %v1139 = vadd.f32 %v1050, 1.0
      %v1140 = vadd.f32 %v1052, 1.0
      %v1141 = vadd.f32 %v1054, 1.0
      %v1142 = vadd.f32 %v1056, 1.0
      %v1143 = vadd.f32 %v1058, 1.0
      %v1144 = vadd.f32 %v1060, 1.0
      %v1145 = vadd.f32 %v1062, 1.0
      %v1146 = vadd.f32 %v1064, 1.0
      %v1147 = vadd.f32 %v1066, 1.0
      %v1148 = vadd.f32 %v1068, 1.0
      %v1149 = vadd.f32 %v1070, 1.0
      %v1150 = vadd.f32 %v1072, 1.0
      %v1151 = vadd.f32 %v1074, 1.0
      %v1152 = vadd.f32 %v1076, 1.0
      %v1153 = vadd.f32 %v1078, 1.0
      %v1154 = vadd.f32 %v1080, 1.0
      %v1155 = vadd.f32 %v1082, 1.0
      %v1156 = vadd.f32 %v1084, 1.0
      %v1157 = vadd.f32 %v1086, 1.0
      %v1158 = vadd.f32 %v1088, 1.0
      %v1159 = vadd.f32 %v1090, 1.0
      %v1160 = vadd.f32 %v1092, 1.0
      %v1161 = vadd.f32 %v1094, 1.0
      %v1162 = vadd.f32 %v1096, 1.0
      %v1163 = vadd.f32 %v1098, 1.0
      %v1164 = vadd.f32 %v1100, 1.0
      %v1165 = vrcp.pop %v1101
      %v1166 = vmul.f32 1.0, %v1165
      %v1167 = vrcp.pop %v1102
      %v1168 = vmul.f32 1.0, %v1167
      %v1169 = vrcp.pop %v1103
      %v1170 = vmul.f32 1.0, %v1169
      %v1171 = vrcp.pop %v1104
      %v1172 = vmul.f32 1.0, %v1171
      %v1173 = vrcp.pop %v1105
      %v1174 = vmul.f32 1.0, %v1173
      %v1175 = vrcp.pop %v1106
      %v1176 = vmul.f32 1.0, %v1175
      %v1177 = vrcp.pop %v1107
      %v1178 = vmul.f32 1.0, %v1177
      %v1179 = vrcp.pop %v1108
      %v1180 = vmul.f32 1.0, %v1179
      %v1181 = vrcp.pop %v1109
      %v1182 = vmul.f32 1.0, %v1181
      %v1183 = vrcp.pop %v1110
      %v1184 = vmul.f32 1.0, %v1183
      %v1185 = vrcp.pop %v1111
      %v1186 = vmul.f32 1.0, %v1185
      %v1187 = vrcp.pop %v1112
      %v1188 = vmul.f32 1.0, %v1187
      %v1189 = vrcp.pop %v1113
      %v1190 = vmul.f32 1.0, %v1189
      %v1191 = vrcp.pop %v1114
      %v1192 = vmul.f32 1.0, %v1191
      %v1193 = vrcp.pop %v1115
      %v1194 = vmul.f32 1.0, %v1193
      %v1195 = vrcp.pop %v1116
      %v1196 = vmul.f32 1.0, %v1195
      %v1197 = vrcp.pop %v1117
      %v1198 = vmul.f32 1.0, %v1197
      %v1199 = vrcp.pop %v1118
      %v1200 = vmul.f32 1.0, %v1199
      %v1201 = vrcp.pop %v1119
      %v1202 = vmul.f32 1.0, %v1201
      %v1203 = vrcp.pop %v1120
      %v1204 = vmul.f32 1.0, %v1203
      %v1205 = vrcp.pop %v1121
      %v1206 = vmul.f32 1.0, %v1205
      %v1207 = vrcp.pop %v1122
      %v1208 = vmul.f32 1.0, %v1207
      %v1209 = vrcp.pop %v1123
      %v1210 = vmul.f32 1.0, %v1209
      %v1211 = vrcp.pop %v1124
      %v1212 = vmul.f32 1.0, %v1211
      %v1213 = vrcp.pop %v1125
      %v1214 = vmul.f32 1.0, %v1213
      %v1215 = vrcp.pop %v1126
      %v1216 = vmul.f32 1.0, %v1215
      %v1217 = vrcp.pop %v1127
      %v1218 = vmul.f32 1.0, %v1217
      %v1219 = vrcp.pop %v1128
      %v1220 = vmul.f32 1.0, %v1219
      %v1221 = vrcp.pop %v1129
      %v1222 = vmul.f32 1.0, %v1221
      %v1223 = vrcp.pop %v1130
      %v1224 = vmul.f32 1.0, %v1223
      %v1225 = vrcp.pop %v1131
      %v1226 = vmul.f32 1.0, %v1225
      %v1227 = vrcp.pop %v1132
      %v1228 = vmul.f32 1.0, %v1227
      %v1229 = vrcp.pop %v1133
      %v1230 = vmul.f32 1.0, %v1229
      %v1231 = vrcp.pop %v1134
      %v1232 = vmul.f32 1.0, %v1231
      %v1233 = vrcp.pop %v1135
      %v1234 = vmul.f32 1.0, %v1233
      %v1235 = vrcp.pop %v1136
      %v1236 = vmul.f32 1.0, %v1235
      %v1237 = vrcp.pop %v1137
      %v1238 = vmul.f32 1.0, %v1237
      %v1239 = vrcp.pop %v1138
      %v1240 = vmul.f32 1.0, %v1239
      %v1241 = vrcp.pop %v1139
      %v1242 = vmul.f32 1.0, %v1241
      %v1243 = vrcp.pop %v1140
      %v1244 = vmul.f32 1.0, %v1243
      %v1245 = vrcp.pop %v1141
      %v1246 = vmul.f32 1.0, %v1245
      %v1247 = vrcp.pop %v1142
      %v1248 = vmul.f32 1.0, %v1247
      %v1249 = vrcp.pop %v1143
      %v1250 = vmul.f32 1.0, %v1249
      %v1251 = vrcp.pop %v1144
      %v1252 = vmul.f32 1.0, %v1251
      %v1253 = vrcp.pop %v1145
      %v1254 = vmul.f32 1.0, %v1253
      %v1255 = vrcp.pop %v1146
      %v1256 = vmul.f32 1.0, %v1255
      %v1257 = vrcp.pop %v1147
      %v1258 = vmul.f32 1.0, %v1257
      %v1259 = vrcp.pop %v1148
      %v1260 = vmul.f32 1.0, %v1259
      %v1261 = vrcp.pop %v1149
      %v1262 = vmul.f32 1.0, %v1261
      %v1263 = vrcp.pop %v1150
      %v1264 = vmul.f32 1.0, %v1263
      %v1265 = vrcp.pop %v1151
      %v1266 = vmul.f32 1.0, %v1265
      %v1267 = vrcp.pop %v1152
      %v1268 = vmul.f32 1.0, %v1267
      %v1269 = vrcp.pop %v1153
      %v1270 = vmul.f32 1.0, %v1269
      %v1271 = vrcp.pop %v1154
      %v1272 = vmul.f32 1.0, %v1271
      %v1273 = vrcp.pop %v1155
      %v1274 = vmul.f32 1.0, %v1273
      %v1275 = vrcp.pop %v1156
      %v1276 = vmul.f32 1.0, %v1275
      %v1277 = vrcp.pop %v1157
      %v1278 = vmul.f32 1.0, %v1277
      %v1279 = vrcp.pop %v1158
      %v1280 = vmul.f32 1.0, %v1279
      %v1281 = vrcp.pop %v1159
      %v1282 = vmul.f32 1.0, %v1281
      %v1283 = vrcp.pop %v1160
      %v1284 = vmul.f32 1.0, %v1283
      %v1285 = vrcp.pop %v1161
      %v1286 = vmul.f32 1.0, %v1285
      %v1287 = vrcp.pop %v1162
      %v1288 = vmul.f32 1.0, %v1287
      %v1289 = vrcp.pop %v1163
      %v1290 = vmul.f32 1.0, %v1289
      %v1291 = vrcp.pop %v1164
      %v1292 = vmul.f32 1.0, %v1291
      %vm1293 = vcmask 31744
      %1294 = vst.msk [vmem:[%s257] sm:$0xff] %vm1293, %v1166
      %1295 = vst.msk [vmem:[%s257 + $0x8] sm:$0xff] %vm1293, %v1168
      %1296 = vst.msk [vmem:[%s257 + $0x10] sm:$0xff] %vm1293, %v1170
      %1297 = vst.msk [vmem:[%s257 + $0x18] sm:$0xff] %vm1293, %v1172
      %1298 = vst.msk [vmem:[%s257 + $0x20] sm:$0xff] %vm1293, %v1174
      %1299 = vst.msk [vmem:[%s257 + $0x28] sm:$0xff] %vm1293, %v1176
      %1300 = vst.msk [vmem:[%s257 + $0x30] sm:$0xff] %vm1293, %v1178
      %1301 = vst.msk [vmem:[%s257 + $0x38] sm:$0xff] %vm1293, %v1180
      %1302 = vst.msk [vmem:[%s257 + $0x40] sm:$0xff] %vm1293, %v1182
      %1303 = vst.msk [vmem:[%s257 + $0x48] sm:$0xff] %vm1293, %v1184
      %1304 = vst.msk [vmem:[%s257 + $0x50] sm:$0xff] %vm1293, %v1186
      %1305 = vst.msk [vmem:[%s257 + $0x58] sm:$0xff] %vm1293, %v1188
      %1306 = vst.msk [vmem:[%s257 + $0x60] sm:$0xff] %vm1293, %v1190
      %1307 = vst.msk [vmem:[%s257 + $0x68] sm:$0xff] %vm1293, %v1192
      %1308 = vst.msk [vmem:[%s257 + $0x70] sm:$0xff] %vm1293, %v1194
      %1309 = vst.msk [vmem:[%s257 + $0x78] sm:$0xff] %vm1293, %v1196
      %1310 = vst.msk [vmem:[%s257 + $0x80] sm:$0xff] %vm1293, %v1198
      %1311 = vst.msk [vmem:[%s257 + $0x88] sm:$0xff] %vm1293, %v1200
      %1312 = vst.msk [vmem:[%s257 + $0x90] sm:$0xff] %vm1293, %v1202
      %1313 = vst.msk [vmem:[%s257 + $0x98] sm:$0xff] %vm1293, %v1204
      %1314 = vst.msk [vmem:[%s257 + $0xa0] sm:$0xff] %vm1293, %v1206
      %1315 = vst.msk [vmem:[%s257 + $0xa8] sm:$0xff] %vm1293, %v1208
      %1316 = vst.msk [vmem:[%s257 + $0xb0] sm:$0xff] %vm1293, %v1210
      %1317 = vst.msk [vmem:[%s257 + $0xb8] sm:$0xff] %vm1293, %v1212
      %1318 = vst.msk [vmem:[%s257 + $0xc0] sm:$0xff] %vm1293, %v1214
      %1319 = vst.msk [vmem:[%s257 + $0xc8] sm:$0xff] %vm1293, %v1216
      %1320 = vst.msk [vmem:[%s257 + $0xd0] sm:$0xff] %vm1293, %v1218
      %1321 = vst.msk [vmem:[%s257 + $0xd8] sm:$0xff] %vm1293, %v1220
      %1322 = vst.msk [vmem:[%s257 + $0xe0] sm:$0xff] %vm1293, %v1222
      %1323 = vst.msk [vmem:[%s257 + $0xe8] sm:$0xff] %vm1293, %v1224
      %1324 = vst.msk [vmem:[%s257 + $0xf0] sm:$0xff] %vm1293, %v1226
      %1325 = vst.msk [vmem:[%s257 + $0xf8] sm:$0xff] %vm1293, %v1228
      %1326 = vst.msk [vmem:[%s257 + $0x100] sm:$0xff] %vm1293, %v1230
      %1327 = vst.msk [vmem:[%s257 + $0x108] sm:$0xff] %vm1293, %v1232
      %1328 = vst.msk [vmem:[%s257 + $0x110] sm:$0xff] %vm1293, %v1234
      %1329 = vst.msk [vmem:[%s257 + $0x118] sm:$0xff] %vm1293, %v1236
      %1330 = vst.msk [vmem:[%s257 + $0x120] sm:$0xff] %vm1293, %v1238
      %1331 = vst.msk [vmem:[%s257 + $0x128] sm:$0xff] %vm1293, %v1240
      %1332 = vst.msk [vmem:[%s257 + $0x130] sm:$0xff] %vm1293, %v1242
      %1333 = vst.msk [vmem:[%s257 + $0x138] sm:$0xff] %vm1293, %v1244
      %1334 = vst.msk [vmem:[%s257 + $0x140] sm:$0xff] %vm1293, %v1246
      %1335 = vst.msk [vmem:[%s257 + $0x148] sm:$0xff] %vm1293, %v1248
      %1336 = vst.msk [vmem:[%s257 + $0x150] sm:$0xff] %vm1293, %v1250
      %1337 = vst.msk [vmem:[%s257 + $0x158] sm:$0xff] %vm1293, %v1252
      %1338 = vst.msk [vmem:[%s257 + $0x160] sm:$0xff] %vm1293, %v1254
      %1339 = vst.msk [vmem:[%s257 + $0x168] sm:$0xff] %vm1293, %v1256
      %1340 = vst.msk [vmem:[%s257 + $0x170] sm:$0xff] %vm1293, %v1258
      %1341 = vst.msk [vmem:[%s257 + $0x178] sm:$0xff] %vm1293, %v1260
      %1342 = vst.msk [vmem:[%s257 + $0x180] sm:$0xff] %vm1293, %v1262
      %1343 = vst.msk [vmem:[%s257 + $0x188] sm:$0xff] %vm1293, %v1264
      %1344 = vst.msk [vmem:[%s257 + $0x190] sm:$0xff] %vm1293, %v1266
      %1345 = vst.msk [vmem:[%s257 + $0x198] sm:$0xff] %vm1293, %v1268
      %1346 = vst.msk [vmem:[%s257 + $0x1a0] sm:$0xff] %vm1293, %v1270
      %1347 = vst.msk [vmem:[%s257 + $0x1a8] sm:$0xff] %vm1293, %v1272
      %1348 = vst.msk [vmem:[%s257 + $0x1b0] sm:$0xff] %vm1293, %v1274
      %1349 = vst.msk [vmem:[%s257 + $0x1b8] sm:$0xff] %vm1293, %v1276
      %1350 = vst.msk [vmem:[%s257 + $0x1c0] sm:$0xff] %vm1293, %v1278
      %1351 = vst.msk [vmem:[%s257 + $0x1c8] sm:$0xff] %vm1293, %v1280
      %1352 = vst.msk [vmem:[%s257 + $0x1d0] sm:$0xff] %vm1293, %v1282
      %1353 = vst.msk [vmem:[%s257 + $0x1d8] sm:$0xff] %vm1293, %v1284
      %1354 = vst.msk [vmem:[%s257 + $0x1e0] sm:$0xff] %vm1293, %v1286
      %1355 = vst.msk [vmem:[%s257 + $0x1e8] sm:$0xff] %vm1293, %v1288
      %1356 = vst.msk [vmem:[%s257 + $0x1f0] sm:$0xff] %vm1293, %v1290
      %1357 = vst.msk [vmem:[%s257 + $0x1f8] sm:$0xff] %vm1293, %v1292
      %s1358 = smul.u32 64, %s19
      %p1359 = scmp.lt.s32.totalorder %s1358, 3135
      %s1360 = scalar_select %p1359, %s1358, 3135
      %p1361 = scmp.lt.s32.totalorder %s20, 0
      %s1362 = scalar_select %p1361, %s20, 0
      %s1363 = sadd.s32 %s1362, %s1360
      %s1364 = smul.addr %s1363, 8
      %s1365 = scalar_lea.vmem %s3, %s1364
      // Predicated region
      $region33: #{autoencoder_forward.15} parent=31 // pred_check
        %p1366 = pneg %p135
      $region34: #{autoencoder_forward.15} parent=31 // pred_check_branch
        %1368 = sbr.rel (%p1366) target = $region36
      $region35: #{autoencoder_forward.15} parent=31 // pred_region
        %s1369 = smul.u32 64, %s19
      $region36: #{autoencoder_forward.15} parent=31 // pred_fallthru
        _
    $region32: #{autoencoder_forward.15} parent=5 // pred_fallthru
      _
    %p1370 = scmp.le.s32.totalorder 2, %s9
    // Predicated region
    $region37: #{autoencoder_forward.15} parent=5 // pred_check
      %p1371 = pneg %p1370
    $region38: #{autoencoder_forward.15} parent=5 // pred_check_branch
      %1373 = sbr.rel (%p1371) target = $region40
    $region39: #{autoencoder_forward.15} parent=5 // pred_region
      %s1374 = ssub.s32 %s9, 2
      // Predicated region
      $region41: #{autoencoder_forward.15} parent=39 // pred_check
        %p1375 = pneg %p141
      $region42: #{autoencoder_forward.15} parent=39 // pred_check_branch
        %1377 = sbr.rel (%p1375) target = $region44
      $region43: #{autoencoder_forward.15} parent=39 // pred_region
        %s1378 = smul.u32 64, %s22
        %p1379 = scmp.lt.s32.totalorder %s1378, 3135
        %s1380 = scalar_select %p1379, %s1378, 3135
        %p1381 = scmp.lt.s32.totalorder %s23, 0
        %s1382 = scalar_select %p1381, %s23, 0
        %s1383 = sadd.s32 %s1382, %s1380
        %s1384 = smul.addr %s1383, 8
        %s1385 = scalar_lea.vmem %s3, %s1384
      $region44: #{autoencoder_forward.15} parent=39 // pred_fallthru
        _
    $region40: #{autoencoder_forward.15} parent=5 // pred_fallthru
      _
  $region6: #{autoencoder_forward.15} parent=0 // loop_footer
    %s13 = sadd.s32 1, %s9
  $region7: #{autoencoder_forward.15} parent=0 // loop_footer_branch
    %8 = sbr.rel target = $region3
  $region8: #{autoencoder_forward.15} parent=0 // loop_exit
    _

</llo_original>
